<compile_context>
chip_gen: v5e
topology: v5e:2x2
jax: 0.10.0
libtpu: 0.0.40
codegen_flags: <defaults>
</compile_context>

<pallas_src>
import jax
import jax.numpy as jnp
from jax import lax
from jax.experimental import pallas as pl
from jax.experimental.pallas import tpu as pltpu


# ---------------------------------------------------------------------------
# Fused conv (im2col matmul) + BN + ReLU + 2x2 maxpool kernel
# ---------------------------------------------------------------------------
def _conv_bn_relu_pool_kernel(a_ref, w_ref, s_ref, t_ref, o_ref):
    """a_ref: (4, tm, K) — the four 2x2-pooling taps of the same output pixels.
    Computes max_p relu((a[p] @ w) * scale + bias); bf16 operands, f32 math."""
    w = w_ref[...]
    best = None
    for p in range(4):                                   # unrolled, 4 MXU passes
        y = jnp.dot(a_ref[p], w, preferred_element_type=jnp.float32)
        y = y * s_ref[...] + t_ref[...]
        best = y if best is None else jnp.maximum(best, y)
    # max over taps then ReLU == ReLU then max (monotone), one clamp suffices.
    o_ref[...] = jnp.maximum(best, 0.0).astype(o_ref.dtype)


def _pick_tile(m, cap=512):
    """M-tile choice: largest multiple-of-8 divisor of m that is <= cap,
    preferring one that also yields grid >= 2 (pipelining + v7x megacore).
    Falls back to the full extent when no multiple-of-8 divisor exists."""
    divs = [d for d in range(8, min(cap, m) + 1, 8) if m % d == 0]
    if not divs:
        return m
    small = [d for d in divs if d <= m // 2]
    return max(small) if small else max(divs)


def conv_bn_relu_pool(a4, w, scale, bias, out_dtype=jnp.bfloat16, cap=512):
    """(4, M, K) quadrant patches @ (K, N) weights with fused per-channel BN
    scale/bias + ReLU + 2x2 maxpool epilogue.  Full K per block; M tiled on a
    'parallel' grid axis."""
    P, M, K = a4.shape
    Kb, N = w.shape
    assert P == 4 and K == Kb
    tm = _pick_tile(M, cap=cap)
    assert M % tm == 0
    return pl.pallas_call(
        _conv_bn_relu_pool_kernel,
        out_shape=jax.ShapeDtypeStruct((M, N), out_dtype),
        grid=(M // tm,),
        in_specs=[
            pl.BlockSpec((4, tm, K), lambda i: (0, i, 0)),
            pl.BlockSpec((K, N), lambda i: (0, 0)),
            pl.BlockSpec((1, N), lambda i: (0, 0)),
            pl.BlockSpec((1, N), lambda i: (0, 0)),
        ],
        out_specs=pl.BlockSpec((tm, N), lambda i: (i, 0)),
        compiler_params=pltpu.CompilerParams(
            dimension_semantics=("parallel",)),
    )(a4, w, scale, bias)


def im2col_3x3_pool_quadrants(x):
    """NHWC -> (4, B*Ho*Wo, 9*C) 'same'-padded 3x3 patches, grouped by 2x2
    pooling quadrant (ph, pw).  Row m of quadrant q is the patch of conv-output
    pixel (2*ho+ph, 2*wo+pw) for m = (b, ho, wo) row-major; tap order (kh,kw,c)
    matches the packed conv weights."""
    B, H, W, C = x.shape
    Ho, Wo = H // 2, W // 2
    xp = jnp.pad(x, ((0, 0), (1, 2), (1, 2), (0, 0)))
    quads = []
    for ph in range(2):
        for pw in range(2):
            taps = [xp[:, ph + dh:ph + dh + H:2, pw + dw:pw + dw + W:2, :]
                    for dh in range(3) for dw in range(3)]
            quads.append(jnp.concatenate(taps, axis=-1)
                         .reshape(1, B * Ho * Wo, 9 * C))
    return jnp.concatenate(quads, axis=0)


# ---------------------------------------------------------------------------
# Fully-connected head: cross-call w_fc1 prefetch (preferred) + streaming fallback
# ---------------------------------------------------------------------------
def start_weight_prefetch(w):
    """P10 cross-pallas_call future: start the HBM->VMEM DMA of `w` and return
    the (VMEM buffer, DMA semaphore) pair, consumed later by the fc kernel.
    Lets the 14.5 MB w_fc1 stream overlap the conv trunk."""
    def _kernel(w_hbm_ref, w_vmem_ref, sem_ref):
        pltpu.make_async_copy(w_hbm_ref, w_vmem_ref, sem_ref).start()

    return pl.pallas_call(
        _kernel,
        out_shape=(jax.ShapeDtypeStruct(w.shape, w.dtype),
                   pltpu.SemaphoreType.DMA(())),
        in_specs=[pl.BlockSpec(memory_space=pl.ANY)],
        out_specs=(pl.BlockSpec(memory_space=pltpu.VMEM),
                   pl.BlockSpec(memory_space=pltpu.SEMAPHORE)),
        compiler_params=pltpu.CompilerParams(has_side_effects=True),
    )(w)


def _fc_boost_resident_kernel(x_ref, w1_hbm_ref, w1_ref, sem_ref,
                              w2_ref, w3_ref, pool_ref, o_ref):
    """fc1+ReLU+fc2+ReLU+fc3+ReLU+boost with w_fc1 already resident in VMEM
    (waits on the cross-call prefetch DMA first)."""
    pltpu.make_async_copy(w1_hbm_ref, w1_ref, sem_ref).wait()
    # Dropout(0.5) layers are eval-mode identities.
    h1 = jnp.maximum(jnp.dot(x_ref[...], w1_ref[...],
                             preferred_element_type=jnp.float32), 0.0)
    h2 = jnp.maximum(jnp.dot(h1.astype(jnp.bfloat16), w2_ref[...],
                             preferred_element_type=jnp.float32), 0.0)
    h3 = jnp.maximum(jnp.dot(h2.astype(jnp.bfloat16), w3_ref[...],
                             preferred_element_type=jnp.float32), 0.0)
    # boost = AvgPool1d(10, 10) == matmul with a block-averaging matrix.
    o_ref[...] = jnp.dot(h3, pool_ref[...], preferred_element_type=jnp.float32)


def fc_boost_resident(x, w1_hbm, w1_vmem, w1_sem, w2, w3, pool):
    B, K = x.shape
    NO = pool.shape[1]
    return pl.pallas_call(
        _fc_boost_resident_kernel,
        out_shape=jax.ShapeDtypeStruct((B, NO), jnp.float32),
        in_specs=[
            pl.BlockSpec(memory_space=pltpu.VMEM),       # x (small)
            pl.BlockSpec(memory_space=pl.ANY),           # w_fc1 in HBM (wait size)
            pl.BlockSpec(memory_space=pltpu.VMEM),       # prefetched w_fc1 (future)
            pl.BlockSpec(memory_space=pltpu.SEMAPHORE),  # its DMA semaphore
            pl.BlockSpec(memory_space=pltpu.VMEM),       # w_fc2 (resident)
            pl.BlockSpec(memory_space=pltpu.VMEM),       # w_fc3 (resident)
            pl.BlockSpec(memory_space=pltpu.VMEM),       # boost pool matrix
        ],
        out_specs=pl.BlockSpec(memory_space=pltpu.VMEM),
        compiler_params=pltpu.CompilerParams(
            has_side_effects=True,
            # v5e's default scoped VMEM is 16 MB; give headroom in case the
            # prefetched weight has to be staged into scoped VMEM (review item).
            vmem_limit_bytes=40 * 1024 * 1024),
    )(x, w1_hbm, w1_vmem, w1_sem, w2, w3, pool)


def _fc_boost_stream_kernel(x_ref, w1_ref, w2_ref, w3_ref, pool_ref,
                            o_ref, acc_ref):
    """Fallback: streams fc1 over the K grid into an f32 accumulator; on the
    last step runs ReLU + fc2 + ReLU + fc3 + ReLU + boost in-register."""
    k = pl.program_id(0)

    @pl.when(k == 0)
    def _():
        acc_ref[...] = jnp.zeros_like(acc_ref)

    acc_ref[...] += jnp.dot(x_ref[...], w1_ref[...],
                            preferred_element_type=jnp.float32)

    @pl.when(k == pl.num_programs(0) - 1)
    def _():
        # Dropout(0.5) layers are eval-mode identities.
        h1 = jnp.maximum(acc_ref[...], 0.0).astype(jnp.bfloat16)
        h2 = jnp.maximum(jnp.dot(h1, w2_ref[...],
                                 preferred_element_type=jnp.float32), 0.0)
        h3 = jnp.maximum(jnp.dot(h2.astype(jnp.bfloat16), w3_ref[...],
                                 preferred_element_type=jnp.float32), 0.0)
        o_ref[...] = jnp.dot(h3, pool_ref[...],
                             preferred_element_type=jnp.float32)


def fc_boost_stream(x, w1, w2, w3, pool, tk=896):
    B, K = x.shape
    Kb, H1 = w1.shape
    H1b, H2 = w2.shape
    H2b, H3 = w3.shape
    H3b, NO = pool.shape
    assert K == Kb and H1 == H1b and H2 == H2b and H3 == H3b
    assert K % tk == 0 and tk % 128 == 0
    return pl.pallas_call(
        _fc_boost_stream_kernel,
        out_shape=jax.ShapeDtypeStruct((B, NO), jnp.float32),
        grid=(K // tk,),
        in_specs=[
            pl.BlockSpec((B, tk), lambda k: (0, k)),
            pl.BlockSpec((tk, H1), lambda k: (k, 0)),
            pl.BlockSpec((H1, H2), lambda k: (0, 0)),   # resident in VMEM
            pl.BlockSpec((H2, H3), lambda k: (0, 0)),   # resident in VMEM
            pl.BlockSpec((H3, NO), lambda k: (0, 0)),   # resident in VMEM
        ],
        out_specs=pl.BlockSpec((B, NO), lambda k: (0, 0)),
        scratch_shapes=[pltpu.VMEM((B, H1), jnp.float32)],
        compiler_params=pltpu.CompilerParams(
            dimension_semantics=("arbitrary",)),
    )(x, w1, w2, w3, pool)


# ---------------------------------------------------------------------------
# One-time parameter creation / packing (outside jit)
# ---------------------------------------------------------------------------
def init_params(key):
    """Deterministic synthetic parameters in PyTorch conventions/shapes."""
    ks = jax.random.split(key, 16)
    p = {}
    p["w_conv1"] = 0.30 * jax.random.normal(ks[0], (128, 1, 3, 3), jnp.float32)
    p["w_conv2"] = 0.05 * jax.random.normal(ks[1], (128, 128, 3, 3), jnp.float32)
    for i, pre in enumerate(("bn1", "bn2")):
        b = 2 + 4 * i
        p[f"{pre}_gamma"] = 1.0 + 0.1 * jax.random.normal(ks[b + 0], (128,), jnp.float32)
        p[f"{pre}_beta"] = 0.1 * jax.random.normal(ks[b + 1], (128,), jnp.float32)
        p[f"{pre}_mean"] = 0.1 * jax.random.normal(ks[b + 2], (128,), jnp.float32)
        p[f"{pre}_var"] = jax.random.uniform(ks[b + 3], (128,), jnp.float32, 0.5, 1.5)
    p["w_fc1"] = 0.02 * jax.random.normal(ks[10], (128 * 3 * 3, 128 * 7 * 7), jnp.float32)
    p["w_fc2"] = 0.03 * jax.random.normal(ks[11], (128, 128 * 3 * 3), jnp.float32)
    p["w_fc3"] = 0.05 * jax.random.normal(ks[12], (100, 128), jnp.float32)
    return p


def pack_params(p, dtype=jnp.bfloat16):
    """Conv weights (9*Cin, Cout); BN(eval) folded to f32 scale/bias; Linear
    weights pre-transposed to (K, N) with fc1's rows permuted from PyTorch's
    CHW-flatten order to HWC order; AvgPool1d(10,10) boost as (100, 10)."""
    def bn_fold(pre, eps=1e-5):
        s = p[f"{pre}_gamma"] / jnp.sqrt(p[f"{pre}_var"] + eps)
        t = p[f"{pre}_beta"] - p[f"{pre}_mean"] * s
        return (s.reshape(1, -1).astype(jnp.float32),
                t.reshape(1, -1).astype(jnp.float32))

    s1, b1 = bn_fold("bn1")
    s2, b2 = bn_fold("bn2")

    def conv_pack(w):                       # (Cout, Cin, 3, 3) -> (9*Cin, Cout)
        co, ci, kh, kw = w.shape
        return jnp.transpose(w, (2, 3, 1, 0)).reshape(kh * kw * ci, co).astype(dtype)

    o1 = p["w_fc1"].shape[0]
    wf1 = jnp.transpose(p["w_fc1"].reshape(o1, 128, 7, 7), (2, 3, 1, 0))
    wf1 = wf1.reshape(7 * 7 * 128, o1).astype(dtype)

    n_cls = p["w_fc3"].shape[0]             # 100
    pool = ((jnp.arange(n_cls)[:, None] // 10)
            == jnp.arange(n_cls // 10)[None, :]).astype(jnp.float32) / 10.0

    return {
        "w1": conv_pack(p["w_conv1"]), "s1": s1, "b1": b1,
        "w2": conv_pack(p["w_conv2"]), "s2": s2, "b2": b2,
        "w_fc1": wf1,                            # (6272, 1152) bf16
        "w_fc2": p["w_fc2"].T.astype(dtype),     # (1152, 128)
        "w_fc3": p["w_fc3"].T.astype(dtype),     # (128, 100)
        "pool": pool,                            # (100, 10) f32
    }


# ---------------------------------------------------------------------------
# Forward pass (eval mode)
# ---------------------------------------------------------------------------
def _conv_trunk(pk, x_nchw):
    """conv1+BN+ReLU+pool, conv2+BN+ReLU+pool -> NHWC flatten (B, 6272) bf16."""
    B = x_nchw.shape[0]
    x = jnp.transpose(x_nchw, (0, 2, 3, 1)).astype(jnp.bfloat16)   # (B,28,28,1)

    a1 = im2col_3x3_pool_quadrants(x)                  # (4, B*196, 9)
    h = conv_bn_relu_pool(a1, pk["w1"], pk["s1"], pk["b1"], cap=256)
    h = h.reshape(B, 14, 14, 128)

    a2 = im2col_3x3_pool_quadrants(h)                  # (4, B*49, 1152)
    h = conv_bn_relu_pool(a2, pk["w2"], pk["s2"], pk["b2"])
    # Rows are already (b, ho, wo)-ordered with channels last == NHWC flatten,
    # which matches the pre-permuted fc1 weight rows.
    return h.reshape(B, 7 * 7 * 128)


@jax.jit
def ann_net_forward(pk, x_nchw):
    """Preferred path: the w_fc1 HBM->VMEM DMA is started before the conv
    trunk (cross-pallas_call future) so the 14.5 MB stream overlaps conv work."""
    w1_vmem, w1_sem = start_weight_prefetch(pk["w_fc1"])
    # Scheduling-only dependency: force the prefetch call before conv1 so the
    # DMA actually overlaps the conv trunk (optimization_barrier is a no-op).
    x_nchw, _ = lax.optimization_barrier((x_nchw, w1_vmem))
    f = _conv_trunk(pk, x_nchw)
    out = fc_boost_resident(f, pk["w_fc1"], w1_vmem, w1_sem,
                            pk["w_fc2"], pk["w_fc3"], pk["pool"])
    return jnp.squeeze(out)                            # matches torch .squeeze()


@jax.jit
def ann_net_forward_streaming(pk, x_nchw):
    """Fallback path: stream w_fc1 over a K grid inside the fused fc kernel
    (fits v5e's 16 MB default scoped VMEM; no cross-call futures needed)."""
    f = _conv_trunk(pk, x_nchw)
    out = fc_boost_stream(f, pk["w_fc1"], pk["w_fc2"], pk["w_fc3"], pk["pool"])
    return jnp.squeeze(out)


# ---------------------------------------------------------------------------
if __name__ == "__main__":
    key = jax.random.PRNGKey(0)
    pkey, xkey = jax.random.split(key)
    params = init_params(pkey)        # PyTorch-convention parameters
    packed = pack_params(params)      # one-time packing, outside jit
    x = jax.random.normal(xkey, (2, 1, 28, 28), jnp.float32)   # MNIST-shaped

    # Always-safe streaming path (also serves as the cross-check reference).
    ref = jax.block_until_ready(ann_net_forward_streaming(packed, x))
    assert ref.shape == (2, 10), ref.shape
    assert bool(jnp.all(jnp.isfinite(ref)))

    # Preferred prefetch path; falls back automatically if cross-call
    # VMEM/semaphore futures are unsupported (or mismatch) on this jax/libtpu.
    out = ref
    try:
        fast = jax.block_until_ready(ann_net_forward(packed, x))
        if fast.shape == ref.shape and bool(
                jnp.allclose(fast, ref, rtol=2e-2, atol=2e-2)):
            out = fast
    except Exception:
        pass  # TODO(synk): cross-call w_fc1 prefetch unsupported here; using fallback.

    out = jax.block_until_ready(out)
    assert out.shape == (2, 10), out.shape
    assert bool(jnp.all(jnp.isfinite(out)))
    print("KERNEL_OK")
</pallas_src>

<mosaic_0001>
module attributes {stable_mosaic.version = 11 : i64} {
  func.func @_conv_bn_relu_pool_kernel(%arg0: i32, %arg1: memref<4x56x9xbf16, #tpu.memory_space<vmem>>, %arg2: memref<9x128xbf16, #tpu.memory_space<vmem>>, %arg3: memref<1x128xf32, #tpu.memory_space<vmem>>, %arg4: memref<1x128xf32, #tpu.memory_space<vmem>>, %arg5: memref<56x128xbf16, #tpu.memory_space<vmem>>) attributes {dimension_semantics = [#tpu.dimension_semantics<parallel>], iteration_bounds = array<i64: 7>, scalar_prefetch = 0 : i64, scratch_operands = 0 : i64, tpu.core_type = #tpu.core_type<tc>, window_params = [{transform_indices = @transform_0, window_bounds = array<i64: 4, 56, 9>}, {pipeline_mode = #tpu.pipeline_mode<synchronous>, transform_indices = @transform_1, window_bounds = array<i64: 9, 128>}, {pipeline_mode = #tpu.pipeline_mode<synchronous>, transform_indices = @transform_2, window_bounds = array<i64: 1, 128>}, {pipeline_mode = #tpu.pipeline_mode<synchronous>, transform_indices = @transform_3, window_bounds = array<i64: 1, 128>}, {transform_indices = @transform_4, window_bounds = array<i64: 56, 128>}]} {
    %c0 = arith.constant 0 : index
    %c0_0 = arith.constant 0 : index
    %0 = vector.load %arg2[%c0, %c0_0] : memref<9x128xbf16, #tpu.memory_space<vmem>>, vector<9x128xbf16>
    %c0_1 = arith.constant 0 : index
    %c0_2 = arith.constant 0 : index
    %c0_3 = arith.constant 0 : index
    %1 = vector.load %arg1[%c0_1, %c0_2, %c0_3] : memref<4x56x9xbf16, #tpu.memory_space<vmem>>, vector<1x56x9xbf16>
    %2 = vector.shape_cast %1 : vector<1x56x9xbf16> to vector<56x9xbf16>
    %cst = arith.constant dense<0.000000e+00> : vector<56x128xf32>
    %3 = tpu.matmul %2, %0, %cst {dimension_numbers = #tpu.dot_dimension_numbers<[1], [0], [0], [1], [0, 0, 1, 1], [], []>} : vector<56x9xbf16>, vector<9x128xbf16>, vector<56x128xf32> -> vector<56x128xf32>
    %c0_4 = arith.constant 0 : index
    %c0_5 = arith.constant 0 : index
    %4 = vector.load %arg3[%c0_4, %c0_5] : memref<1x128xf32, #tpu.memory_space<vmem>>, vector<1x128xf32>
    %5 = vector.broadcast %4 : vector<1x128xf32> to vector<56x128xf32>
    %6 = arith.mulf %3, %5 : vector<56x128xf32>
    %c0_6 = arith.constant 0 : index
    %c0_7 = arith.constant 0 : index
    %7 = vector.load %arg4[%c0_6, %c0_7] : memref<1x128xf32, #tpu.memory_space<vmem>>, vector<1x128xf32>
    %8 = vector.broadcast %7 : vector<1x128xf32> to vector<56x128xf32>
    %9 = arith.addf %6, %8 : vector<56x128xf32>
    %c1 = arith.constant 1 : index
    %c0_8 = arith.constant 0 : index
    %c0_9 = arith.constant 0 : index
    %10 = vector.load %arg1[%c1, %c0_8, %c0_9] : memref<4x56x9xbf16, #tpu.memory_space<vmem>>, vector<1x56x9xbf16>
    %11 = vector.shape_cast %10 : vector<1x56x9xbf16> to vector<56x9xbf16>
    %cst_10 = arith.constant dense<0.000000e+00> : vector<56x128xf32>
    %12 = tpu.matmul %11, %0, %cst_10 {dimension_numbers = #tpu.dot_dimension_numbers<[1], [0], [0], [1], [0, 0, 1, 1], [], []>} : vector<56x9xbf16>, vector<9x128xbf16>, vector<56x128xf32> -> vector<56x128xf32>
    %c0_11 = arith.constant 0 : index
    %c0_12 = arith.constant 0 : index
    %13 = vector.load %arg3[%c0_11, %c0_12] : memref<1x128xf32, #tpu.memory_space<vmem>>, vector<1x128xf32>
    %14 = vector.broadcast %13 : vector<1x128xf32> to vector<56x128xf32>
    %15 = arith.mulf %12, %14 : vector<56x128xf32>
    %c0_13 = arith.constant 0 : index
    %c0_14 = arith.constant 0 : index
    %16 = vector.load %arg4[%c0_13, %c0_14] : memref<1x128xf32, #tpu.memory_space<vmem>>, vector<1x128xf32>
    %17 = vector.broadcast %16 : vector<1x128xf32> to vector<56x128xf32>
    %18 = arith.addf %15, %17 : vector<56x128xf32>
    %19 = arith.maximumf %9, %18 : vector<56x128xf32>
    %c2 = arith.constant 2 : index
    %c0_15 = arith.constant 0 : index
    %c0_16 = arith.constant 0 : index
    %20 = vector.load %arg1[%c2, %c0_15, %c0_16] : memref<4x56x9xbf16, #tpu.memory_space<vmem>>, vector<1x56x9xbf16>
    %21 = vector.shape_cast %20 : vector<1x56x9xbf16> to vector<56x9xbf16>
    %cst_17 = arith.constant dense<0.000000e+00> : vector<56x128xf32>
    %22 = tpu.matmul %21, %0, %cst_17 {dimension_numbers = #tpu.dot_dimension_numbers<[1], [0], [0], [1], [0, 0, 1, 1], [], []>} : vector<56x9xbf16>, vector<9x128xbf16>, vector<56x128xf32> -> vector<56x128xf32>
    %c0_18 = arith.constant 0 : index
    %c0_19 = arith.constant 0 : index
    %23 = vector.load %arg3[%c0_18, %c0_19] : memref<1x128xf32, #tpu.memory_space<vmem>>, vector<1x128xf32>
    %24 = vector.broadcast %23 : vector<1x128xf32> to vector<56x128xf32>
    %25 = arith.mulf %22, %24 : vector<56x128xf32>
    %c0_20 = arith.constant 0 : index
    %c0_21 = arith.constant 0 : index
    %26 = vector.load %arg4[%c0_20, %c0_21] : memref<1x128xf32, #tpu.memory_space<vmem>>, vector<1x128xf32>
    %27 = vector.broadcast %26 : vector<1x128xf32> to vector<56x128xf32>
    %28 = arith.addf %25, %27 : vector<56x128xf32>
    %29 = arith.maximumf %19, %28 : vector<56x128xf32>
    %c3 = arith.constant 3 : index
    %c0_22 = arith.constant 0 : index
    %c0_23 = arith.constant 0 : index
    %30 = vector.load %arg1[%c3, %c0_22, %c0_23] : memref<4x56x9xbf16, #tpu.memory_space<vmem>>, vector<1x56x9xbf16>
    %31 = vector.shape_cast %30 : vector<1x56x9xbf16> to vector<56x9xbf16>
    %cst_24 = arith.constant dense<0.000000e+00> : vector<56x128xf32>
    %32 = tpu.matmul %31, %0, %cst_24 {dimension_numbers = #tpu.dot_dimension_numbers<[1], [0], [0], [1], [0, 0, 1, 1], [], []>} : vector<56x9xbf16>, vector<9x128xbf16>, vector<56x128xf32> -> vector<56x128xf32>
    %c0_25 = arith.constant 0 : index
    %c0_26 = arith.constant 0 : index
    %33 = vector.load %arg3[%c0_25, %c0_26] : memref<1x128xf32, #tpu.memory_space<vmem>>, vector<1x128xf32>
    %34 = vector.broadcast %33 : vector<1x128xf32> to vector<56x128xf32>
    %35 = arith.mulf %32, %34 : vector<56x128xf32>
    %c0_27 = arith.constant 0 : index
    %c0_28 = arith.constant 0 : index
    %36 = vector.load %arg4[%c0_27, %c0_28] : memref<1x128xf32, #tpu.memory_space<vmem>>, vector<1x128xf32>
    %37 = vector.broadcast %36 : vector<1x128xf32> to vector<56x128xf32>
    %38 = arith.addf %35, %37 : vector<56x128xf32>
    %39 = arith.maximumf %29, %38 : vector<56x128xf32>
    %cst_29 = arith.constant 0.000000e+00 : f32
    %40 = vector.broadcast %cst_29 : f32 to vector<56x128xf32>
    %41 = arith.maximumf %39, %40 : vector<56x128xf32>
    %42 = arith.truncf %41 : vector<56x128xf32> to vector<56x128xbf16>
    %c0_30 = arith.constant 0 : index
    %c0_31 = arith.constant 0 : index
    %43 = vector.load %arg5[%c0_30, %c0_31] : memref<56x128xbf16, #tpu.memory_space<vmem>>, vector<56x128xbf16>
    tpu.vector_store %arg5[%c0_30, %c0_31], %42 {strides = array<i32>} : memref<56x128xbf16, #tpu.memory_space<vmem>>, vector<56x128xbf16>,
    return
  }
  func.func @transform_0(%arg0: i32) -> (i32, i32, i32) {
    %c0_i32 = arith.constant 0 : i32
    %c0_i32_0 = arith.constant 0 : i32
    %c0_i32_1 = arith.constant 0 : i32
    return %c0_i32, %arg0, %c0_i32_0 : i32, i32, i32
  }
  func.func @transform_1(%arg0: i32) -> (i32, i32) {
    %c0_i32 = arith.constant 0 : i32
    %c0_i32_0 = arith.constant 0 : i32
    %c0_i32_1 = arith.constant 0 : i32
    return %c0_i32, %c0_i32_0 : i32, i32
  }
  func.func @transform_2(%arg0: i32) -> (i32, i32) {
    %c0_i32 = arith.constant 0 : i32
    %c0_i32_0 = arith.constant 0 : i32
    %c0_i32_1 = arith.constant 0 : i32
    return %c0_i32, %c0_i32_0 : i32, i32
  }
  func.func @transform_3(%arg0: i32) -> (i32, i32) {
    %c0_i32 = arith.constant 0 : i32
    %c0_i32_0 = arith.constant 0 : i32
    %c0_i32_1 = arith.constant 0 : i32
    return %c0_i32, %c0_i32_0 : i32, i32
  }
  func.func @transform_4(%arg0: i32) -> (i32, i32) {
    %c0_i32 = arith.constant 0 : i32
    %c0_i32_0 = arith.constant 0 : i32
    return %arg0, %c0_i32 : i32, i32
  }
}

module attributes {stable_mosaic.version = 11 : i64} {
  func.func @_conv_bn_relu_pool_kernel(%arg0: i32, %arg1: memref<4x98x1152xbf16, #tpu.memory_space<vmem>>, %arg2: memref<1152x128xbf16, #tpu.memory_space<vmem>>, %arg3: memref<1x128xf32, #tpu.memory_space<vmem>>, %arg4: memref<1x128xf32, #tpu.memory_space<vmem>>, %arg5: memref<98x128xbf16, #tpu.memory_space<vmem>>) attributes {dimension_semantics = [#tpu.dimension_semantics<parallel>], iteration_bounds = array<i64: 1>, scalar_prefetch = 0 : i64, scratch_operands = 0 : i64, tpu.core_type = #tpu.core_type<tc>, window_params = [{transform_indices = @transform_0, window_bounds = array<i64: 4, 98, 1152>}, {pipeline_mode = #tpu.pipeline_mode<synchronous>, transform_indices = @transform_1, window_bounds = array<i64: 1152, 128>}, {pipeline_mode = #tpu.pipeline_mode<synchronous>, transform_indices = @transform_2, window_bounds = array<i64: 1, 128>}, {pipeline_mode = #tpu.pipeline_mode<synchronous>, transform_indices = @transform_3, window_bounds = array<i64: 1, 128>}, {transform_indices = @transform_4, window_bounds = array<i64: 98, 128>}]} {
    %c0 = arith.constant 0 : index
    %c0_0 = arith.constant 0 : index
    %0 = vector.load %arg2[%c0, %c0_0] : memref<1152x128xbf16, #tpu.memory_space<vmem>>, vector<1152x128xbf16>
    %c0_1 = arith.constant 0 : index
    %c0_2 = arith.constant 0 : index
    %c0_3 = arith.constant 0 : index
    %1 = vector.load %arg1[%c0_1, %c0_2, %c0_3] : memref<4x98x1152xbf16, #tpu.memory_space<vmem>>, vector<1x98x1152xbf16>
    %2 = vector.shape_cast %1 : vector<1x98x1152xbf16> to vector<98x1152xbf16>
    %cst = arith.constant dense<0.000000e+00> : vector<98x128xf32>
    %3 = tpu.matmul %2, %0, %cst {dimension_numbers = #tpu.dot_dimension_numbers<[1], [0], [0], [1], [0, 0, 1, 1], [], []>} : vector<98x1152xbf16>, vector<1152x128xbf16>, vector<98x128xf32> -> vector<98x128xf32>
    %c0_4 = arith.constant 0 : index
    %c0_5 = arith.constant 0 : index
    %4 = vector.load %arg3[%c0_4, %c0_5] : memref<1x128xf32, #tpu.memory_space<vmem>>, vector<1x128xf32>
    %5 = vector.broadcast %4 : vector<1x128xf32> to vector<98x128xf32>
    %6 = arith.mulf %3, %5 : vector<98x128xf32>
    %c0_6 = arith.constant 0 : index
    %c0_7 = arith.constant 0 : index
    %7 = vector.load %arg4[%c0_6, %c0_7] : memref<1x128xf32, #tpu.memory_space<vmem>>, vector<1x128xf32>
    %8 = vector.broadcast %7 : vector<1x128xf32> to vector<98x128xf32>
    %9 = arith.addf %6, %8 : vector<98x128xf32>
    %c1 = arith.constant 1 : index
    %c0_8 = arith.constant 0 : index
    %c0_9 = arith.constant 0 : index
    %10 = vector.load %arg1[%c1, %c0_8, %c0_9] : memref<4x98x1152xbf16, #tpu.memory_space<vmem>>, vector<1x98x1152xbf16>
    %11 = vector.shape_cast %10 : vector<1x98x1152xbf16> to vector<98x1152xbf16>
    %cst_10 = arith.constant dense<0.000000e+00> : vector<98x128xf32>
    %12 = tpu.matmul %11, %0, %cst_10 {dimension_numbers = #tpu.dot_dimension_numbers<[1], [0], [0], [1], [0, 0, 1, 1], [], []>} : vector<98x1152xbf16>, vector<1152x128xbf16>, vector<98x128xf32> -> vector<98x128xf32>
    %c0_11 = arith.constant 0 : index
    %c0_12 = arith.constant 0 : index
    %13 = vector.load %arg3[%c0_11, %c0_12] : memref<1x128xf32, #tpu.memory_space<vmem>>, vector<1x128xf32>
    %14 = vector.broadcast %13 : vector<1x128xf32> to vector<98x128xf32>
    %15 = arith.mulf %12, %14 : vector<98x128xf32>
    %c0_13 = arith.constant 0 : index
    %c0_14 = arith.constant 0 : index
    %16 = vector.load %arg4[%c0_13, %c0_14] : memref<1x128xf32, #tpu.memory_space<vmem>>, vector<1x128xf32>
    %17 = vector.broadcast %16 : vector<1x128xf32> to vector<98x128xf32>
    %18 = arith.addf %15, %17 : vector<98x128xf32>
    %19 = arith.maximumf %9, %18 : vector<98x128xf32>
    %c2 = arith.constant 2 : index
    %c0_15 = arith.constant 0 : index
    %c0_16 = arith.constant 0 : index
    %20 = vector.load %arg1[%c2, %c0_15, %c0_16] : memref<4x98x1152xbf16, #tpu.memory_space<vmem>>, vector<1x98x1152xbf16>
    %21 = vector.shape_cast %20 : vector<1x98x1152xbf16> to vector<98x1152xbf16>
    %cst_17 = arith.constant dense<0.000000e+00> : vector<98x128xf32>
    %22 = tpu.matmul %21, %0, %cst_17 {dimension_numbers = #tpu.dot_dimension_numbers<[1], [0], [0], [1], [0, 0, 1, 1], [], []>} : vector<98x1152xbf16>, vector<1152x128xbf16>, vector<98x128xf32> -> vector<98x128xf32>
    %c0_18 = arith.constant 0 : index
    %c0_19 = arith.constant 0 : index
    %23 = vector.load %arg3[%c0_18, %c0_19] : memref<1x128xf32, #tpu.memory_space<vmem>>, vector<1x128xf32>
    %24 = vector.broadcast %23 : vector<1x128xf32> to vector<98x128xf32>
    %25 = arith.mulf %22, %24 : vector<98x128xf32>
    %c0_20 = arith.constant 0 : index
    %c0_21 = arith.constant 0 : index
    %26 = vector.load %arg4[%c0_20, %c0_21] : memref<1x128xf32, #tpu.memory_space<vmem>>, vector<1x128xf32>
    %27 = vector.broadcast %26 : vector<1x128xf32> to vector<98x128xf32>
    %28 = arith.addf %25, %27 : vector<98x128xf32>
    %29 = arith.maximumf %19, %28 : vector<98x128xf32>
    %c3 = arith.constant 3 : index
    %c0_22 = arith.constant 0 : index
    %c0_23 = arith.constant 0 : index
    %30 = vector.load %arg1[%c3, %c0_22, %c0_23] : memref<4x98x1152xbf16, #tpu.memory_space<vmem>>, vector<1x98x1152xbf16>
    %31 = vector.shape_cast %30 : vector<1x98x1152xbf16> to vector<98x1152xbf16>
    %cst_24 = arith.constant dense<0.000000e+00> : vector<98x128xf32>
    %32 = tpu.matmul %31, %0, %cst_24 {dimension_numbers = #tpu.dot_dimension_numbers<[1], [0], [0], [1], [0, 0, 1, 1], [], []>} : vector<98x1152xbf16>, vector<1152x128xbf16>, vector<98x128xf32> -> vector<98x128xf32>
    %c0_25 = arith.constant 0 : index
    %c0_26 = arith.constant 0 : index
    %33 = vector.load %arg3[%c0_25, %c0_26] : memref<1x128xf32, #tpu.memory_space<vmem>>, vector<1x128xf32>
    %34 = vector.broadcast %33 : vector<1x128xf32> to vector<98x128xf32>
    %35 = arith.mulf %32, %34 : vector<98x128xf32>
    %c0_27 = arith.constant 0 : index
    %c0_28 = arith.constant 0 : index
    %36 = vector.load %arg4[%c0_27, %c0_28] : memref<1x128xf32, #tpu.memory_space<vmem>>, vector<1x128xf32>
    %37 = vector.broadcast %36 : vector<1x128xf32> to vector<98x128xf32>
    %38 = arith.addf %35, %37 : vector<98x128xf32>
    %39 = arith.maximumf %29, %38 : vector<98x128xf32>
    %cst_29 = arith.constant 0.000000e+00 : f32
    %40 = vector.broadcast %cst_29 : f32 to vector<98x128xf32>
    %41 = arith.maximumf %39, %40 : vector<98x128xf32>
    %42 = arith.truncf %41 : vector<98x128xf32> to vector<98x128xbf16>
    %c0_30 = arith.constant 0 : index
    %c0_31 = arith.constant 0 : index
    %43 = vector.load %arg5[%c0_30, %c0_31] : memref<98x128xbf16, #tpu.memory_space<vmem>>, vector<98x128xbf16>
    tpu.vector_store %arg5[%c0_30, %c0_31], %42 {strides = array<i32>} : memref<98x128xbf16, #tpu.memory_space<vmem>>, vector<98x128xbf16>,
    return
  }
  func.func @transform_0(%arg0: i32) -> (i32, i32, i32) {
    %c0_i32 = arith.constant 0 : i32
    %c0_i32_0 = arith.constant 0 : i32
    %c0_i32_1 = arith.constant 0 : i32
    return %c0_i32, %arg0, %c0_i32_0 : i32, i32, i32
  }
  func.func @transform_1(%arg0: i32) -> (i32, i32) {
    %c0_i32 = arith.constant 0 : i32
    %c0_i32_0 = arith.constant 0 : i32
    %c0_i32_1 = arith.constant 0 : i32
    return %c0_i32, %c0_i32_0 : i32, i32
  }
  func.func @transform_2(%arg0: i32) -> (i32, i32) {
    %c0_i32 = arith.constant 0 : i32
    %c0_i32_0 = arith.constant 0 : i32
    %c0_i32_1 = arith.constant 0 : i32
    return %c0_i32, %c0_i32_0 : i32, i32
  }
  func.func @transform_3(%arg0: i32) -> (i32, i32) {
    %c0_i32 = arith.constant 0 : i32
    %c0_i32_0 = arith.constant 0 : i32
    %c0_i32_1 = arith.constant 0 : i32
    return %c0_i32, %c0_i32_0 : i32, i32
  }
  func.func @transform_4(%arg0: i32) -> (i32, i32) {
    %c0_i32 = arith.constant 0 : i32
    %c0_i32_0 = arith.constant 0 : i32
    return %arg0, %c0_i32 : i32, i32
  }
}

module attributes {stable_mosaic.version = 11 : i64} {
  func.func @_fc_boost_stream_kernel(%arg0: i32, %arg1: memref<2x896xbf16, #tpu.memory_space<vmem>>, %arg2: memref<896x1152xbf16, #tpu.memory_space<vmem>>, %arg3: memref<1152x128xbf16, #tpu.memory_space<vmem>>, %arg4: memref<128x100xbf16, #tpu.memory_space<vmem>>, %arg5: memref<100x10xf32, #tpu.memory_space<vmem>>, %arg6: memref<2x10xf32, #tpu.memory_space<vmem>>, %arg7: memref<2x1152xf32, #tpu.memory_space<vmem>>) attributes {dimension_semantics = [#tpu.dimension_semantics<arbitrary>], iteration_bounds = array<i64: 7>, scalar_prefetch = 0 : i64, scratch_operands = 1 : i64, tpu.core_type = #tpu.core_type<tc>, window_params = [{transform_indices = @transform_0, window_bounds = array<i64: 2, 896>}, {transform_indices = @transform_1, window_bounds = array<i64: 896, 1152>}, {pipeline_mode = #tpu.pipeline_mode<synchronous>, transform_indices = @transform_2, window_bounds = array<i64: 1152, 128>}, {pipeline_mode = #tpu.pipeline_mode<synchronous>, transform_indices = @transform_3, window_bounds = array<i64: 128, 100>}, {pipeline_mode = #tpu.pipeline_mode<synchronous>, transform_indices = @transform_4, window_bounds = array<i64: 100, 10>}, {pipeline_mode = #tpu.pipeline_mode<synchronous>, transform_indices = @transform_5, window_bounds = array<i64: 2, 10>}]} {
    %c0_i32 = arith.constant 0 : i32
    %0 = arith.cmpi eq, %arg0, %c0_i32 : i32
    %1 = arith.extui %0 : i1 to i32
    %c0_i32_0 = arith.constant 0 : i32
    %2 = arith.cmpi ne, %1, %c0_i32_0 : i32
    scf.if %2 {
      %cst_9 = arith.constant 0.000000e+00 : f32
      %12 = vector.broadcast %cst_9 : f32 to vector<2x1152xf32>
      %c0_10 = arith.constant 0 : index
      %c0_11 = arith.constant 0 : index
      %13 = vector.load %arg7[%c0_10, %c0_11] : memref<2x1152xf32, #tpu.memory_space<vmem>>, vector<2x1152xf32>
      tpu.vector_store %arg7[%c0_10, %c0_11], %12 {strides = array<i32>} : memref<2x1152xf32, #tpu.memory_space<vmem>>, vector<2x1152xf32>,
    } else {
    }
    %c0 = arith.constant 0 : index
    %c0_1 = arith.constant 0 : index
    %3 = vector.load %arg7[%c0, %c0_1] : memref<2x1152xf32, #tpu.memory_space<vmem>>, vector<2x1152xf32>
    %c0_2 = arith.constant 0 : index
    %c0_3 = arith.constant 0 : index
    %4 = vector.load %arg1[%c0_2, %c0_3] : memref<2x896xbf16, #tpu.memory_space<vmem>>, vector<2x896xbf16>
    %c0_4 = arith.constant 0 : index
    %c0_5 = arith.constant 0 : index
    %5 = vector.load %arg2[%c0_4, %c0_5] : memref<896x1152xbf16, #tpu.memory_space<vmem>>, vector<896x1152xbf16>
    %cst = arith.constant dense<0.000000e+00> : vector<2x1152xf32>
    %6 = tpu.matmul %4, %5, %cst {dimension_numbers = #tpu.dot_dimension_numbers<[1], [0], [0], [1], [0, 0, 1, 1], [], []>} : vector<2x896xbf16>, vector<896x1152xbf16>, vector<2x1152xf32> -> vector<2x1152xf32>
    %7 = arith.addf %3, %6 : vector<2x1152xf32>
    %c0_6 = arith.constant 0 : index
    %c0_7 = arith.constant 0 : index
    %8 = vector.load %arg7[%c0_6, %c0_7] : memref<2x1152xf32, #tpu.memory_space<vmem>>, vector<2x1152xf32>
    tpu.vector_store %arg7[%c0_6, %c0_7], %7 {strides = array<i32>} : memref<2x1152xf32, #tpu.memory_space<vmem>>, vector<2x1152xf32>,
    %c6_i32 = arith.constant 6 : i32
    %9 = arith.cmpi eq, %arg0, %c6_i32 : i32
    %10 = arith.extui %9 : i1 to i32
    %c0_i32_8 = arith.constant 0 : i32
    %11 = arith.cmpi ne, %10, %c0_i32_8 : i32
    scf.if %11 {
      %c0_9 = arith.constant 0 : index
      %c0_10 = arith.constant 0 : index
      %12 = vector.load %arg7[%c0_9, %c0_10] : memref<2x1152xf32, #tpu.memory_space<vmem>>, vector<2x1152xf32>
      %cst_11 = arith.constant 0.000000e+00 : f32
      %13 = vector.broadcast %cst_11 : f32 to vector<2x1152xf32>
      %14 = arith.maximumf %12, %13 : vector<2x1152xf32>
      %15 = arith.truncf %14 : vector<2x1152xf32> to vector<2x1152xbf16>
      %c0_12 = arith.constant 0 : index
      %c0_13 = arith.constant 0 : index
      %16 = vector.load %arg3[%c0_12, %c0_13] : memref<1152x128xbf16, #tpu.memory_space<vmem>>, vector<1152x128xbf16>
      %cst_14 = arith.constant dense<0.000000e+00> : vector<2x128xf32>
      %17 = tpu.matmul %15, %16, %cst_14 {dimension_numbers = #tpu.dot_dimension_numbers<[1], [0], [0], [1], [0, 0, 1, 1], [], []>} : vector<2x1152xbf16>, vector<1152x128xbf16>, vector<2x128xf32> -> vector<2x128xf32>
      %cst_15 = arith.constant 0.000000e+00 : f32
      %18 = vector.broadcast %cst_15 : f32 to vector<2x128xf32>
      %19 = arith.maximumf %17, %18 : vector<2x128xf32>
      %20 = arith.truncf %19 : vector<2x128xf32> to vector<2x128xbf16>
      %c0_16 = arith.constant 0 : index
      %c0_17 = arith.constant 0 : index
      %21 = vector.load %arg4[%c0_16, %c0_17] : memref<128x100xbf16, #tpu.memory_space<vmem>>, vector<128x100xbf16>
      %cst_18 = arith.constant dense<0.000000e+00> : vector<2x100xf32>
      %22 = tpu.matmul %20, %21, %cst_18 {dimension_numbers = #tpu.dot_dimension_numbers<[1], [0], [0], [1], [0, 0, 1, 1], [], []>} : vector<2x128xbf16>, vector<128x100xbf16>, vector<2x100xf32> -> vector<2x100xf32>
      %cst_19 = arith.constant 0.000000e+00 : f32
      %23 = vector.broadcast %cst_19 : f32 to vector<2x100xf32>
      %24 = arith.maximumf %22, %23 : vector<2x100xf32>
      %c0_20 = arith.constant 0 : index
      %c0_21 = arith.constant 0 : index
      %25 = vector.load %arg5[%c0_20, %c0_21] : memref<100x10xf32, #tpu.memory_space<vmem>>, vector<100x10xf32>
      %cst_22 = arith.constant dense<0.000000e+00> : vector<2x10xf32>
      %26 = tpu.matmul %24, %25, %cst_22 {dimension_numbers = #tpu.dot_dimension_numbers<[1], [0], [0], [1], [0, 0, 1, 1], [], []>} : vector<2x100xf32>, vector<100x10xf32>, vector<2x10xf32> -> vector<2x10xf32>
      %c0_23 = arith.constant 0 : index
      %c0_24 = arith.constant 0 : index
      %27 = vector.load %arg6[%c0_23, %c0_24] : memref<2x10xf32, #tpu.memory_space<vmem>>, vector<2x10xf32>
      tpu.vector_store %arg6[%c0_23, %c0_24], %26 {strides = array<i32>} : memref<2x10xf32, #tpu.memory_space<vmem>>, vector<2x10xf32>,
    } else {
    }
    return
  }
  func.func @transform_0(%arg0: i32) -> (i32, i32) {
    %c0_i32 = arith.constant 0 : i32
    %c0_i32_0 = arith.constant 0 : i32
    return %c0_i32, %arg0 : i32, i32
  }
  func.func @transform_1(%arg0: i32) -> (i32, i32) {
    %c0_i32 = arith.constant 0 : i32
    %c0_i32_0 = arith.constant 0 : i32
    return %arg0, %c0_i32 : i32, i32
  }
  func.func @transform_2(%arg0: i32) -> (i32, i32) {
    %c0_i32 = arith.constant 0 : i32
    %c0_i32_0 = arith.constant 0 : i32
    %c0_i32_1 = arith.constant 0 : i32
    return %c0_i32, %c0_i32_0 : i32, i32
  }
  func.func @transform_3(%arg0: i32) -> (i32, i32) {
    %c0_i32 = arith.constant 0 : i32
    %c0_i32_0 = arith.constant 0 : i32
    %c0_i32_1 = arith.constant 0 : i32
    return %c0_i32, %c0_i32_0 : i32, i32
  }
  func.func @transform_4(%arg0: i32) -> (i32, i32) {
    %c0_i32 = arith.constant 0 : i32
    %c0_i32_0 = arith.constant 0 : i32
    %c0_i32_1 = arith.constant 0 : i32
    return %c0_i32, %c0_i32_0 : i32, i32
  }
  func.func @transform_5(%arg0: i32) -> (i32, i32) {
    %c0_i32 = arith.constant 0 : i32
    %c0_i32_0 = arith.constant 0 : i32
    %c0_i32_1 = arith.constant 0 : i32
    return %c0_i32, %c0_i32_0 : i32, i32
  }
}

</mosaic_0001>

<llo_original>
// kernel: ann_net_forward_streaming.3
$region0: #{ann_net_forward_streaming.3}
  #allocation0 [shape = 'u32[]', space=smem, size = 0x4, offset = 0x4, fixed_abs, tag = 'smem constant byte address 0x4 - core index']
  #allocation1 [shape = 'u32[72,128]{1,0:T(1,128)}', space=vmem, size = 0x9000, scoped, tag = 'internal scratch']
  %s0 = inlined_call_operand.vmem [shape: bf16[4,392,9], index: 0, kind: input, shape index: {}]
  %s1 = inlined_call_operand.hbm [shape: bf16[9,128], index: 1, kind: input, shape index: {}]
  %s2 = inlined_call_operand.hbm [shape: f32[1,128], index: 2, kind: input, shape index: {}]
  %s3 = inlined_call_operand.hbm [shape: f32[1,128], index: 3, kind: input, shape index: {}]
  %s4 = inlined_call_operand.vmem [shape: bf16[392,128], index: 4, kind: output, shape index: {}]
  %s5 = sld [smem:[#allocation0]]
  $region102: #{ann_net_forward_streaming.3} parent=0
    _
  %s7 = ssub.s32 1, %s5
  %s8 = scalar_select 0, %s7, %s5
  $region1: #{ann_net_forward_streaming.3} parent=0
    #allocation2 [shape = 'u8[114688]{0}', space=vmem, size = 0x1c000, scoped, tag = 'input window, operand 0']
    #allocation3 [shape = 'u8[4096]{0}', space=vmem, size = 0x1000, scoped, tag = 'input window, operand 1, single buffered']
    #allocation4 [shape = 's32[2]{0}', space=sflag, size = 0x8, scoped, tag = 'scoped memory for ann_net_forward_streaming.3']
    #allocation5 [shape = 'u8[512]{0}', space=vmem, size = 0x400, scoped, tag = 'input window, operand 2, single buffered']
    #allocation6 [shape = 's32[1]{0}', space=sflag, size = 0x4, scoped, tag = 'scoped memory for ann_net_forward_streaming.3']
    #allocation7 [shape = 'u8[512]{0}', space=vmem, size = 0x400, scoped, tag = 'input window, operand 3, single buffered']
    %9 = vsyncpa [#allocation4], 0
    %10 = vsyncpa [#allocation6], 0
    loop: start=0, step=1, limit=9
    $region2: #{ann_net_forward_streaming.3} parent=1 // loop_pre_header
      _
    $region3: #{ann_net_forward_streaming.3} parent=1 // loop_header
      %s12 = sphi 0, %s16
      %p13 = scmp.ge.s32.totalorder %s12, 9
      %s22 = sphi 0, %s24
      %s25 = sphi 0, %s22
      %s26 = sphi 0, %s25
      %s42 = sphi 0, %s26
      %s46 = sphi 0, %s46
      %s48 = sphi 0, %s46
      %s49 = sphi 0, %s48
      %s63 = sphi 0, %s49
      %s67 = sphi 0, %s67
      %s69 = sphi 0, %s67
      %s70 = sphi 0, %s69
      %s84 = sphi 0, %s70
      %s88 = sphi 0, %s88
      %s90 = sphi 0, %s88
      %s91 = sphi 0, %s90
      %s105 = sphi 0, %s91
      %s111 = sphi 0, %s113
      %s114 = sphi 0, %s111
      %s115 = sphi 0, %s114
      %s131 = sphi 0, %s115
    $region4: #{ann_net_forward_streaming.3} parent=1 // loop_header_branch
      %15 = sbr.rel (%p13) target = $region8
    $region5: #{ann_net_forward_streaming.3} parent=1 // loop_body
      %s17 = ssub.s32 %s12, 1
      %s18 = ssub.s32 %s12, 2
      %s19 = sadd.s32 %s12, 1
      %s20 = ssub.s32 %s12, %s19
      %p21 = scmp.eq.s32.totalorder %s20, 0
      %s23 = sadd.s32 %s22, 1
      %s24 = scalar_select %p21, %s22, %s23
      %p27 = pneg %p21
      %p28 = scmp.eq.s32.totalorder %s12, 6
      %p29 = por %p27, %p28
      %p30 = scmp.ne.s32.totalorder %s22, %s25
      %p31 = scmp.eq.s32.totalorder %s12, 0
      %p32 = por %p30, %p31
      %p33 = scmp.ne.s32.totalorder %s22, %s25
      %p34 = scmp.eq.s32.totalorder %s17, 6
      %p35 = por %p33, %p34
      %p36 = scmp.ne.s32.totalorder %s25, %s26
      %p37 = scmp.eq.s32.totalorder %s17, 0
      %p38 = por %p36, %p37
      %p39 = scmp.ne.s32.totalorder %s25, %s26
      %p40 = scmp.eq.s32.totalorder %s18, 6
      %p41 = por %p39, %p40
      %p43 = scmp.ne.s32.totalorder %s26, %s42
      %p44 = scmp.eq.s32.totalorder %s18, 0
      %p45 = por %p43, %p44
      %s47 = sadd.s32 %s46, 1
      %p50 = scmp.eq.s32.totalorder %s12, 6
      %p51 = scmp.ne.s32.totalorder %s46, %s48
      %p52 = scmp.eq.s32.totalorder %s12, 0
      %p53 = por %p51, %p52
      %p54 = scmp.ne.s32.totalorder %s46, %s48
      %p55 = scmp.eq.s32.totalorder %s17, 6
      %p56 = por %p54, %p55
      %p57 = scmp.ne.s32.totalorder %s48, %s49
      %p58 = scmp.eq.s32.totalorder %s17, 0
      %p59 = por %p57, %p58
      %p60 = scmp.ne.s32.totalorder %s48, %s49
      %p61 = scmp.eq.s32.totalorder %s18, 6
      %p62 = por %p60, %p61
      %p64 = scmp.ne.s32.totalorder %s49, %s63
      %p65 = scmp.eq.s32.totalorder %s18, 0
      %p66 = por %p64, %p65
      %s68 = sadd.s32 %s67, 1
      %p71 = scmp.eq.s32.totalorder %s12, 6
      %p72 = scmp.ne.s32.totalorder %s67, %s69
      %p73 = scmp.eq.s32.totalorder %s12, 0
      %p74 = por %p72, %p73
      %p75 = scmp.ne.s32.totalorder %s67, %s69
      %p76 = scmp.eq.s32.totalorder %s17, 6
      %p77 = por %p75, %p76
      %p78 = scmp.ne.s32.totalorder %s69, %s70
      %p79 = scmp.eq.s32.totalorder %s17, 0
      %p80 = por %p78, %p79
      %p81 = scmp.ne.s32.totalorder %s69, %s70
      %p82 = scmp.eq.s32.totalorder %s18, 6
      %p83 = por %p81, %p82
      %p85 = scmp.ne.s32.totalorder %s70, %s84
      %p86 = scmp.eq.s32.totalorder %s18, 0
      %p87 = por %p85, %p86
      %s89 = sadd.s32 %s88, 1
      %p92 = scmp.eq.s32.totalorder %s12, 6
      %p93 = scmp.ne.s32.totalorder %s88, %s90
      %p94 = scmp.eq.s32.totalorder %s12, 0
      %p95 = por %p93, %p94
      %p96 = scmp.ne.s32.totalorder %s88, %s90
      %p97 = scmp.eq.s32.totalorder %s17, 6
      %p98 = por %p96, %p97
      %p99 = scmp.ne.s32.totalorder %s90, %s91
      %p100 = scmp.eq.s32.totalorder %s17, 0
      %p101 = por %p99, %p100
      %p102 = scmp.ne.s32.totalorder %s90, %s91
      %p103 = scmp.eq.s32.totalorder %s18, 6
      %p104 = por %p102, %p103
      %p106 = scmp.ne.s32.totalorder %s91, %s105
      %p107 = scmp.eq.s32.totalorder %s18, 0
      %p108 = por %p106, %p107
      %s109 = ssub.s32 %s12, %s19
      %p110 = scmp.eq.s32.totalorder %s109, 0
      %s112 = sadd.s32 %s111, 1
      %s113 = scalar_select %p110, %s111, %s112
      %p116 = pneg %p110
      %p117 = scmp.eq.s32.totalorder %s12, 6
      %p118 = por %p116, %p117
      %p119 = scmp.ne.s32.totalorder %s111, %s114
      %p120 = scmp.eq.s32.totalorder %s12, 0
      %p121 = por %p119, %p120
      %p122 = scmp.ne.s32.totalorder %s111, %s114
      %p123 = scmp.eq.s32.totalorder %s17, 6
      %p124 = por %p122, %p123
      %p125 = scmp.ne.s32.totalorder %s114, %s115
      %p126 = scmp.eq.s32.totalorder %s17, 0
      %p127 = por %p125, %p126
      %p128 = scmp.ne.s32.totalorder %s114, %s115
      %p129 = scmp.eq.s32.totalorder %s18, 6
      %p130 = por %p128, %p129
      %p132 = scmp.ne.s32.totalorder %s115, %s131
      %p133 = scmp.eq.s32.totalorder %s18, 0
      %p134 = por %p132, %p133
      %p135 = scmp.le.s32.totalorder 1, %s12
      %p136 = scmp.lt.s32.totalorder %s12, 8
      %p137 = pnand %p135, %p136
      %p138 = pneg %p137
      // Predicated region
      $region9: #{ann_net_forward_streaming.3} parent=5 // pred_check
        _
      $region10: #{ann_net_forward_streaming.3} parent=5 // pred_check_branch
        %140 = sbr.rel (%p137) target = $region12
      $region11: #{ann_net_forward_streaming.3} parent=5 // pred_region
        %s141 = ssub.s32 %s12, 1
        // Predicated region
        $region13: #{ann_net_forward_streaming.3} parent=11 // pred_check
          %p142 = pneg %p59
        $region14: #{ann_net_forward_streaming.3} parent=11 // pred_check_branch
          %144 = sbr.rel (%p142) target = $region16
        $region15: #{ann_net_forward_streaming.3} parent=11 // pred_region
          %146 = vsyncadd [#allocation4], 0
          %s147 = sshll.u32 %s1, 4
          %s148 = int_to_ptr.hbm [resolvable:$true] %s147
          %s149 = sshll.u32 [#allocation3], 4
          %s150 = int_to_ptr.vmem [resolvable:$true] %s149
          %155 = dma.hbm_to_vmem [thread:$0]  %s148, 128, %s150, [#allocation4], 64, 64, 4
        $region16: #{ann_net_forward_streaming.3} parent=11 // pred_fallthru
          _
        // Predicated region
        $region17: #{ann_net_forward_streaming.3} parent=11 // pred_check
          %p156 = pneg %p80
        $region18: #{ann_net_forward_streaming.3} parent=11 // pred_check_branch
          %158 = sbr.rel (%p156) target = $region20
        $region19: #{ann_net_forward_streaming.3} parent=11 // pred_region
          %160 = vsyncadd [#allocation6], 0
          %s162 = sshll.u32 %s2, 4
          %s163 = int_to_ptr.hbm [resolvable:$true] %s162
          %s164 = sshll.u32 [#allocation5], 4
          %s165 = int_to_ptr.vmem [resolvable:$true] %s164
          %167 = dma.hbm_to_vmem [thread:$0]  %s163, 16, %s165, [#allocation6]
        $region20: #{ann_net_forward_streaming.3} parent=11 // pred_fallthru
          _
        // Predicated region
        $region21: #{ann_net_forward_streaming.3} parent=11 // pred_check
          %p168 = pneg %p101
        $region22: #{ann_net_forward_streaming.3} parent=11 // pred_check_branch
          %170 = sbr.rel (%p168) target = $region24
        $region23: #{ann_net_forward_streaming.3} parent=11 // pred_region
          %172 = vsyncadd [#allocation6], 0
          %s174 = sshll.u32 %s3, 4
          %s175 = int_to_ptr.hbm [resolvable:$true] %s174
          %s176 = sshll.u32 [#allocation7], 4
          %s177 = int_to_ptr.vmem [resolvable:$true] %s176
          %179 = dma.hbm_to_vmem [thread:$0]  %s175, 16, %s177, [#allocation6]
        $region24: #{ann_net_forward_streaming.3} parent=11 // pred_fallthru
          _
      $region12: #{ann_net_forward_streaming.3} parent=5 // pred_fallthru
        _
      %p180 = scmp.lt.s32.totalorder %s12, 7
      // Predicated region
      $region25: #{ann_net_forward_streaming.3} parent=5 // pred_check
        %p181 = pneg %p180
      $region26: #{ann_net_forward_streaming.3} parent=5 // pred_check_branch
        %183 = sbr.rel (%p181) target = $region28
      $region27: #{ann_net_forward_streaming.3} parent=5 // pred_region
        // Predicated region
        $region29: #{ann_net_forward_streaming.3} parent=27 // pred_check
          %p184 = pneg %p32
        $region30: #{ann_net_forward_streaming.3} parent=27 // pred_check_branch
          %186 = sbr.rel (%p184) target = $region32
        $region31: #{ann_net_forward_streaming.3} parent=27 // pred_region
          %s187 = sand.u32 %s22, 1
          %s188 = sand.u32 %s22, 1
          %s189 = smul.addr %s188, 112
          %s190 = scalar_lea.vmem [#allocation2], %s189
          %s191 = smul.u32 7, %s12
          %s192 = smul.addr %s191, 4
          %s193 = scalar_lea.vmem %s0, %s192
          // Predicated region
          $region33: #{ann_net_forward_streaming.3} parent=31 // pred_check
            _
          $region34: #{ann_net_forward_streaming.3} parent=31 // pred_check_branch
            %195 = sbr.rel (0) target = $region36
          $region35: #{ann_net_forward_streaming.3} parent=31 // pred_region
            // Predicated region
            $region37: #{ann_net_forward_streaming.3} parent=35 // pred_check
              _
            $region38: #{ann_net_forward_streaming.3} parent=35 // pred_check_branch
              %197 = sbr.rel target = $region40
            $region39: #{ann_net_forward_streaming.3} parent=35 // pred_region
              // Predicated region
              $region52: #{ann_net_forward_streaming.3} parent=39 // pred_check
                _
              $region53: #{ann_net_forward_streaming.3} parent=39 // pred_check_branch
                %267 = sbr.rel (0) target = $region55
              $region54: #{ann_net_forward_streaming.3} parent=39 // pred_region
                loop: start=0, step=1, limit=1
                $region56: #{ann_net_forward_streaming.3} parent=54 // loop_pre_header
                  _
                $region57: #{ann_net_forward_streaming.3} parent=54 // loop_header
                  %s269 = sphi 0, %s273
                  %p270 = scmp.ge.s32.totalorder %s269, 1
                  %s274 = sphi %s193, %s193
                  %s275 = sphi %s190, %s190
                $region58: #{ann_net_forward_streaming.3} parent=54 // loop_header_branch
                  %272 = sbr.rel (%p270) target = $region62
                $region59: #{ann_net_forward_streaming.3} parent=54 // loop_body
                  _
                $region60: #{ann_net_forward_streaming.3} parent=54 // loop_footer
                  %s273 = sadd.s32 1, %s269
                $region61: #{ann_net_forward_streaming.3} parent=54 // loop_footer_branch
                  %268 = sbr.rel target = $region57
                $region62: #{ann_net_forward_streaming.3} parent=54 // loop_exit
                  _
                %s277 = ssub.s32 16, 1
                loop: start=0, step=1, limit=1
                $region63: #{ann_net_forward_streaming.3} parent=54 // loop_pre_header
                  _
                $region64: #{ann_net_forward_streaming.3} parent=54 // loop_header
                  %s279 = sphi 0, %s283
                  %p280 = scmp.ge.s32.totalorder %s279, 1
                  %s284 = sphi %s193, %s193
                  %s285 = sphi %s190, %s190
                $region65: #{ann_net_forward_streaming.3} parent=54 // loop_header_branch
                  %282 = sbr.rel (%p280) target = $region69
                $region66: #{ann_net_forward_streaming.3} parent=54 // loop_body
                  %v286 = vld [vmem:[%s284] sm:%s277]
                  %287 = vst [vmem:[%s285] sm:%s277] %v286
                  %v288 = vld [vmem:[%s284 + $0x4] sm:%s277]
                  %289 = vst [vmem:[%s285 + $0x4] sm:%s277] %v288
                  %v290 = vld [vmem:[%s284 + $0x8] sm:%s277]
                  %291 = vst [vmem:[%s285 + $0x8] sm:%s277] %v290
                  %v292 = vld [vmem:[%s284 + $0xc] sm:%s277]
                  %293 = vst [vmem:[%s285 + $0xc] sm:%s277] %v292
                  %v294 = vld [vmem:[%s284 + $0x10] sm:%s277]
                  %295 = vst [vmem:[%s285 + $0x10] sm:%s277] %v294
                  %v296 = vld [vmem:[%s284 + $0x14] sm:%s277]
                  %297 = vst [vmem:[%s285 + $0x14] sm:%s277] %v296
                  %v298 = vld [vmem:[%s284 + $0x18] sm:%s277]
                  %299 = vst [vmem:[%s285 + $0x18] sm:%s277] %v298
                  %v300 = vld [vmem:[%s284 + $0xc4] sm:%s277]
                  %301 = vst [vmem:[%s285 + $0x1c] sm:%s277] %v300
                  %v302 = vld [vmem:[%s284 + $0xc8] sm:%s277]
                  %303 = vst [vmem:[%s285 + $0x20] sm:%s277] %v302
                  %v304 = vld [vmem:[%s284 + $0xcc] sm:%s277]
                  %305 = vst [vmem:[%s285 + $0x24] sm:%s277] %v304
                  %v306 = vld [vmem:[%s284 + $0xd0] sm:%s277]
                  %307 = vst [vmem:[%s285 + $0x28] sm:%s277] %v306
                  %v308 = vld [vmem:[%s284 + $0xd4] sm:%s277]
                  %309 = vst [vmem:[%s285 + $0x2c] sm:%s277] %v308
                  %v310 = vld [vmem:[%s284 + $0xd8] sm:%s277]
                  %311 = vst [vmem:[%s285 + $0x30] sm:%s277] %v310
                  %v312 = vld [vmem:[%s284 + $0xdc] sm:%s277]
                  %313 = vst [vmem:[%s285 + $0x34] sm:%s277] %v312
                  %v314 = vld [vmem:[%s284 + $0x188] sm:%s277]
                  %315 = vst [vmem:[%s285 + $0x38] sm:%s277] %v314
                  %v316 = vld [vmem:[%s284 + $0x18c] sm:%s277]
                  %317 = vst [vmem:[%s285 + $0x3c] sm:%s277] %v316
                  %v318 = vld [vmem:[%s284 + $0x190] sm:%s277]
                  %319 = vst [vmem:[%s285 + $0x40] sm:%s277] %v318
                  %v320 = vld [vmem:[%s284 + $0x194] sm:%s277]
                  %321 = vst [vmem:[%s285 + $0x44] sm:%s277] %v320
                  %v322 = vld [vmem:[%s284 + $0x198] sm:%s277]
                  %323 = vst [vmem:[%s285 + $0x48] sm:%s277] %v322
                  %v324 = vld [vmem:[%s284 + $0x19c] sm:%s277]
                  %325 = vst [vmem:[%s285 + $0x4c] sm:%s277] %v324
                  %v326 = vld [vmem:[%s284 + $0x1a0] sm:%s277]
                  %327 = vst [vmem:[%s285 + $0x50] sm:%s277] %v326
                  %v328 = vld [vmem:[%s284 + $0x24c] sm:%s277]
                  %329 = vst [vmem:[%s285 + $0x54] sm:%s277] %v328
                  %v330 = vld [vmem:[%s284 + $0x250] sm:%s277]
                  %331 = vst [vmem:[%s285 + $0x58] sm:%s277] %v330
                  %v332 = vld [vmem:[%s284 + $0x254] sm:%s277]
                  %333 = vst [vmem:[%s285 + $0x5c] sm:%s277] %v332
                  %v334 = vld [vmem:[%s284 + $0x258] sm:%s277]
                  %335 = vst [vmem:[%s285 + $0x60] sm:%s277] %v334
                  %v336 = vld [vmem:[%s284 + $0x25c] sm:%s277]
                  %337 = vst [vmem:[%s285 + $0x64] sm:%s277] %v336
                  %v338 = vld [vmem:[%s284 + $0x260] sm:%s277]
                  %339 = vst [vmem:[%s285 + $0x68] sm:%s277] %v338
                  %v340 = vld [vmem:[%s284 + $0x264] sm:%s277]
                  %341 = vst [vmem:[%s285 + $0x6c] sm:%s277] %v340
                $region67: #{ann_net_forward_streaming.3} parent=54 // loop_footer
                  %s283 = sadd.s32 1, %s279
                $region68: #{ann_net_forward_streaming.3} parent=54 // loop_footer_branch
                  %278 = sbr.rel target = $region64
                $region69: #{ann_net_forward_streaming.3} parent=54 // loop_exit
                  _
              $region55: #{ann_net_forward_streaming.3} parent=39 // pred_fallthru
                _
            $region40: #{ann_net_forward_streaming.3} parent=35 // pred_fallthru
              _
            // Predicated region
            $region41: #{ann_net_forward_streaming.3} parent=35 // pred_check
              _
            $region42: #{ann_net_forward_streaming.3} parent=35 // pred_check_branch
              %199 = sbr.rel (0) target = $region44
            $region43: #{ann_net_forward_streaming.3} parent=35 // pred_region
              %s201 = ssub.s32 16, 1
              loop: start=0, step=1, limit=1
              $region45: #{ann_net_forward_streaming.3} parent=43 // loop_pre_header
                _
              $region46: #{ann_net_forward_streaming.3} parent=43 // loop_header
                %s203 = sphi 0, %s207
                %p204 = scmp.ge.s32.totalorder %s203, 1
                %s208 = sphi %s193, %s193
                %s209 = sphi %s190, %s190
              $region47: #{ann_net_forward_streaming.3} parent=43 // loop_header_branch
                %206 = sbr.rel (%p204) target = $region51
              $region48: #{ann_net_forward_streaming.3} parent=43 // loop_body
                %v210 = vld [vmem:[%s208] sm:%s201]
                %211 = vst [vmem:[%s209] sm:%s201] %v210
                %v212 = vld [vmem:[%s208 + $0x4] sm:%s201]
                %213 = vst [vmem:[%s209 + $0x4] sm:%s201] %v212
                %v214 = vld [vmem:[%s208 + $0x8] sm:%s201]
                %215 = vst [vmem:[%s209 + $0x8] sm:%s201] %v214
                %v216 = vld [vmem:[%s208 + $0xc] sm:%s201]
                %217 = vst [vmem:[%s209 + $0xc] sm:%s201] %v216
                %v218 = vld [vmem:[%s208 + $0x10] sm:%s201]
                %219 = vst [vmem:[%s209 + $0x10] sm:%s201] %v218
                %v220 = vld [vmem:[%s208 + $0x14] sm:%s201]
                %221 = vst [vmem:[%s209 + $0x14] sm:%s201] %v220
                %v222 = vld [vmem:[%s208 + $0x18] sm:%s201]
                %223 = vst [vmem:[%s209 + $0x18] sm:%s201] %v222
                %v224 = vld [vmem:[%s208 + $0xc4] sm:%s201]
                %225 = vst [vmem:[%s209 + $0x1c] sm:%s201] %v224
                %v226 = vld [vmem:[%s208 + $0xc8] sm:%s201]
                %227 = vst [vmem:[%s209 + $0x20] sm:%s201] %v226
                %v228 = vld [vmem:[%s208 + $0xcc] sm:%s201]
                %229 = vst [vmem:[%s209 + $0x24] sm:%s201] %v228
                %v230 = vld [vmem:[%s208 + $0xd0] sm:%s201]
                %231 = vst [vmem:[%s209 + $0x28] sm:%s201] %v230
                %v232 = vld [vmem:[%s208 + $0xd4] sm:%s201]
                %233 = vst [vmem:[%s209 + $0x2c] sm:%s201] %v232
                %v234 = vld [vmem:[%s208 + $0xd8] sm:%s201]
                %235 = vst [vmem:[%s209 + $0x30] sm:%s201] %v234
                %v236 = vld [vmem:[%s208 + $0xdc] sm:%s201]
                %237 = vst [vmem:[%s209 + $0x34] sm:%s201] %v236
                %v238 = vld [vmem:[%s208 + $0x188] sm:%s201]
                %239 = vst [vmem:[%s209 + $0x38] sm:%s201] %v238
                %v240 = vld [vmem:[%s208 + $0x18c] sm:%s201]
                %241 = vst [vmem:[%s209 + $0x3c] sm:%s201] %v240
                %v242 = vld [vmem:[%s208 + $0x190] sm:%s201]
                %243 = vst [vmem:[%s209 + $0x40] sm:%s201] %v242
                %v244 = vld [vmem:[%s208 + $0x194] sm:%s201]
                %245 = vst [vmem:[%s209 + $0x44] sm:%s201] %v244
                %v246 = vld [vmem:[%s208 + $0x198] sm:%s201]
                %247 = vst [vmem:[%s209 + $0x48] sm:%s201] %v246
                %v248 = vld [vmem:[%s208 + $0x19c] sm:%s201]
                %249 = vst [vmem:[%s209 + $0x4c] sm:%s201] %v248
                %v250 = vld [vmem:[%s208 + $0x1a0] sm:%s201]
                %251 = vst [vmem:[%s209 + $0x50] sm:%s201] %v250
                %v252 = vld [vmem:[%s208 + $0x24c] sm:%s201]
                %253 = vst [vmem:[%s209 + $0x54] sm:%s201] %v252
                %v254 = vld [vmem:[%s208 + $0x250] sm:%s201]
                %255 = vst [vmem:[%s209 + $0x58] sm:%s201] %v254
                %v256 = vld [vmem:[%s208 + $0x254] sm:%s201]
                %257 = vst [vmem:[%s209 + $0x5c] sm:%s201] %v256
                %v258 = vld [vmem:[%s208 + $0x258] sm:%s201]
                %259 = vst [vmem:[%s209 + $0x60] sm:%s201] %v258
                %v260 = vld [vmem:[%s208 + $0x25c] sm:%s201]
                %261 = vst [vmem:[%s209 + $0x64] sm:%s201] %v260
                %v262 = vld [vmem:[%s208 + $0x260] sm:%s201]
                %263 = vst [vmem:[%s209 + $0x68] sm:%s201] %v262
                %v264 = vld [vmem:[%s208 + $0x264] sm:%s201]
                %265 = vst [vmem:[%s209 + $0x6c] sm:%s201] %v264
              $region49: #{ann_net_forward_streaming.3} parent=43 // loop_footer
                %s207 = sadd.s32 1, %s203
              $region50: #{ann_net_forward_streaming.3} parent=43 // loop_footer_branch
                %202 = sbr.rel target = $region46
              $region51: #{ann_net_forward_streaming.3} parent=43 // loop_exit
                _
            $region44: #{ann_net_forward_streaming.3} parent=35 // pred_fallthru
              _
          $region36: #{ann_net_forward_streaming.3} parent=31 // pred_fallthru
            _
          %342 = vnop
        $region32: #{ann_net_forward_streaming.3} parent=27 // pred_fallthru
          _
      $region28: #{ann_net_forward_streaming.3} parent=5 // pred_fallthru
        _
      %p343 = scmp.le.s32.totalorder 1, %s12
      %p344 = scmp.lt.s32.totalorder %s12, 8
      %p345 = pnand %p343, %p344
      %p346 = pneg %p345
      // Predicated region
      $region70: #{ann_net_forward_streaming.3} parent=5 // pred_check
        _
      $region71: #{ann_net_forward_streaming.3} parent=5 // pred_check_branch
        %348 = sbr.rel (%p345) target = $region73
      $region72: #{ann_net_forward_streaming.3} parent=5 // pred_region
        %s349 = ssub.s32 %s12, 1
        %s350 = sand.u32 %s25, 1
        %s351 = sand.u32 %s25, 1
        %s352 = smul.addr %s351, 112
        %s353 = scalar_lea.vmem [#allocation2], %s352
        // Predicated region
        $region74: #{ann_net_forward_streaming.3} parent=72 // pred_check
          %p354 = pneg %p38
        $region75: #{ann_net_forward_streaming.3} parent=72 // pred_check_branch
          %356 = sbr.rel (%p354) target = $region77
        $region76: #{ann_net_forward_streaming.3} parent=72 // pred_region
          _
        $region77: #{ann_net_forward_streaming.3} parent=72 // pred_fallthru
          _
        // Predicated region
        $region78: #{ann_net_forward_streaming.3} parent=72 // pred_check
          %p357 = pneg %p59
        $region79: #{ann_net_forward_streaming.3} parent=72 // pred_check_branch
          %359 = sbr.rel (%p357) target = $region81
        $region80: #{ann_net_forward_streaming.3} parent=72 // pred_region
          %361 = dma.done [#allocation4], 128
        $region81: #{ann_net_forward_streaming.3} parent=72 // pred_fallthru
          _
        // Predicated region
        $region82: #{ann_net_forward_streaming.3} parent=72 // pred_check
          %p362 = pneg %p80
        $region83: #{ann_net_forward_streaming.3} parent=72 // pred_check_branch
          %364 = sbr.rel (%p362) target = $region85
        $region84: #{ann_net_forward_streaming.3} parent=72 // pred_region
          %366 = dma.done [#allocation6], 16
        $region85: #{ann_net_forward_streaming.3} parent=72 // pred_fallthru
          _
        // Predicated region
        $region86: #{ann_net_forward_streaming.3} parent=72 // pred_check
          %p367 = pneg %p101
        $region87: #{ann_net_forward_streaming.3} parent=72 // pred_check_branch
          %369 = sbr.rel (%p367) target = $region89
        $region88: #{ann_net_forward_streaming.3} parent=72 // pred_region
          %371 = dma.done [#allocation6], 16
        $region89: #{ann_net_forward_streaming.3} parent=72 // pred_fallthru
          _
        %s372 = sand.u32 %s25, 1
        %s373 = sand.u32 %s25, 1
        %s374 = smul.addr %s373, 112
        %s375 = scalar_lea.vmem [#allocation2], %s374
        %p376 = pneg %p38
        %p377 = pneg %p35
        %p378 = pneg %p59
        %p379 = pneg %p56
        %p380 = pneg %p80
        %p381 = pneg %p77
        %p382 = pneg %p101
        %p383 = pneg %p98
        %p384 = pneg %p127
        %p385 = pneg %p124
        %s386 = smul.u32 7, %s17
        %p387 = scmp.lt.s32.totalorder %s386, 48
        %s388 = scalar_select %p387, %s386, 48
        %s389 = smul.addr %s388, 4
        %s390 = scalar_lea.vmem %s4, %s389
        %s391 = smul.u32 7, %s17
        %s392 = smul.u32 7, %s17
        %p393 = scmp.lt.s32.totalorder %s392, 48
        %s394 = scalar_select %p393, %s392, 48
        %s395 = smul.addr %s394, 4
        %s396 = scalar_lea.vmem %s4, %s395
        %s397 = smul.u32 7, %s17
        %v399 = vld [vmem:[#allocation3] sm:$0xf]
        %v400 = vld [vmem:[#allocation3 + $0x4] sm:$0x1]
        %v401 = vld [vmem:[%s353] sm:$0xf]
        %v402 = vld [vmem:[%s353 + $0x4] sm:$0xf]
        %v403 = vld [vmem:[%s353 + $0x8] sm:$0xf]
        %v404 = vld [vmem:[%s353 + $0xc] sm:$0xf]
        %v405 = vld [vmem:[%s353 + $0x10] sm:$0xf]
        %v406 = vld [vmem:[%s353 + $0x14] sm:$0xf]
        %v407 = vld [vmem:[%s353 + $0x18] sm:$0xf]
        %v415 = vunpack.c.l.b16 %v401
        %v416 = vunpack.c.l.b16 %v402
        %v417 = vunpack.c.l.b16 %v403
        %v418 = vunpack.c.l.b16 %v404
        %v419 = vunpack.c.l.b16 %v405
        %v420 = vunpack.c.l.b16 %v406
        %v421 = vunpack.c.l.b16 %v407
        %v422 = vpack.c.b16 %v416, %v415
        %v423 = vpack.c.b16 %v418, %v417
        %v424 = vpack.c.b16 %v420, %v419
        %v425 = vpack.c.b16 %v421, %v421
        %v428 = vunpack.c.l.b16 %v399
        %v429 = vunpack.c.l.b16 %v400
        %v430 = vpack.c.b16 %v429, %v428
        %vm431 = vcmask 72704
        %v433 = vsel %vm431, %v422, 0
        %v436 = vsel %vm431, %v423, 0
        %v439 = vsel %vm431, %v424, 0
        %v442 = vsel %vm431, %v425, 0
        %vm444 = vcmask 1043456
        %vm445 = vcmask 1044480
        %v446 = vsel %vm444, 4294967295, 65535
        %v447 = vsel %vm445, %v446, 0
        %v449 = vand.u32 %v430, %v447
        %451 = vmatpush.bf16.msra.mxu0 0
        %452 = vmatpush.bf16.msra.mxu0 0
        %453 = vmatpush.bf16.msra.mxu0 0
        %454 = vmatpush.bf16.msra.mxu0 0
        %455 = vmatpush.bf16.msra.mxu0 0
        %456 = vmatpush.bf16.msra.mxu0 0
        %457 = vmatpush.bf16.msra.mxu0 0
        %458 = vmatpush.bf16.msra.mxu0 %v449
        %459 = vmatmul.bf16.gmra.mxu0 %v433
        %v460 = vpop.f32.mrf.mxu0
        %v461 = vadd.f32 0.0, %v460
        %v462 = vpop.f32.mrf.mxu0
        %v463 = vadd.f32 0.0, %v462
        %464 = vmatmul.bf16.gmra.mxu0 %v436
        %v465 = vpop.f32.mrf.mxu0
        %v466 = vadd.f32 0.0, %v465
        %v467 = vpop.f32.mrf.mxu0
        %v468 = vadd.f32 0.0, %v467
        %469 = vmatmul.bf16.gmra.mxu0 %v439
        %v470 = vpop.f32.mrf.mxu0
        %v471 = vadd.f32 0.0, %v470
        %v472 = vpop.f32.mrf.mxu0
        %v473 = vadd.f32 0.0, %v472
        %474 = vmatmul.bf16.gmra.mxu0 %v442
        %v475 = vpop.f32.mrf.mxu0
        %v476 = vadd.f32 0.0, %v475
        %v477 = vpop.f32.mrf.mxu0
        %478 = vdwg.mxu0
        %v479 = vld [vmem:[#allocation5] sm:$0x1]
        %v481 = vperm.slane %v479, 0
        %v483 = vmul.f32 %v461, %v481
        %v484 = vmul.f32 %v463, %v481
        %v485 = vmul.f32 %v466, %v481
        %v486 = vmul.f32 %v468, %v481
        %v487 = vmul.f32 %v471, %v481
        %v488 = vmul.f32 %v473, %v481
        %v489 = vmul.f32 %v476, %v481
        %v490 = vld [vmem:[#allocation7] sm:$0x1]
        %v492 = vperm.slane %v490, 0
        %v494 = vadd.f32 %v483, %v492
        %v495 = vadd.f32 %v484, %v492
        %v496 = vadd.f32 %v485, %v492
        %v497 = vadd.f32 %v486, %v492
        %v498 = vadd.f32 %v487, %v492
        %v499 = vadd.f32 %v488, %v492
        %v500 = vadd.f32 %v489, %v492
        %s501 = scalar_lea.vmem %s353, 28 [#allocation2]
        %v502 = vld [vmem:[%s501] sm:$0xf]
        %v503 = vld [vmem:[%s501 + $0x4] sm:$0xf]
        %v504 = vld [vmem:[%s501 + $0x8] sm:$0xf]
        %v505 = vld [vmem:[%s501 + $0xc] sm:$0xf]
        %v506 = vld [vmem:[%s501 + $0x10] sm:$0xf]
        %v507 = vld [vmem:[%s501 + $0x14] sm:$0xf]
        %v508 = vld [vmem:[%s501 + $0x18] sm:$0xf]
        %v516 = vunpack.c.l.b16 %v502
        %v517 = vunpack.c.l.b16 %v503
        %v518 = vunpack.c.l.b16 %v504
        %v519 = vunpack.c.l.b16 %v505
        %v520 = vunpack.c.l.b16 %v506
        %v521 = vunpack.c.l.b16 %v507
        %v522 = vunpack.c.l.b16 %v508
        %v523 = vpack.c.b16 %v517, %v516
        %v524 = vpack.c.b16 %v519, %v518
        %v525 = vpack.c.b16 %v521, %v520
        %v526 = vpack.c.b16 %v522, %v522
        %v528 = vsel %vm431, %v523, 0
        %v531 = vsel %vm431, %v524, 0
        %v534 = vsel %vm431, %v525, 0
        %v537 = vsel %vm431, %v526, 0
        %539 = vmatpush.bf16.msra.mxu0 0
        %540 = vmatpush.bf16.msra.mxu0 0
        %541 = vmatpush.bf16.msra.mxu0 0
        %542 = vmatpush.bf16.msra.mxu0 0
        %543 = vmatpush.bf16.msra.mxu0 0
        %544 = vmatpush.bf16.msra.mxu0 0
        %545 = vmatpush.bf16.msra.mxu0 0
        %546 = vmatpush.bf16.msra.mxu0 %v449
        %547 = vmatmul.bf16.gmra.mxu0 %v528
        %v548 = vpop.f32.mrf.mxu0
        %v549 = vadd.f32 0.0, %v548
        %v550 = vpop.f32.mrf.mxu0
        %v551 = vadd.f32 0.0, %v550
        %552 = vmatmul.bf16.gmra.mxu0 %v531
        %v553 = vpop.f32.mrf.mxu0
        %v554 = vadd.f32 0.0, %v553
        %v555 = vpop.f32.mrf.mxu0
        %v556 = vadd.f32 0.0, %v555
        %557 = vmatmul.bf16.gmra.mxu0 %v534
        %v558 = vpop.f32.mrf.mxu0
        %v559 = vadd.f32 0.0, %v558
        %v560 = vpop.f32.mrf.mxu0
        %v561 = vadd.f32 0.0, %v560
        %562 = vmatmul.bf16.gmra.mxu0 %v537
        %v563 = vpop.f32.mrf.mxu0
        %v564 = vadd.f32 0.0, %v563
        %v565 = vpop.f32.mrf.mxu0
        %566 = vdwg.mxu0
        %v567 = vmul.f32 %v549, %v481
        %v568 = vmul.f32 %v551, %v481
        %v569 = vmul.f32 %v554, %v481
        %v570 = vmul.f32 %v556, %v481
        %v571 = vmul.f32 %v559, %v481
        %v572 = vmul.f32 %v561, %v481
        %v573 = vmul.f32 %v564, %v481
        %v574 = vadd.f32 %v567, %v492
        %v575 = vadd.f32 %v568, %v492
        %v576 = vadd.f32 %v569, %v492
        %v577 = vadd.f32 %v570, %v492
        %v578 = vadd.f32 %v571, %v492
        %v579 = vadd.f32 %v572, %v492
        %v580 = vadd.f32 %v573, %v492
        %v581 = vmax.f32 %v494, %v574
        %v582 = vmax.f32 %v495, %v575
        %v583 = vmax.f32 %v496, %v576
        %v584 = vmax.f32 %v497, %v577
        %v585 = vmax.f32 %v498, %v578
        %v586 = vmax.f32 %v499, %v579
        %v587 = vmax.f32 %v500, %v580
        %s588 = scalar_lea.vmem %s353, 56 [#allocation2]
        %v589 = vld [vmem:[%s588] sm:$0xf]
        %v590 = vld [vmem:[%s588 + $0x4] sm:$0xf]
        %v591 = vld [vmem:[%s588 + $0x8] sm:$0xf]
        %v592 = vld [vmem:[%s588 + $0xc] sm:$0xf]
        %v593 = vld [vmem:[%s588 + $0x10] sm:$0xf]
        %v594 = vld [vmem:[%s588 + $0x14] sm:$0xf]
        %v595 = vld [vmem:[%s588 + $0x18] sm:$0xf]
        %v603 = vunpack.c.l.b16 %v589
        %v604 = vunpack.c.l.b16 %v590
        %v605 = vunpack.c.l.b16 %v591
        %v606 = vunpack.c.l.b16 %v592
        %v607 = vunpack.c.l.b16 %v593
        %v608 = vunpack.c.l.b16 %v594
        %v609 = vunpack.c.l.b16 %v595
        %v610 = vpack.c.b16 %v604, %v603
        %v611 = vpack.c.b16 %v606, %v605
        %v612 = vpack.c.b16 %v608, %v607
        %v613 = vpack.c.b16 %v609, %v609
        %v615 = vsel %vm431, %v610, 0
        %v618 = vsel %vm431, %v611, 0
        %v621 = vsel %vm431, %v612, 0
        %v624 = vsel %vm431, %v613, 0
        %626 = vmatpush.bf16.msra.mxu0 0
        %627 = vmatpush.bf16.msra.mxu0 0
        %628 = vmatpush.bf16.msra.mxu0 0
        %629 = vmatpush.bf16.msra.mxu0 0
        %630 = vmatpush.bf16.msra.mxu0 0
        %631 = vmatpush.bf16.msra.mxu0 0
        %632 = vmatpush.bf16.msra.mxu0 0
        %633 = vmatpush.bf16.msra.mxu0 %v449
        %634 = vmatmul.bf16.gmra.mxu0 %v615
        %v635 = vpop.f32.mrf.mxu0
        %v636 = vadd.f32 0.0, %v635
        %v637 = vpop.f32.mrf.mxu0
        %v638 = vadd.f32 0.0, %v637
        %639 = vmatmul.bf16.gmra.mxu0 %v618
        %v640 = vpop.f32.mrf.mxu0
        %v641 = vadd.f32 0.0, %v640
        %v642 = vpop.f32.mrf.mxu0
        %v643 = vadd.f32 0.0, %v642
        %644 = vmatmul.bf16.gmra.mxu0 %v621
        %v645 = vpop.f32.mrf.mxu0
        %v646 = vadd.f32 0.0, %v645
        %v647 = vpop.f32.mrf.mxu0
        %v648 = vadd.f32 0.0, %v647
        %649 = vmatmul.bf16.gmra.mxu0 %v624
        %v650 = vpop.f32.mrf.mxu0
        %v651 = vadd.f32 0.0, %v650
        %v652 = vpop.f32.mrf.mxu0
        %653 = vdwg.mxu0
        %v654 = vmul.f32 %v636, %v481
        %v655 = vmul.f32 %v638, %v481
        %v656 = vmul.f32 %v641, %v481
        %v657 = vmul.f32 %v643, %v481
        %v658 = vmul.f32 %v646, %v481
        %v659 = vmul.f32 %v648, %v481
        %v660 = vmul.f32 %v651, %v481
        %v661 = vadd.f32 %v654, %v492
        %v662 = vadd.f32 %v655, %v492
        %v663 = vadd.f32 %v656, %v492
        %v664 = vadd.f32 %v657, %v492
        %v665 = vadd.f32 %v658, %v492
        %v666 = vadd.f32 %v659, %v492
        %v667 = vadd.f32 %v660, %v492
        %v668 = vmax.f32 %v581, %v661
        %v669 = vmax.f32 %v582, %v662
        %v670 = vmax.f32 %v583, %v663
        %v671 = vmax.f32 %v584, %v664
        %v672 = vmax.f32 %v585, %v665
        %v673 = vmax.f32 %v586, %v666
        %v674 = vmax.f32 %v587, %v667
        %s675 = scalar_lea.vmem %s353, 84 [#allocation2]
        %v676 = vld [vmem:[%s675] sm:$0xf]
        %v677 = vld [vmem:[%s675 + $0x4] sm:$0xf]
        %v678 = vld [vmem:[%s675 + $0x8] sm:$0xf]
        %v679 = vld [vmem:[%s675 + $0xc] sm:$0xf]
        %v680 = vld [vmem:[%s675 + $0x10] sm:$0xf]
        %v681 = vld [vmem:[%s675 + $0x14] sm:$0xf]
        %v682 = vld [vmem:[%s675 + $0x18] sm:$0xf]
        %v690 = vunpack.c.l.b16 %v676
        %v691 = vunpack.c.l.b16 %v677
        %v692 = vunpack.c.l.b16 %v678
        %v693 = vunpack.c.l.b16 %v679
        %v694 = vunpack.c.l.b16 %v680
        %v695 = vunpack.c.l.b16 %v681
        %v696 = vunpack.c.l.b16 %v682
        %v697 = vpack.c.b16 %v691, %v690
        %v698 = vpack.c.b16 %v693, %v692
        %v699 = vpack.c.b16 %v695, %v694
        %v700 = vpack.c.b16 %v696, %v696
        %v702 = vsel %vm431, %v697, 0
        %v705 = vsel %vm431, %v698, 0
        %v708 = vsel %vm431, %v699, 0
        %v711 = vsel %vm431, %v700, 0
        %713 = vmatpush.bf16.msra.mxu0 0
        %714 = vmatpush.bf16.msra.mxu0 0
        %715 = vmatpush.bf16.msra.mxu0 0
        %716 = vmatpush.bf16.msra.mxu0 0
        %717 = vmatpush.bf16.msra.mxu0 0
        %718 = vmatpush.bf16.msra.mxu0 0
        %719 = vmatpush.bf16.msra.mxu0 0
        %720 = vmatpush.bf16.msra.mxu0 %v449
        %721 = vmatmul.bf16.gmra.mxu0 %v702
        %v722 = vpop.f32.mrf.mxu0
        %v723 = vadd.f32 0.0, %v722
        %v724 = vpop.f32.mrf.mxu0
        %v725 = vadd.f32 0.0, %v724
        %726 = vmatmul.bf16.gmra.mxu0 %v705
        %v727 = vpop.f32.mrf.mxu0
        %v728 = vadd.f32 0.0, %v727
        %v729 = vpop.f32.mrf.mxu0
        %v730 = vadd.f32 0.0, %v729
        %731 = vmatmul.bf16.gmra.mxu0 %v708
        %v732 = vpop.f32.mrf.mxu0
        %v733 = vadd.f32 0.0, %v732
        %v734 = vpop.f32.mrf.mxu0
        %v735 = vadd.f32 0.0, %v734
        %736 = vmatmul.bf16.gmra.mxu0 %v711
        %v737 = vpop.f32.mrf.mxu0
        %v738 = vadd.f32 0.0, %v737
        %v739 = vpop.f32.mrf.mxu0
        %740 = vdwg.mxu0
        %v741 = vmul.f32 %v723, %v481
        %v742 = vmul.f32 %v725, %v481
        %v743 = vmul.f32 %v728, %v481
        %v744 = vmul.f32 %v730, %v481
        %v745 = vmul.f32 %v733, %v481
        %v746 = vmul.f32 %v735, %v481
        %v747 = vmul.f32 %v738, %v481
        %v748 = vadd.f32 %v741, %v492
        %v749 = vadd.f32 %v742, %v492
        %v750 = vadd.f32 %v743, %v492
        %v751 = vadd.f32 %v744, %v492
        %v752 = vadd.f32 %v745, %v492
        %v753 = vadd.f32 %v746, %v492
        %v754 = vadd.f32 %v747, %v492
        %v755 = vmax.f32 %v668, %v748
        %v756 = vmax.f32 %v669, %v749
        %v757 = vmax.f32 %v670, %v750
        %v758 = vmax.f32 %v671, %v751
        %v759 = vmax.f32 %v672, %v752
        %v760 = vmax.f32 %v673, %v753
        %v761 = vmax.f32 %v674, %v754
        %v762 = vmax.f32 %v755, 0.0
        %v763 = vmax.f32 %v756, 0.0
        %v764 = vmax.f32 %v757, 0.0
        %v765 = vmax.f32 %v758, 0.0
        %v766 = vmax.f32 %v759, 0.0
        %v767 = vmax.f32 %v760, 0.0
        %v768 = vmax.f32 %v761, 0.0
        %v769 = vpack.c.bf16 %v762, %v762
        %v770 = vpack.c.bf16 %v763, %v763
        %v771 = vpack.c.bf16 %v764, %v764
        %v772 = vpack.c.bf16 %v765, %v765
        %v773 = vpack.c.bf16 %v766, %v766
        %v774 = vpack.c.bf16 %v767, %v767
        %v775 = vpack.c.bf16 %v768, %v768
        %776 = vst [vmem:[%s396] sm:$0xf] %v769
        %777 = vst [vmem:[%s396 + $0x4] sm:$0xf] %v770
        %778 = vst [vmem:[%s396 + $0x8] sm:$0xf] %v771
        %779 = vst [vmem:[%s396 + $0xc] sm:$0xf] %v772
        %780 = vst [vmem:[%s396 + $0x10] sm:$0xf] %v773
        %781 = vst [vmem:[%s396 + $0x14] sm:$0xf] %v774
        %782 = vst [vmem:[%s396 + $0x18] sm:$0xf] %v775
        %s783 = smul.u32 7, %s17
        %p784 = scmp.lt.s32.totalorder %s783, 48
        %s785 = scalar_select %p784, %s783, 48
        %s786 = smul.addr %s785, 4
        %s787 = scalar_lea.vmem %s4, %s786
        // Predicated region
        $region90: #{ann_net_forward_streaming.3} parent=72 // pred_check
          %p788 = pneg %p124
        $region91: #{ann_net_forward_streaming.3} parent=72 // pred_check_branch
          %790 = sbr.rel (%p788) target = $region93
        $region92: #{ann_net_forward_streaming.3} parent=72 // pred_region
          %s791 = smul.u32 7, %s17
        $region93: #{ann_net_forward_streaming.3} parent=72 // pred_fallthru
          _
      $region73: #{ann_net_forward_streaming.3} parent=5 // pred_fallthru
        _
      %p792 = scmp.le.s32.totalorder 2, %s12
      // Predicated region
      $region94: #{ann_net_forward_streaming.3} parent=5 // pred_check
        %p793 = pneg %p792
      $region95: #{ann_net_forward_streaming.3} parent=5 // pred_check_branch
        %795 = sbr.rel (%p793) target = $region97
      $region96: #{ann_net_forward_streaming.3} parent=5 // pred_region
        %s796 = ssub.s32 %s12, 2
        // Predicated region
        $region98: #{ann_net_forward_streaming.3} parent=96 // pred_check
          %p797 = pneg %p130
        $region99: #{ann_net_forward_streaming.3} parent=96 // pred_check_branch
          %799 = sbr.rel (%p797) target = $region101
        $region100: #{ann_net_forward_streaming.3} parent=96 // pred_region
          %s800 = smul.u32 7, %s18
          %p801 = scmp.lt.s32.totalorder %s800, 48
          %s802 = scalar_select %p801, %s800, 48
          %s803 = smul.addr %s802, 4
          %s804 = scalar_lea.vmem %s4, %s803
        $region101: #{ann_net_forward_streaming.3} parent=96 // pred_fallthru
          _
      $region97: #{ann_net_forward_streaming.3} parent=5 // pred_fallthru
        _
    $region6: #{ann_net_forward_streaming.3} parent=1 // loop_footer
      %s16 = sadd.s32 1, %s12
    $region7: #{ann_net_forward_streaming.3} parent=1 // loop_footer_branch
      %11 = sbr.rel target = $region3
    $region8: #{ann_net_forward_streaming.3} parent=1 // loop_exit
      _
    %805 = vsyncpa [#allocation4], 1
    %s806 = scalar_lea.sflag [#allocation4], 1
    %807 = vsyncpa %s806, 1
    %808 = vsyncpa [#allocation6], 1

// kernel: ann_net_forward_streaming.4
$region0: #{ann_net_forward_streaming.4}
  #allocation0 [shape = 'u32[]', space=smem, size = 0x4, offset = 0x4, fixed_abs, tag = 'smem constant byte address 0x4 - core index']
  #allocation1 [shape = 'u32[72,128]{1,0:T(1,128)}', space=vmem, size = 0x9000, scoped, tag = 'internal scratch']
  %s0 = inlined_call_operand.vmem [shape: bf16[4,98,1152], index: 0, kind: input, shape index: {}]
  %s1 = inlined_call_operand.hbm [shape: bf16[1152,128], index: 1, kind: input, shape index: {}]
  %s2 = inlined_call_operand.hbm [shape: f32[1,128], index: 2, kind: input, shape index: {}]
  %s3 = inlined_call_operand.hbm [shape: f32[1,128], index: 3, kind: input, shape index: {}]
  %s4 = inlined_call_operand.vmem [shape: bf16[98,128], index: 4, kind: output, shape index: {}]
  %s5 = sld [smem:[#allocation0]]
  $region38: #{ann_net_forward_streaming.4} parent=0
    _
  %s7 = ssub.s32 1, %s5
  %s8 = scalar_select 0, %s7, %s5
  $region1: #{ann_net_forward_streaming.4} parent=0
    #allocation2 [shape = 'u8[294912]{0}', space=vmem, size = 0x48000, scoped, tag = 'input window, operand 1, single buffered']
    #allocation3 [shape = 's32[1]{0}', space=sflag, size = 0x4, scoped, tag = 'scoped memory for ann_net_forward_streaming.4']
    #allocation4 [shape = 'u8[512]{0}', space=vmem, size = 0x400, scoped, tag = 'input window, operand 2, single buffered']
    #allocation5 [shape = 's32[1]{0}', space=sflag, size = 0x4, scoped, tag = 'scoped memory for ann_net_forward_streaming.4']
    #allocation6 [shape = 'u8[512]{0}', space=vmem, size = 0x400, scoped, tag = 'input window, operand 3, single buffered']
    %9 = vsyncpa [#allocation3], 0
    %10 = vsyncpa [#allocation5], 0
    // Predicated region
    $region2: #{ann_net_forward_streaming.4} parent=1 // pred_check
      _
    $region3: #{ann_net_forward_streaming.4} parent=1 // pred_check_branch
      %12 = sbr.rel (0) target = $region5
    $region4: #{ann_net_forward_streaming.4} parent=1 // pred_region
      _
    $region5: #{ann_net_forward_streaming.4} parent=1 // pred_fallthru
      _
    // Predicated region
    $region6: #{ann_net_forward_streaming.4} parent=1 // pred_check
      _
    $region7: #{ann_net_forward_streaming.4} parent=1 // pred_check_branch
      %14 = sbr.rel (0) target = $region9
    $region8: #{ann_net_forward_streaming.4} parent=1 // pred_region
      %16 = vsyncadd [#allocation3], 0
      %s17 = sshll.u32 %s1, 4
      %s18 = int_to_ptr.hbm [resolvable:$true] %s17
      %s19 = sshll.u32 [#allocation2], 4
      %s20 = int_to_ptr.vmem [resolvable:$true] %s19
      %25 = dma.hbm_to_vmem [thread:$0]  %s18, 9216, %s20, [#allocation3], 64, 64, 4
    $region9: #{ann_net_forward_streaming.4} parent=1 // pred_fallthru
      _
    // Predicated region
    $region10: #{ann_net_forward_streaming.4} parent=1 // pred_check
      _
    $region11: #{ann_net_forward_streaming.4} parent=1 // pred_check_branch
      %27 = sbr.rel (0) target = $region13
    $region12: #{ann_net_forward_streaming.4} parent=1 // pred_region
      %29 = vsyncadd [#allocation5], 0
      %s31 = sshll.u32 %s2, 4
      %s32 = int_to_ptr.hbm [resolvable:$true] %s31
      %s33 = sshll.u32 [#allocation4], 4
      %s34 = int_to_ptr.vmem [resolvable:$true] %s33
      %36 = dma.hbm_to_vmem [thread:$0]  %s32, 16, %s34, [#allocation5]
    $region13: #{ann_net_forward_streaming.4} parent=1 // pred_fallthru
      _
    // Predicated region
    $region14: #{ann_net_forward_streaming.4} parent=1 // pred_check
      _
    $region15: #{ann_net_forward_streaming.4} parent=1 // pred_check_branch
      %38 = sbr.rel (0) target = $region17
    $region16: #{ann_net_forward_streaming.4} parent=1 // pred_region
      %40 = vsyncadd [#allocation5], 0
      %s42 = sshll.u32 %s3, 4
      %s43 = int_to_ptr.hbm [resolvable:$true] %s42
      %s44 = sshll.u32 [#allocation6], 4
      %s45 = int_to_ptr.vmem [resolvable:$true] %s44
      %47 = dma.hbm_to_vmem [thread:$0]  %s43, 16, %s45, [#allocation5]
    $region17: #{ann_net_forward_streaming.4} parent=1 // pred_fallthru
      _
    // Predicated region
    $region18: #{ann_net_forward_streaming.4} parent=1 // pred_check
      _
    $region19: #{ann_net_forward_streaming.4} parent=1 // pred_check_branch
      %49 = sbr.rel (0) target = $region21
    $region20: #{ann_net_forward_streaming.4} parent=1 // pred_region
      %51 = dma.done [#allocation3], 9216
    $region21: #{ann_net_forward_streaming.4} parent=1 // pred_fallthru
      _
    // Predicated region
    $region22: #{ann_net_forward_streaming.4} parent=1 // pred_check
      _
    $region23: #{ann_net_forward_streaming.4} parent=1 // pred_check_branch
      %53 = sbr.rel (0) target = $region25
    $region24: #{ann_net_forward_streaming.4} parent=1 // pred_region
      %55 = dma.done [#allocation5], 16
    $region25: #{ann_net_forward_streaming.4} parent=1 // pred_fallthru
      _
    // Predicated region
    $region26: #{ann_net_forward_streaming.4} parent=1 // pred_check
      _
    $region27: #{ann_net_forward_streaming.4} parent=1 // pred_check_branch
      %57 = sbr.rel (0) target = $region29
    $region28: #{ann_net_forward_streaming.4} parent=1 // pred_region
      %59 = dma.done [#allocation5], 16
    $region29: #{ann_net_forward_streaming.4} parent=1 // pred_fallthru
      _
    %v60 = vld [vmem:[#allocation2] sm:$0xf]
    %v61 = vld [vmem:[#allocation2 + $0x4] sm:$0xf]
    %v62 = vld [vmem:[#allocation2 + $0x8] sm:$0xf]
    %v63 = vld [vmem:[#allocation2 + $0xc] sm:$0xf]
    %v64 = vld [vmem:[#allocation2 + $0x10] sm:$0xf]
    %v65 = vld [vmem:[#allocation2 + $0x14] sm:$0xf]
    %v66 = vld [vmem:[#allocation2 + $0x18] sm:$0xf]
    %v67 = vld [vmem:[#allocation2 + $0x1c] sm:$0xf]
    %v68 = vld [vmem:[#allocation2 + $0x20] sm:$0xf]
    %v69 = vld [vmem:[#allocation2 + $0x24] sm:$0xf]
    %v70 = vld [vmem:[#allocation2 + $0x28] sm:$0xf]
    %v71 = vld [vmem:[#allocation2 + $0x2c] sm:$0xf]
    %v72 = vld [vmem:[#allocation2 + $0x30] sm:$0xf]
    %v73 = vld [vmem:[#allocation2 + $0x34] sm:$0xf]
    %v74 = vld [vmem:[#allocation2 + $0x38] sm:$0xf]
    %v75 = vld [vmem:[#allocation2 + $0x3c] sm:$0xf]
    %v76 = vld [vmem:[#allocation2 + $0x40] sm:$0xf]
    %v77 = vld [vmem:[#allocation2 + $0x44] sm:$0xf]
    %v78 = vld [vmem:[#allocation2 + $0x48] sm:$0xf]
    %v79 = vld [vmem:[#allocation2 + $0x4c] sm:$0xf]
    %v80 = vld [vmem:[#allocation2 + $0x50] sm:$0xf]
    %v81 = vld [vmem:[#allocation2 + $0x54] sm:$0xf]
    %v82 = vld [vmem:[#allocation2 + $0x58] sm:$0xf]
    %v83 = vld [vmem:[#allocation2 + $0x5c] sm:$0xf]
    %v84 = vld [vmem:[#allocation2 + $0x60] sm:$0xf]
    %v85 = vld [vmem:[#allocation2 + $0x64] sm:$0xf]
    %v86 = vld [vmem:[#allocation2 + $0x68] sm:$0xf]
    %v87 = vld [vmem:[#allocation2 + $0x6c] sm:$0xf]
    %v88 = vld [vmem:[#allocation2 + $0x70] sm:$0xf]
    %v89 = vld [vmem:[#allocation2 + $0x74] sm:$0xf]
    %v90 = vld [vmem:[#allocation2 + $0x78] sm:$0xf]
    %v91 = vld [vmem:[#allocation2 + $0x7c] sm:$0xf]
    %v92 = vld [vmem:[#allocation2 + $0x80] sm:$0xf]
    %v93 = vld [vmem:[#allocation2 + $0x84] sm:$0xf]
    %v94 = vld [vmem:[#allocation2 + $0x88] sm:$0xf]
    %v95 = vld [vmem:[#allocation2 + $0x8c] sm:$0xf]
    %v96 = vld [vmem:[#allocation2 + $0x90] sm:$0xf]
    %v97 = vld [vmem:[#allocation2 + $0x94] sm:$0xf]
    %v98 = vld [vmem:[#allocation2 + $0x98] sm:$0xf]
    %v99 = vld [vmem:[#allocation2 + $0x9c] sm:$0xf]
    %v100 = vld [vmem:[#allocation2 + $0xa0] sm:$0xf]
    %v101 = vld [vmem:[#allocation2 + $0xa4] sm:$0xf]
    %v102 = vld [vmem:[#allocation2 + $0xa8] sm:$0xf]
    %v103 = vld [vmem:[#allocation2 + $0xac] sm:$0xf]
    %v104 = vld [vmem:[#allocation2 + $0xb0] sm:$0xf]
    %v105 = vld [vmem:[#allocation2 + $0xb4] sm:$0xf]
    %v106 = vld [vmem:[#allocation2 + $0xb8] sm:$0xf]
    %v107 = vld [vmem:[#allocation2 + $0xbc] sm:$0xf]
    %v108 = vld [vmem:[#allocation2 + $0xc0] sm:$0xf]
    %v109 = vld [vmem:[#allocation2 + $0xc4] sm:$0xf]
    %v110 = vld [vmem:[#allocation2 + $0xc8] sm:$0xf]
    %v111 = vld [vmem:[#allocation2 + $0xcc] sm:$0xf]
    %v112 = vld [vmem:[#allocation2 + $0xd0] sm:$0xf]
    %v113 = vld [vmem:[#allocation2 + $0xd4] sm:$0xf]
    %v114 = vld [vmem:[#allocation2 + $0xd8] sm:$0xf]
    %v115 = vld [vmem:[#allocation2 + $0xdc] sm:$0xf]
    %v116 = vld [vmem:[#allocation2 + $0xe0] sm:$0xf]
    %v117 = vld [vmem:[#allocation2 + $0xe4] sm:$0xf]
    %v118 = vld [vmem:[#allocation2 + $0xe8] sm:$0xf]
    %v119 = vld [vmem:[#allocation2 + $0xec] sm:$0xf]
    %v120 = vld [vmem:[#allocation2 + $0xf0] sm:$0xf]
    %v121 = vld [vmem:[#allocation2 + $0xf4] sm:$0xf]
    %v122 = vld [vmem:[#allocation2 + $0xf8] sm:$0xf]
    %v123 = vld [vmem:[#allocation2 + $0xfc] sm:$0xf]
    %v124 = vld [vmem:[#allocation2 + $0x100] sm:$0xf]
    %v125 = vld [vmem:[#allocation2 + $0x104] sm:$0xf]
    %v126 = vld [vmem:[#allocation2 + $0x108] sm:$0xf]
    %v127 = vld [vmem:[#allocation2 + $0x10c] sm:$0xf]
    %v128 = vld [vmem:[#allocation2 + $0x110] sm:$0xf]
    %v129 = vld [vmem:[#allocation2 + $0x114] sm:$0xf]
    %v130 = vld [vmem:[#allocation2 + $0x118] sm:$0xf]
    %v131 = vld [vmem:[#allocation2 + $0x11c] sm:$0xf]
    %v132 = vld [vmem:[#allocation2 + $0x120] sm:$0xf]
    %v133 = vld [vmem:[#allocation2 + $0x124] sm:$0xf]
    %v134 = vld [vmem:[#allocation2 + $0x128] sm:$0xf]
    %v135 = vld [vmem:[#allocation2 + $0x12c] sm:$0xf]
    %v136 = vld [vmem:[#allocation2 + $0x130] sm:$0xf]
    %v137 = vld [vmem:[#allocation2 + $0x134] sm:$0xf]
    %v138 = vld [vmem:[#allocation2 + $0x138] sm:$0xf]
    %v139 = vld [vmem:[#allocation2 + $0x13c] sm:$0xf]
    %v140 = vld [vmem:[#allocation2 + $0x140] sm:$0xf]
    %v141 = vld [vmem:[#allocation2 + $0x144] sm:$0xf]
    %v142 = vld [vmem:[#allocation2 + $0x148] sm:$0xf]
    %v143 = vld [vmem:[#allocation2 + $0x14c] sm:$0xf]
    %v144 = vld [vmem:[#allocation2 + $0x150] sm:$0xf]
    %v145 = vld [vmem:[#allocation2 + $0x154] sm:$0xf]
    %v146 = vld [vmem:[#allocation2 + $0x158] sm:$0xf]
    %v147 = vld [vmem:[#allocation2 + $0x15c] sm:$0xf]
    %v148 = vld [vmem:[#allocation2 + $0x160] sm:$0xf]
    %v149 = vld [vmem:[#allocation2 + $0x164] sm:$0xf]
    %v150 = vld [vmem:[#allocation2 + $0x168] sm:$0xf]
    %v151 = vld [vmem:[#allocation2 + $0x16c] sm:$0xf]
    %v152 = vld [vmem:[#allocation2 + $0x170] sm:$0xf]
    %v153 = vld [vmem:[#allocation2 + $0x174] sm:$0xf]
    %v154 = vld [vmem:[#allocation2 + $0x178] sm:$0xf]
    %v155 = vld [vmem:[#allocation2 + $0x17c] sm:$0xf]
    %v156 = vld [vmem:[#allocation2 + $0x180] sm:$0xf]
    %v157 = vld [vmem:[#allocation2 + $0x184] sm:$0xf]
    %v158 = vld [vmem:[#allocation2 + $0x188] sm:$0xf]
    %v159 = vld [vmem:[#allocation2 + $0x18c] sm:$0xf]
    %v160 = vld [vmem:[#allocation2 + $0x190] sm:$0xf]
    %v161 = vld [vmem:[#allocation2 + $0x194] sm:$0xf]
    %v162 = vld [vmem:[#allocation2 + $0x198] sm:$0xf]
    %v163 = vld [vmem:[#allocation2 + $0x19c] sm:$0xf]
    %v164 = vld [vmem:[#allocation2 + $0x1a0] sm:$0xf]
    %v165 = vld [vmem:[#allocation2 + $0x1a4] sm:$0xf]
    %v166 = vld [vmem:[#allocation2 + $0x1a8] sm:$0xf]
    %v167 = vld [vmem:[#allocation2 + $0x1ac] sm:$0xf]
    %v168 = vld [vmem:[#allocation2 + $0x1b0] sm:$0xf]
    %v169 = vld [vmem:[#allocation2 + $0x1b4] sm:$0xf]
    %v170 = vld [vmem:[#allocation2 + $0x1b8] sm:$0xf]
    %v171 = vld [vmem:[#allocation2 + $0x1bc] sm:$0xf]
    %v172 = vld [vmem:[#allocation2 + $0x1c0] sm:$0xf]
    %v173 = vld [vmem:[#allocation2 + $0x1c4] sm:$0xf]
    %v174 = vld [vmem:[#allocation2 + $0x1c8] sm:$0xf]
    %v175 = vld [vmem:[#allocation2 + $0x1cc] sm:$0xf]
    %v176 = vld [vmem:[#allocation2 + $0x1d0] sm:$0xf]
    %v177 = vld [vmem:[#allocation2 + $0x1d4] sm:$0xf]
    %v178 = vld [vmem:[#allocation2 + $0x1d8] sm:$0xf]
    %v179 = vld [vmem:[#allocation2 + $0x1dc] sm:$0xf]
    %v180 = vld [vmem:[#allocation2 + $0x1e0] sm:$0xf]
    %v181 = vld [vmem:[#allocation2 + $0x1e4] sm:$0xf]
    %v182 = vld [vmem:[#allocation2 + $0x1e8] sm:$0xf]
    %v183 = vld [vmem:[#allocation2 + $0x1ec] sm:$0xf]
    %v184 = vld [vmem:[#allocation2 + $0x1f0] sm:$0xf]
    %v185 = vld [vmem:[#allocation2 + $0x1f4] sm:$0xf]
    %v186 = vld [vmem:[#allocation2 + $0x1f8] sm:$0xf]
    %v187 = vld [vmem:[#allocation2 + $0x1fc] sm:$0xf]
    %v188 = vld [vmem:[#allocation2 + $0x200] sm:$0xf]
    %v189 = vld [vmem:[#allocation2 + $0x204] sm:$0xf]
    %v190 = vld [vmem:[#allocation2 + $0x208] sm:$0xf]
    %v191 = vld [vmem:[#allocation2 + $0x20c] sm:$0xf]
    %v192 = vld [vmem:[#allocation2 + $0x210] sm:$0xf]
    %v193 = vld [vmem:[#allocation2 + $0x214] sm:$0xf]
    %v194 = vld [vmem:[#allocation2 + $0x218] sm:$0xf]
    %v195 = vld [vmem:[#allocation2 + $0x21c] sm:$0xf]
    %v196 = vld [vmem:[#allocation2 + $0x220] sm:$0xf]
    %v197 = vld [vmem:[#allocation2 + $0x224] sm:$0xf]
    %v198 = vld [vmem:[#allocation2 + $0x228] sm:$0xf]
    %v199 = vld [vmem:[#allocation2 + $0x22c] sm:$0xf]
    %v200 = vld [vmem:[#allocation2 + $0x230] sm:$0xf]
    %v201 = vld [vmem:[#allocation2 + $0x234] sm:$0xf]
    %v202 = vld [vmem:[#allocation2 + $0x238] sm:$0xf]
    %v203 = vld [vmem:[#allocation2 + $0x23c] sm:$0xf]
    %v204 = vld [vmem:[%s0] sm:$0xff]
    %v205 = vld [vmem:[%s0 + $0x8] sm:$0xff]
    %v206 = vld [vmem:[%s0 + $0x10] sm:$0xff]
    %v207 = vld [vmem:[%s0 + $0x18] sm:$0xff]
    %v208 = vld [vmem:[%s0 + $0x20] sm:$0xf]
    %v209 = vld [vmem:[%s0 + $0x24] sm:$0xff]
    %v210 = vld [vmem:[%s0 + $0x2c] sm:$0xff]
    %v211 = vld [vmem:[%s0 + $0x34] sm:$0xff]
    %v212 = vld [vmem:[%s0 + $0x3c] sm:$0xff]
    %v213 = vld [vmem:[%s0 + $0x44] sm:$0xf]
    %v214 = vld [vmem:[%s0 + $0x48] sm:$0xff]
    %v215 = vld [vmem:[%s0 + $0x50] sm:$0xff]
    %v216 = vld [vmem:[%s0 + $0x58] sm:$0xff]
    %v217 = vld [vmem:[%s0 + $0x60] sm:$0xff]
    %v218 = vld [vmem:[%s0 + $0x68] sm:$0xf]
    %v219 = vld [vmem:[%s0 + $0x6c] sm:$0xff]
    %v220 = vld [vmem:[%s0 + $0x74] sm:$0xff]
    %v221 = vld [vmem:[%s0 + $0x7c] sm:$0xff]
    %v222 = vld [vmem:[%s0 + $0x84] sm:$0xff]
    %v223 = vld [vmem:[%s0 + $0x8c] sm:$0xf]
    %v224 = vld [vmem:[%s0 + $0x90] sm:$0xff]
    %v225 = vld [vmem:[%s0 + $0x98] sm:$0xff]
    %v226 = vld [vmem:[%s0 + $0xa0] sm:$0xff]
    %v227 = vld [vmem:[%s0 + $0xa8] sm:$0xff]
    %v228 = vld [vmem:[%s0 + $0xb0] sm:$0xf]
    %v229 = vld [vmem:[%s0 + $0xb4] sm:$0xff]
    %v230 = vld [vmem:[%s0 + $0xbc] sm:$0xff]
    %v231 = vld [vmem:[%s0 + $0xc4] sm:$0xff]
    %v232 = vld [vmem:[%s0 + $0xcc] sm:$0xff]
    %v233 = vld [vmem:[%s0 + $0xd4] sm:$0xf]
    %v234 = vld [vmem:[%s0 + $0xd8] sm:$0xff]
    %v235 = vld [vmem:[%s0 + $0xe0] sm:$0xff]
    %v236 = vld [vmem:[%s0 + $0xe8] sm:$0xff]
    %v237 = vld [vmem:[%s0 + $0xf0] sm:$0xff]
    %v238 = vld [vmem:[%s0 + $0xf8] sm:$0xf]
    %v239 = vld [vmem:[%s0 + $0xfc] sm:$0xff]
    %v240 = vld [vmem:[%s0 + $0x104] sm:$0xff]
    %v241 = vld [vmem:[%s0 + $0x10c] sm:$0xff]
    %v242 = vld [vmem:[%s0 + $0x114] sm:$0xff]
    %v243 = vld [vmem:[%s0 + $0x11c] sm:$0xf]
    %v244 = vld [vmem:[%s0 + $0x120] sm:$0xff]
    %v245 = vld [vmem:[%s0 + $0x128] sm:$0xff]
    %v246 = vld [vmem:[%s0 + $0x130] sm:$0xff]
    %v247 = vld [vmem:[%s0 + $0x138] sm:$0xff]
    %v248 = vld [vmem:[%s0 + $0x140] sm:$0xf]
    %v249 = vld [vmem:[%s0 + $0x144] sm:$0xff]
    %v250 = vld [vmem:[%s0 + $0x14c] sm:$0xff]
    %v251 = vld [vmem:[%s0 + $0x154] sm:$0xff]
    %v252 = vld [vmem:[%s0 + $0x15c] sm:$0xff]
    %v253 = vld [vmem:[%s0 + $0x164] sm:$0xf]
    %v254 = vld [vmem:[%s0 + $0x168] sm:$0xff]
    %v255 = vld [vmem:[%s0 + $0x170] sm:$0xff]
    %v256 = vld [vmem:[%s0 + $0x178] sm:$0xff]
    %v257 = vld [vmem:[%s0 + $0x180] sm:$0xff]
    %v258 = vld [vmem:[%s0 + $0x188] sm:$0xf]
    %v259 = vld [vmem:[%s0 + $0x18c] sm:$0xff]
    %v260 = vld [vmem:[%s0 + $0x194] sm:$0xff]
    %v261 = vld [vmem:[%s0 + $0x19c] sm:$0xff]
    %v262 = vld [vmem:[%s0 + $0x1a4] sm:$0xff]
    %v263 = vld [vmem:[%s0 + $0x1ac] sm:$0xf]
    %v264 = vld [vmem:[%s0 + $0x1b0] sm:$0x11]
    %v265 = vld [vmem:[%s0 + $0x1b8] sm:$0x11]
    %v266 = vld [vmem:[%s0 + $0x1c0] sm:$0x11]
    %v267 = vld [vmem:[%s0 + $0x1c8] sm:$0x11]
    %v268 = vld [vmem:[%s0 + $0x1d0] sm:$0x1]
    %v334 = vunpack.c.l.b16 %v204
    %v335 = vunpack.c.h.b16 %v204
    %v336 = vunpack.c.l.b16 %v205
    %v337 = vunpack.c.h.b16 %v205
    %v338 = vunpack.c.l.b16 %v206
    %v339 = vunpack.c.h.b16 %v206
    %v340 = vunpack.c.l.b16 %v207
    %v341 = vunpack.c.h.b16 %v207
    %v342 = vunpack.c.l.b16 %v208
    %v343 = vunpack.c.l.b16 %v209
    %v344 = vunpack.c.h.b16 %v209
    %v345 = vunpack.c.l.b16 %v210
    %v346 = vunpack.c.h.b16 %v210
    %v347 = vunpack.c.l.b16 %v211
    %v348 = vunpack.c.h.b16 %v211
    %v349 = vunpack.c.l.b16 %v212
    %v350 = vunpack.c.h.b16 %v212
    %v351 = vunpack.c.l.b16 %v213
    %v352 = vunpack.c.l.b16 %v214
    %v353 = vunpack.c.h.b16 %v214
    %v354 = vunpack.c.l.b16 %v215
    %v355 = vunpack.c.h.b16 %v215
    %v356 = vunpack.c.l.b16 %v216
    %v357 = vunpack.c.h.b16 %v216
    %v358 = vunpack.c.l.b16 %v217
    %v359 = vunpack.c.h.b16 %v217
    %v360 = vunpack.c.l.b16 %v218
    %v361 = vunpack.c.l.b16 %v219
    %v362 = vunpack.c.h.b16 %v219
    %v363 = vunpack.c.l.b16 %v220
    %v364 = vunpack.c.h.b16 %v220
    %v365 = vunpack.c.l.b16 %v221
    %v366 = vunpack.c.h.b16 %v221
    %v367 = vunpack.c.l.b16 %v222
    %v368 = vunpack.c.h.b16 %v222
    %v369 = vunpack.c.l.b16 %v223
    %v370 = vunpack.c.l.b16 %v224
    %v371 = vunpack.c.h.b16 %v224
    %v372 = vunpack.c.l.b16 %v225
    %v373 = vunpack.c.h.b16 %v225
    %v374 = vunpack.c.l.b16 %v226
    %v375 = vunpack.c.h.b16 %v226
    %v376 = vunpack.c.l.b16 %v227
    %v377 = vunpack.c.h.b16 %v227
    %v378 = vunpack.c.l.b16 %v228
    %v379 = vunpack.c.l.b16 %v229
    %v380 = vunpack.c.h.b16 %v229
    %v381 = vunpack.c.l.b16 %v230
    %v382 = vunpack.c.h.b16 %v230
    %v383 = vunpack.c.l.b16 %v231
    %v384 = vunpack.c.h.b16 %v231
    %v385 = vunpack.c.l.b16 %v232
    %v386 = vunpack.c.h.b16 %v232
    %v387 = vunpack.c.l.b16 %v233
    %v388 = vunpack.c.l.b16 %v234
    %v389 = vunpack.c.h.b16 %v234
    %v390 = vunpack.c.l.b16 %v235
    %v391 = vunpack.c.h.b16 %v235
    %v392 = vunpack.c.l.b16 %v236
    %v393 = vunpack.c.h.b16 %v236
    %v394 = vunpack.c.l.b16 %v237
    %v395 = vunpack.c.h.b16 %v237
    %v396 = vunpack.c.l.b16 %v238
    %v397 = vunpack.c.l.b16 %v239
    %v398 = vunpack.c.h.b16 %v239
    %v399 = vunpack.c.l.b16 %v240
    %v400 = vunpack.c.h.b16 %v240
    %v401 = vunpack.c.l.b16 %v241
    %v402 = vunpack.c.h.b16 %v241
    %v403 = vunpack.c.l.b16 %v242
    %v404 = vunpack.c.h.b16 %v242
    %v405 = vunpack.c.l.b16 %v243
    %v406 = vunpack.c.l.b16 %v244
    %v407 = vunpack.c.h.b16 %v244
    %v408 = vunpack.c.l.b16 %v245
    %v409 = vunpack.c.h.b16 %v245
    %v410 = vunpack.c.l.b16 %v246
    %v411 = vunpack.c.h.b16 %v246
    %v412 = vunpack.c.l.b16 %v247
    %v413 = vunpack.c.h.b16 %v247
    %v414 = vunpack.c.l.b16 %v248
    %v415 = vunpack.c.l.b16 %v249
    %v416 = vunpack.c.h.b16 %v249
    %v417 = vunpack.c.l.b16 %v250
    %v418 = vunpack.c.h.b16 %v250
    %v419 = vunpack.c.l.b16 %v251
    %v420 = vunpack.c.h.b16 %v251
    %v421 = vunpack.c.l.b16 %v252
    %v422 = vunpack.c.h.b16 %v252
    %v423 = vunpack.c.l.b16 %v253
    %v424 = vunpack.c.l.b16 %v254
    %v425 = vunpack.c.h.b16 %v254
    %v426 = vunpack.c.l.b16 %v255
    %v427 = vunpack.c.h.b16 %v255
    %v428 = vunpack.c.l.b16 %v256
    %v429 = vunpack.c.h.b16 %v256
    %v430 = vunpack.c.l.b16 %v257
    %v431 = vunpack.c.h.b16 %v257
    %v432 = vunpack.c.l.b16 %v258
    %v433 = vunpack.c.l.b16 %v259
    %v434 = vunpack.c.h.b16 %v259
    %v435 = vunpack.c.l.b16 %v260
    %v436 = vunpack.c.h.b16 %v260
    %v437 = vunpack.c.l.b16 %v261
    %v438 = vunpack.c.h.b16 %v261
    %v439 = vunpack.c.l.b16 %v262
    %v440 = vunpack.c.h.b16 %v262
    %v441 = vunpack.c.l.b16 %v263
    %v442 = vunpack.c.l.b16 %v264
    %v443 = vunpack.c.h.b16 %v264
    %v444 = vunpack.c.l.b16 %v265
    %v445 = vunpack.c.h.b16 %v265
    %v446 = vunpack.c.l.b16 %v266
    %v447 = vunpack.c.h.b16 %v266
    %v448 = vunpack.c.l.b16 %v267
    %v449 = vunpack.c.h.b16 %v267
    %v450 = vunpack.c.l.b16 %v268
    %v451 = vpack.c.b16 %v343, %v334
    %v452 = vpack.c.b16 %v344, %v335
    %v453 = vpack.c.b16 %v345, %v336
    %v454 = vpack.c.b16 %v346, %v337
    %v455 = vpack.c.b16 %v347, %v338
    %v456 = vpack.c.b16 %v348, %v339
    %v457 = vpack.c.b16 %v349, %v340
    %v458 = vpack.c.b16 %v350, %v341
    %v459 = vpack.c.b16 %v351, %v342
    %v460 = vpack.c.b16 %v361, %v352
    %v461 = vpack.c.b16 %v362, %v353
    %v462 = vpack.c.b16 %v363, %v354
    %v463 = vpack.c.b16 %v364, %v355
    %v464 = vpack.c.b16 %v365, %v356
    %v465 = vpack.c.b16 %v366, %v357
    %v466 = vpack.c.b16 %v367, %v358
    %v467 = vpack.c.b16 %v368, %v359
    %v468 = vpack.c.b16 %v369, %v360
    %v469 = vpack.c.b16 %v379, %v370
    %v470 = vpack.c.b16 %v380, %v371
    %v471 = vpack.c.b16 %v381, %v372
    %v472 = vpack.c.b16 %v382, %v373
    %v473 = vpack.c.b16 %v383, %v374
    %v474 = vpack.c.b16 %v384, %v375
    %v475 = vpack.c.b16 %v385, %v376
    %v476 = vpack.c.b16 %v386, %v377
    %v477 = vpack.c.b16 %v387, %v378
    %v478 = vpack.c.b16 %v397, %v388
    %v479 = vpack.c.b16 %v398, %v389
    %v480 = vpack.c.b16 %v399, %v390
    %v481 = vpack.c.b16 %v400, %v391
    %v482 = vpack.c.b16 %v401, %v392
    %v483 = vpack.c.b16 %v402, %v393
    %v484 = vpack.c.b16 %v403, %v394
    %v485 = vpack.c.b16 %v404, %v395
    %v486 = vpack.c.b16 %v405, %v396
    %v487 = vpack.c.b16 %v415, %v406
    %v488 = vpack.c.b16 %v416, %v407
    %v489 = vpack.c.b16 %v417, %v408
    %v490 = vpack.c.b16 %v418, %v409
    %v491 = vpack.c.b16 %v419, %v410
    %v492 = vpack.c.b16 %v420, %v411
    %v493 = vpack.c.b16 %v421, %v412
    %v494 = vpack.c.b16 %v422, %v413
    %v495 = vpack.c.b16 %v423, %v414
    %v496 = vpack.c.b16 %v433, %v424
    %v497 = vpack.c.b16 %v434, %v425
    %v498 = vpack.c.b16 %v435, %v426
    %v499 = vpack.c.b16 %v436, %v427
    %v500 = vpack.c.b16 %v437, %v428
    %v501 = vpack.c.b16 %v438, %v429
    %v502 = vpack.c.b16 %v439, %v430
    %v503 = vpack.c.b16 %v440, %v431
    %v504 = vpack.c.b16 %v441, %v432
    %v505 = vpack.c.b16 %v442, %v442
    %v506 = vpack.c.b16 %v443, %v443
    %v507 = vpack.c.b16 %v444, %v444
    %v508 = vpack.c.b16 %v445, %v445
    %v509 = vpack.c.b16 %v446, %v446
    %v510 = vpack.c.b16 %v447, %v447
    %v511 = vpack.c.b16 %v448, %v448
    %v512 = vpack.c.b16 %v449, %v449
    %v513 = vpack.c.b16 %v450, %v450
    %v721 = vunpack.c.l.b16 %v60
    %v722 = vunpack.c.l.b16 %v61
    %v723 = vunpack.c.l.b16 %v62
    %v724 = vunpack.c.l.b16 %v63
    %v725 = vunpack.c.l.b16 %v64
    %v726 = vunpack.c.l.b16 %v65
    %v727 = vunpack.c.l.b16 %v66
    %v728 = vunpack.c.l.b16 %v67
    %v729 = vunpack.c.l.b16 %v68
    %v730 = vunpack.c.l.b16 %v69
    %v731 = vunpack.c.l.b16 %v70
    %v732 = vunpack.c.l.b16 %v71
    %v733 = vunpack.c.l.b16 %v72
    %v734 = vunpack.c.l.b16 %v73
    %v735 = vunpack.c.l.b16 %v74
    %v736 = vunpack.c.l.b16 %v75
    %v737 = vunpack.c.l.b16 %v76
    %v738 = vunpack.c.l.b16 %v77
    %v739 = vunpack.c.l.b16 %v78
    %v740 = vunpack.c.l.b16 %v79
    %v741 = vunpack.c.l.b16 %v80
    %v742 = vunpack.c.l.b16 %v81
    %v743 = vunpack.c.l.b16 %v82
    %v744 = vunpack.c.l.b16 %v83
    %v745 = vunpack.c.l.b16 %v84
    %v746 = vunpack.c.l.b16 %v85
    %v747 = vunpack.c.l.b16 %v86
    %v748 = vunpack.c.l.b16 %v87
    %v749 = vunpack.c.l.b16 %v88
    %v750 = vunpack.c.l.b16 %v89
    %v751 = vunpack.c.l.b16 %v90
    %v752 = vunpack.c.l.b16 %v91
    %v753 = vunpack.c.l.b16 %v92
    %v754 = vunpack.c.l.b16 %v93
    %v755 = vunpack.c.l.b16 %v94
    %v756 = vunpack.c.l.b16 %v95
    %v757 = vunpack.c.l.b16 %v96
    %v758 = vunpack.c.l.b16 %v97
    %v759 = vunpack.c.l.b16 %v98
    %v760 = vunpack.c.l.b16 %v99
    %v761 = vunpack.c.l.b16 %v100
    %v762 = vunpack.c.l.b16 %v101
    %v763 = vunpack.c.l.b16 %v102
    %v764 = vunpack.c.l.b16 %v103
    %v765 = vunpack.c.l.b16 %v104
    %v766 = vunpack.c.l.b16 %v105
    %v767 = vunpack.c.l.b16 %v106
    %v768 = vunpack.c.l.b16 %v107
    %v769 = vunpack.c.l.b16 %v108
    %v770 = vunpack.c.l.b16 %v109
    %v771 = vunpack.c.l.b16 %v110
    %v772 = vunpack.c.l.b16 %v111
    %v773 = vunpack.c.l.b16 %v112
    %v774 = vunpack.c.l.b16 %v113
    %v775 = vunpack.c.l.b16 %v114
    %v776 = vunpack.c.l.b16 %v115
    %v777 = vunpack.c.l.b16 %v116
    %v778 = vunpack.c.l.b16 %v117
    %v779 = vunpack.c.l.b16 %v118
    %v780 = vunpack.c.l.b16 %v119
    %v781 = vunpack.c.l.b16 %v120
    %v782 = vunpack.c.l.b16 %v121
    %v783 = vunpack.c.l.b16 %v122
    %v784 = vunpack.c.l.b16 %v123
    %v785 = vunpack.c.l.b16 %v124
    %v786 = vunpack.c.l.b16 %v125
    %v787 = vunpack.c.l.b16 %v126
    %v788 = vunpack.c.l.b16 %v127
    %v789 = vunpack.c.l.b16 %v128
    %v790 = vunpack.c.l.b16 %v129
    %v791 = vunpack.c.l.b16 %v130
    %v792 = vunpack.c.l.b16 %v131
    %v793 = vunpack.c.l.b16 %v132
    %v794 = vunpack.c.l.b16 %v133
    %v795 = vunpack.c.l.b16 %v134
    %v796 = vunpack.c.l.b16 %v135
    %v797 = vunpack.c.l.b16 %v136
    %v798 = vunpack.c.l.b16 %v137
    %v799 = vunpack.c.l.b16 %v138
    %v800 = vunpack.c.l.b16 %v139
    %v801 = vunpack.c.l.b16 %v140
    %v802 = vunpack.c.l.b16 %v141
    %v803 = vunpack.c.l.b16 %v142
    %v804 = vunpack.c.l.b16 %v143
    %v805 = vunpack.c.l.b16 %v144
    %v806 = vunpack.c.l.b16 %v145
    %v807 = vunpack.c.l.b16 %v146
    %v808 = vunpack.c.l.b16 %v147
    %v809 = vunpack.c.l.b16 %v148
    %v810 = vunpack.c.l.b16 %v149
    %v811 = vunpack.c.l.b16 %v150
    %v812 = vunpack.c.l.b16 %v151
    %v813 = vunpack.c.l.b16 %v152
    %v814 = vunpack.c.l.b16 %v153
    %v815 = vunpack.c.l.b16 %v154
    %v816 = vunpack.c.l.b16 %v155
    %v817 = vunpack.c.l.b16 %v156
    %v818 = vunpack.c.l.b16 %v157
    %v819 = vunpack.c.l.b16 %v158
    %v820 = vunpack.c.l.b16 %v159
    %v821 = vunpack.c.l.b16 %v160
    %v822 = vunpack.c.l.b16 %v161
    %v823 = vunpack.c.l.b16 %v162
    %v824 = vunpack.c.l.b16 %v163
    %v825 = vunpack.c.l.b16 %v164
    %v826 = vunpack.c.l.b16 %v165
    %v827 = vunpack.c.l.b16 %v166
    %v828 = vunpack.c.l.b16 %v167
    %v829 = vunpack.c.l.b16 %v168
    %v830 = vunpack.c.l.b16 %v169
    %v831 = vunpack.c.l.b16 %v170
    %v832 = vunpack.c.l.b16 %v171
    %v833 = vunpack.c.l.b16 %v172
    %v834 = vunpack.c.l.b16 %v173
    %v835 = vunpack.c.l.b16 %v174
    %v836 = vunpack.c.l.b16 %v175
    %v837 = vunpack.c.l.b16 %v176
    %v838 = vunpack.c.l.b16 %v177
    %v839 = vunpack.c.l.b16 %v178
    %v840 = vunpack.c.l.b16 %v179
    %v841 = vunpack.c.l.b16 %v180
    %v842 = vunpack.c.l.b16 %v181
    %v843 = vunpack.c.l.b16 %v182
    %v844 = vunpack.c.l.b16 %v183
    %v845 = vunpack.c.l.b16 %v184
    %v846 = vunpack.c.l.b16 %v185
    %v847 = vunpack.c.l.b16 %v186
    %v848 = vunpack.c.l.b16 %v187
    %v849 = vunpack.c.l.b16 %v188
    %v850 = vunpack.c.l.b16 %v189
    %v851 = vunpack.c.l.b16 %v190
    %v852 = vunpack.c.l.b16 %v191
    %v853 = vunpack.c.l.b16 %v192
    %v854 = vunpack.c.l.b16 %v193
    %v855 = vunpack.c.l.b16 %v194
    %v856 = vunpack.c.l.b16 %v195
    %v857 = vunpack.c.l.b16 %v196
    %v858 = vunpack.c.l.b16 %v197
    %v859 = vunpack.c.l.b16 %v198
    %v860 = vunpack.c.l.b16 %v199
    %v861 = vunpack.c.l.b16 %v200
    %v862 = vunpack.c.l.b16 %v201
    %v863 = vunpack.c.l.b16 %v202
    %v864 = vunpack.c.l.b16 %v203
    %v865 = vpack.c.b16 %v722, %v721
    %v866 = vpack.c.b16 %v724, %v723
    %v867 = vpack.c.b16 %v726, %v725
    %v868 = vpack.c.b16 %v728, %v727
    %v869 = vpack.c.b16 %v730, %v729
    %v870 = vpack.c.b16 %v732, %v731
    %v871 = vpack.c.b16 %v734, %v733
    %v872 = vpack.c.b16 %v736, %v735
    %v873 = vpack.c.b16 %v738, %v737
    %v874 = vpack.c.b16 %v740, %v739
    %v875 = vpack.c.b16 %v742, %v741
    %v876 = vpack.c.b16 %v744, %v743
    %v877 = vpack.c.b16 %v746, %v745
    %v878 = vpack.c.b16 %v748, %v747
    %v879 = vpack.c.b16 %v750, %v749
    %v880 = vpack.c.b16 %v752, %v751
    %v881 = vpack.c.b16 %v754, %v753
    %v882 = vpack.c.b16 %v756, %v755
    %v883 = vpack.c.b16 %v758, %v757
    %v884 = vpack.c.b16 %v760, %v759
    %v885 = vpack.c.b16 %v762, %v761
    %v886 = vpack.c.b16 %v764, %v763
    %v887 = vpack.c.b16 %v766, %v765
    %v888 = vpack.c.b16 %v768, %v767
    %v889 = vpack.c.b16 %v770, %v769
    %v890 = vpack.c.b16 %v772, %v771
    %v891 = vpack.c.b16 %v774, %v773
    %v892 = vpack.c.b16 %v776, %v775
    %v893 = vpack.c.b16 %v778, %v777
    %v894 = vpack.c.b16 %v780, %v779
    %v895 = vpack.c.b16 %v782, %v781
    %v896 = vpack.c.b16 %v784, %v783
    %v897 = vpack.c.b16 %v786, %v785
    %v898 = vpack.c.b16 %v788, %v787
    %v899 = vpack.c.b16 %v790, %v789
    %v900 = vpack.c.b16 %v792, %v791
    %v901 = vpack.c.b16 %v794, %v793
    %v902 = vpack.c.b16 %v796, %v795
    %v903 = vpack.c.b16 %v798, %v797
    %v904 = vpack.c.b16 %v800, %v799
    %v905 = vpack.c.b16 %v802, %v801
    %v906 = vpack.c.b16 %v804, %v803
    %v907 = vpack.c.b16 %v806, %v805
    %v908 = vpack.c.b16 %v808, %v807
    %v909 = vpack.c.b16 %v810, %v809
    %v910 = vpack.c.b16 %v812, %v811
    %v911 = vpack.c.b16 %v814, %v813
    %v912 = vpack.c.b16 %v816, %v815
    %v913 = vpack.c.b16 %v818, %v817
    %v914 = vpack.c.b16 %v820, %v819
    %v915 = vpack.c.b16 %v822, %v821
    %v916 = vpack.c.b16 %v824, %v823
    %v917 = vpack.c.b16 %v826, %v825
    %v918 = vpack.c.b16 %v828, %v827
    %v919 = vpack.c.b16 %v830, %v829
    %v920 = vpack.c.b16 %v832, %v831
    %v921 = vpack.c.b16 %v834, %v833
    %v922 = vpack.c.b16 %v836, %v835
    %v923 = vpack.c.b16 %v838, %v837
    %v924 = vpack.c.b16 %v840, %v839
    %v925 = vpack.c.b16 %v842, %v841
    %v926 = vpack.c.b16 %v844, %v843
    %v927 = vpack.c.b16 %v846, %v845
    %v928 = vpack.c.b16 %v848, %v847
    %v929 = vpack.c.b16 %v850, %v849
    %v930 = vpack.c.b16 %v852, %v851
    %v931 = vpack.c.b16 %v854, %v853
    %v932 = vpack.c.b16 %v856, %v855
    %v933 = vpack.c.b16 %v858, %v857
    %v934 = vpack.c.b16 %v860, %v859
    %v935 = vpack.c.b16 %v862, %v861
    %v936 = vpack.c.b16 %v864, %v863
    %1009 = vmatpush.bf16.msra.mxu0 %v872
    %1010 = vmatpush.bf16.msra.mxu0 %v871
    %1011 = vmatpush.bf16.msra.mxu0 %v870
    %1012 = vmatpush.bf16.msra.mxu0 %v869
    %1013 = vmatpush.bf16.msra.mxu0 %v868
    %1014 = vmatpush.bf16.msra.mxu0 %v867
    %1015 = vmatpush.bf16.msra.mxu0 %v866
    %1016 = vmatpush.bf16.msra.mxu0 %v865
    %1017 = vmatmul.bf16.gmra.mxu0 %v451
    %v1018 = vpop.f32.mrf.mxu0
    %v1019 = vadd.f32 0.0, %v1018
    %v1020 = vpop.f32.mrf.mxu0
    %v1021 = vadd.f32 0.0, %v1020
    %1022 = vmatmul.bf16.gmra.mxu0 %v460
    %v1023 = vpop.f32.mrf.mxu0
    %v1024 = vadd.f32 0.0, %v1023
    %v1025 = vpop.f32.mrf.mxu0
    %v1026 = vadd.f32 0.0, %v1025
    %1027 = vmatmul.bf16.gmra.mxu0 %v469
    %v1028 = vpop.f32.mrf.mxu0
    %v1029 = vadd.f32 0.0, %v1028
    %v1030 = vpop.f32.mrf.mxu0
    %v1031 = vadd.f32 0.0, %v1030
    %1032 = vmatmul.bf16.gmra.mxu0 %v478
    %v1033 = vpop.f32.mrf.mxu0
    %v1034 = vadd.f32 0.0, %v1033
    %v1035 = vpop.f32.mrf.mxu0
    %v1036 = vadd.f32 0.0, %v1035
    %1037 = vmatmul.bf16.gmra.mxu0 %v487
    %v1038 = vpop.f32.mrf.mxu0
    %v1039 = vadd.f32 0.0, %v1038
    %v1040 = vpop.f32.mrf.mxu0
    %v1041 = vadd.f32 0.0, %v1040
    %1042 = vmatmul.bf16.gmra.mxu0 %v496
    %v1043 = vpop.f32.mrf.mxu0
    %v1044 = vadd.f32 0.0, %v1043
    %v1045 = vpop.f32.mrf.mxu0
    %v1046 = vadd.f32 0.0, %v1045
    %1047 = vmatmul.bf16.gmra.mxu0 %v505
    %v1048 = vpop.f32.mrf.mxu0
    %v1049 = vadd.f32 0.0, %v1048
    %v1050 = vpop.f32.mrf.mxu0
    %1051 = vdwg.mxu0
    %1052 = vmatpush.bf16.msra.mxu0 %v880
    %1053 = vmatpush.bf16.msra.mxu0 %v879
    %1054 = vmatpush.bf16.msra.mxu0 %v878
    %1055 = vmatpush.bf16.msra.mxu0 %v877
    %1056 = vmatpush.bf16.msra.mxu0 %v876
    %1057 = vmatpush.bf16.msra.mxu0 %v875
    %1058 = vmatpush.bf16.msra.mxu0 %v874
    %1059 = vmatpush.bf16.msra.mxu0 %v873
    %1060 = vmatmul.bf16.gmra.mxu0 %v452
    %v1061 = vpop.f32.mrf.mxu0
    %v1062 = vadd.f32 %v1019, %v1061
    %v1063 = vpop.f32.mrf.mxu0
    %v1064 = vadd.f32 %v1021, %v1063
    %1065 = vmatmul.bf16.gmra.mxu0 %v461
    %v1066 = vpop.f32.mrf.mxu0
    %v1067 = vadd.f32 %v1024, %v1066
    %v1068 = vpop.f32.mrf.mxu0
    %v1069 = vadd.f32 %v1026, %v1068
    %1070 = vmatmul.bf16.gmra.mxu0 %v470
    %v1071 = vpop.f32.mrf.mxu0
    %v1072 = vadd.f32 %v1029, %v1071
    %v1073 = vpop.f32.mrf.mxu0
    %v1074 = vadd.f32 %v1031, %v1073
    %1075 = vmatmul.bf16.gmra.mxu0 %v479
    %v1076 = vpop.f32.mrf.mxu0
    %v1077 = vadd.f32 %v1034, %v1076
    %v1078 = vpop.f32.mrf.mxu0
    %v1079 = vadd.f32 %v1036, %v1078
    %1080 = vmatmul.bf16.gmra.mxu0 %v488
    %v1081 = vpop.f32.mrf.mxu0
    %v1082 = vadd.f32 %v1039, %v1081
    %v1083 = vpop.f32.mrf.mxu0
    %v1084 = vadd.f32 %v1041, %v1083
    %1085 = vmatmul.bf16.gmra.mxu0 %v497
    %v1086 = vpop.f32.mrf.mxu0
    %v1087 = vadd.f32 %v1044, %v1086
    %v1088 = vpop.f32.mrf.mxu0
    %v1089 = vadd.f32 %v1046, %v1088
    %1090 = vmatmul.bf16.gmra.mxu0 %v506
    %v1091 = vpop.f32.mrf.mxu0
    %v1092 = vadd.f32 %v1049, %v1091
    %v1093 = vpop.f32.mrf.mxu0
    %1094 = vdwg.mxu0
    %1095 = vmatpush.bf16.msra.mxu0 %v888
    %1096 = vmatpush.bf16.msra.mxu0 %v887
    %1097 = vmatpush.bf16.msra.mxu0 %v886
    %1098 = vmatpush.bf16.msra.mxu0 %v885
    %1099 = vmatpush.bf16.msra.mxu0 %v884
    %1100 = vmatpush.bf16.msra.mxu0 %v883
    %1101 = vmatpush.bf16.msra.mxu0 %v882
    %1102 = vmatpush.bf16.msra.mxu0 %v881
    %1103 = vmatmul.bf16.gmra.mxu0 %v453
    %v1104 = vpop.f32.mrf.mxu0
    %v1105 = vadd.f32 %v1062, %v1104
    %v1106 = vpop.f32.mrf.mxu0
    %v1107 = vadd.f32 %v1064, %v1106
    %1108 = vmatmul.bf16.gmra.mxu0 %v462
    %v1109 = vpop.f32.mrf.mxu0
    %v1110 = vadd.f32 %v1067, %v1109
    %v1111 = vpop.f32.mrf.mxu0
    %v1112 = vadd.f32 %v1069, %v1111
    %1113 = vmatmul.bf16.gmra.mxu0 %v471
    %v1114 = vpop.f32.mrf.mxu0
    %v1115 = vadd.f32 %v1072, %v1114
    %v1116 = vpop.f32.mrf.mxu0
    %v1117 = vadd.f32 %v1074, %v1116
    %1118 = vmatmul.bf16.gmra.mxu0 %v480
    %v1119 = vpop.f32.mrf.mxu0
    %v1120 = vadd.f32 %v1077, %v1119
    %v1121 = vpop.f32.mrf.mxu0
    %v1122 = vadd.f32 %v1079, %v1121
    %1123 = vmatmul.bf16.gmra.mxu0 %v489
    %v1124 = vpop.f32.mrf.mxu0
    %v1125 = vadd.f32 %v1082, %v1124
    %v1126 = vpop.f32.mrf.mxu0
    %v1127 = vadd.f32 %v1084, %v1126
    %1128 = vmatmul.bf16.gmra.mxu0 %v498
    %v1129 = vpop.f32.mrf.mxu0
    %v1130 = vadd.f32 %v1087, %v1129
    %v1131 = vpop.f32.mrf.mxu0
    %v1132 = vadd.f32 %v1089, %v1131
    %1133 = vmatmul.bf16.gmra.mxu0 %v507
    %v1134 = vpop.f32.mrf.mxu0
    %v1135 = vadd.f32 %v1092, %v1134
    %v1136 = vpop.f32.mrf.mxu0
    %1137 = vdwg.mxu0
    %1138 = vmatpush.bf16.msra.mxu0 %v896
    %1139 = vmatpush.bf16.msra.mxu0 %v895
    %1140 = vmatpush.bf16.msra.mxu0 %v894
    %1141 = vmatpush.bf16.msra.mxu0 %v893
    %1142 = vmatpush.bf16.msra.mxu0 %v892
    %1143 = vmatpush.bf16.msra.mxu0 %v891
    %1144 = vmatpush.bf16.msra.mxu0 %v890
    %1145 = vmatpush.bf16.msra.mxu0 %v889
    %1146 = vmatmul.bf16.gmra.mxu0 %v454
    %v1147 = vpop.f32.mrf.mxu0
    %v1148 = vadd.f32 %v1105, %v1147
    %v1149 = vpop.f32.mrf.mxu0
    %v1150 = vadd.f32 %v1107, %v1149
    %1151 = vmatmul.bf16.gmra.mxu0 %v463
    %v1152 = vpop.f32.mrf.mxu0
    %v1153 = vadd.f32 %v1110, %v1152
    %v1154 = vpop.f32.mrf.mxu0
    %v1155 = vadd.f32 %v1112, %v1154
    %1156 = vmatmul.bf16.gmra.mxu0 %v472
    %v1157 = vpop.f32.mrf.mxu0
    %v1158 = vadd.f32 %v1115, %v1157
    %v1159 = vpop.f32.mrf.mxu0
    %v1160 = vadd.f32 %v1117, %v1159
    %1161 = vmatmul.bf16.gmra.mxu0 %v481
    %v1162 = vpop.f32.mrf.mxu0
    %v1163 = vadd.f32 %v1120, %v1162
    %v1164 = vpop.f32.mrf.mxu0
    %v1165 = vadd.f32 %v1122, %v1164
    %1166 = vmatmul.bf16.gmra.mxu0 %v490
    %v1167 = vpop.f32.mrf.mxu0
    %v1168 = vadd.f32 %v1125, %v1167
    %v1169 = vpop.f32.mrf.mxu0
    %v1170 = vadd.f32 %v1127, %v1169
    %1171 = vmatmul.bf16.gmra.mxu0 %v499
    %v1172 = vpop.f32.mrf.mxu0
    %v1173 = vadd.f32 %v1130, %v1172
    %v1174 = vpop.f32.mrf.mxu0
    %v1175 = vadd.f32 %v1132, %v1174
    %1176 = vmatmul.bf16.gmra.mxu0 %v508
    %v1177 = vpop.f32.mrf.mxu0
    %v1178 = vadd.f32 %v1135, %v1177
    %v1179 = vpop.f32.mrf.mxu0
    %1180 = vdwg.mxu0
    %1181 = vmatpush.bf16.msra.mxu0 %v904
    %1182 = vmatpush.bf16.msra.mxu0 %v903
    %1183 = vmatpush.bf16.msra.mxu0 %v902
    %1184 = vmatpush.bf16.msra.mxu0 %v901
    %1185 = vmatpush.bf16.msra.mxu0 %v900
    %1186 = vmatpush.bf16.msra.mxu0 %v899
    %1187 = vmatpush.bf16.msra.mxu0 %v898
    %1188 = vmatpush.bf16.msra.mxu0 %v897
    %1189 = vmatmul.bf16.gmra.mxu0 %v455
    %v1190 = vpop.f32.mrf.mxu0
    %v1191 = vadd.f32 %v1148, %v1190
    %v1192 = vpop.f32.mrf.mxu0
    %v1193 = vadd.f32 %v1150, %v1192
    %1194 = vmatmul.bf16.gmra.mxu0 %v464
    %v1195 = vpop.f32.mrf.mxu0
    %v1196 = vadd.f32 %v1153, %v1195
    %v1197 = vpop.f32.mrf.mxu0
    %v1198 = vadd.f32 %v1155, %v1197
    %1199 = vmatmul.bf16.gmra.mxu0 %v473
    %v1200 = vpop.f32.mrf.mxu0
    %v1201 = vadd.f32 %v1158, %v1200
    %v1202 = vpop.f32.mrf.mxu0
    %v1203 = vadd.f32 %v1160, %v1202
    %1204 = vmatmul.bf16.gmra.mxu0 %v482
    %v1205 = vpop.f32.mrf.mxu0
    %v1206 = vadd.f32 %v1163, %v1205
    %v1207 = vpop.f32.mrf.mxu0
    %v1208 = vadd.f32 %v1165, %v1207
    %1209 = vmatmul.bf16.gmra.mxu0 %v491
    %v1210 = vpop.f32.mrf.mxu0
    %v1211 = vadd.f32 %v1168, %v1210
    %v1212 = vpop.f32.mrf.mxu0
    %v1213 = vadd.f32 %v1170, %v1212
    %1214 = vmatmul.bf16.gmra.mxu0 %v500
    %v1215 = vpop.f32.mrf.mxu0
    %v1216 = vadd.f32 %v1173, %v1215
    %v1217 = vpop.f32.mrf.mxu0
    %v1218 = vadd.f32 %v1175, %v1217
    %1219 = vmatmul.bf16.gmra.mxu0 %v509
    %v1220 = vpop.f32.mrf.mxu0
    %v1221 = vadd.f32 %v1178, %v1220
    %v1222 = vpop.f32.mrf.mxu0
    %1223 = vdwg.mxu0
    %1224 = vmatpush.bf16.msra.mxu0 %v912
    %1225 = vmatpush.bf16.msra.mxu0 %v911
    %1226 = vmatpush.bf16.msra.mxu0 %v910
    %1227 = vmatpush.bf16.msra.mxu0 %v909
    %1228 = vmatpush.bf16.msra.mxu0 %v908
    %1229 = vmatpush.bf16.msra.mxu0 %v907
    %1230 = vmatpush.bf16.msra.mxu0 %v906
    %1231 = vmatpush.bf16.msra.mxu0 %v905
    %1232 = vmatmul.bf16.gmra.mxu0 %v456
    %v1233 = vpop.f32.mrf.mxu0
    %v1234 = vadd.f32 %v1191, %v1233
    %v1235 = vpop.f32.mrf.mxu0
    %v1236 = vadd.f32 %v1193, %v1235
    %1237 = vmatmul.bf16.gmra.mxu0 %v465
    %v1238 = vpop.f32.mrf.mxu0
    %v1239 = vadd.f32 %v1196, %v1238
    %v1240 = vpop.f32.mrf.mxu0
    %v1241 = vadd.f32 %v1198, %v1240
    %1242 = vmatmul.bf16.gmra.mxu0 %v474
    %v1243 = vpop.f32.mrf.mxu0
    %v1244 = vadd.f32 %v1201, %v1243
    %v1245 = vpop.f32.mrf.mxu0
    %v1246 = vadd.f32 %v1203, %v1245
    %1247 = vmatmul.bf16.gmra.mxu0 %v483
    %v1248 = vpop.f32.mrf.mxu0
    %v1249 = vadd.f32 %v1206, %v1248
    %v1250 = vpop.f32.mrf.mxu0
    %v1251 = vadd.f32 %v1208, %v1250
    %1252 = vmatmul.bf16.gmra.mxu0 %v492
    %v1253 = vpop.f32.mrf.mxu0
    %v1254 = vadd.f32 %v1211, %v1253
    %v1255 = vpop.f32.mrf.mxu0
    %v1256 = vadd.f32 %v1213, %v1255
    %1257 = vmatmul.bf16.gmra.mxu0 %v501
    %v1258 = vpop.f32.mrf.mxu0
    %v1259 = vadd.f32 %v1216, %v1258
    %v1260 = vpop.f32.mrf.mxu0
    %v1261 = vadd.f32 %v1218, %v1260
    %1262 = vmatmul.bf16.gmra.mxu0 %v510
    %v1263 = vpop.f32.mrf.mxu0
    %v1264 = vadd.f32 %v1221, %v1263
    %v1265 = vpop.f32.mrf.mxu0
    %1266 = vdwg.mxu0
    %1267 = vmatpush.bf16.msra.mxu0 %v920
    %1268 = vmatpush.bf16.msra.mxu0 %v919
    %1269 = vmatpush.bf16.msra.mxu0 %v918
    %1270 = vmatpush.bf16.msra.mxu0 %v917
    %1271 = vmatpush.bf16.msra.mxu0 %v916
    %1272 = vmatpush.bf16.msra.mxu0 %v915
    %1273 = vmatpush.bf16.msra.mxu0 %v914
    %1274 = vmatpush.bf16.msra.mxu0 %v913
    %1275 = vmatmul.bf16.gmra.mxu0 %v457
    %v1276 = vpop.f32.mrf.mxu0
    %v1277 = vadd.f32 %v1234, %v1276
    %v1278 = vpop.f32.mrf.mxu0
    %v1279 = vadd.f32 %v1236, %v1278
    %1280 = vmatmul.bf16.gmra.mxu0 %v466
    %v1281 = vpop.f32.mrf.mxu0
    %v1282 = vadd.f32 %v1239, %v1281
    %v1283 = vpop.f32.mrf.mxu0
    %v1284 = vadd.f32 %v1241, %v1283
    %1285 = vmatmul.bf16.gmra.mxu0 %v475
    %v1286 = vpop.f32.mrf.mxu0
    %v1287 = vadd.f32 %v1244, %v1286
    %v1288 = vpop.f32.mrf.mxu0
    %v1289 = vadd.f32 %v1246, %v1288
    %1290 = vmatmul.bf16.gmra.mxu0 %v484
    %v1291 = vpop.f32.mrf.mxu0
    %v1292 = vadd.f32 %v1249, %v1291
    %v1293 = vpop.f32.mrf.mxu0
    %v1294 = vadd.f32 %v1251, %v1293
    %1295 = vmatmul.bf16.gmra.mxu0 %v493
    %v1296 = vpop.f32.mrf.mxu0
    %v1297 = vadd.f32 %v1254, %v1296
    %v1298 = vpop.f32.mrf.mxu0
    %v1299 = vadd.f32 %v1256, %v1298
    %1300 = vmatmul.bf16.gmra.mxu0 %v502
    %v1301 = vpop.f32.mrf.mxu0
    %v1302 = vadd.f32 %v1259, %v1301
    %v1303 = vpop.f32.mrf.mxu0
    %v1304 = vadd.f32 %v1261, %v1303
    %1305 = vmatmul.bf16.gmra.mxu0 %v511
    %v1306 = vpop.f32.mrf.mxu0
    %v1307 = vadd.f32 %v1264, %v1306
    %v1308 = vpop.f32.mrf.mxu0
    %1309 = vdwg.mxu0
    %1310 = vmatpush.bf16.msra.mxu0 %v928
    %1311 = vmatpush.bf16.msra.mxu0 %v927
    %1312 = vmatpush.bf16.msra.mxu0 %v926
    %1313 = vmatpush.bf16.msra.mxu0 %v925
    %1314 = vmatpush.bf16.msra.mxu0 %v924
    %1315 = vmatpush.bf16.msra.mxu0 %v923
    %1316 = vmatpush.bf16.msra.mxu0 %v922
    %1317 = vmatpush.bf16.msra.mxu0 %v921
    %1318 = vmatmul.bf16.gmra.mxu0 %v458
    %v1319 = vpop.f32.mrf.mxu0
    %v1320 = vadd.f32 %v1277, %v1319
    %v1321 = vpop.f32.mrf.mxu0
    %v1322 = vadd.f32 %v1279, %v1321
    %1323 = vmatmul.bf16.gmra.mxu0 %v467
    %v1324 = vpop.f32.mrf.mxu0
    %v1325 = vadd.f32 %v1282, %v1324
    %v1326 = vpop.f32.mrf.mxu0
    %v1327 = vadd.f32 %v1284, %v1326
    %1328 = vmatmul.bf16.gmra.mxu0 %v476
    %v1329 = vpop.f32.mrf.mxu0
    %v1330 = vadd.f32 %v1287, %v1329
    %v1331 = vpop.f32.mrf.mxu0
    %v1332 = vadd.f32 %v1289, %v1331
    %1333 = vmatmul.bf16.gmra.mxu0 %v485
    %v1334 = vpop.f32.mrf.mxu0
    %v1335 = vadd.f32 %v1292, %v1334
    %v1336 = vpop.f32.mrf.mxu0
    %v1337 = vadd.f32 %v1294, %v1336
    %1338 = vmatmul.bf16.gmra.mxu0 %v494
    %v1339 = vpop.f32.mrf.mxu0
    %v1340 = vadd.f32 %v1297, %v1339
    %v1341 = vpop.f32.mrf.mxu0
    %v1342 = vadd.f32 %v1299, %v1341
    %1343 = vmatmul.bf16.gmra.mxu0 %v503
    %v1344 = vpop.f32.mrf.mxu0
    %v1345 = vadd.f32 %v1302, %v1344
    %v1346 = vpop.f32.mrf.mxu0
    %v1347 = vadd.f32 %v1304, %v1346
    %1348 = vmatmul.bf16.gmra.mxu0 %v512
    %v1349 = vpop.f32.mrf.mxu0
    %v1350 = vadd.f32 %v1307, %v1349
    %v1351 = vpop.f32.mrf.mxu0
    %1352 = vdwg.mxu0
    %1353 = vmatpush.bf16.msra.mxu0 %v936
    %1354 = vmatpush.bf16.msra.mxu0 %v935
    %1355 = vmatpush.bf16.msra.mxu0 %v934
    %1356 = vmatpush.bf16.msra.mxu0 %v933
    %1357 = vmatpush.bf16.msra.mxu0 %v932
    %1358 = vmatpush.bf16.msra.mxu0 %v931
    %1359 = vmatpush.bf16.msra.mxu0 %v930
    %1360 = vmatpush.bf16.msra.mxu0 %v929
    %1361 = vmatmul.bf16.gmra.mxu0 %v459
    %v1362 = vpop.f32.mrf.mxu0
    %v1363 = vadd.f32 %v1320, %v1362
    %v1364 = vpop.f32.mrf.mxu0
    %v1365 = vadd.f32 %v1322, %v1364
    %1366 = vmatmul.bf16.gmra.mxu0 %v468
    %v1367 = vpop.f32.mrf.mxu0
    %v1368 = vadd.f32 %v1325, %v1367
    %v1369 = vpop.f32.mrf.mxu0
    %v1370 = vadd.f32 %v1327, %v1369
    %1371 = vmatmul.bf16.gmra.mxu0 %v477
    %v1372 = vpop.f32.mrf.mxu0
    %v1373 = vadd.f32 %v1330, %v1372
    %v1374 = vpop.f32.mrf.mxu0
    %v1375 = vadd.f32 %v1332, %v1374
    %1376 = vmatmul.bf16.gmra.mxu0 %v486
    %v1377 = vpop.f32.mrf.mxu0
    %v1378 = vadd.f32 %v1335, %v1377
    %v1379 = vpop.f32.mrf.mxu0
    %v1380 = vadd.f32 %v1337, %v1379
    %1381 = vmatmul.bf16.gmra.mxu0 %v495
    %v1382 = vpop.f32.mrf.mxu0
    %v1383 = vadd.f32 %v1340, %v1382
    %v1384 = vpop.f32.mrf.mxu0
    %v1385 = vadd.f32 %v1342, %v1384
    %1386 = vmatmul.bf16.gmra.mxu0 %v504
    %v1387 = vpop.f32.mrf.mxu0
    %v1388 = vadd.f32 %v1345, %v1387
    %v1389 = vpop.f32.mrf.mxu0
    %v1390 = vadd.f32 %v1347, %v1389
    %1391 = vmatmul.bf16.gmra.mxu0 %v513
    %v1392 = vpop.f32.mrf.mxu0
    %v1393 = vadd.f32 %v1350, %v1392
    %v1394 = vpop.f32.mrf.mxu0
    %1395 = vdwg.mxu0
    %v1396 = vld [vmem:[#allocation4] sm:$0x1]
    %v1398 = vperm.slane %v1396, 0
    %v1400 = vmul.f32 %v1363, %v1398
    %v1401 = vmul.f32 %v1365, %v1398
    %v1402 = vmul.f32 %v1368, %v1398
    %v1403 = vmul.f32 %v1370, %v1398
    %v1404 = vmul.f32 %v1373, %v1398
    %v1405 = vmul.f32 %v1375, %v1398
    %v1406 = vmul.f32 %v1378, %v1398
    %v1407 = vmul.f32 %v1380, %v1398
    %v1408 = vmul.f32 %v1383, %v1398
    %v1409 = vmul.f32 %v1385, %v1398
    %v1410 = vmul.f32 %v1388, %v1398
    %v1411 = vmul.f32 %v1390, %v1398
    %v1412 = vmul.f32 %v1393, %v1398
    %v1413 = vld [vmem:[#allocation6] sm:$0x1]
    %v1415 = vperm.slane %v1413, 0
    %v1417 = vadd.f32 %v1400, %v1415
    %v1418 = vadd.f32 %v1401, %v1415
    %v1419 = vadd.f32 %v1402, %v1415
    %v1420 = vadd.f32 %v1403, %v1415
    %v1421 = vadd.f32 %v1404, %v1415
    %v1422 = vadd.f32 %v1405, %v1415
    %v1423 = vadd.f32 %v1406, %v1415
    %v1424 = vadd.f32 %v1407, %v1415
    %v1425 = vadd.f32 %v1408, %v1415
    %v1426 = vadd.f32 %v1409, %v1415
    %v1427 = vadd.f32 %v1410, %v1415
    %v1428 = vadd.f32 %v1411, %v1415
    %v1429 = vadd.f32 %v1412, %v1415
    %s1430 = scalar_lea.vmem %s0, 468
    %v1431 = vld [vmem:[%s1430] sm:$0xff]
    %v1432 = vld [vmem:[%s1430 + $0x8] sm:$0xff]
    %v1433 = vld [vmem:[%s1430 + $0x10] sm:$0xff]
    %v1434 = vld [vmem:[%s1430 + $0x18] sm:$0xff]
    %v1435 = vld [vmem:[%s1430 + $0x20] sm:$0xf]
    %v1436 = vld [vmem:[%s1430 + $0x24] sm:$0xff]
    %v1437 = vld [vmem:[%s1430 + $0x2c] sm:$0xff]
    %v1438 = vld [vmem:[%s1430 + $0x34] sm:$0xff]
    %v1439 = vld [vmem:[%s1430 + $0x3c] sm:$0xff]
    %v1440 = vld [vmem:[%s1430 + $0x44] sm:$0xf]
    %v1441 = vld [vmem:[%s1430 + $0x48] sm:$0xff]
    %v1442 = vld [vmem:[%s1430 + $0x50] sm:$0xff]
    %v1443 = vld [vmem:[%s1430 + $0x58] sm:$0xff]
    %v1444 = vld [vmem:[%s1430 + $0x60] sm:$0xff]
    %v1445 = vld [vmem:[%s1430 + $0x68] sm:$0xf]
    %v1446 = vld [vmem:[%s1430 + $0x6c] sm:$0xff]
    %v1447 = vld [vmem:[%s1430 + $0x74] sm:$0xff]
    %v1448 = vld [vmem:[%s1430 + $0x7c] sm:$0xff]
    %v1449 = vld [vmem:[%s1430 + $0x84] sm:$0xff]
    %v1450 = vld [vmem:[%s1430 + $0x8c] sm:$0xf]
    %v1451 = vld [vmem:[%s1430 + $0x90] sm:$0xff]
    %v1452 = vld [vmem:[%s1430 + $0x98] sm:$0xff]
    %v1453 = vld [vmem:[%s1430 + $0xa0] sm:$0xff]
    %v1454 = vld [vmem:[%s1430 + $0xa8] sm:$0xff]
    %v1455 = vld [vmem:[%s1430 + $0xb0] sm:$0xf]
    %v1456 = vld [vmem:[%s1430 + $0xb4] sm:$0xff]
    %v1457 = vld [vmem:[%s1430 + $0xbc] sm:$0xff]
    %v1458 = vld [vmem:[%s1430 + $0xc4] sm:$0xff]
    %v1459 = vld [vmem:[%s1430 + $0xcc] sm:$0xff]
    %v1460 = vld [vmem:[%s1430 + $0xd4] sm:$0xf]
    %v1461 = vld [vmem:[%s1430 + $0xd8] sm:$0xff]
    %v1462 = vld [vmem:[%s1430 + $0xe0] sm:$0xff]
    %v1463 = vld [vmem:[%s1430 + $0xe8] sm:$0xff]
    %v1464 = vld [vmem:[%s1430 + $0xf0] sm:$0xff]
    %v1465 = vld [vmem:[%s1430 + $0xf8] sm:$0xf]
    %v1466 = vld [vmem:[%s1430 + $0xfc] sm:$0xff]
    %v1467 = vld [vmem:[%s1430 + $0x104] sm:$0xff]
    %v1468 = vld [vmem:[%s1430 + $0x10c] sm:$0xff]
    %v1469 = vld [vmem:[%s1430 + $0x114] sm:$0xff]
    %v1470 = vld [vmem:[%s1430 + $0x11c] sm:$0xf]
    %v1471 = vld [vmem:[%s1430 + $0x120] sm:$0xff]
    %v1472 = vld [vmem:[%s1430 + $0x128] sm:$0xff]
    %v1473 = vld [vmem:[%s1430 + $0x130] sm:$0xff]
    %v1474 = vld [vmem:[%s1430 + $0x138] sm:$0xff]
    %v1475 = vld [vmem:[%s1430 + $0x140] sm:$0xf]
    %v1476 = vld [vmem:[%s1430 + $0x144] sm:$0xff]
    %v1477 = vld [vmem:[%s1430 + $0x14c] sm:$0xff]
    %v1478 = vld [vmem:[%s1430 + $0x154] sm:$0xff]
    %v1479 = vld [vmem:[%s1430 + $0x15c] sm:$0xff]
    %v1480 = vld [vmem:[%s1430 + $0x164] sm:$0xf]
    %v1481 = vld [vmem:[%s1430 + $0x168] sm:$0xff]
    %v1482 = vld [vmem:[%s1430 + $0x170] sm:$0xff]
    %v1483 = vld [vmem:[%s1430 + $0x178] sm:$0xff]
    %v1484 = vld [vmem:[%s1430 + $0x180] sm:$0xff]
    %v1485 = vld [vmem:[%s1430 + $0x188] sm:$0xf]
    %v1486 = vld [vmem:[%s1430 + $0x18c] sm:$0xff]
    %v1487 = vld [vmem:[%s1430 + $0x194] sm:$0xff]
    %v1488 = vld [vmem:[%s1430 + $0x19c] sm:$0xff]
    %v1489 = vld [vmem:[%s1430 + $0x1a4] sm:$0xff]
    %v1490 = vld [vmem:[%s1430 + $0x1ac] sm:$0xf]
    %v1491 = vld [vmem:[%s1430 + $0x1b0] sm:$0x11]
    %v1492 = vld [vmem:[%s1430 + $0x1b8] sm:$0x11]
    %v1493 = vld [vmem:[%s1430 + $0x1c0] sm:$0x11]
    %v1494 = vld [vmem:[%s1430 + $0x1c8] sm:$0x11]
    %v1495 = vld [vmem:[%s1430 + $0x1d0] sm:$0x1]
    %v1561 = vunpack.c.l.b16 %v1431
    %v1562 = vunpack.c.h.b16 %v1431
    %v1563 = vunpack.c.l.b16 %v1432
    %v1564 = vunpack.c.h.b16 %v1432
    %v1565 = vunpack.c.l.b16 %v1433
    %v1566 = vunpack.c.h.b16 %v1433
    %v1567 = vunpack.c.l.b16 %v1434
    %v1568 = vunpack.c.h.b16 %v1434
    %v1569 = vunpack.c.l.b16 %v1435
    %v1570 = vunpack.c.l.b16 %v1436
    %v1571 = vunpack.c.h.b16 %v1436
    %v1572 = vunpack.c.l.b16 %v1437
    %v1573 = vunpack.c.h.b16 %v1437
    %v1574 = vunpack.c.l.b16 %v1438
    %v1575 = vunpack.c.h.b16 %v1438
    %v1576 = vunpack.c.l.b16 %v1439
    %v1577 = vunpack.c.h.b16 %v1439
    %v1578 = vunpack.c.l.b16 %v1440
    %v1579 = vunpack.c.l.b16 %v1441
    %v1580 = vunpack.c.h.b16 %v1441
    %v1581 = vunpack.c.l.b16 %v1442
    %v1582 = vunpack.c.h.b16 %v1442
    %v1583 = vunpack.c.l.b16 %v1443
    %v1584 = vunpack.c.h.b16 %v1443
    %v1585 = vunpack.c.l.b16 %v1444
    %v1586 = vunpack.c.h.b16 %v1444
    %v1587 = vunpack.c.l.b16 %v1445
    %v1588 = vunpack.c.l.b16 %v1446
    %v1589 = vunpack.c.h.b16 %v1446
    %v1590 = vunpack.c.l.b16 %v1447
    %v1591 = vunpack.c.h.b16 %v1447
    %v1592 = vunpack.c.l.b16 %v1448
    %v1593 = vunpack.c.h.b16 %v1448
    %v1594 = vunpack.c.l.b16 %v1449
    %v1595 = vunpack.c.h.b16 %v1449
    %v1596 = vunpack.c.l.b16 %v1450
    %v1597 = vunpack.c.l.b16 %v1451
    %v1598 = vunpack.c.h.b16 %v1451
    %v1599 = vunpack.c.l.b16 %v1452
    %v1600 = vunpack.c.h.b16 %v1452
    %v1601 = vunpack.c.l.b16 %v1453
    %v1602 = vunpack.c.h.b16 %v1453
    %v1603 = vunpack.c.l.b16 %v1454
    %v1604 = vunpack.c.h.b16 %v1454
    %v1605 = vunpack.c.l.b16 %v1455
    %v1606 = vunpack.c.l.b16 %v1456
    %v1607 = vunpack.c.h.b16 %v1456
    %v1608 = vunpack.c.l.b16 %v1457
    %v1609 = vunpack.c.h.b16 %v1457
    %v1610 = vunpack.c.l.b16 %v1458
    %v1611 = vunpack.c.h.b16 %v1458
    %v1612 = vunpack.c.l.b16 %v1459
    %v1613 = vunpack.c.h.b16 %v1459
    %v1614 = vunpack.c.l.b16 %v1460
    %v1615 = vunpack.c.l.b16 %v1461
    %v1616 = vunpack.c.h.b16 %v1461
    %v1617 = vunpack.c.l.b16 %v1462
    %v1618 = vunpack.c.h.b16 %v1462
    %v1619 = vunpack.c.l.b16 %v1463
    %v1620 = vunpack.c.h.b16 %v1463
    %v1621 = vunpack.c.l.b16 %v1464
    %v1622 = vunpack.c.h.b16 %v1464
    %v1623 = vunpack.c.l.b16 %v1465
    %v1624 = vunpack.c.l.b16 %v1466
    %v1625 = vunpack.c.h.b16 %v1466
    %v1626 = vunpack.c.l.b16 %v1467
    %v1627 = vunpack.c.h.b16 %v1467
    %v1628 = vunpack.c.l.b16 %v1468
    %v1629 = vunpack.c.h.b16 %v1468
    %v1630 = vunpack.c.l.b16 %v1469
    %v1631 = vunpack.c.h.b16 %v1469
    %v1632 = vunpack.c.l.b16 %v1470
    %v1633 = vunpack.c.l.b16 %v1471
    %v1634 = vunpack.c.h.b16 %v1471
    %v1635 = vunpack.c.l.b16 %v1472
    %v1636 = vunpack.c.h.b16 %v1472
    %v1637 = vunpack.c.l.b16 %v1473
    %v1638 = vunpack.c.h.b16 %v1473
    %v1639 = vunpack.c.l.b16 %v1474
    %v1640 = vunpack.c.h.b16 %v1474
    %v1641 = vunpack.c.l.b16 %v1475
    %v1642 = vunpack.c.l.b16 %v1476
    %v1643 = vunpack.c.h.b16 %v1476
    %v1644 = vunpack.c.l.b16 %v1477
    %v1645 = vunpack.c.h.b16 %v1477
    %v1646 = vunpack.c.l.b16 %v1478
    %v1647 = vunpack.c.h.b16 %v1478
    %v1648 = vunpack.c.l.b16 %v1479
    %v1649 = vunpack.c.h.b16 %v1479
    %v1650 = vunpack.c.l.b16 %v1480
    %v1651 = vunpack.c.l.b16 %v1481
    %v1652 = vunpack.c.h.b16 %v1481
    %v1653 = vunpack.c.l.b16 %v1482
    %v1654 = vunpack.c.h.b16 %v1482
    %v1655 = vunpack.c.l.b16 %v1483
    %v1656 = vunpack.c.h.b16 %v1483
    %v1657 = vunpack.c.l.b16 %v1484
    %v1658 = vunpack.c.h.b16 %v1484
    %v1659 = vunpack.c.l.b16 %v1485
    %v1660 = vunpack.c.l.b16 %v1486
    %v1661 = vunpack.c.h.b16 %v1486
    %v1662 = vunpack.c.l.b16 %v1487
    %v1663 = vunpack.c.h.b16 %v1487
    %v1664 = vunpack.c.l.b16 %v1488
    %v1665 = vunpack.c.h.b16 %v1488
    %v1666 = vunpack.c.l.b16 %v1489
    %v1667 = vunpack.c.h.b16 %v1489
    %v1668 = vunpack.c.l.b16 %v1490
    %v1669 = vunpack.c.l.b16 %v1491
    %v1670 = vunpack.c.h.b16 %v1491
    %v1671 = vunpack.c.l.b16 %v1492
    %v1672 = vunpack.c.h.b16 %v1492
    %v1673 = vunpack.c.l.b16 %v1493
    %v1674 = vunpack.c.h.b16 %v1493
    %v1675 = vunpack.c.l.b16 %v1494
    %v1676 = vunpack.c.h.b16 %v1494
    %v1677 = vunpack.c.l.b16 %v1495
    %v1678 = vpack.c.b16 %v1570, %v1561
    %v1679 = vpack.c.b16 %v1571, %v1562
    %v1680 = vpack.c.b16 %v1572, %v1563
    %v1681 = vpack.c.b16 %v1573, %v1564
    %v1682 = vpack.c.b16 %v1574, %v1565
    %v1683 = vpack.c.b16 %v1575, %v1566
    %v1684 = vpack.c.b16 %v1576, %v1567
    %v1685 = vpack.c.b16 %v1577, %v1568
    %v1686 = vpack.c.b16 %v1578, %v1569
    %v1687 = vpack.c.b16 %v1588, %v1579
    %v1688 = vpack.c.b16 %v1589, %v1580
    %v1689 = vpack.c.b16 %v1590, %v1581
    %v1690 = vpack.c.b16 %v1591, %v1582
    %v1691 = vpack.c.b16 %v1592, %v1583
    %v1692 = vpack.c.b16 %v1593, %v1584
    %v1693 = vpack.c.b16 %v1594, %v1585
    %v1694 = vpack.c.b16 %v1595, %v1586
    %v1695 = vpack.c.b16 %v1596, %v1587
    %v1696 = vpack.c.b16 %v1606, %v1597
    %v1697 = vpack.c.b16 %v1607, %v1598
    %v1698 = vpack.c.b16 %v1608, %v1599
    %v1699 = vpack.c.b16 %v1609, %v1600
    %v1700 = vpack.c.b16 %v1610, %v1601
    %v1701 = vpack.c.b16 %v1611, %v1602
    %v1702 = vpack.c.b16 %v1612, %v1603
    %v1703 = vpack.c.b16 %v1613, %v1604
    %v1704 = vpack.c.b16 %v1614, %v1605
    %v1705 = vpack.c.b16 %v1624, %v1615
    %v1706 = vpack.c.b16 %v1625, %v1616
    %v1707 = vpack.c.b16 %v1626, %v1617
    %v1708 = vpack.c.b16 %v1627, %v1618
    %v1709 = vpack.c.b16 %v1628, %v1619
    %v1710 = vpack.c.b16 %v1629, %v1620
    %v1711 = vpack.c.b16 %v1630, %v1621
    %v1712 = vpack.c.b16 %v1631, %v1622
    %v1713 = vpack.c.b16 %v1632, %v1623
    %v1714 = vpack.c.b16 %v1642, %v1633
    %v1715 = vpack.c.b16 %v1643, %v1634
    %v1716 = vpack.c.b16 %v1644, %v1635
    %v1717 = vpack.c.b16 %v1645, %v1636
    %v1718 = vpack.c.b16 %v1646, %v1637
    %v1719 = vpack.c.b16 %v1647, %v1638
    %v1720 = vpack.c.b16 %v1648, %v1639
    %v1721 = vpack.c.b16 %v1649, %v1640
    %v1722 = vpack.c.b16 %v1650, %v1641
    %v1723 = vpack.c.b16 %v1660, %v1651
    %v1724 = vpack.c.b16 %v1661, %v1652
    %v1725 = vpack.c.b16 %v1662, %v1653
    %v1726 = vpack.c.b16 %v1663, %v1654
    %v1727 = vpack.c.b16 %v1664, %v1655
    %v1728 = vpack.c.b16 %v1665, %v1656
    %v1729 = vpack.c.b16 %v1666, %v1657
    %v1730 = vpack.c.b16 %v1667, %v1658
    %v1731 = vpack.c.b16 %v1668, %v1659
    %v1732 = vpack.c.b16 %v1669, %v1669
    %v1733 = vpack.c.b16 %v1670, %v1670
    %v1734 = vpack.c.b16 %v1671, %v1671
    %v1735 = vpack.c.b16 %v1672, %v1672
    %v1736 = vpack.c.b16 %v1673, %v1673
    %v1737 = vpack.c.b16 %v1674, %v1674
    %v1738 = vpack.c.b16 %v1675, %v1675
    %v1739 = vpack.c.b16 %v1676, %v1676
    %v1740 = vpack.c.b16 %v1677, %v1677
    %1804 = vmatpush.bf16.msra.mxu0 %v872
    %1805 = vmatpush.bf16.msra.mxu0 %v871
    %1806 = vmatpush.bf16.msra.mxu0 %v870
    %1807 = vmatpush.bf16.msra.mxu0 %v869
    %1808 = vmatpush.bf16.msra.mxu0 %v868
    %1809 = vmatpush.bf16.msra.mxu0 %v867
    %1810 = vmatpush.bf16.msra.mxu0 %v866
    %1811 = vmatpush.bf16.msra.mxu0 %v865
    %1812 = vmatmul.bf16.gmra.mxu0 %v1678
    %v1813 = vpop.f32.mrf.mxu0
    %v1814 = vadd.f32 0.0, %v1813
    %v1815 = vpop.f32.mrf.mxu0
    %v1816 = vadd.f32 0.0, %v1815
    %1817 = vmatmul.bf16.gmra.mxu0 %v1687
    %v1818 = vpop.f32.mrf.mxu0
    %v1819 = vadd.f32 0.0, %v1818
    %v1820 = vpop.f32.mrf.mxu0
    %v1821 = vadd.f32 0.0, %v1820
    %1822 = vmatmul.bf16.gmra.mxu0 %v1696
    %v1823 = vpop.f32.mrf.mxu0
    %v1824 = vadd.f32 0.0, %v1823
    %v1825 = vpop.f32.mrf.mxu0
    %v1826 = vadd.f32 0.0, %v1825
    %1827 = vmatmul.bf16.gmra.mxu0 %v1705
    %v1828 = vpop.f32.mrf.mxu0
    %v1829 = vadd.f32 0.0, %v1828
    %v1830 = vpop.f32.mrf.mxu0
    %v1831 = vadd.f32 0.0, %v1830
    %1832 = vmatmul.bf16.gmra.mxu0 %v1714
    %v1833 = vpop.f32.mrf.mxu0
    %v1834 = vadd.f32 0.0, %v1833
    %v1835 = vpop.f32.mrf.mxu0
    %v1836 = vadd.f32 0.0, %v1835
    %1837 = vmatmul.bf16.gmra.mxu0 %v1723
    %v1838 = vpop.f32.mrf.mxu0
    %v1839 = vadd.f32 0.0, %v1838
    %v1840 = vpop.f32.mrf.mxu0
    %v1841 = vadd.f32 0.0, %v1840
    %1842 = vmatmul.bf16.gmra.mxu0 %v1732
    %v1843 = vpop.f32.mrf.mxu0
    %v1844 = vadd.f32 0.0, %v1843
    %v1845 = vpop.f32.mrf.mxu0
    %1846 = vdwg.mxu0
    %1847 = vmatpush.bf16.msra.mxu0 %v880
    %1848 = vmatpush.bf16.msra.mxu0 %v879
    %1849 = vmatpush.bf16.msra.mxu0 %v878
    %1850 = vmatpush.bf16.msra.mxu0 %v877
    %1851 = vmatpush.bf16.msra.mxu0 %v876
    %1852 = vmatpush.bf16.msra.mxu0 %v875
    %1853 = vmatpush.bf16.msra.mxu0 %v874
    %1854 = vmatpush.bf16.msra.mxu0 %v873
    %1855 = vmatmul.bf16.gmra.mxu0 %v1679
    %v1856 = vpop.f32.mrf.mxu0
    %v1857 = vadd.f32 %v1814, %v1856
    %v1858 = vpop.f32.mrf.mxu0
    %v1859 = vadd.f32 %v1816, %v1858
    %1860 = vmatmul.bf16.gmra.mxu0 %v1688
    %v1861 = vpop.f32.mrf.mxu0
    %v1862 = vadd.f32 %v1819, %v1861
    %v1863 = vpop.f32.mrf.mxu0
    %v1864 = vadd.f32 %v1821, %v1863
    %1865 = vmatmul.bf16.gmra.mxu0 %v1697
    %v1866 = vpop.f32.mrf.mxu0
    %v1867 = vadd.f32 %v1824, %v1866
    %v1868 = vpop.f32.mrf.mxu0
    %v1869 = vadd.f32 %v1826, %v1868
    %1870 = vmatmul.bf16.gmra.mxu0 %v1706
    %v1871 = vpop.f32.mrf.mxu0
    %v1872 = vadd.f32 %v1829, %v1871
    %v1873 = vpop.f32.mrf.mxu0
    %v1874 = vadd.f32 %v1831, %v1873
    %1875 = vmatmul.bf16.gmra.mxu0 %v1715
    %v1876 = vpop.f32.mrf.mxu0
    %v1877 = vadd.f32 %v1834, %v1876
    %v1878 = vpop.f32.mrf.mxu0
    %v1879 = vadd.f32 %v1836, %v1878
    %1880 = vmatmul.bf16.gmra.mxu0 %v1724
    %v1881 = vpop.f32.mrf.mxu0
    %v1882 = vadd.f32 %v1839, %v1881
    %v1883 = vpop.f32.mrf.mxu0
    %v1884 = vadd.f32 %v1841, %v1883
    %1885 = vmatmul.bf16.gmra.mxu0 %v1733
    %v1886 = vpop.f32.mrf.mxu0
    %v1887 = vadd.f32 %v1844, %v1886
    %v1888 = vpop.f32.mrf.mxu0
    %1889 = vdwg.mxu0
    %1890 = vmatpush.bf16.msra.mxu0 %v888
    %1891 = vmatpush.bf16.msra.mxu0 %v887
    %1892 = vmatpush.bf16.msra.mxu0 %v886
    %1893 = vmatpush.bf16.msra.mxu0 %v885
    %1894 = vmatpush.bf16.msra.mxu0 %v884
    %1895 = vmatpush.bf16.msra.mxu0 %v883
    %1896 = vmatpush.bf16.msra.mxu0 %v882
    %1897 = vmatpush.bf16.msra.mxu0 %v881
    %1898 = vmatmul.bf16.gmra.mxu0 %v1680
    %v1899 = vpop.f32.mrf.mxu0
    %v1900 = vadd.f32 %v1857, %v1899
    %v1901 = vpop.f32.mrf.mxu0
    %v1902 = vadd.f32 %v1859, %v1901
    %1903 = vmatmul.bf16.gmra.mxu0 %v1689
    %v1904 = vpop.f32.mrf.mxu0
    %v1905 = vadd.f32 %v1862, %v1904
    %v1906 = vpop.f32.mrf.mxu0
    %v1907 = vadd.f32 %v1864, %v1906
    %1908 = vmatmul.bf16.gmra.mxu0 %v1698
    %v1909 = vpop.f32.mrf.mxu0
    %v1910 = vadd.f32 %v1867, %v1909
    %v1911 = vpop.f32.mrf.mxu0
    %v1912 = vadd.f32 %v1869, %v1911
    %1913 = vmatmul.bf16.gmra.mxu0 %v1707
    %v1914 = vpop.f32.mrf.mxu0
    %v1915 = vadd.f32 %v1872, %v1914
    %v1916 = vpop.f32.mrf.mxu0
    %v1917 = vadd.f32 %v1874, %v1916
    %1918 = vmatmul.bf16.gmra.mxu0 %v1716
    %v1919 = vpop.f32.mrf.mxu0
    %v1920 = vadd.f32 %v1877, %v1919
    %v1921 = vpop.f32.mrf.mxu0
    %v1922 = vadd.f32 %v1879, %v1921
    %1923 = vmatmul.bf16.gmra.mxu0 %v1725
    %v1924 = vpop.f32.mrf.mxu0
    %v1925 = vadd.f32 %v1882, %v1924
    %v1926 = vpop.f32.mrf.mxu0
    %v1927 = vadd.f32 %v1884, %v1926
    %1928 = vmatmul.bf16.gmra.mxu0 %v1734
    %v1929 = vpop.f32.mrf.mxu0
    %v1930 = vadd.f32 %v1887, %v1929
    %v1931 = vpop.f32.mrf.mxu0
    %1932 = vdwg.mxu0
    %1933 = vmatpush.bf16.msra.mxu0 %v896
    %1934 = vmatpush.bf16.msra.mxu0 %v895
    %1935 = vmatpush.bf16.msra.mxu0 %v894
    %1936 = vmatpush.bf16.msra.mxu0 %v893
    %1937 = vmatpush.bf16.msra.mxu0 %v892
    %1938 = vmatpush.bf16.msra.mxu0 %v891
    %1939 = vmatpush.bf16.msra.mxu0 %v890
    %1940 = vmatpush.bf16.msra.mxu0 %v889
    %1941 = vmatmul.bf16.gmra.mxu0 %v1681
    %v1942 = vpop.f32.mrf.mxu0
    %v1943 = vadd.f32 %v1900, %v1942
    %v1944 = vpop.f32.mrf.mxu0
    %v1945 = vadd.f32 %v1902, %v1944
    %1946 = vmatmul.bf16.gmra.mxu0 %v1690
    %v1947 = vpop.f32.mrf.mxu0
    %v1948 = vadd.f32 %v1905, %v1947
    %v1949 = vpop.f32.mrf.mxu0
    %v1950 = vadd.f32 %v1907, %v1949
    %1951 = vmatmul.bf16.gmra.mxu0 %v1699
    %v1952 = vpop.f32.mrf.mxu0
    %v1953 = vadd.f32 %v1910, %v1952
    %v1954 = vpop.f32.mrf.mxu0
    %v1955 = vadd.f32 %v1912, %v1954
    %1956 = vmatmul.bf16.gmra.mxu0 %v1708
    %v1957 = vpop.f32.mrf.mxu0
    %v1958 = vadd.f32 %v1915, %v1957
    %v1959 = vpop.f32.mrf.mxu0
    %v1960 = vadd.f32 %v1917, %v1959
    %1961 = vmatmul.bf16.gmra.mxu0 %v1717
    %v1962 = vpop.f32.mrf.mxu0
    %v1963 = vadd.f32 %v1920, %v1962
    %v1964 = vpop.f32.mrf.mxu0
    %v1965 = vadd.f32 %v1922, %v1964
    %1966 = vmatmul.bf16.gmra.mxu0 %v1726
    %v1967 = vpop.f32.mrf.mxu0
    %v1968 = vadd.f32 %v1925, %v1967
    %v1969 = vpop.f32.mrf.mxu0
    %v1970 = vadd.f32 %v1927, %v1969
    %1971 = vmatmul.bf16.gmra.mxu0 %v1735
    %v1972 = vpop.f32.mrf.mxu0
    %v1973 = vadd.f32 %v1930, %v1972
    %v1974 = vpop.f32.mrf.mxu0
    %1975 = vdwg.mxu0
    %1976 = vmatpush.bf16.msra.mxu0 %v904
    %1977 = vmatpush.bf16.msra.mxu0 %v903
    %1978 = vmatpush.bf16.msra.mxu0 %v902
    %1979 = vmatpush.bf16.msra.mxu0 %v901
    %1980 = vmatpush.bf16.msra.mxu0 %v900
    %1981 = vmatpush.bf16.msra.mxu0 %v899
    %1982 = vmatpush.bf16.msra.mxu0 %v898
    %1983 = vmatpush.bf16.msra.mxu0 %v897
    %1984 = vmatmul.bf16.gmra.mxu0 %v1682
    %v1985 = vpop.f32.mrf.mxu0
    %v1986 = vadd.f32 %v1943, %v1985
    %v1987 = vpop.f32.mrf.mxu0
    %v1988 = vadd.f32 %v1945, %v1987
    %1989 = vmatmul.bf16.gmra.mxu0 %v1691
    %v1990 = vpop.f32.mrf.mxu0
    %v1991 = vadd.f32 %v1948, %v1990
    %v1992 = vpop.f32.mrf.mxu0
    %v1993 = vadd.f32 %v1950, %v1992
    %1994 = vmatmul.bf16.gmra.mxu0 %v1700
    %v1995 = vpop.f32.mrf.mxu0
    %v1996 = vadd.f32 %v1953, %v1995
    %v1997 = vpop.f32.mrf.mxu0
    %v1998 = vadd.f32 %v1955, %v1997
    %1999 = vmatmul.bf16.gmra.mxu0 %v1709
    %v2000 = vpop.f32.mrf.mxu0
    %v2001 = vadd.f32 %v1958, %v2000
    %v2002 = vpop.f32.mrf.mxu0
    %v2003 = vadd.f32 %v1960, %v2002
    %2004 = vmatmul.bf16.gmra.mxu0 %v1718
    %v2005 = vpop.f32.mrf.mxu0
    %v2006 = vadd.f32 %v1963, %v2005
    %v2007 = vpop.f32.mrf.mxu0
    %v2008 = vadd.f32 %v1965, %v2007
    %2009 = vmatmul.bf16.gmra.mxu0 %v1727
    %v2010 = vpop.f32.mrf.mxu0
    %v2011 = vadd.f32 %v1968, %v2010
    %v2012 = vpop.f32.mrf.mxu0
    %v2013 = vadd.f32 %v1970, %v2012
    %2014 = vmatmul.bf16.gmra.mxu0 %v1736
    %v2015 = vpop.f32.mrf.mxu0
    %v2016 = vadd.f32 %v1973, %v2015
    %v2017 = vpop.f32.mrf.mxu0
    %2018 = vdwg.mxu0
    %2019 = vmatpush.bf16.msra.mxu0 %v912
    %2020 = vmatpush.bf16.msra.mxu0 %v911
    %2021 = vmatpush.bf16.msra.mxu0 %v910
    %2022 = vmatpush.bf16.msra.mxu0 %v909
    %2023 = vmatpush.bf16.msra.mxu0 %v908
    %2024 = vmatpush.bf16.msra.mxu0 %v907
    %2025 = vmatpush.bf16.msra.mxu0 %v906
    %2026 = vmatpush.bf16.msra.mxu0 %v905
    %2027 = vmatmul.bf16.gmra.mxu0 %v1683
    %v2028 = vpop.f32.mrf.mxu0
    %v2029 = vadd.f32 %v1986, %v2028
    %v2030 = vpop.f32.mrf.mxu0
    %v2031 = vadd.f32 %v1988, %v2030
    %2032 = vmatmul.bf16.gmra.mxu0 %v1692
    %v2033 = vpop.f32.mrf.mxu0
    %v2034 = vadd.f32 %v1991, %v2033
    %v2035 = vpop.f32.mrf.mxu0
    %v2036 = vadd.f32 %v1993, %v2035
    %2037 = vmatmul.bf16.gmra.mxu0 %v1701
    %v2038 = vpop.f32.mrf.mxu0
    %v2039 = vadd.f32 %v1996, %v2038
    %v2040 = vpop.f32.mrf.mxu0
    %v2041 = vadd.f32 %v1998, %v2040
    %2042 = vmatmul.bf16.gmra.mxu0 %v1710
    %v2043 = vpop.f32.mrf.mxu0
    %v2044 = vadd.f32 %v2001, %v2043
    %v2045 = vpop.f32.mrf.mxu0
    %v2046 = vadd.f32 %v2003, %v2045
    %2047 = vmatmul.bf16.gmra.mxu0 %v1719
    %v2048 = vpop.f32.mrf.mxu0
    %v2049 = vadd.f32 %v2006, %v2048
    %v2050 = vpop.f32.mrf.mxu0
    %v2051 = vadd.f32 %v2008, %v2050
    %2052 = vmatmul.bf16.gmra.mxu0 %v1728
    %v2053 = vpop.f32.mrf.mxu0
    %v2054 = vadd.f32 %v2011, %v2053
    %v2055 = vpop.f32.mrf.mxu0
    %v2056 = vadd.f32 %v2013, %v2055
    %2057 = vmatmul.bf16.gmra.mxu0 %v1737
    %v2058 = vpop.f32.mrf.mxu0
    %v2059 = vadd.f32 %v2016, %v2058
    %v2060 = vpop.f32.mrf.mxu0
    %2061 = vdwg.mxu0
    %2062 = vmatpush.bf16.msra.mxu0 %v920
    %2063 = vmatpush.bf16.msra.mxu0 %v919
    %2064 = vmatpush.bf16.msra.mxu0 %v918
    %2065 = vmatpush.bf16.msra.mxu0 %v917
    %2066 = vmatpush.bf16.msra.mxu0 %v916
    %2067 = vmatpush.bf16.msra.mxu0 %v915
    %2068 = vmatpush.bf16.msra.mxu0 %v914
    %2069 = vmatpush.bf16.msra.mxu0 %v913
    %2070 = vmatmul.bf16.gmra.mxu0 %v1684
    %v2071 = vpop.f32.mrf.mxu0
    %v2072 = vadd.f32 %v2029, %v2071
    %v2073 = vpop.f32.mrf.mxu0
    %v2074 = vadd.f32 %v2031, %v2073
    %2075 = vmatmul.bf16.gmra.mxu0 %v1693
    %v2076 = vpop.f32.mrf.mxu0
    %v2077 = vadd.f32 %v2034, %v2076
    %v2078 = vpop.f32.mrf.mxu0
    %v2079 = vadd.f32 %v2036, %v2078
    %2080 = vmatmul.bf16.gmra.mxu0 %v1702
    %v2081 = vpop.f32.mrf.mxu0
    %v2082 = vadd.f32 %v2039, %v2081
    %v2083 = vpop.f32.mrf.mxu0
    %v2084 = vadd.f32 %v2041, %v2083
    %2085 = vmatmul.bf16.gmra.mxu0 %v1711
    %v2086 = vpop.f32.mrf.mxu0
    %v2087 = vadd.f32 %v2044, %v2086
    %v2088 = vpop.f32.mrf.mxu0
    %v2089 = vadd.f32 %v2046, %v2088
    %2090 = vmatmul.bf16.gmra.mxu0 %v1720
    %v2091 = vpop.f32.mrf.mxu0
    %v2092 = vadd.f32 %v2049, %v2091
    %v2093 = vpop.f32.mrf.mxu0
    %v2094 = vadd.f32 %v2051, %v2093
    %2095 = vmatmul.bf16.gmra.mxu0 %v1729
    %v2096 = vpop.f32.mrf.mxu0
    %v2097 = vadd.f32 %v2054, %v2096
    %v2098 = vpop.f32.mrf.mxu0
    %v2099 = vadd.f32 %v2056, %v2098
    %2100 = vmatmul.bf16.gmra.mxu0 %v1738
    %v2101 = vpop.f32.mrf.mxu0
    %v2102 = vadd.f32 %v2059, %v2101
    %v2103 = vpop.f32.mrf.mxu0
    %2104 = vdwg.mxu0
    %2105 = vmatpush.bf16.msra.mxu0 %v928
    %2106 = vmatpush.bf16.msra.mxu0 %v927
    %2107 = vmatpush.bf16.msra.mxu0 %v926
    %2108 = vmatpush.bf16.msra.mxu0 %v925
    %2109 = vmatpush.bf16.msra.mxu0 %v924
    %2110 = vmatpush.bf16.msra.mxu0 %v923
    %2111 = vmatpush.bf16.msra.mxu0 %v922
    %2112 = vmatpush.bf16.msra.mxu0 %v921
    %2113 = vmatmul.bf16.gmra.mxu0 %v1685
    %v2114 = vpop.f32.mrf.mxu0
    %v2115 = vadd.f32 %v2072, %v2114
    %v2116 = vpop.f32.mrf.mxu0
    %v2117 = vadd.f32 %v2074, %v2116
    %2118 = vmatmul.bf16.gmra.mxu0 %v1694
    %v2119 = vpop.f32.mrf.mxu0
    %v2120 = vadd.f32 %v2077, %v2119
    %v2121 = vpop.f32.mrf.mxu0
    %v2122 = vadd.f32 %v2079, %v2121
    %2123 = vmatmul.bf16.gmra.mxu0 %v1703
    %v2124 = vpop.f32.mrf.mxu0
    %v2125 = vadd.f32 %v2082, %v2124
    %v2126 = vpop.f32.mrf.mxu0
    %v2127 = vadd.f32 %v2084, %v2126
    %2128 = vmatmul.bf16.gmra.mxu0 %v1712
    %v2129 = vpop.f32.mrf.mxu0
    %v2130 = vadd.f32 %v2087, %v2129
    %v2131 = vpop.f32.mrf.mxu0
    %v2132 = vadd.f32 %v2089, %v2131
    %2133 = vmatmul.bf16.gmra.mxu0 %v1721
    %v2134 = vpop.f32.mrf.mxu0
    %v2135 = vadd.f32 %v2092, %v2134
    %v2136 = vpop.f32.mrf.mxu0
    %v2137 = vadd.f32 %v2094, %v2136
    %2138 = vmatmul.bf16.gmra.mxu0 %v1730
    %v2139 = vpop.f32.mrf.mxu0
    %v2140 = vadd.f32 %v2097, %v2139
    %v2141 = vpop.f32.mrf.mxu0
    %v2142 = vadd.f32 %v2099, %v2141
    %2143 = vmatmul.bf16.gmra.mxu0 %v1739
    %v2144 = vpop.f32.mrf.mxu0
    %v2145 = vadd.f32 %v2102, %v2144
    %v2146 = vpop.f32.mrf.mxu0
    %2147 = vdwg.mxu0
    %2148 = vmatpush.bf16.msra.mxu0 %v936
    %2149 = vmatpush.bf16.msra.mxu0 %v935
    %2150 = vmatpush.bf16.msra.mxu0 %v934
    %2151 = vmatpush.bf16.msra.mxu0 %v933
    %2152 = vmatpush.bf16.msra.mxu0 %v932
    %2153 = vmatpush.bf16.msra.mxu0 %v931
    %2154 = vmatpush.bf16.msra.mxu0 %v930
    %2155 = vmatpush.bf16.msra.mxu0 %v929
    %2156 = vmatmul.bf16.gmra.mxu0 %v1686
    %v2157 = vpop.f32.mrf.mxu0
    %v2158 = vadd.f32 %v2115, %v2157
    %v2159 = vpop.f32.mrf.mxu0
    %v2160 = vadd.f32 %v2117, %v2159
    %2161 = vmatmul.bf16.gmra.mxu0 %v1695
    %v2162 = vpop.f32.mrf.mxu0
    %v2163 = vadd.f32 %v2120, %v2162
    %v2164 = vpop.f32.mrf.mxu0
    %v2165 = vadd.f32 %v2122, %v2164
    %2166 = vmatmul.bf16.gmra.mxu0 %v1704
    %v2167 = vpop.f32.mrf.mxu0
    %v2168 = vadd.f32 %v2125, %v2167
    %v2169 = vpop.f32.mrf.mxu0
    %v2170 = vadd.f32 %v2127, %v2169
    %2171 = vmatmul.bf16.gmra.mxu0 %v1713
    %v2172 = vpop.f32.mrf.mxu0
    %v2173 = vadd.f32 %v2130, %v2172
    %v2174 = vpop.f32.mrf.mxu0
    %v2175 = vadd.f32 %v2132, %v2174
    %2176 = vmatmul.bf16.gmra.mxu0 %v1722
    %v2177 = vpop.f32.mrf.mxu0
    %v2178 = vadd.f32 %v2135, %v2177
    %v2179 = vpop.f32.mrf.mxu0
    %v2180 = vadd.f32 %v2137, %v2179
    %2181 = vmatmul.bf16.gmra.mxu0 %v1731
    %v2182 = vpop.f32.mrf.mxu0
    %v2183 = vadd.f32 %v2140, %v2182
    %v2184 = vpop.f32.mrf.mxu0
    %v2185 = vadd.f32 %v2142, %v2184
    %2186 = vmatmul.bf16.gmra.mxu0 %v1740
    %v2187 = vpop.f32.mrf.mxu0
    %v2188 = vadd.f32 %v2145, %v2187
    %v2189 = vpop.f32.mrf.mxu0
    %2190 = vdwg.mxu0
    %v2191 = vmul.f32 %v2158, %v1398
    %v2192 = vmul.f32 %v2160, %v1398
    %v2193 = vmul.f32 %v2163, %v1398
    %v2194 = vmul.f32 %v2165, %v1398
    %v2195 = vmul.f32 %v2168, %v1398
    %v2196 = vmul.f32 %v2170, %v1398
    %v2197 = vmul.f32 %v2173, %v1398
    %v2198 = vmul.f32 %v2175, %v1398
    %v2199 = vmul.f32 %v2178, %v1398
    %v2200 = vmul.f32 %v2180, %v1398
    %v2201 = vmul.f32 %v2183, %v1398
    %v2202 = vmul.f32 %v2185, %v1398
    %v2203 = vmul.f32 %v2188, %v1398
    %v2204 = vadd.f32 %v2191, %v1415
    %v2205 = vadd.f32 %v2192, %v1415
    %v2206 = vadd.f32 %v2193, %v1415
    %v2207 = vadd.f32 %v2194, %v1415
    %v2208 = vadd.f32 %v2195, %v1415
    %v2209 = vadd.f32 %v2196, %v1415
    %v2210 = vadd.f32 %v2197, %v1415
    %v2211 = vadd.f32 %v2198, %v1415
    %v2212 = vadd.f32 %v2199, %v1415
    %v2213 = vadd.f32 %v2200, %v1415
    %v2214 = vadd.f32 %v2201, %v1415
    %v2215 = vadd.f32 %v2202, %v1415
    %v2216 = vadd.f32 %v2203, %v1415
    %v2217 = vmax.f32 %v1417, %v2204
    %v2218 = vmax.f32 %v1418, %v2205
    %v2219 = vmax.f32 %v1419, %v2206
    %v2220 = vmax.f32 %v1420, %v2207
    %v2221 = vmax.f32 %v1421, %v2208
    %v2222 = vmax.f32 %v1422, %v2209
    %v2223 = vmax.f32 %v1423, %v2210
    %v2224 = vmax.f32 %v1424, %v2211
    %v2225 = vmax.f32 %v1425, %v2212
    %v2226 = vmax.f32 %v1426, %v2213
    %v2227 = vmax.f32 %v1427, %v2214
    %v2228 = vmax.f32 %v1428, %v2215
    %v2229 = vmax.f32 %v1429, %v2216
    %s2230 = scalar_lea.vmem %s0, 936
    %v2231 = vld [vmem:[%s2230] sm:$0xff]
    %v2232 = vld [vmem:[%s2230 + $0x8] sm:$0xff]
    %v2233 = vld [vmem:[%s2230 + $0x10] sm:$0xff]
    %v2234 = vld [vmem:[%s2230 + $0x18] sm:$0xff]
    %v2235 = vld [vmem:[%s2230 + $0x20] sm:$0xf]
    %v2236 = vld [vmem:[%s2230 + $0x24] sm:$0xff]
    %v2237 = vld [vmem:[%s2230 + $0x2c] sm:$0xff]
    %v2238 = vld [vmem:[%s2230 + $0x34] sm:$0xff]
    %v2239 = vld [vmem:[%s2230 + $0x3c] sm:$0xff]
    %v2240 = vld [vmem:[%s2230 + $0x44] sm:$0xf]
    %v2241 = vld [vmem:[%s2230 + $0x48] sm:$0xff]
    %v2242 = vld [vmem:[%s2230 + $0x50] sm:$0xff]
    %v2243 = vld [vmem:[%s2230 + $0x58] sm:$0xff]
    %v2244 = vld [vmem:[%s2230 + $0x60] sm:$0xff]
    %v2245 = vld [vmem:[%s2230 + $0x68] sm:$0xf]
    %v2246 = vld [vmem:[%s2230 + $0x6c] sm:$0xff]
    %v2247 = vld [vmem:[%s2230 + $0x74] sm:$0xff]
    %v2248 = vld [vmem:[%s2230 + $0x7c] sm:$0xff]
    %v2249 = vld [vmem:[%s2230 + $0x84] sm:$0xff]
    %v2250 = vld [vmem:[%s2230 + $0x8c] sm:$0xf]
    %v2251 = vld [vmem:[%s2230 + $0x90] sm:$0xff]
    %v2252 = vld [vmem:[%s2230 + $0x98] sm:$0xff]
    %v2253 = vld [vmem:[%s2230 + $0xa0] sm:$0xff]
    %v2254 = vld [vmem:[%s2230 + $0xa8] sm:$0xff]
    %v2255 = vld [vmem:[%s2230 + $0xb0] sm:$0xf]
    %v2256 = vld [vmem:[%s2230 + $0xb4] sm:$0xff]
    %v2257 = vld [vmem:[%s2230 + $0xbc] sm:$0xff]
    %v2258 = vld [vmem:[%s2230 + $0xc4] sm:$0xff]
    %v2259 = vld [vmem:[%s2230 + $0xcc] sm:$0xff]
    %v2260 = vld [vmem:[%s2230 + $0xd4] sm:$0xf]
    %v2261 = vld [vmem:[%s2230 + $0xd8] sm:$0xff]
    %v2262 = vld [vmem:[%s2230 + $0xe0] sm:$0xff]
    %v2263 = vld [vmem:[%s2230 + $0xe8] sm:$0xff]
    %v2264 = vld [vmem:[%s2230 + $0xf0] sm:$0xff]
    %v2265 = vld [vmem:[%s2230 + $0xf8] sm:$0xf]
    %v2266 = vld [vmem:[%s2230 + $0xfc] sm:$0xff]
    %v2267 = vld [vmem:[%s2230 + $0x104] sm:$0xff]
    %v2268 = vld [vmem:[%s2230 + $0x10c] sm:$0xff]
    %v2269 = vld [vmem:[%s2230 + $0x114] sm:$0xff]
    %v2270 = vld [vmem:[%s2230 + $0x11c] sm:$0xf]
    %v2271 = vld [vmem:[%s2230 + $0x120] sm:$0xff]
    %v2272 = vld [vmem:[%s2230 + $0x128] sm:$0xff]
    %v2273 = vld [vmem:[%s2230 + $0x130] sm:$0xff]
    %v2274 = vld [vmem:[%s2230 + $0x138] sm:$0xff]
    %v2275 = vld [vmem:[%s2230 + $0x140] sm:$0xf]
    %v2276 = vld [vmem:[%s2230 + $0x144] sm:$0xff]
    %v2277 = vld [vmem:[%s2230 + $0x14c] sm:$0xff]
    %v2278 = vld [vmem:[%s2230 + $0x154] sm:$0xff]
    %v2279 = vld [vmem:[%s2230 + $0x15c] sm:$0xff]
    %v2280 = vld [vmem:[%s2230 + $0x164] sm:$0xf]
    %v2281 = vld [vmem:[%s2230 + $0x168] sm:$0xff]
    %v2282 = vld [vmem:[%s2230 + $0x170] sm:$0xff]
    %v2283 = vld [vmem:[%s2230 + $0x178] sm:$0xff]
    %v2284 = vld [vmem:[%s2230 + $0x180] sm:$0xff]
    %v2285 = vld [vmem:[%s2230 + $0x188] sm:$0xf]
    %v2286 = vld [vmem:[%s2230 + $0x18c] sm:$0xff]
    %v2287 = vld [vmem:[%s2230 + $0x194] sm:$0xff]
    %v2288 = vld [vmem:[%s2230 + $0x19c] sm:$0xff]
    %v2289 = vld [vmem:[%s2230 + $0x1a4] sm:$0xff]
    %v2290 = vld [vmem:[%s2230 + $0x1ac] sm:$0xf]
    %v2291 = vld [vmem:[%s2230 + $0x1b0] sm:$0x11]
    %v2292 = vld [vmem:[%s2230 + $0x1b8] sm:$0x11]
    %v2293 = vld [vmem:[%s2230 + $0x1c0] sm:$0x11]
    %v2294 = vld [vmem:[%s2230 + $0x1c8] sm:$0x11]
    %v2295 = vld [vmem:[%s2230 + $0x1d0] sm:$0x1]
    %v2361 = vunpack.c.l.b16 %v2231
    %v2362 = vunpack.c.h.b16 %v2231
    %v2363 = vunpack.c.l.b16 %v2232
    %v2364 = vunpack.c.h.b16 %v2232
    %v2365 = vunpack.c.l.b16 %v2233
    %v2366 = vunpack.c.h.b16 %v2233
    %v2367 = vunpack.c.l.b16 %v2234
    %v2368 = vunpack.c.h.b16 %v2234
    %v2369 = vunpack.c.l.b16 %v2235
    %v2370 = vunpack.c.l.b16 %v2236
    %v2371 = vunpack.c.h.b16 %v2236
    %v2372 = vunpack.c.l.b16 %v2237
    %v2373 = vunpack.c.h.b16 %v2237
    %v2374 = vunpack.c.l.b16 %v2238
    %v2375 = vunpack.c.h.b16 %v2238
    %v2376 = vunpack.c.l.b16 %v2239
    %v2377 = vunpack.c.h.b16 %v2239
    %v2378 = vunpack.c.l.b16 %v2240
    %v2379 = vunpack.c.l.b16 %v2241
    %v2380 = vunpack.c.h.b16 %v2241
    %v2381 = vunpack.c.l.b16 %v2242
    %v2382 = vunpack.c.h.b16 %v2242
    %v2383 = vunpack.c.l.b16 %v2243
    %v2384 = vunpack.c.h.b16 %v2243
    %v2385 = vunpack.c.l.b16 %v2244
    %v2386 = vunpack.c.h.b16 %v2244
    %v2387 = vunpack.c.l.b16 %v2245
    %v2388 = vunpack.c.l.b16 %v2246
    %v2389 = vunpack.c.h.b16 %v2246
    %v2390 = vunpack.c.l.b16 %v2247
    %v2391 = vunpack.c.h.b16 %v2247
    %v2392 = vunpack.c.l.b16 %v2248
    %v2393 = vunpack.c.h.b16 %v2248
    %v2394 = vunpack.c.l.b16 %v2249
    %v2395 = vunpack.c.h.b16 %v2249
    %v2396 = vunpack.c.l.b16 %v2250
    %v2397 = vunpack.c.l.b16 %v2251
    %v2398 = vunpack.c.h.b16 %v2251
    %v2399 = vunpack.c.l.b16 %v2252
    %v2400 = vunpack.c.h.b16 %v2252
    %v2401 = vunpack.c.l.b16 %v2253
    %v2402 = vunpack.c.h.b16 %v2253
    %v2403 = vunpack.c.l.b16 %v2254
    %v2404 = vunpack.c.h.b16 %v2254
    %v2405 = vunpack.c.l.b16 %v2255
    %v2406 = vunpack.c.l.b16 %v2256
    %v2407 = vunpack.c.h.b16 %v2256
    %v2408 = vunpack.c.l.b16 %v2257
    %v2409 = vunpack.c.h.b16 %v2257
    %v2410 = vunpack.c.l.b16 %v2258
    %v2411 = vunpack.c.h.b16 %v2258
    %v2412 = vunpack.c.l.b16 %v2259
    %v2413 = vunpack.c.h.b16 %v2259
    %v2414 = vunpack.c.l.b16 %v2260
    %v2415 = vunpack.c.l.b16 %v2261
    %v2416 = vunpack.c.h.b16 %v2261
    %v2417 = vunpack.c.l.b16 %v2262
    %v2418 = vunpack.c.h.b16 %v2262
    %v2419 = vunpack.c.l.b16 %v2263
    %v2420 = vunpack.c.h.b16 %v2263
    %v2421 = vunpack.c.l.b16 %v2264
    %v2422 = vunpack.c.h.b16 %v2264
    %v2423 = vunpack.c.l.b16 %v2265
    %v2424 = vunpack.c.l.b16 %v2266
    %v2425 = vunpack.c.h.b16 %v2266
    %v2426 = vunpack.c.l.b16 %v2267
    %v2427 = vunpack.c.h.b16 %v2267
    %v2428 = vunpack.c.l.b16 %v2268
    %v2429 = vunpack.c.h.b16 %v2268
    %v2430 = vunpack.c.l.b16 %v2269
    %v2431 = vunpack.c.h.b16 %v2269
    %v2432 = vunpack.c.l.b16 %v2270
    %v2433 = vunpack.c.l.b16 %v2271
    %v2434 = vunpack.c.h.b16 %v2271
    %v2435 = vunpack.c.l.b16 %v2272
    %v2436 = vunpack.c.h.b16 %v2272
    %v2437 = vunpack.c.l.b16 %v2273
    %v2438 = vunpack.c.h.b16 %v2273
    %v2439 = vunpack.c.l.b16 %v2274
    %v2440 = vunpack.c.h.b16 %v2274
    %v2441 = vunpack.c.l.b16 %v2275
    %v2442 = vunpack.c.l.b16 %v2276
    %v2443 = vunpack.c.h.b16 %v2276
    %v2444 = vunpack.c.l.b16 %v2277
    %v2445 = vunpack.c.h.b16 %v2277
    %v2446 = vunpack.c.l.b16 %v2278
    %v2447 = vunpack.c.h.b16 %v2278
    %v2448 = vunpack.c.l.b16 %v2279
    %v2449 = vunpack.c.h.b16 %v2279
    %v2450 = vunpack.c.l.b16 %v2280
    %v2451 = vunpack.c.l.b16 %v2281
    %v2452 = vunpack.c.h.b16 %v2281
    %v2453 = vunpack.c.l.b16 %v2282
    %v2454 = vunpack.c.h.b16 %v2282
    %v2455 = vunpack.c.l.b16 %v2283
    %v2456 = vunpack.c.h.b16 %v2283
    %v2457 = vunpack.c.l.b16 %v2284
    %v2458 = vunpack.c.h.b16 %v2284
    %v2459 = vunpack.c.l.b16 %v2285
    %v2460 = vunpack.c.l.b16 %v2286
    %v2461 = vunpack.c.h.b16 %v2286
    %v2462 = vunpack.c.l.b16 %v2287
    %v2463 = vunpack.c.h.b16 %v2287
    %v2464 = vunpack.c.l.b16 %v2288
    %v2465 = vunpack.c.h.b16 %v2288
    %v2466 = vunpack.c.l.b16 %v2289
    %v2467 = vunpack.c.h.b16 %v2289
    %v2468 = vunpack.c.l.b16 %v2290
    %v2469 = vunpack.c.l.b16 %v2291
    %v2470 = vunpack.c.h.b16 %v2291
    %v2471 = vunpack.c.l.b16 %v2292
    %v2472 = vunpack.c.h.b16 %v2292
    %v2473 = vunpack.c.l.b16 %v2293
    %v2474 = vunpack.c.h.b16 %v2293
    %v2475 = vunpack.c.l.b16 %v2294
    %v2476 = vunpack.c.h.b16 %v2294
    %v2477 = vunpack.c.l.b16 %v2295
    %v2478 = vpack.c.b16 %v2370, %v2361
    %v2479 = vpack.c.b16 %v2371, %v2362
    %v2480 = vpack.c.b16 %v2372, %v2363
    %v2481 = vpack.c.b16 %v2373, %v2364
    %v2482 = vpack.c.b16 %v2374, %v2365
    %v2483 = vpack.c.b16 %v2375, %v2366
    %v2484 = vpack.c.b16 %v2376, %v2367
    %v2485 = vpack.c.b16 %v2377, %v2368
    %v2486 = vpack.c.b16 %v2378, %v2369
    %v2487 = vpack.c.b16 %v2388, %v2379
    %v2488 = vpack.c.b16 %v2389, %v2380
    %v2489 = vpack.c.b16 %v2390, %v2381
    %v2490 = vpack.c.b16 %v2391, %v2382
    %v2491 = vpack.c.b16 %v2392, %v2383
    %v2492 = vpack.c.b16 %v2393, %v2384
    %v2493 = vpack.c.b16 %v2394, %v2385
    %v2494 = vpack.c.b16 %v2395, %v2386
    %v2495 = vpack.c.b16 %v2396, %v2387
    %v2496 = vpack.c.b16 %v2406, %v2397
    %v2497 = vpack.c.b16 %v2407, %v2398
    %v2498 = vpack.c.b16 %v2408, %v2399
    %v2499 = vpack.c.b16 %v2409, %v2400
    %v2500 = vpack.c.b16 %v2410, %v2401
    %v2501 = vpack.c.b16 %v2411, %v2402
    %v2502 = vpack.c.b16 %v2412, %v2403
    %v2503 = vpack.c.b16 %v2413, %v2404
    %v2504 = vpack.c.b16 %v2414, %v2405
    %v2505 = vpack.c.b16 %v2424, %v2415
    %v2506 = vpack.c.b16 %v2425, %v2416
    %v2507 = vpack.c.b16 %v2426, %v2417
    %v2508 = vpack.c.b16 %v2427, %v2418
    %v2509 = vpack.c.b16 %v2428, %v2419
    %v2510 = vpack.c.b16 %v2429, %v2420
    %v2511 = vpack.c.b16 %v2430, %v2421
    %v2512 = vpack.c.b16 %v2431, %v2422
    %v2513 = vpack.c.b16 %v2432, %v2423
    %v2514 = vpack.c.b16 %v2442, %v2433
    %v2515 = vpack.c.b16 %v2443, %v2434
    %v2516 = vpack.c.b16 %v2444, %v2435
    %v2517 = vpack.c.b16 %v2445, %v2436
    %v2518 = vpack.c.b16 %v2446, %v2437
    %v2519 = vpack.c.b16 %v2447, %v2438
    %v2520 = vpack.c.b16 %v2448, %v2439
    %v2521 = vpack.c.b16 %v2449, %v2440
    %v2522 = vpack.c.b16 %v2450, %v2441
    %v2523 = vpack.c.b16 %v2460, %v2451
    %v2524 = vpack.c.b16 %v2461, %v2452
    %v2525 = vpack.c.b16 %v2462, %v2453
    %v2526 = vpack.c.b16 %v2463, %v2454
    %v2527 = vpack.c.b16 %v2464, %v2455
    %v2528 = vpack.c.b16 %v2465, %v2456
    %v2529 = vpack.c.b16 %v2466, %v2457
    %v2530 = vpack.c.b16 %v2467, %v2458
    %v2531 = vpack.c.b16 %v2468, %v2459
    %v2532 = vpack.c.b16 %v2469, %v2469
    %v2533 = vpack.c.b16 %v2470, %v2470
    %v2534 = vpack.c.b16 %v2471, %v2471
    %v2535 = vpack.c.b16 %v2472, %v2472
    %v2536 = vpack.c.b16 %v2473, %v2473
    %v2537 = vpack.c.b16 %v2474, %v2474
    %v2538 = vpack.c.b16 %v2475, %v2475
    %v2539 = vpack.c.b16 %v2476, %v2476
    %v2540 = vpack.c.b16 %v2477, %v2477
    %2604 = vmatpush.bf16.msra.mxu0 %v872
    %2605 = vmatpush.bf16.msra.mxu0 %v871
    %2606 = vmatpush.bf16.msra.mxu0 %v870
    %2607 = vmatpush.bf16.msra.mxu0 %v869
    %2608 = vmatpush.bf16.msra.mxu0 %v868
    %2609 = vmatpush.bf16.msra.mxu0 %v867
    %2610 = vmatpush.bf16.msra.mxu0 %v866
    %2611 = vmatpush.bf16.msra.mxu0 %v865
    %2612 = vmatmul.bf16.gmra.mxu0 %v2478
    %v2613 = vpop.f32.mrf.mxu0
    %v2614 = vadd.f32 0.0, %v2613
    %v2615 = vpop.f32.mrf.mxu0
    %v2616 = vadd.f32 0.0, %v2615
    %2617 = vmatmul.bf16.gmra.mxu0 %v2487
    %v2618 = vpop.f32.mrf.mxu0
    %v2619 = vadd.f32 0.0, %v2618
    %v2620 = vpop.f32.mrf.mxu0
    %v2621 = vadd.f32 0.0, %v2620
    %2622 = vmatmul.bf16.gmra.mxu0 %v2496
    %v2623 = vpop.f32.mrf.mxu0
    %v2624 = vadd.f32 0.0, %v2623
    %v2625 = vpop.f32.mrf.mxu0
    %v2626 = vadd.f32 0.0, %v2625
    %2627 = vmatmul.bf16.gmra.mxu0 %v2505
    %v2628 = vpop.f32.mrf.mxu0
    %v2629 = vadd.f32 0.0, %v2628
    %v2630 = vpop.f32.mrf.mxu0
    %v2631 = vadd.f32 0.0, %v2630
    %2632 = vmatmul.bf16.gmra.mxu0 %v2514
    %v2633 = vpop.f32.mrf.mxu0
    %v2634 = vadd.f32 0.0, %v2633
    %v2635 = vpop.f32.mrf.mxu0
    %v2636 = vadd.f32 0.0, %v2635
    %2637 = vmatmul.bf16.gmra.mxu0 %v2523
    %v2638 = vpop.f32.mrf.mxu0
    %v2639 = vadd.f32 0.0, %v2638
    %v2640 = vpop.f32.mrf.mxu0
    %v2641 = vadd.f32 0.0, %v2640
    %2642 = vmatmul.bf16.gmra.mxu0 %v2532
    %v2643 = vpop.f32.mrf.mxu0
    %v2644 = vadd.f32 0.0, %v2643
    %v2645 = vpop.f32.mrf.mxu0
    %2646 = vdwg.mxu0
    %2647 = vmatpush.bf16.msra.mxu0 %v880
    %2648 = vmatpush.bf16.msra.mxu0 %v879
    %2649 = vmatpush.bf16.msra.mxu0 %v878
    %2650 = vmatpush.bf16.msra.mxu0 %v877
    %2651 = vmatpush.bf16.msra.mxu0 %v876
    %2652 = vmatpush.bf16.msra.mxu0 %v875
    %2653 = vmatpush.bf16.msra.mxu0 %v874
    %2654 = vmatpush.bf16.msra.mxu0 %v873
    %2655 = vmatmul.bf16.gmra.mxu0 %v2479
    %v2656 = vpop.f32.mrf.mxu0
    %v2657 = vadd.f32 %v2614, %v2656
    %v2658 = vpop.f32.mrf.mxu0
    %v2659 = vadd.f32 %v2616, %v2658
    %2660 = vmatmul.bf16.gmra.mxu0 %v2488
    %v2661 = vpop.f32.mrf.mxu0
    %v2662 = vadd.f32 %v2619, %v2661
    %v2663 = vpop.f32.mrf.mxu0
    %v2664 = vadd.f32 %v2621, %v2663
    %2665 = vmatmul.bf16.gmra.mxu0 %v2497
    %v2666 = vpop.f32.mrf.mxu0
    %v2667 = vadd.f32 %v2624, %v2666
    %v2668 = vpop.f32.mrf.mxu0
    %v2669 = vadd.f32 %v2626, %v2668
    %2670 = vmatmul.bf16.gmra.mxu0 %v2506
    %v2671 = vpop.f32.mrf.mxu0
    %v2672 = vadd.f32 %v2629, %v2671
    %v2673 = vpop.f32.mrf.mxu0
    %v2674 = vadd.f32 %v2631, %v2673
    %2675 = vmatmul.bf16.gmra.mxu0 %v2515
    %v2676 = vpop.f32.mrf.mxu0
    %v2677 = vadd.f32 %v2634, %v2676
    %v2678 = vpop.f32.mrf.mxu0
    %v2679 = vadd.f32 %v2636, %v2678
    %2680 = vmatmul.bf16.gmra.mxu0 %v2524
    %v2681 = vpop.f32.mrf.mxu0
    %v2682 = vadd.f32 %v2639, %v2681
    %v2683 = vpop.f32.mrf.mxu0
    %v2684 = vadd.f32 %v2641, %v2683
    %2685 = vmatmul.bf16.gmra.mxu0 %v2533
    %v2686 = vpop.f32.mrf.mxu0
    %v2687 = vadd.f32 %v2644, %v2686
    %v2688 = vpop.f32.mrf.mxu0
    %2689 = vdwg.mxu0
    %2690 = vmatpush.bf16.msra.mxu0 %v888
    %2691 = vmatpush.bf16.msra.mxu0 %v887
    %2692 = vmatpush.bf16.msra.mxu0 %v886
    %2693 = vmatpush.bf16.msra.mxu0 %v885
    %2694 = vmatpush.bf16.msra.mxu0 %v884
    %2695 = vmatpush.bf16.msra.mxu0 %v883
    %2696 = vmatpush.bf16.msra.mxu0 %v882
    %2697 = vmatpush.bf16.msra.mxu0 %v881
    %2698 = vmatmul.bf16.gmra.mxu0 %v2480
    %v2699 = vpop.f32.mrf.mxu0
    %v2700 = vadd.f32 %v2657, %v2699
    %v2701 = vpop.f32.mrf.mxu0
    %v2702 = vadd.f32 %v2659, %v2701
    %2703 = vmatmul.bf16.gmra.mxu0 %v2489
    %v2704 = vpop.f32.mrf.mxu0
    %v2705 = vadd.f32 %v2662, %v2704
    %v2706 = vpop.f32.mrf.mxu0
    %v2707 = vadd.f32 %v2664, %v2706
    %2708 = vmatmul.bf16.gmra.mxu0 %v2498
    %v2709 = vpop.f32.mrf.mxu0
    %v2710 = vadd.f32 %v2667, %v2709
    %v2711 = vpop.f32.mrf.mxu0
    %v2712 = vadd.f32 %v2669, %v2711
    %2713 = vmatmul.bf16.gmra.mxu0 %v2507
    %v2714 = vpop.f32.mrf.mxu0
    %v2715 = vadd.f32 %v2672, %v2714
    %v2716 = vpop.f32.mrf.mxu0
    %v2717 = vadd.f32 %v2674, %v2716
    %2718 = vmatmul.bf16.gmra.mxu0 %v2516
    %v2719 = vpop.f32.mrf.mxu0
    %v2720 = vadd.f32 %v2677, %v2719
    %v2721 = vpop.f32.mrf.mxu0
    %v2722 = vadd.f32 %v2679, %v2721
    %2723 = vmatmul.bf16.gmra.mxu0 %v2525
    %v2724 = vpop.f32.mrf.mxu0
    %v2725 = vadd.f32 %v2682, %v2724
    %v2726 = vpop.f32.mrf.mxu0
    %v2727 = vadd.f32 %v2684, %v2726
    %2728 = vmatmul.bf16.gmra.mxu0 %v2534
    %v2729 = vpop.f32.mrf.mxu0
    %v2730 = vadd.f32 %v2687, %v2729
    %v2731 = vpop.f32.mrf.mxu0
    %2732 = vdwg.mxu0
    %2733 = vmatpush.bf16.msra.mxu0 %v896
    %2734 = vmatpush.bf16.msra.mxu0 %v895
    %2735 = vmatpush.bf16.msra.mxu0 %v894
    %2736 = vmatpush.bf16.msra.mxu0 %v893
    %2737 = vmatpush.bf16.msra.mxu0 %v892
    %2738 = vmatpush.bf16.msra.mxu0 %v891
    %2739 = vmatpush.bf16.msra.mxu0 %v890
    %2740 = vmatpush.bf16.msra.mxu0 %v889
    %2741 = vmatmul.bf16.gmra.mxu0 %v2481
    %v2742 = vpop.f32.mrf.mxu0
    %v2743 = vadd.f32 %v2700, %v2742
    %v2744 = vpop.f32.mrf.mxu0
    %v2745 = vadd.f32 %v2702, %v2744
    %2746 = vmatmul.bf16.gmra.mxu0 %v2490
    %v2747 = vpop.f32.mrf.mxu0
    %v2748 = vadd.f32 %v2705, %v2747
    %v2749 = vpop.f32.mrf.mxu0
    %v2750 = vadd.f32 %v2707, %v2749
    %2751 = vmatmul.bf16.gmra.mxu0 %v2499
    %v2752 = vpop.f32.mrf.mxu0
    %v2753 = vadd.f32 %v2710, %v2752
    %v2754 = vpop.f32.mrf.mxu0
    %v2755 = vadd.f32 %v2712, %v2754
    %2756 = vmatmul.bf16.gmra.mxu0 %v2508
    %v2757 = vpop.f32.mrf.mxu0
    %v2758 = vadd.f32 %v2715, %v2757
    %v2759 = vpop.f32.mrf.mxu0
    %v2760 = vadd.f32 %v2717, %v2759
    %2761 = vmatmul.bf16.gmra.mxu0 %v2517
    %v2762 = vpop.f32.mrf.mxu0
    %v2763 = vadd.f32 %v2720, %v2762
    %v2764 = vpop.f32.mrf.mxu0
    %v2765 = vadd.f32 %v2722, %v2764
    %2766 = vmatmul.bf16.gmra.mxu0 %v2526
    %v2767 = vpop.f32.mrf.mxu0
    %v2768 = vadd.f32 %v2725, %v2767
    %v2769 = vpop.f32.mrf.mxu0
    %v2770 = vadd.f32 %v2727, %v2769
    %2771 = vmatmul.bf16.gmra.mxu0 %v2535
    %v2772 = vpop.f32.mrf.mxu0
    %v2773 = vadd.f32 %v2730, %v2772
    %v2774 = vpop.f32.mrf.mxu0
    %2775 = vdwg.mxu0
    %2776 = vmatpush.bf16.msra.mxu0 %v904
    %2777 = vmatpush.bf16.msra.mxu0 %v903
    %2778 = vmatpush.bf16.msra.mxu0 %v902
    %2779 = vmatpush.bf16.msra.mxu0 %v901
    %2780 = vmatpush.bf16.msra.mxu0 %v900
    %2781 = vmatpush.bf16.msra.mxu0 %v899
    %2782 = vmatpush.bf16.msra.mxu0 %v898
    %2783 = vmatpush.bf16.msra.mxu0 %v897
    %2784 = vmatmul.bf16.gmra.mxu0 %v2482
    %v2785 = vpop.f32.mrf.mxu0
    %v2786 = vadd.f32 %v2743, %v2785
    %v2787 = vpop.f32.mrf.mxu0
    %v2788 = vadd.f32 %v2745, %v2787
    %2789 = vmatmul.bf16.gmra.mxu0 %v2491
    %v2790 = vpop.f32.mrf.mxu0
    %v2791 = vadd.f32 %v2748, %v2790
    %v2792 = vpop.f32.mrf.mxu0
    %v2793 = vadd.f32 %v2750, %v2792
    %2794 = vmatmul.bf16.gmra.mxu0 %v2500
    %v2795 = vpop.f32.mrf.mxu0
    %v2796 = vadd.f32 %v2753, %v2795
    %v2797 = vpop.f32.mrf.mxu0
    %v2798 = vadd.f32 %v2755, %v2797
    %2799 = vmatmul.bf16.gmra.mxu0 %v2509
    %v2800 = vpop.f32.mrf.mxu0
    %v2801 = vadd.f32 %v2758, %v2800
    %v2802 = vpop.f32.mrf.mxu0
    %v2803 = vadd.f32 %v2760, %v2802
    %2804 = vmatmul.bf16.gmra.mxu0 %v2518
    %v2805 = vpop.f32.mrf.mxu0
    %v2806 = vadd.f32 %v2763, %v2805
    %v2807 = vpop.f32.mrf.mxu0
    %v2808 = vadd.f32 %v2765, %v2807
    %2809 = vmatmul.bf16.gmra.mxu0 %v2527
    %v2810 = vpop.f32.mrf.mxu0
    %v2811 = vadd.f32 %v2768, %v2810
    %v2812 = vpop.f32.mrf.mxu0
    %v2813 = vadd.f32 %v2770, %v2812
    %2814 = vmatmul.bf16.gmra.mxu0 %v2536
    %v2815 = vpop.f32.mrf.mxu0
    %v2816 = vadd.f32 %v2773, %v2815
    %v2817 = vpop.f32.mrf.mxu0
    %2818 = vdwg.mxu0
    %2819 = vmatpush.bf16.msra.mxu0 %v912
    %2820 = vmatpush.bf16.msra.mxu0 %v911
    %2821 = vmatpush.bf16.msra.mxu0 %v910
    %2822 = vmatpush.bf16.msra.mxu0 %v909
    %2823 = vmatpush.bf16.msra.mxu0 %v908
    %2824 = vmatpush.bf16.msra.mxu0 %v907
    %2825 = vmatpush.bf16.msra.mxu0 %v906
    %2826 = vmatpush.bf16.msra.mxu0 %v905
    %2827 = vmatmul.bf16.gmra.mxu0 %v2483
    %v2828 = vpop.f32.mrf.mxu0
    %v2829 = vadd.f32 %v2786, %v2828
    %v2830 = vpop.f32.mrf.mxu0
    %v2831 = vadd.f32 %v2788, %v2830
    %2832 = vmatmul.bf16.gmra.mxu0 %v2492
    %v2833 = vpop.f32.mrf.mxu0
    %v2834 = vadd.f32 %v2791, %v2833
    %v2835 = vpop.f32.mrf.mxu0
    %v2836 = vadd.f32 %v2793, %v2835
    %2837 = vmatmul.bf16.gmra.mxu0 %v2501
    %v2838 = vpop.f32.mrf.mxu0
    %v2839 = vadd.f32 %v2796, %v2838
    %v2840 = vpop.f32.mrf.mxu0
    %v2841 = vadd.f32 %v2798, %v2840
    %2842 = vmatmul.bf16.gmra.mxu0 %v2510
    %v2843 = vpop.f32.mrf.mxu0
    %v2844 = vadd.f32 %v2801, %v2843
    %v2845 = vpop.f32.mrf.mxu0
    %v2846 = vadd.f32 %v2803, %v2845
    %2847 = vmatmul.bf16.gmra.mxu0 %v2519
    %v2848 = vpop.f32.mrf.mxu0
    %v2849 = vadd.f32 %v2806, %v2848
    %v2850 = vpop.f32.mrf.mxu0
    %v2851 = vadd.f32 %v2808, %v2850
    %2852 = vmatmul.bf16.gmra.mxu0 %v2528
    %v2853 = vpop.f32.mrf.mxu0
    %v2854 = vadd.f32 %v2811, %v2853
    %v2855 = vpop.f32.mrf.mxu0
    %v2856 = vadd.f32 %v2813, %v2855
    %2857 = vmatmul.bf16.gmra.mxu0 %v2537
    %v2858 = vpop.f32.mrf.mxu0
    %v2859 = vadd.f32 %v2816, %v2858
    %v2860 = vpop.f32.mrf.mxu0
    %2861 = vdwg.mxu0
    %2862 = vmatpush.bf16.msra.mxu0 %v920
    %2863 = vmatpush.bf16.msra.mxu0 %v919
    %2864 = vmatpush.bf16.msra.mxu0 %v918
    %2865 = vmatpush.bf16.msra.mxu0 %v917
    %2866 = vmatpush.bf16.msra.mxu0 %v916
    %2867 = vmatpush.bf16.msra.mxu0 %v915
    %2868 = vmatpush.bf16.msra.mxu0 %v914
    %2869 = vmatpush.bf16.msra.mxu0 %v913
    %2870 = vmatmul.bf16.gmra.mxu0 %v2484
    %v2871 = vpop.f32.mrf.mxu0
    %v2872 = vadd.f32 %v2829, %v2871
    %v2873 = vpop.f32.mrf.mxu0
    %v2874 = vadd.f32 %v2831, %v2873
    %2875 = vmatmul.bf16.gmra.mxu0 %v2493
    %v2876 = vpop.f32.mrf.mxu0
    %v2877 = vadd.f32 %v2834, %v2876
    %v2878 = vpop.f32.mrf.mxu0
    %v2879 = vadd.f32 %v2836, %v2878
    %2880 = vmatmul.bf16.gmra.mxu0 %v2502
    %v2881 = vpop.f32.mrf.mxu0
    %v2882 = vadd.f32 %v2839, %v2881
    %v2883 = vpop.f32.mrf.mxu0
    %v2884 = vadd.f32 %v2841, %v2883
    %2885 = vmatmul.bf16.gmra.mxu0 %v2511
    %v2886 = vpop.f32.mrf.mxu0
    %v2887 = vadd.f32 %v2844, %v2886
    %v2888 = vpop.f32.mrf.mxu0
    %v2889 = vadd.f32 %v2846, %v2888
    %2890 = vmatmul.bf16.gmra.mxu0 %v2520
    %v2891 = vpop.f32.mrf.mxu0
    %v2892 = vadd.f32 %v2849, %v2891
    %v2893 = vpop.f32.mrf.mxu0
    %v2894 = vadd.f32 %v2851, %v2893
    %2895 = vmatmul.bf16.gmra.mxu0 %v2529
    %v2896 = vpop.f32.mrf.mxu0
    %v2897 = vadd.f32 %v2854, %v2896
    %v2898 = vpop.f32.mrf.mxu0
    %v2899 = vadd.f32 %v2856, %v2898
    %2900 = vmatmul.bf16.gmra.mxu0 %v2538
    %v2901 = vpop.f32.mrf.mxu0
    %v2902 = vadd.f32 %v2859, %v2901
    %v2903 = vpop.f32.mrf.mxu0
    %2904 = vdwg.mxu0
    %2905 = vmatpush.bf16.msra.mxu0 %v928
    %2906 = vmatpush.bf16.msra.mxu0 %v927
    %2907 = vmatpush.bf16.msra.mxu0 %v926
    %2908 = vmatpush.bf16.msra.mxu0 %v925
    %2909 = vmatpush.bf16.msra.mxu0 %v924
    %2910 = vmatpush.bf16.msra.mxu0 %v923
    %2911 = vmatpush.bf16.msra.mxu0 %v922
    %2912 = vmatpush.bf16.msra.mxu0 %v921
    %2913 = vmatmul.bf16.gmra.mxu0 %v2485
    %v2914 = vpop.f32.mrf.mxu0
    %v2915 = vadd.f32 %v2872, %v2914
    %v2916 = vpop.f32.mrf.mxu0
    %v2917 = vadd.f32 %v2874, %v2916
    %2918 = vmatmul.bf16.gmra.mxu0 %v2494
    %v2919 = vpop.f32.mrf.mxu0
    %v2920 = vadd.f32 %v2877, %v2919
    %v2921 = vpop.f32.mrf.mxu0
    %v2922 = vadd.f32 %v2879, %v2921
    %2923 = vmatmul.bf16.gmra.mxu0 %v2503
    %v2924 = vpop.f32.mrf.mxu0
    %v2925 = vadd.f32 %v2882, %v2924
    %v2926 = vpop.f32.mrf.mxu0
    %v2927 = vadd.f32 %v2884, %v2926
    %2928 = vmatmul.bf16.gmra.mxu0 %v2512
    %v2929 = vpop.f32.mrf.mxu0
    %v2930 = vadd.f32 %v2887, %v2929
    %v2931 = vpop.f32.mrf.mxu0
    %v2932 = vadd.f32 %v2889, %v2931
    %2933 = vmatmul.bf16.gmra.mxu0 %v2521
    %v2934 = vpop.f32.mrf.mxu0
    %v2935 = vadd.f32 %v2892, %v2934
    %v2936 = vpop.f32.mrf.mxu0
    %v2937 = vadd.f32 %v2894, %v2936
    %2938 = vmatmul.bf16.gmra.mxu0 %v2530
    %v2939 = vpop.f32.mrf.mxu0
    %v2940 = vadd.f32 %v2897, %v2939
    %v2941 = vpop.f32.mrf.mxu0
    %v2942 = vadd.f32 %v2899, %v2941
    %2943 = vmatmul.bf16.gmra.mxu0 %v2539
    %v2944 = vpop.f32.mrf.mxu0
    %v2945 = vadd.f32 %v2902, %v2944
    %v2946 = vpop.f32.mrf.mxu0
    %2947 = vdwg.mxu0
    %2948 = vmatpush.bf16.msra.mxu0 %v936
    %2949 = vmatpush.bf16.msra.mxu0 %v935
    %2950 = vmatpush.bf16.msra.mxu0 %v934
    %2951 = vmatpush.bf16.msra.mxu0 %v933
    %2952 = vmatpush.bf16.msra.mxu0 %v932
    %2953 = vmatpush.bf16.msra.mxu0 %v931
    %2954 = vmatpush.bf16.msra.mxu0 %v930
    %2955 = vmatpush.bf16.msra.mxu0 %v929
    %2956 = vmatmul.bf16.gmra.mxu0 %v2486
    %v2957 = vpop.f32.mrf.mxu0
    %v2958 = vadd.f32 %v2915, %v2957
    %v2959 = vpop.f32.mrf.mxu0
    %v2960 = vadd.f32 %v2917, %v2959
    %2961 = vmatmul.bf16.gmra.mxu0 %v2495
    %v2962 = vpop.f32.mrf.mxu0
    %v2963 = vadd.f32 %v2920, %v2962
    %v2964 = vpop.f32.mrf.mxu0
    %v2965 = vadd.f32 %v2922, %v2964
    %2966 = vmatmul.bf16.gmra.mxu0 %v2504
    %v2967 = vpop.f32.mrf.mxu0
    %v2968 = vadd.f32 %v2925, %v2967
    %v2969 = vpop.f32.mrf.mxu0
    %v2970 = vadd.f32 %v2927, %v2969
    %2971 = vmatmul.bf16.gmra.mxu0 %v2513
    %v2972 = vpop.f32.mrf.mxu0
    %v2973 = vadd.f32 %v2930, %v2972
    %v2974 = vpop.f32.mrf.mxu0
    %v2975 = vadd.f32 %v2932, %v2974
    %2976 = vmatmul.bf16.gmra.mxu0 %v2522
    %v2977 = vpop.f32.mrf.mxu0
    %v2978 = vadd.f32 %v2935, %v2977
    %v2979 = vpop.f32.mrf.mxu0
    %v2980 = vadd.f32 %v2937, %v2979
    %2981 = vmatmul.bf16.gmra.mxu0 %v2531
    %v2982 = vpop.f32.mrf.mxu0
    %v2983 = vadd.f32 %v2940, %v2982
    %v2984 = vpop.f32.mrf.mxu0
    %v2985 = vadd.f32 %v2942, %v2984
    %2986 = vmatmul.bf16.gmra.mxu0 %v2540
    %v2987 = vpop.f32.mrf.mxu0
    %v2988 = vadd.f32 %v2945, %v2987
    %v2989 = vpop.f32.mrf.mxu0
    %2990 = vdwg.mxu0
    %v2991 = vmul.f32 %v2958, %v1398
    %v2992 = vmul.f32 %v2960, %v1398
    %v2993 = vmul.f32 %v2963, %v1398
    %v2994 = vmul.f32 %v2965, %v1398
    %v2995 = vmul.f32 %v2968, %v1398
    %v2996 = vmul.f32 %v2970, %v1398
    %v2997 = vmul.f32 %v2973, %v1398
    %v2998 = vmul.f32 %v2975, %v1398
    %v2999 = vmul.f32 %v2978, %v1398
    %v3000 = vmul.f32 %v2980, %v1398
    %v3001 = vmul.f32 %v2983, %v1398
    %v3002 = vmul.f32 %v2985, %v1398
    %v3003 = vmul.f32 %v2988, %v1398
    %v3004 = vadd.f32 %v2991, %v1415
    %v3005 = vadd.f32 %v2992, %v1415
    %v3006 = vadd.f32 %v2993, %v1415
    %v3007 = vadd.f32 %v2994, %v1415
    %v3008 = vadd.f32 %v2995, %v1415
    %v3009 = vadd.f32 %v2996, %v1415
    %v3010 = vadd.f32 %v2997, %v1415
    %v3011 = vadd.f32 %v2998, %v1415
    %v3012 = vadd.f32 %v2999, %v1415
    %v3013 = vadd.f32 %v3000, %v1415
    %v3014 = vadd.f32 %v3001, %v1415
    %v3015 = vadd.f32 %v3002, %v1415
    %v3016 = vadd.f32 %v3003, %v1415
    %v3017 = vmax.f32 %v2217, %v3004
    %v3018 = vmax.f32 %v2218, %v3005
    %v3019 = vmax.f32 %v2219, %v3006
    %v3020 = vmax.f32 %v2220, %v3007
    %v3021 = vmax.f32 %v2221, %v3008
    %v3022 = vmax.f32 %v2222, %v3009
    %v3023 = vmax.f32 %v2223, %v3010
    %v3024 = vmax.f32 %v2224, %v3011
    %v3025 = vmax.f32 %v2225, %v3012
    %v3026 = vmax.f32 %v2226, %v3013
    %v3027 = vmax.f32 %v2227, %v3014
    %v3028 = vmax.f32 %v2228, %v3015
    %v3029 = vmax.f32 %v2229, %v3016
    %s3030 = scalar_lea.vmem %s0, 1404
    %v3031 = vld [vmem:[%s3030] sm:$0xff]
    %v3032 = vld [vmem:[%s3030 + $0x8] sm:$0xff]
    %v3033 = vld [vmem:[%s3030 + $0x10] sm:$0xff]
    %v3034 = vld [vmem:[%s3030 + $0x18] sm:$0xff]
    %v3035 = vld [vmem:[%s3030 + $0x20] sm:$0xf]
    %v3036 = vld [vmem:[%s3030 + $0x24] sm:$0xff]
    %v3037 = vld [vmem:[%s3030 + $0x2c] sm:$0xff]
    %v3038 = vld [vmem:[%s3030 + $0x34] sm:$0xff]
    %v3039 = vld [vmem:[%s3030 + $0x3c] sm:$0xff]
    %v3040 = vld [vmem:[%s3030 + $0x44] sm:$0xf]
    %v3041 = vld [vmem:[%s3030 + $0x48] sm:$0xff]
    %v3042 = vld [vmem:[%s3030 + $0x50] sm:$0xff]
    %v3043 = vld [vmem:[%s3030 + $0x58] sm:$0xff]
    %v3044 = vld [vmem:[%s3030 + $0x60] sm:$0xff]
    %v3045 = vld [vmem:[%s3030 + $0x68] sm:$0xf]
    %v3046 = vld [vmem:[%s3030 + $0x6c] sm:$0xff]
    %v3047 = vld [vmem:[%s3030 + $0x74] sm:$0xff]
    %v3048 = vld [vmem:[%s3030 + $0x7c] sm:$0xff]
    %v3049 = vld [vmem:[%s3030 + $0x84] sm:$0xff]
    %v3050 = vld [vmem:[%s3030 + $0x8c] sm:$0xf]
    %v3051 = vld [vmem:[%s3030 + $0x90] sm:$0xff]
    %v3052 = vld [vmem:[%s3030 + $0x98] sm:$0xff]
    %v3053 = vld [vmem:[%s3030 + $0xa0] sm:$0xff]
    %v3054 = vld [vmem:[%s3030 + $0xa8] sm:$0xff]
    %v3055 = vld [vmem:[%s3030 + $0xb0] sm:$0xf]
    %v3056 = vld [vmem:[%s3030 + $0xb4] sm:$0xff]
    %v3057 = vld [vmem:[%s3030 + $0xbc] sm:$0xff]
    %v3058 = vld [vmem:[%s3030 + $0xc4] sm:$0xff]
    %v3059 = vld [vmem:[%s3030 + $0xcc] sm:$0xff]
    %v3060 = vld [vmem:[%s3030 + $0xd4] sm:$0xf]
    %v3061 = vld [vmem:[%s3030 + $0xd8] sm:$0xff]
    %v3062 = vld [vmem:[%s3030 + $0xe0] sm:$0xff]
    %v3063 = vld [vmem:[%s3030 + $0xe8] sm:$0xff]
    %v3064 = vld [vmem:[%s3030 + $0xf0] sm:$0xff]
    %v3065 = vld [vmem:[%s3030 + $0xf8] sm:$0xf]
    %v3066 = vld [vmem:[%s3030 + $0xfc] sm:$0xff]
    %v3067 = vld [vmem:[%s3030 + $0x104] sm:$0xff]
    %v3068 = vld [vmem:[%s3030 + $0x10c] sm:$0xff]
    %v3069 = vld [vmem:[%s3030 + $0x114] sm:$0xff]
    %v3070 = vld [vmem:[%s3030 + $0x11c] sm:$0xf]
    %v3071 = vld [vmem:[%s3030 + $0x120] sm:$0xff]
    %v3072 = vld [vmem:[%s3030 + $0x128] sm:$0xff]
    %v3073 = vld [vmem:[%s3030 + $0x130] sm:$0xff]
    %v3074 = vld [vmem:[%s3030 + $0x138] sm:$0xff]
    %v3075 = vld [vmem:[%s3030 + $0x140] sm:$0xf]
    %v3076 = vld [vmem:[%s3030 + $0x144] sm:$0xff]
    %v3077 = vld [vmem:[%s3030 + $0x14c] sm:$0xff]
    %v3078 = vld [vmem:[%s3030 + $0x154] sm:$0xff]
    %v3079 = vld [vmem:[%s3030 + $0x15c] sm:$0xff]
    %v3080 = vld [vmem:[%s3030 + $0x164] sm:$0xf]
    %v3081 = vld [vmem:[%s3030 + $0x168] sm:$0xff]
    %v3082 = vld [vmem:[%s3030 + $0x170] sm:$0xff]
    %v3083 = vld [vmem:[%s3030 + $0x178] sm:$0xff]
    %v3084 = vld [vmem:[%s3030 + $0x180] sm:$0xff]
    %v3085 = vld [vmem:[%s3030 + $0x188] sm:$0xf]
    %v3086 = vld [vmem:[%s3030 + $0x18c] sm:$0xff]
    %v3087 = vld [vmem:[%s3030 + $0x194] sm:$0xff]
    %v3088 = vld [vmem:[%s3030 + $0x19c] sm:$0xff]
    %v3089 = vld [vmem:[%s3030 + $0x1a4] sm:$0xff]
    %v3090 = vld [vmem:[%s3030 + $0x1ac] sm:$0xf]
    %v3091 = vld [vmem:[%s3030 + $0x1b0] sm:$0x11]
    %v3092 = vld [vmem:[%s3030 + $0x1b8] sm:$0x11]
    %v3093 = vld [vmem:[%s3030 + $0x1c0] sm:$0x11]
    %v3094 = vld [vmem:[%s3030 + $0x1c8] sm:$0x11]
    %v3095 = vld [vmem:[%s3030 + $0x1d0] sm:$0x1]
    %v3161 = vunpack.c.l.b16 %v3031
    %v3162 = vunpack.c.h.b16 %v3031
    %v3163 = vunpack.c.l.b16 %v3032
    %v3164 = vunpack.c.h.b16 %v3032
    %v3165 = vunpack.c.l.b16 %v3033
    %v3166 = vunpack.c.h.b16 %v3033
    %v3167 = vunpack.c.l.b16 %v3034
    %v3168 = vunpack.c.h.b16 %v3034
    %v3169 = vunpack.c.l.b16 %v3035
    %v3170 = vunpack.c.l.b16 %v3036
    %v3171 = vunpack.c.h.b16 %v3036
    %v3172 = vunpack.c.l.b16 %v3037
    %v3173 = vunpack.c.h.b16 %v3037
    %v3174 = vunpack.c.l.b16 %v3038
    %v3175 = vunpack.c.h.b16 %v3038
    %v3176 = vunpack.c.l.b16 %v3039
    %v3177 = vunpack.c.h.b16 %v3039
    %v3178 = vunpack.c.l.b16 %v3040
    %v3179 = vunpack.c.l.b16 %v3041
    %v3180 = vunpack.c.h.b16 %v3041
    %v3181 = vunpack.c.l.b16 %v3042
    %v3182 = vunpack.c.h.b16 %v3042
    %v3183 = vunpack.c.l.b16 %v3043
    %v3184 = vunpack.c.h.b16 %v3043
    %v3185 = vunpack.c.l.b16 %v3044
    %v3186 = vunpack.c.h.b16 %v3044
    %v3187 = vunpack.c.l.b16 %v3045
    %v3188 = vunpack.c.l.b16 %v3046
    %v3189 = vunpack.c.h.b16 %v3046
    %v3190 = vunpack.c.l.b16 %v3047
    %v3191 = vunpack.c.h.b16 %v3047
    %v3192 = vunpack.c.l.b16 %v3048
    %v3193 = vunpack.c.h.b16 %v3048
    %v3194 = vunpack.c.l.b16 %v3049
    %v3195 = vunpack.c.h.b16 %v3049
    %v3196 = vunpack.c.l.b16 %v3050
    %v3197 = vunpack.c.l.b16 %v3051
    %v3198 = vunpack.c.h.b16 %v3051
    %v3199 = vunpack.c.l.b16 %v3052
    %v3200 = vunpack.c.h.b16 %v3052
    %v3201 = vunpack.c.l.b16 %v3053
    %v3202 = vunpack.c.h.b16 %v3053
    %v3203 = vunpack.c.l.b16 %v3054
    %v3204 = vunpack.c.h.b16 %v3054
    %v3205 = vunpack.c.l.b16 %v3055
    %v3206 = vunpack.c.l.b16 %v3056
    %v3207 = vunpack.c.h.b16 %v3056
    %v3208 = vunpack.c.l.b16 %v3057
    %v3209 = vunpack.c.h.b16 %v3057
    %v3210 = vunpack.c.l.b16 %v3058
    %v3211 = vunpack.c.h.b16 %v3058
    %v3212 = vunpack.c.l.b16 %v3059
    %v3213 = vunpack.c.h.b16 %v3059
    %v3214 = vunpack.c.l.b16 %v3060
    %v3215 = vunpack.c.l.b16 %v3061
    %v3216 = vunpack.c.h.b16 %v3061
    %v3217 = vunpack.c.l.b16 %v3062
    %v3218 = vunpack.c.h.b16 %v3062
    %v3219 = vunpack.c.l.b16 %v3063
    %v3220 = vunpack.c.h.b16 %v3063
    %v3221 = vunpack.c.l.b16 %v3064
    %v3222 = vunpack.c.h.b16 %v3064
    %v3223 = vunpack.c.l.b16 %v3065
    %v3224 = vunpack.c.l.b16 %v3066
    %v3225 = vunpack.c.h.b16 %v3066
    %v3226 = vunpack.c.l.b16 %v3067
    %v3227 = vunpack.c.h.b16 %v3067
    %v3228 = vunpack.c.l.b16 %v3068
    %v3229 = vunpack.c.h.b16 %v3068
    %v3230 = vunpack.c.l.b16 %v3069
    %v3231 = vunpack.c.h.b16 %v3069
    %v3232 = vunpack.c.l.b16 %v3070
    %v3233 = vunpack.c.l.b16 %v3071
    %v3234 = vunpack.c.h.b16 %v3071
    %v3235 = vunpack.c.l.b16 %v3072
    %v3236 = vunpack.c.h.b16 %v3072
    %v3237 = vunpack.c.l.b16 %v3073
    %v3238 = vunpack.c.h.b16 %v3073
    %v3239 = vunpack.c.l.b16 %v3074
    %v3240 = vunpack.c.h.b16 %v3074
    %v3241 = vunpack.c.l.b16 %v3075
    %v3242 = vunpack.c.l.b16 %v3076
    %v3243 = vunpack.c.h.b16 %v3076
    %v3244 = vunpack.c.l.b16 %v3077
    %v3245 = vunpack.c.h.b16 %v3077
    %v3246 = vunpack.c.l.b16 %v3078
    %v3247 = vunpack.c.h.b16 %v3078
    %v3248 = vunpack.c.l.b16 %v3079
    %v3249 = vunpack.c.h.b16 %v3079
    %v3250 = vunpack.c.l.b16 %v3080
    %v3251 = vunpack.c.l.b16 %v3081
    %v3252 = vunpack.c.h.b16 %v3081
    %v3253 = vunpack.c.l.b16 %v3082
    %v3254 = vunpack.c.h.b16 %v3082
    %v3255 = vunpack.c.l.b16 %v3083
    %v3256 = vunpack.c.h.b16 %v3083
    %v3257 = vunpack.c.l.b16 %v3084
    %v3258 = vunpack.c.h.b16 %v3084
    %v3259 = vunpack.c.l.b16 %v3085
    %v3260 = vunpack.c.l.b16 %v3086
    %v3261 = vunpack.c.h.b16 %v3086
    %v3262 = vunpack.c.l.b16 %v3087
    %v3263 = vunpack.c.h.b16 %v3087
    %v3264 = vunpack.c.l.b16 %v3088
    %v3265 = vunpack.c.h.b16 %v3088
    %v3266 = vunpack.c.l.b16 %v3089
    %v3267 = vunpack.c.h.b16 %v3089
    %v3268 = vunpack.c.l.b16 %v3090
    %v3269 = vunpack.c.l.b16 %v3091
    %v3270 = vunpack.c.h.b16 %v3091
    %v3271 = vunpack.c.l.b16 %v3092
    %v3272 = vunpack.c.h.b16 %v3092
    %v3273 = vunpack.c.l.b16 %v3093
    %v3274 = vunpack.c.h.b16 %v3093
    %v3275 = vunpack.c.l.b16 %v3094
    %v3276 = vunpack.c.h.b16 %v3094
    %v3277 = vunpack.c.l.b16 %v3095
    %v3278 = vpack.c.b16 %v3170, %v3161
    %v3279 = vpack.c.b16 %v3171, %v3162
    %v3280 = vpack.c.b16 %v3172, %v3163
    %v3281 = vpack.c.b16 %v3173, %v3164
    %v3282 = vpack.c.b16 %v3174, %v3165
    %v3283 = vpack.c.b16 %v3175, %v3166
    %v3284 = vpack.c.b16 %v3176, %v3167
    %v3285 = vpack.c.b16 %v3177, %v3168
    %v3286 = vpack.c.b16 %v3178, %v3169
    %v3287 = vpack.c.b16 %v3188, %v3179
    %v3288 = vpack.c.b16 %v3189, %v3180
    %v3289 = vpack.c.b16 %v3190, %v3181
    %v3290 = vpack.c.b16 %v3191, %v3182
    %v3291 = vpack.c.b16 %v3192, %v3183
    %v3292 = vpack.c.b16 %v3193, %v3184
    %v3293 = vpack.c.b16 %v3194, %v3185
    %v3294 = vpack.c.b16 %v3195, %v3186
    %v3295 = vpack.c.b16 %v3196, %v3187
    %v3296 = vpack.c.b16 %v3206, %v3197
    %v3297 = vpack.c.b16 %v3207, %v3198
    %v3298 = vpack.c.b16 %v3208, %v3199
    %v3299 = vpack.c.b16 %v3209, %v3200
    %v3300 = vpack.c.b16 %v3210, %v3201
    %v3301 = vpack.c.b16 %v3211, %v3202
    %v3302 = vpack.c.b16 %v3212, %v3203
    %v3303 = vpack.c.b16 %v3213, %v3204
    %v3304 = vpack.c.b16 %v3214, %v3205
    %v3305 = vpack.c.b16 %v3224, %v3215
    %v3306 = vpack.c.b16 %v3225, %v3216
    %v3307 = vpack.c.b16 %v3226, %v3217
    %v3308 = vpack.c.b16 %v3227, %v3218
    %v3309 = vpack.c.b16 %v3228, %v3219
    %v3310 = vpack.c.b16 %v3229, %v3220
    %v3311 = vpack.c.b16 %v3230, %v3221
    %v3312 = vpack.c.b16 %v3231, %v3222
    %v3313 = vpack.c.b16 %v3232, %v3223
    %v3314 = vpack.c.b16 %v3242, %v3233
    %v3315 = vpack.c.b16 %v3243, %v3234
    %v3316 = vpack.c.b16 %v3244, %v3235
    %v3317 = vpack.c.b16 %v3245, %v3236
    %v3318 = vpack.c.b16 %v3246, %v3237
    %v3319 = vpack.c.b16 %v3247, %v3238
    %v3320 = vpack.c.b16 %v3248, %v3239
    %v3321 = vpack.c.b16 %v3249, %v3240
    %v3322 = vpack.c.b16 %v3250, %v3241
    %v3323 = vpack.c.b16 %v3260, %v3251
    %v3324 = vpack.c.b16 %v3261, %v3252
    %v3325 = vpack.c.b16 %v3262, %v3253
    %v3326 = vpack.c.b16 %v3263, %v3254
    %v3327 = vpack.c.b16 %v3264, %v3255
    %v3328 = vpack.c.b16 %v3265, %v3256
    %v3329 = vpack.c.b16 %v3266, %v3257
    %v3330 = vpack.c.b16 %v3267, %v3258
    %v3331 = vpack.c.b16 %v3268, %v3259
    %v3332 = vpack.c.b16 %v3269, %v3269
    %v3333 = vpack.c.b16 %v3270, %v3270
    %v3334 = vpack.c.b16 %v3271, %v3271
    %v3335 = vpack.c.b16 %v3272, %v3272
    %v3336 = vpack.c.b16 %v3273, %v3273
    %v3337 = vpack.c.b16 %v3274, %v3274
    %v3338 = vpack.c.b16 %v3275, %v3275
    %v3339 = vpack.c.b16 %v3276, %v3276
    %v3340 = vpack.c.b16 %v3277, %v3277
    %3404 = vmatpush.bf16.msra.mxu0 %v872
    %3405 = vmatpush.bf16.msra.mxu0 %v871
    %3406 = vmatpush.bf16.msra.mxu0 %v870
    %3407 = vmatpush.bf16.msra.mxu0 %v869
    %3408 = vmatpush.bf16.msra.mxu0 %v868
    %3409 = vmatpush.bf16.msra.mxu0 %v867
    %3410 = vmatpush.bf16.msra.mxu0 %v866
    %3411 = vmatpush.bf16.msra.mxu0 %v865
    %3412 = vmatmul.bf16.gmra.mxu0 %v3278
    %v3413 = vpop.f32.mrf.mxu0
    %v3414 = vadd.f32 0.0, %v3413
    %v3415 = vpop.f32.mrf.mxu0
    %v3416 = vadd.f32 0.0, %v3415
    %3417 = vmatmul.bf16.gmra.mxu0 %v3287
    %v3418 = vpop.f32.mrf.mxu0
    %v3419 = vadd.f32 0.0, %v3418
    %v3420 = vpop.f32.mrf.mxu0
    %v3421 = vadd.f32 0.0, %v3420
    %3422 = vmatmul.bf16.gmra.mxu0 %v3296
    %v3423 = vpop.f32.mrf.mxu0
    %v3424 = vadd.f32 0.0, %v3423
    %v3425 = vpop.f32.mrf.mxu0
    %v3426 = vadd.f32 0.0, %v3425
    %3427 = vmatmul.bf16.gmra.mxu0 %v3305
    %v3428 = vpop.f32.mrf.mxu0
    %v3429 = vadd.f32 0.0, %v3428
    %v3430 = vpop.f32.mrf.mxu0
    %v3431 = vadd.f32 0.0, %v3430
    %3432 = vmatmul.bf16.gmra.mxu0 %v3314
    %v3433 = vpop.f32.mrf.mxu0
    %v3434 = vadd.f32 0.0, %v3433
    %v3435 = vpop.f32.mrf.mxu0
    %v3436 = vadd.f32 0.0, %v3435
    %3437 = vmatmul.bf16.gmra.mxu0 %v3323
    %v3438 = vpop.f32.mrf.mxu0
    %v3439 = vadd.f32 0.0, %v3438
    %v3440 = vpop.f32.mrf.mxu0
    %v3441 = vadd.f32 0.0, %v3440
    %3442 = vmatmul.bf16.gmra.mxu0 %v3332
    %v3443 = vpop.f32.mrf.mxu0
    %v3444 = vadd.f32 0.0, %v3443
    %v3445 = vpop.f32.mrf.mxu0
    %3446 = vdwg.mxu0
    %3447 = vmatpush.bf16.msra.mxu0 %v880
    %3448 = vmatpush.bf16.msra.mxu0 %v879
    %3449 = vmatpush.bf16.msra.mxu0 %v878
    %3450 = vmatpush.bf16.msra.mxu0 %v877
    %3451 = vmatpush.bf16.msra.mxu0 %v876
    %3452 = vmatpush.bf16.msra.mxu0 %v875
    %3453 = vmatpush.bf16.msra.mxu0 %v874
    %3454 = vmatpush.bf16.msra.mxu0 %v873
    %3455 = vmatmul.bf16.gmra.mxu0 %v3279
    %v3456 = vpop.f32.mrf.mxu0
    %v3457 = vadd.f32 %v3414, %v3456
    %v3458 = vpop.f32.mrf.mxu0
    %v3459 = vadd.f32 %v3416, %v3458
    %3460 = vmatmul.bf16.gmra.mxu0 %v3288
    %v3461 = vpop.f32.mrf.mxu0
    %v3462 = vadd.f32 %v3419, %v3461
    %v3463 = vpop.f32.mrf.mxu0
    %v3464 = vadd.f32 %v3421, %v3463
    %3465 = vmatmul.bf16.gmra.mxu0 %v3297
    %v3466 = vpop.f32.mrf.mxu0
    %v3467 = vadd.f32 %v3424, %v3466
    %v3468 = vpop.f32.mrf.mxu0
    %v3469 = vadd.f32 %v3426, %v3468
    %3470 = vmatmul.bf16.gmra.mxu0 %v3306
    %v3471 = vpop.f32.mrf.mxu0
    %v3472 = vadd.f32 %v3429, %v3471
    %v3473 = vpop.f32.mrf.mxu0
    %v3474 = vadd.f32 %v3431, %v3473
    %3475 = vmatmul.bf16.gmra.mxu0 %v3315
    %v3476 = vpop.f32.mrf.mxu0
    %v3477 = vadd.f32 %v3434, %v3476
    %v3478 = vpop.f32.mrf.mxu0
    %v3479 = vadd.f32 %v3436, %v3478
    %3480 = vmatmul.bf16.gmra.mxu0 %v3324
    %v3481 = vpop.f32.mrf.mxu0
    %v3482 = vadd.f32 %v3439, %v3481
    %v3483 = vpop.f32.mrf.mxu0
    %v3484 = vadd.f32 %v3441, %v3483
    %3485 = vmatmul.bf16.gmra.mxu0 %v3333
    %v3486 = vpop.f32.mrf.mxu0
    %v3487 = vadd.f32 %v3444, %v3486
    %v3488 = vpop.f32.mrf.mxu0
    %3489 = vdwg.mxu0
    %3490 = vmatpush.bf16.msra.mxu0 %v888
    %3491 = vmatpush.bf16.msra.mxu0 %v887
    %3492 = vmatpush.bf16.msra.mxu0 %v886
    %3493 = vmatpush.bf16.msra.mxu0 %v885
    %3494 = vmatpush.bf16.msra.mxu0 %v884
    %3495 = vmatpush.bf16.msra.mxu0 %v883
    %3496 = vmatpush.bf16.msra.mxu0 %v882
    %3497 = vmatpush.bf16.msra.mxu0 %v881
    %3498 = vmatmul.bf16.gmra.mxu0 %v3280
    %v3499 = vpop.f32.mrf.mxu0
    %v3500 = vadd.f32 %v3457, %v3499
    %v3501 = vpop.f32.mrf.mxu0
    %v3502 = vadd.f32 %v3459, %v3501
    %3503 = vmatmul.bf16.gmra.mxu0 %v3289
    %v3504 = vpop.f32.mrf.mxu0
    %v3505 = vadd.f32 %v3462, %v3504
    %v3506 = vpop.f32.mrf.mxu0
    %v3507 = vadd.f32 %v3464, %v3506
    %3508 = vmatmul.bf16.gmra.mxu0 %v3298
    %v3509 = vpop.f32.mrf.mxu0
    %v3510 = vadd.f32 %v3467, %v3509
    %v3511 = vpop.f32.mrf.mxu0
    %v3512 = vadd.f32 %v3469, %v3511
    %3513 = vmatmul.bf16.gmra.mxu0 %v3307
    %v3514 = vpop.f32.mrf.mxu0
    %v3515 = vadd.f32 %v3472, %v3514
    %v3516 = vpop.f32.mrf.mxu0
    %v3517 = vadd.f32 %v3474, %v3516
    %3518 = vmatmul.bf16.gmra.mxu0 %v3316
    %v3519 = vpop.f32.mrf.mxu0
    %v3520 = vadd.f32 %v3477, %v3519
    %v3521 = vpop.f32.mrf.mxu0
    %v3522 = vadd.f32 %v3479, %v3521
    %3523 = vmatmul.bf16.gmra.mxu0 %v3325
    %v3524 = vpop.f32.mrf.mxu0
    %v3525 = vadd.f32 %v3482, %v3524
    %v3526 = vpop.f32.mrf.mxu0
    %v3527 = vadd.f32 %v3484, %v3526
    %3528 = vmatmul.bf16.gmra.mxu0 %v3334
    %v3529 = vpop.f32.mrf.mxu0
    %v3530 = vadd.f32 %v3487, %v3529
    %v3531 = vpop.f32.mrf.mxu0
    %3532 = vdwg.mxu0
    %3533 = vmatpush.bf16.msra.mxu0 %v896
    %3534 = vmatpush.bf16.msra.mxu0 %v895
    %3535 = vmatpush.bf16.msra.mxu0 %v894
    %3536 = vmatpush.bf16.msra.mxu0 %v893
    %3537 = vmatpush.bf16.msra.mxu0 %v892
    %3538 = vmatpush.bf16.msra.mxu0 %v891
    %3539 = vmatpush.bf16.msra.mxu0 %v890
    %3540 = vmatpush.bf16.msra.mxu0 %v889
    %3541 = vmatmul.bf16.gmra.mxu0 %v3281
    %v3542 = vpop.f32.mrf.mxu0
    %v3543 = vadd.f32 %v3500, %v3542
    %v3544 = vpop.f32.mrf.mxu0
    %v3545 = vadd.f32 %v3502, %v3544
    %3546 = vmatmul.bf16.gmra.mxu0 %v3290
    %v3547 = vpop.f32.mrf.mxu0
    %v3548 = vadd.f32 %v3505, %v3547
    %v3549 = vpop.f32.mrf.mxu0
    %v3550 = vadd.f32 %v3507, %v3549
    %3551 = vmatmul.bf16.gmra.mxu0 %v3299
    %v3552 = vpop.f32.mrf.mxu0
    %v3553 = vadd.f32 %v3510, %v3552
    %v3554 = vpop.f32.mrf.mxu0
    %v3555 = vadd.f32 %v3512, %v3554
    %3556 = vmatmul.bf16.gmra.mxu0 %v3308
    %v3557 = vpop.f32.mrf.mxu0
    %v3558 = vadd.f32 %v3515, %v3557
    %v3559 = vpop.f32.mrf.mxu0
    %v3560 = vadd.f32 %v3517, %v3559
    %3561 = vmatmul.bf16.gmra.mxu0 %v3317
    %v3562 = vpop.f32.mrf.mxu0
    %v3563 = vadd.f32 %v3520, %v3562
    %v3564 = vpop.f32.mrf.mxu0
    %v3565 = vadd.f32 %v3522, %v3564
    %3566 = vmatmul.bf16.gmra.mxu0 %v3326
    %v3567 = vpop.f32.mrf.mxu0
    %v3568 = vadd.f32 %v3525, %v3567
    %v3569 = vpop.f32.mrf.mxu0
    %v3570 = vadd.f32 %v3527, %v3569
    %3571 = vmatmul.bf16.gmra.mxu0 %v3335
    %v3572 = vpop.f32.mrf.mxu0
    %v3573 = vadd.f32 %v3530, %v3572
    %v3574 = vpop.f32.mrf.mxu0
    %3575 = vdwg.mxu0
    %3576 = vmatpush.bf16.msra.mxu0 %v904
    %3577 = vmatpush.bf16.msra.mxu0 %v903
    %3578 = vmatpush.bf16.msra.mxu0 %v902
    %3579 = vmatpush.bf16.msra.mxu0 %v901
    %3580 = vmatpush.bf16.msra.mxu0 %v900
    %3581 = vmatpush.bf16.msra.mxu0 %v899
    %3582 = vmatpush.bf16.msra.mxu0 %v898
    %3583 = vmatpush.bf16.msra.mxu0 %v897
    %3584 = vmatmul.bf16.gmra.mxu0 %v3282
    %v3585 = vpop.f32.mrf.mxu0
    %v3586 = vadd.f32 %v3543, %v3585
    %v3587 = vpop.f32.mrf.mxu0
    %v3588 = vadd.f32 %v3545, %v3587
    %3589 = vmatmul.bf16.gmra.mxu0 %v3291
    %v3590 = vpop.f32.mrf.mxu0
    %v3591 = vadd.f32 %v3548, %v3590
    %v3592 = vpop.f32.mrf.mxu0
    %v3593 = vadd.f32 %v3550, %v3592
    %3594 = vmatmul.bf16.gmra.mxu0 %v3300
    %v3595 = vpop.f32.mrf.mxu0
    %v3596 = vadd.f32 %v3553, %v3595
    %v3597 = vpop.f32.mrf.mxu0
    %v3598 = vadd.f32 %v3555, %v3597
    %3599 = vmatmul.bf16.gmra.mxu0 %v3309
    %v3600 = vpop.f32.mrf.mxu0
    %v3601 = vadd.f32 %v3558, %v3600
    %v3602 = vpop.f32.mrf.mxu0
    %v3603 = vadd.f32 %v3560, %v3602
    %3604 = vmatmul.bf16.gmra.mxu0 %v3318
    %v3605 = vpop.f32.mrf.mxu0
    %v3606 = vadd.f32 %v3563, %v3605
    %v3607 = vpop.f32.mrf.mxu0
    %v3608 = vadd.f32 %v3565, %v3607
    %3609 = vmatmul.bf16.gmra.mxu0 %v3327
    %v3610 = vpop.f32.mrf.mxu0
    %v3611 = vadd.f32 %v3568, %v3610
    %v3612 = vpop.f32.mrf.mxu0
    %v3613 = vadd.f32 %v3570, %v3612
    %3614 = vmatmul.bf16.gmra.mxu0 %v3336
    %v3615 = vpop.f32.mrf.mxu0
    %v3616 = vadd.f32 %v3573, %v3615
    %v3617 = vpop.f32.mrf.mxu0
    %3618 = vdwg.mxu0
    %3619 = vmatpush.bf16.msra.mxu0 %v912
    %3620 = vmatpush.bf16.msra.mxu0 %v911
    %3621 = vmatpush.bf16.msra.mxu0 %v910
    %3622 = vmatpush.bf16.msra.mxu0 %v909
    %3623 = vmatpush.bf16.msra.mxu0 %v908
    %3624 = vmatpush.bf16.msra.mxu0 %v907
    %3625 = vmatpush.bf16.msra.mxu0 %v906
    %3626 = vmatpush.bf16.msra.mxu0 %v905
    %3627 = vmatmul.bf16.gmra.mxu0 %v3283
    %v3628 = vpop.f32.mrf.mxu0
    %v3629 = vadd.f32 %v3586, %v3628
    %v3630 = vpop.f32.mrf.mxu0
    %v3631 = vadd.f32 %v3588, %v3630
    %3632 = vmatmul.bf16.gmra.mxu0 %v3292
    %v3633 = vpop.f32.mrf.mxu0
    %v3634 = vadd.f32 %v3591, %v3633
    %v3635 = vpop.f32.mrf.mxu0
    %v3636 = vadd.f32 %v3593, %v3635
    %3637 = vmatmul.bf16.gmra.mxu0 %v3301
    %v3638 = vpop.f32.mrf.mxu0
    %v3639 = vadd.f32 %v3596, %v3638
    %v3640 = vpop.f32.mrf.mxu0
    %v3641 = vadd.f32 %v3598, %v3640
    %3642 = vmatmul.bf16.gmra.mxu0 %v3310
    %v3643 = vpop.f32.mrf.mxu0
    %v3644 = vadd.f32 %v3601, %v3643
    %v3645 = vpop.f32.mrf.mxu0
    %v3646 = vadd.f32 %v3603, %v3645
    %3647 = vmatmul.bf16.gmra.mxu0 %v3319
    %v3648 = vpop.f32.mrf.mxu0
    %v3649 = vadd.f32 %v3606, %v3648
    %v3650 = vpop.f32.mrf.mxu0
    %v3651 = vadd.f32 %v3608, %v3650
    %3652 = vmatmul.bf16.gmra.mxu0 %v3328
    %v3653 = vpop.f32.mrf.mxu0
    %v3654 = vadd.f32 %v3611, %v3653
    %v3655 = vpop.f32.mrf.mxu0
    %v3656 = vadd.f32 %v3613, %v3655
    %3657 = vmatmul.bf16.gmra.mxu0 %v3337
    %v3658 = vpop.f32.mrf.mxu0
    %v3659 = vadd.f32 %v3616, %v3658
    %v3660 = vpop.f32.mrf.mxu0
    %3661 = vdwg.mxu0
    %3662 = vmatpush.bf16.msra.mxu0 %v920
    %3663 = vmatpush.bf16.msra.mxu0 %v919
    %3664 = vmatpush.bf16.msra.mxu0 %v918
    %3665 = vmatpush.bf16.msra.mxu0 %v917
    %3666 = vmatpush.bf16.msra.mxu0 %v916
    %3667 = vmatpush.bf16.msra.mxu0 %v915
    %3668 = vmatpush.bf16.msra.mxu0 %v914
    %3669 = vmatpush.bf16.msra.mxu0 %v913
    %3670 = vmatmul.bf16.gmra.mxu0 %v3284
    %v3671 = vpop.f32.mrf.mxu0
    %v3672 = vadd.f32 %v3629, %v3671
    %v3673 = vpop.f32.mrf.mxu0
    %v3674 = vadd.f32 %v3631, %v3673
    %3675 = vmatmul.bf16.gmra.mxu0 %v3293
    %v3676 = vpop.f32.mrf.mxu0
    %v3677 = vadd.f32 %v3634, %v3676
    %v3678 = vpop.f32.mrf.mxu0
    %v3679 = vadd.f32 %v3636, %v3678
    %3680 = vmatmul.bf16.gmra.mxu0 %v3302
    %v3681 = vpop.f32.mrf.mxu0
    %v3682 = vadd.f32 %v3639, %v3681
    %v3683 = vpop.f32.mrf.mxu0
    %v3684 = vadd.f32 %v3641, %v3683
    %3685 = vmatmul.bf16.gmra.mxu0 %v3311
    %v3686 = vpop.f32.mrf.mxu0
    %v3687 = vadd.f32 %v3644, %v3686
    %v3688 = vpop.f32.mrf.mxu0
    %v3689 = vadd.f32 %v3646, %v3688
    %3690 = vmatmul.bf16.gmra.mxu0 %v3320
    %v3691 = vpop.f32.mrf.mxu0
    %v3692 = vadd.f32 %v3649, %v3691
    %v3693 = vpop.f32.mrf.mxu0
    %v3694 = vadd.f32 %v3651, %v3693
    %3695 = vmatmul.bf16.gmra.mxu0 %v3329
    %v3696 = vpop.f32.mrf.mxu0
    %v3697 = vadd.f32 %v3654, %v3696
    %v3698 = vpop.f32.mrf.mxu0
    %v3699 = vadd.f32 %v3656, %v3698
    %3700 = vmatmul.bf16.gmra.mxu0 %v3338
    %v3701 = vpop.f32.mrf.mxu0
    %v3702 = vadd.f32 %v3659, %v3701
    %v3703 = vpop.f32.mrf.mxu0
    %3704 = vdwg.mxu0
    %3705 = vmatpush.bf16.msra.mxu0 %v928
    %3706 = vmatpush.bf16.msra.mxu0 %v927
    %3707 = vmatpush.bf16.msra.mxu0 %v926
    %3708 = vmatpush.bf16.msra.mxu0 %v925
    %3709 = vmatpush.bf16.msra.mxu0 %v924
    %3710 = vmatpush.bf16.msra.mxu0 %v923
    %3711 = vmatpush.bf16.msra.mxu0 %v922
    %3712 = vmatpush.bf16.msra.mxu0 %v921
    %3713 = vmatmul.bf16.gmra.mxu0 %v3285
    %v3714 = vpop.f32.mrf.mxu0
    %v3715 = vadd.f32 %v3672, %v3714
    %v3716 = vpop.f32.mrf.mxu0
    %v3717 = vadd.f32 %v3674, %v3716
    %3718 = vmatmul.bf16.gmra.mxu0 %v3294
    %v3719 = vpop.f32.mrf.mxu0
    %v3720 = vadd.f32 %v3677, %v3719
    %v3721 = vpop.f32.mrf.mxu0
    %v3722 = vadd.f32 %v3679, %v3721
    %3723 = vmatmul.bf16.gmra.mxu0 %v3303
    %v3724 = vpop.f32.mrf.mxu0
    %v3725 = vadd.f32 %v3682, %v3724
    %v3726 = vpop.f32.mrf.mxu0
    %v3727 = vadd.f32 %v3684, %v3726
    %3728 = vmatmul.bf16.gmra.mxu0 %v3312
    %v3729 = vpop.f32.mrf.mxu0
    %v3730 = vadd.f32 %v3687, %v3729
    %v3731 = vpop.f32.mrf.mxu0
    %v3732 = vadd.f32 %v3689, %v3731
    %3733 = vmatmul.bf16.gmra.mxu0 %v3321
    %v3734 = vpop.f32.mrf.mxu0
    %v3735 = vadd.f32 %v3692, %v3734
    %v3736 = vpop.f32.mrf.mxu0
    %v3737 = vadd.f32 %v3694, %v3736
    %3738 = vmatmul.bf16.gmra.mxu0 %v3330
    %v3739 = vpop.f32.mrf.mxu0
    %v3740 = vadd.f32 %v3697, %v3739
    %v3741 = vpop.f32.mrf.mxu0
    %v3742 = vadd.f32 %v3699, %v3741
    %3743 = vmatmul.bf16.gmra.mxu0 %v3339
    %v3744 = vpop.f32.mrf.mxu0
    %v3745 = vadd.f32 %v3702, %v3744
    %v3746 = vpop.f32.mrf.mxu0
    %3747 = vdwg.mxu0
    %3748 = vmatpush.bf16.msra.mxu0 %v936
    %3749 = vmatpush.bf16.msra.mxu0 %v935
    %3750 = vmatpush.bf16.msra.mxu0 %v934
    %3751 = vmatpush.bf16.msra.mxu0 %v933
    %3752 = vmatpush.bf16.msra.mxu0 %v932
    %3753 = vmatpush.bf16.msra.mxu0 %v931
    %3754 = vmatpush.bf16.msra.mxu0 %v930
    %3755 = vmatpush.bf16.msra.mxu0 %v929
    %3756 = vmatmul.bf16.gmra.mxu0 %v3286
    %v3757 = vpop.f32.mrf.mxu0
    %v3758 = vadd.f32 %v3715, %v3757
    %v3759 = vpop.f32.mrf.mxu0
    %v3760 = vadd.f32 %v3717, %v3759
    %3761 = vmatmul.bf16.gmra.mxu0 %v3295
    %v3762 = vpop.f32.mrf.mxu0
    %v3763 = vadd.f32 %v3720, %v3762
    %v3764 = vpop.f32.mrf.mxu0
    %v3765 = vadd.f32 %v3722, %v3764
    %3766 = vmatmul.bf16.gmra.mxu0 %v3304
    %v3767 = vpop.f32.mrf.mxu0
    %v3768 = vadd.f32 %v3725, %v3767
    %v3769 = vpop.f32.mrf.mxu0
    %v3770 = vadd.f32 %v3727, %v3769
    %3771 = vmatmul.bf16.gmra.mxu0 %v3313
    %v3772 = vpop.f32.mrf.mxu0
    %v3773 = vadd.f32 %v3730, %v3772
    %v3774 = vpop.f32.mrf.mxu0
    %v3775 = vadd.f32 %v3732, %v3774
    %3776 = vmatmul.bf16.gmra.mxu0 %v3322
    %v3777 = vpop.f32.mrf.mxu0
    %v3778 = vadd.f32 %v3735, %v3777
    %v3779 = vpop.f32.mrf.mxu0
    %v3780 = vadd.f32 %v3737, %v3779
    %3781 = vmatmul.bf16.gmra.mxu0 %v3331
    %v3782 = vpop.f32.mrf.mxu0
    %v3783 = vadd.f32 %v3740, %v3782
    %v3784 = vpop.f32.mrf.mxu0
    %v3785 = vadd.f32 %v3742, %v3784
    %3786 = vmatmul.bf16.gmra.mxu0 %v3340
    %v3787 = vpop.f32.mrf.mxu0
    %v3788 = vadd.f32 %v3745, %v3787
    %v3789 = vpop.f32.mrf.mxu0
    %3790 = vdwg.mxu0
    %v3791 = vmul.f32 %v3758, %v1398
    %v3792 = vmul.f32 %v3760, %v1398
    %v3793 = vmul.f32 %v3763, %v1398
    %v3794 = vmul.f32 %v3765, %v1398
    %v3795 = vmul.f32 %v3768, %v1398
    %v3796 = vmul.f32 %v3770, %v1398
    %v3797 = vmul.f32 %v3773, %v1398
    %v3798 = vmul.f32 %v3775, %v1398
    %v3799 = vmul.f32 %v3778, %v1398
    %v3800 = vmul.f32 %v3780, %v1398
    %v3801 = vmul.f32 %v3783, %v1398
    %v3802 = vmul.f32 %v3785, %v1398
    %v3803 = vmul.f32 %v3788, %v1398
    %v3804 = vadd.f32 %v3791, %v1415
    %v3805 = vadd.f32 %v3792, %v1415
    %v3806 = vadd.f32 %v3793, %v1415
    %v3807 = vadd.f32 %v3794, %v1415
    %v3808 = vadd.f32 %v3795, %v1415
    %v3809 = vadd.f32 %v3796, %v1415
    %v3810 = vadd.f32 %v3797, %v1415
    %v3811 = vadd.f32 %v3798, %v1415
    %v3812 = vadd.f32 %v3799, %v1415
    %v3813 = vadd.f32 %v3800, %v1415
    %v3814 = vadd.f32 %v3801, %v1415
    %v3815 = vadd.f32 %v3802, %v1415
    %v3816 = vadd.f32 %v3803, %v1415
    %v3817 = vmax.f32 %v3017, %v3804
    %v3818 = vmax.f32 %v3018, %v3805
    %v3819 = vmax.f32 %v3019, %v3806
    %v3820 = vmax.f32 %v3020, %v3807
    %v3821 = vmax.f32 %v3021, %v3808
    %v3822 = vmax.f32 %v3022, %v3809
    %v3823 = vmax.f32 %v3023, %v3810
    %v3824 = vmax.f32 %v3024, %v3811
    %v3825 = vmax.f32 %v3025, %v3812
    %v3826 = vmax.f32 %v3026, %v3813
    %v3827 = vmax.f32 %v3027, %v3814
    %v3828 = vmax.f32 %v3028, %v3815
    %v3829 = vmax.f32 %v3029, %v3816
    %v3830 = vmax.f32 %v3817, 0.0
    %v3831 = vmax.f32 %v3818, 0.0
    %v3832 = vmax.f32 %v3819, 0.0
    %v3833 = vmax.f32 %v3820, 0.0
    %v3834 = vmax.f32 %v3821, 0.0
    %v3835 = vmax.f32 %v3822, 0.0
    %v3836 = vmax.f32 %v3823, 0.0
    %v3837 = vmax.f32 %v3824, 0.0
    %v3838 = vmax.f32 %v3825, 0.0
    %v3839 = vmax.f32 %v3826, 0.0
    %v3840 = vmax.f32 %v3827, 0.0
    %v3841 = vmax.f32 %v3828, 0.0
    %v3842 = vmax.f32 %v3829, 0.0
    %v3843 = vpack.c.bf16 %v3830, %v3830
    %v3844 = vpack.c.bf16 %v3831, %v3831
    %v3845 = vpack.c.bf16 %v3832, %v3832
    %v3846 = vpack.c.bf16 %v3833, %v3833
    %v3847 = vpack.c.bf16 %v3834, %v3834
    %v3848 = vpack.c.bf16 %v3835, %v3835
    %v3849 = vpack.c.bf16 %v3836, %v3836
    %v3850 = vpack.c.bf16 %v3837, %v3837
    %v3851 = vpack.c.bf16 %v3838, %v3838
    %v3852 = vpack.c.bf16 %v3839, %v3839
    %v3853 = vpack.c.bf16 %v3840, %v3840
    %v3854 = vpack.c.bf16 %v3841, %v3841
    %v3855 = vpack.c.bf16 %v3842, %v3842
    %3856 = vst [vmem:[%s4] sm:$0xf] %v3843
    %3857 = vst [vmem:[%s4 + $0x4] sm:$0xf] %v3844
    %3858 = vst [vmem:[%s4 + $0x8] sm:$0xf] %v3845
    %3859 = vst [vmem:[%s4 + $0xc] sm:$0xf] %v3846
    %3860 = vst [vmem:[%s4 + $0x10] sm:$0xf] %v3847
    %3861 = vst [vmem:[%s4 + $0x14] sm:$0xf] %v3848
    %3862 = vst [vmem:[%s4 + $0x18] sm:$0xf] %v3849
    %3863 = vst [vmem:[%s4 + $0x1c] sm:$0xf] %v3850
    %3864 = vst [vmem:[%s4 + $0x20] sm:$0xf] %v3851
    %3865 = vst [vmem:[%s4 + $0x24] sm:$0xf] %v3852
    %3866 = vst [vmem:[%s4 + $0x28] sm:$0xf] %v3853
    %3867 = vst [vmem:[%s4 + $0x2c] sm:$0xf] %v3854
    %3868 = vst [vmem:[%s4 + $0x30] sm:$0x1] %v3855
    // Predicated region
    $region30: #{ann_net_forward_streaming.4} parent=1 // pred_check
      _
    $region31: #{ann_net_forward_streaming.4} parent=1 // pred_check_branch
      %3870 = sbr.rel (0) target = $region33
    $region32: #{ann_net_forward_streaming.4} parent=1 // pred_region
      _
    $region33: #{ann_net_forward_streaming.4} parent=1 // pred_fallthru
      _
    // Predicated region
    $region34: #{ann_net_forward_streaming.4} parent=1 // pred_check
      _
    $region35: #{ann_net_forward_streaming.4} parent=1 // pred_check_branch
      %3872 = sbr.rel (0) target = $region37
    $region36: #{ann_net_forward_streaming.4} parent=1 // pred_region
      _
    $region37: #{ann_net_forward_streaming.4} parent=1 // pred_fallthru
      _
    %3873 = vsyncpa [#allocation3], 1
    %3874 = vsyncpa [#allocation5], 1

// kernel: ann_net_forward_streaming.5
$region0: #{ann_net_forward_streaming.5}
  #allocation0 [shape = 'u32[]', space=smem, size = 0x4, offset = 0x4, fixed_abs, tag = 'smem constant byte address 0x4 - core index']
  #allocation1 [shape = 'u32[72,128]{1,0:T(1,128)}', space=vmem, size = 0x9000, scoped, tag = 'internal scratch']
  #allocation2 [shape = 'f32[2,1152]{1,0:T(2,128)}', space=vmem, size = 0x2400, scoped, tag = 'scratch operand']
  %s0 = inlined_call_operand.vmem [shape: bf16[2,6272], index: 0, kind: input, shape index: {}]
  %s1 = inlined_call_operand.hbm [shape: bf16[6272,1152], index: 1, kind: input, shape index: {}]
  %s2 = inlined_call_operand.hbm [shape: bf16[1152,128], index: 2, kind: input, shape index: {}]
  %s3 = inlined_call_operand.vmem [shape: bf16[128,100], index: 3, kind: input, shape index: {}]
  %s4 = inlined_call_operand.vmem [shape: f32[100,10], index: 4, kind: input, shape index: {}]
  %s5 = inlined_call_operand.hbm [shape: f32[2,10], index: 5, kind: output, shape index: {}]
  %s6 = sld [smem:[#allocation0]]
  $region69: #{ann_net_forward_streaming.5} parent=0
    _
  %s8 = ssub.s32 1, %s6
  %s9 = scalar_select 0, %s8, %s6
  $region1: #{ann_net_forward_streaming.5} parent=0
    #allocation3 [shape = 'u8[4128768]{0}', space=vmem, size = 0x3f0000, scoped, tag = 'input window, operand 1']
    #allocation4 [shape = 's32[2]{0}', space=sflag, size = 0x8, scoped, tag = 'scoped memory for ann_net_forward_streaming.5']
    #allocation5 [shape = 's32[2]{0}', space=sflag, size = 0x8, scoped, tag = 'scoped memory for ann_net_forward_streaming.5']
    #allocation6 [shape = 'u8[294912]{0}', space=vmem, size = 0x48000, scoped, tag = 'input window, operand 2, single buffered']
    #allocation7 [shape = 's32[1]{0}', space=sflag, size = 0x4, scoped, tag = 'scoped memory for ann_net_forward_streaming.5']
    #allocation8 [shape = 'u8[1024]{0}', space=vmem, size = 0x400, scoped, tag = 'output window, operand 0, single buffered']
    %10 = vsyncpa [#allocation4], 0
    %s11 = scalar_lea.sflag [#allocation4], 1
    %12 = vsyncpa %s11, 0
    %13 = vsyncpa [#allocation7], 0
    %14 = vsyncpa [#allocation5], 0
    loop: start=0, step=1, limit=9
    $region2: #{ann_net_forward_streaming.5} parent=1 // loop_pre_header
      _
    $region3: #{ann_net_forward_streaming.5} parent=1 // loop_header
      %s16 = sphi 0, %s20
      %p17 = scmp.ge.s32.totalorder %s16, 9
      %s26 = sphi 0, %s28
      %s29 = sphi 0, %s26
      %s30 = sphi 0, %s29
      %s46 = sphi 0, %s30
      %s52 = sphi 0, %s54
      %s55 = sphi 0, %s52
      %s56 = sphi 0, %s55
      %s72 = sphi 0, %s56
      %s76 = sphi 0, %s76
      %s78 = sphi 0, %s76
      %s79 = sphi 0, %s78
      %s93 = sphi 0, %s79
      %s97 = sphi 0, %s97
      %s99 = sphi 0, %s97
      %s100 = sphi 0, %s99
      %s114 = sphi 0, %s100
      %s118 = sphi 0, %s118
      %s120 = sphi 0, %s118
      %s121 = sphi 0, %s120
      %s135 = sphi 0, %s121
      %s139 = sphi 0, %s139
      %s141 = sphi 0, %s139
      %s142 = sphi 0, %s141
      %s156 = sphi 0, %s142
    $region4: #{ann_net_forward_streaming.5} parent=1 // loop_header_branch
      %19 = sbr.rel (%p17) target = $region8
    $region5: #{ann_net_forward_streaming.5} parent=1 // loop_body
      %s21 = ssub.s32 %s16, 1
      %s22 = ssub.s32 %s16, 2
      %s23 = sadd.s32 %s16, 1
      %s24 = ssub.s32 %s16, %s23
      %p25 = scmp.eq.s32.totalorder %s24, 0
      %s27 = sadd.s32 %s26, 1
      %s28 = scalar_select %p25, %s26, %s27
      %p31 = pneg %p25
      %p32 = scmp.eq.s32.totalorder %s16, 6
      %p33 = por %p31, %p32
      %p34 = scmp.ne.s32.totalorder %s26, %s29
      %p35 = scmp.eq.s32.totalorder %s16, 0
      %p36 = por %p34, %p35
      %p37 = scmp.ne.s32.totalorder %s26, %s29
      %p38 = scmp.eq.s32.totalorder %s21, 6
      %p39 = por %p37, %p38
      %p40 = scmp.ne.s32.totalorder %s29, %s30
      %p41 = scmp.eq.s32.totalorder %s21, 0
      %p42 = por %p40, %p41
      %p43 = scmp.ne.s32.totalorder %s29, %s30
      %p44 = scmp.eq.s32.totalorder %s22, 6
      %p45 = por %p43, %p44
      %p47 = scmp.ne.s32.totalorder %s30, %s46
      %p48 = scmp.eq.s32.totalorder %s22, 0
      %p49 = por %p47, %p48
      %s50 = ssub.s32 %s16, %s23
      %p51 = scmp.eq.s32.totalorder %s50, 0
      %s53 = sadd.s32 %s52, 1
      %s54 = scalar_select %p51, %s52, %s53
      %p57 = pneg %p51
      %p58 = scmp.eq.s32.totalorder %s16, 6
      %p59 = por %p57, %p58
      %p60 = scmp.ne.s32.totalorder %s52, %s55
      %p61 = scmp.eq.s32.totalorder %s16, 0
      %p62 = por %p60, %p61
      %p63 = scmp.ne.s32.totalorder %s52, %s55
      %p64 = scmp.eq.s32.totalorder %s21, 6
      %p65 = por %p63, %p64
      %p66 = scmp.ne.s32.totalorder %s55, %s56
      %p67 = scmp.eq.s32.totalorder %s21, 0
      %p68 = por %p66, %p67
      %p69 = scmp.ne.s32.totalorder %s55, %s56
      %p70 = scmp.eq.s32.totalorder %s22, 6
      %p71 = por %p69, %p70
      %p73 = scmp.ne.s32.totalorder %s56, %s72
      %p74 = scmp.eq.s32.totalorder %s22, 0
      %p75 = por %p73, %p74
      %s77 = sadd.s32 %s76, 1
      %p80 = scmp.eq.s32.totalorder %s16, 6
      %p81 = scmp.ne.s32.totalorder %s76, %s78
      %p82 = scmp.eq.s32.totalorder %s16, 0
      %p83 = por %p81, %p82
      %p84 = scmp.ne.s32.totalorder %s76, %s78
      %p85 = scmp.eq.s32.totalorder %s21, 6
      %p86 = por %p84, %p85
      %p87 = scmp.ne.s32.totalorder %s78, %s79
      %p88 = scmp.eq.s32.totalorder %s21, 0
      %p89 = por %p87, %p88
      %p90 = scmp.ne.s32.totalorder %s78, %s79
      %p91 = scmp.eq.s32.totalorder %s22, 6
      %p92 = por %p90, %p91
      %p94 = scmp.ne.s32.totalorder %s79, %s93
      %p95 = scmp.eq.s32.totalorder %s22, 0
      %p96 = por %p94, %p95
      %s98 = sadd.s32 %s97, 1
      %p101 = scmp.eq.s32.totalorder %s16, 6
      %p102 = scmp.ne.s32.totalorder %s97, %s99
      %p103 = scmp.eq.s32.totalorder %s16, 0
      %p104 = por %p102, %p103
      %p105 = scmp.ne.s32.totalorder %s97, %s99
      %p106 = scmp.eq.s32.totalorder %s21, 6
      %p107 = por %p105, %p106
      %p108 = scmp.ne.s32.totalorder %s99, %s100
      %p109 = scmp.eq.s32.totalorder %s21, 0
      %p110 = por %p108, %p109
      %p111 = scmp.ne.s32.totalorder %s99, %s100
      %p112 = scmp.eq.s32.totalorder %s22, 6
      %p113 = por %p111, %p112
      %p115 = scmp.ne.s32.totalorder %s100, %s114
      %p116 = scmp.eq.s32.totalorder %s22, 0
      %p117 = por %p115, %p116
      %s119 = sadd.s32 %s118, 1
      %p122 = scmp.eq.s32.totalorder %s16, 6
      %p123 = scmp.ne.s32.totalorder %s118, %s120
      %p124 = scmp.eq.s32.totalorder %s16, 0
      %p125 = por %p123, %p124
      %p126 = scmp.ne.s32.totalorder %s118, %s120
      %p127 = scmp.eq.s32.totalorder %s21, 6
      %p128 = por %p126, %p127
      %p129 = scmp.ne.s32.totalorder %s120, %s121
      %p130 = scmp.eq.s32.totalorder %s21, 0
      %p131 = por %p129, %p130
      %p132 = scmp.ne.s32.totalorder %s120, %s121
      %p133 = scmp.eq.s32.totalorder %s22, 6
      %p134 = por %p132, %p133
      %p136 = scmp.ne.s32.totalorder %s121, %s135
      %p137 = scmp.eq.s32.totalorder %s22, 0
      %p138 = por %p136, %p137
      %s140 = sadd.s32 %s139, 1
      %p143 = scmp.eq.s32.totalorder %s16, 6
      %p144 = scmp.ne.s32.totalorder %s139, %s141
      %p145 = scmp.eq.s32.totalorder %s16, 0
      %p146 = por %p144, %p145
      %p147 = scmp.ne.s32.totalorder %s139, %s141
      %p148 = scmp.eq.s32.totalorder %s21, 6
      %p149 = por %p147, %p148
      %p150 = scmp.ne.s32.totalorder %s141, %s142
      %p151 = scmp.eq.s32.totalorder %s21, 0
      %p152 = por %p150, %p151
      %p153 = scmp.ne.s32.totalorder %s141, %s142
      %p154 = scmp.eq.s32.totalorder %s22, 6
      %p155 = por %p153, %p154
      %p157 = scmp.ne.s32.totalorder %s142, %s156
      %p158 = scmp.eq.s32.totalorder %s22, 0
      %p159 = por %p157, %p158
      %p160 = scmp.le.s32.totalorder 1, %s16
      %p161 = scmp.lt.s32.totalorder %s16, 8
      %p162 = pnand %p160, %p161
      %p163 = pneg %p162
      // Predicated region
      $region9: #{ann_net_forward_streaming.5} parent=5 // pred_check
        _
      $region10: #{ann_net_forward_streaming.5} parent=5 // pred_check_branch
        %165 = sbr.rel (%p162) target = $region12
      $region11: #{ann_net_forward_streaming.5} parent=5 // pred_region
        %s166 = ssub.s32 %s16, 1
        // Predicated region
        $region13: #{ann_net_forward_streaming.5} parent=11 // pred_check
          %p167 = pneg %p89
        $region14: #{ann_net_forward_streaming.5} parent=11 // pred_check_branch
          %169 = sbr.rel (%p167) target = $region16
        $region15: #{ann_net_forward_streaming.5} parent=11 // pred_region
          %171 = vsyncadd [#allocation7], 0
          %s172 = sshll.u32 %s2, 4
          %s173 = int_to_ptr.hbm [resolvable:$true] %s172
          %s174 = sshll.u32 [#allocation6], 4
          %s175 = int_to_ptr.vmem [resolvable:$true] %s174
          %180 = dma.hbm_to_vmem [thread:$0]  %s173, 9216, %s175, [#allocation7], 64, 64, 4
        $region16: #{ann_net_forward_streaming.5} parent=11 // pred_fallthru
          _
        // Predicated region
        $region17: #{ann_net_forward_streaming.5} parent=11 // pred_check
          %p181 = pneg %p110
        $region18: #{ann_net_forward_streaming.5} parent=11 // pred_check_branch
          %183 = sbr.rel (%p181) target = $region20
        $region19: #{ann_net_forward_streaming.5} parent=11 // pred_region
          _
        $region20: #{ann_net_forward_streaming.5} parent=11 // pred_fallthru
          _
        // Predicated region
        $region21: #{ann_net_forward_streaming.5} parent=11 // pred_check
          %p184 = pneg %p131
        $region22: #{ann_net_forward_streaming.5} parent=11 // pred_check_branch
          %186 = sbr.rel (%p184) target = $region24
        $region23: #{ann_net_forward_streaming.5} parent=11 // pred_region
          _
        $region24: #{ann_net_forward_streaming.5} parent=11 // pred_fallthru
          _
      $region12: #{ann_net_forward_streaming.5} parent=5 // pred_fallthru
        _
      %p187 = scmp.lt.s32.totalorder %s16, 7
      // Predicated region
      $region25: #{ann_net_forward_streaming.5} parent=5 // pred_check
        %p188 = pneg %p187
      $region26: #{ann_net_forward_streaming.5} parent=5 // pred_check_branch
        %190 = sbr.rel (%p188) target = $region28
      $region27: #{ann_net_forward_streaming.5} parent=5 // pred_region
        // Predicated region
        $region29: #{ann_net_forward_streaming.5} parent=27 // pred_check
          %p191 = pneg %p36
        $region30: #{ann_net_forward_streaming.5} parent=27 // pred_check_branch
          %193 = sbr.rel (%p191) target = $region32
        $region31: #{ann_net_forward_streaming.5} parent=27 // pred_region
          %s194 = smul.u32 7, %s16
          %p195 = scmp.lt.s32.totalorder %s194, 48
          %s196 = scalar_select %p195, %s194, 48
          %s197 = scalar_lea.vmem %s0, %s196
          %s198 = smul.u32 7, %s16
        $region32: #{ann_net_forward_streaming.5} parent=27 // pred_fallthru
          _
        // Predicated region
        $region33: #{ann_net_forward_streaming.5} parent=27 // pred_check
          %p199 = pneg %p62
        $region34: #{ann_net_forward_streaming.5} parent=27 // pred_check_branch
          %201 = sbr.rel (%p199) target = $region36
        $region35: #{ann_net_forward_streaming.5} parent=27 // pred_region
          %s202 = sand.u32 %s52, 1
          %s203 = scalar_lea.sflag [#allocation4], %s202
          %s204 = sand.u32 %s52, 1
          %s205 = smul.addr %s204, 4032
          %s206 = scalar_lea.vmem [#allocation3], %s205
          %s207 = smul.u32 112, %s16
          %209 = vsyncadd %s203, 0
          %s210 = smul.addr %s207, 9
          %s211 = smul.addr %s210, 4
          %s212 = scalar_lea.hbm %s1, %s211
          %s213 = sshll.u32 %s212, 4
          %s214 = int_to_ptr.hbm [resolvable:$true] %s213
          %s215 = sshll.u32 %s206, 4
          %s216 = int_to_ptr.vmem [resolvable:$true] %s215
          %221 = dma.hbm_to_vmem [thread:$0]  %s214, 64512, %s216, %s203, 576, 576, 36
        $region36: #{ann_net_forward_streaming.5} parent=27 // pred_fallthru
          _
      $region28: #{ann_net_forward_streaming.5} parent=5 // pred_fallthru
        _
      %p222 = scmp.le.s32.totalorder 1, %s16
      %p223 = scmp.lt.s32.totalorder %s16, 8
      %p224 = pnand %p222, %p223
      %p225 = pneg %p224
      // Predicated region
      $region37: #{ann_net_forward_streaming.5} parent=5 // pred_check
        _
      $region38: #{ann_net_forward_streaming.5} parent=5 // pred_check_branch
        %227 = sbr.rel (%p224) target = $region40
      $region39: #{ann_net_forward_streaming.5} parent=5 // pred_region
        %s228 = ssub.s32 %s16, 1
        %s229 = sand.u32 %s55, 1
        %s230 = scalar_lea.sflag [#allocation4], %s229
        %s231 = sand.u32 %s55, 1
        %s232 = smul.addr %s231, 4032
        %s233 = scalar_lea.vmem [#allocation3], %s232
        // Predicated region
        $region41: #{ann_net_forward_streaming.5} parent=39 // pred_check
          %p234 = pneg %p68
        $region42: #{ann_net_forward_streaming.5} parent=39 // pred_check_branch
          %236 = sbr.rel (%p234) target = $region44
        $region43: #{ann_net_forward_streaming.5} parent=39 // pred_region
          %238 = dma.done %s230, 64512
        $region44: #{ann_net_forward_streaming.5} parent=39 // pred_fallthru
          _
        // Predicated region
        $region45: #{ann_net_forward_streaming.5} parent=39 // pred_check
          %p239 = pneg %p89
        $region46: #{ann_net_forward_streaming.5} parent=39 // pred_check_branch
          %241 = sbr.rel (%p239) target = $region48
        $region47: #{ann_net_forward_streaming.5} parent=39 // pred_region
          %243 = dma.done [#allocation7], 9216
        $region48: #{ann_net_forward_streaming.5} parent=39 // pred_fallthru
          _
        %s244 = smul.u32 7, %s21
        %p245 = scmp.lt.s32.totalorder %s244, 48
        %s246 = scalar_select %p245, %s244, 48
        %s247 = scalar_lea.vmem %s0, %s246
        %p248 = pneg %p42
        %p249 = pneg %p39
        %s250 = sand.u32 %s55, 1
        %s251 = scalar_lea.sflag [#allocation4], %s250
        %s252 = sand.u32 %s55, 1
        %s253 = smul.addr %s252, 4032
        %s254 = scalar_lea.vmem [#allocation3], %s253
        %p255 = pneg %p68
        %p256 = pneg %p65
        %p257 = pneg %p89
        %p258 = pneg %p86
        %p259 = pneg %p110
        %p260 = pneg %p107
        %p261 = pneg %p131
        %p262 = pneg %p128
        %p263 = pneg %p152
        %p264 = pneg %p149
        %s265 = smul.u32 7, %s21
        %p266 = scmp.lt.s32.totalorder %s265, 48
        %s267 = scalar_select %p266, %s265, 48
        %s268 = scalar_lea.vmem %s0, %s267
        %s269 = smul.u32 7, %s21
        %s270 = smul.u32 112, %s21
        %p271 = scmp.eq.s32.totalorder %s21, 0
        // Predicated region
        $region49: #{ann_net_forward_streaming.5} parent=39 // pred_check
          %p272 = pneg %p271
        $region50: #{ann_net_forward_streaming.5} parent=39 // pred_check_branch
          %274 = sbr.rel (%p272) target = $region52
        $region51: #{ann_net_forward_streaming.5} parent=39 // pred_region
          %275 = vst [vmem:[#allocation2] sm:$0xff] 0.0
          %276 = vst [vmem:[#allocation2 + $0x8] sm:$0xff] 0.0
          %277 = vst [vmem:[#allocation2 + $0x10] sm:$0x3] 0.0
        $region52: #{ann_net_forward_streaming.5} parent=39 // pred_fallthru
          _
        %v278 = vld [vmem:[#allocation2] sm:$0xff]
        %v279 = vld [vmem:[#allocation2 + $0x8] sm:$0xff]
        %v280 = vld [vmem:[#allocation2 + $0x10] sm:$0x3]
        %v281 = vld [vmem:[%s268] sm:$0x7f]
        %v282 = vld [vmem:[%s233] sm:$0xff]
        %v283 = vld [vmem:[%s233 + $0x8] sm:$0xff]
        %v284 = vld [vmem:[%s233 + $0x10] sm:$0xff]
        %v285 = vld [vmem:[%s233 + $0x18] sm:$0xff]
        %v286 = vld [vmem:[%s233 + $0x20] sm:$0xf]
        %v287 = vld [vmem:[%s233 + $0x24] sm:$0xff]
        %v288 = vld [vmem:[%s233 + $0x2c] sm:$0xff]
        %v289 = vld [vmem:[%s233 + $0x34] sm:$0xff]
        %v290 = vld [vmem:[%s233 + $0x3c] sm:$0xff]
        %v291 = vld [vmem:[%s233 + $0x44] sm:$0xf]
        %v292 = vld [vmem:[%s233 + $0x48] sm:$0xff]
        %v293 = vld [vmem:[%s233 + $0x50] sm:$0xff]
        %v294 = vld [vmem:[%s233 + $0x58] sm:$0xff]
        %v295 = vld [vmem:[%s233 + $0x60] sm:$0xff]
        %v296 = vld [vmem:[%s233 + $0x68] sm:$0xf]
        %v297 = vld [vmem:[%s233 + $0x6c] sm:$0xff]
        %v298 = vld [vmem:[%s233 + $0x74] sm:$0xff]
        %v299 = vld [vmem:[%s233 + $0x7c] sm:$0xff]
        %v300 = vld [vmem:[%s233 + $0x84] sm:$0xff]
        %v301 = vld [vmem:[%s233 + $0x8c] sm:$0xf]
        %v302 = vld [vmem:[%s233 + $0x90] sm:$0xff]
        %v303 = vld [vmem:[%s233 + $0x98] sm:$0xff]
        %v304 = vld [vmem:[%s233 + $0xa0] sm:$0xff]
        %v305 = vld [vmem:[%s233 + $0xa8] sm:$0xff]
        %v306 = vld [vmem:[%s233 + $0xb0] sm:$0xf]
        %v307 = vld [vmem:[%s233 + $0xb4] sm:$0xff]
        %v308 = vld [vmem:[%s233 + $0xbc] sm:$0xff]
        %v309 = vld [vmem:[%s233 + $0xc4] sm:$0xff]
        %v310 = vld [vmem:[%s233 + $0xcc] sm:$0xff]
        %v311 = vld [vmem:[%s233 + $0xd4] sm:$0xf]
        %v312 = vld [vmem:[%s233 + $0xd8] sm:$0xff]
        %v313 = vld [vmem:[%s233 + $0xe0] sm:$0xff]
        %v314 = vld [vmem:[%s233 + $0xe8] sm:$0xff]
        %v315 = vld [vmem:[%s233 + $0xf0] sm:$0xff]
        %v316 = vld [vmem:[%s233 + $0xf8] sm:$0xf]
        %v317 = vld [vmem:[%s233 + $0xfc] sm:$0xff]
        %v318 = vld [vmem:[%s233 + $0x104] sm:$0xff]
        %v319 = vld [vmem:[%s233 + $0x10c] sm:$0xff]
        %v320 = vld [vmem:[%s233 + $0x114] sm:$0xff]
        %v321 = vld [vmem:[%s233 + $0x11c] sm:$0xf]
        %v322 = vld [vmem:[%s233 + $0x120] sm:$0xff]
        %v323 = vld [vmem:[%s233 + $0x128] sm:$0xff]
        %v324 = vld [vmem:[%s233 + $0x130] sm:$0xff]
        %v325 = vld [vmem:[%s233 + $0x138] sm:$0xff]
        %v326 = vld [vmem:[%s233 + $0x140] sm:$0xf]
        %v327 = vld [vmem:[%s233 + $0x144] sm:$0xff]
        %v328 = vld [vmem:[%s233 + $0x14c] sm:$0xff]
        %v329 = vld [vmem:[%s233 + $0x154] sm:$0xff]
        %v330 = vld [vmem:[%s233 + $0x15c] sm:$0xff]
        %v331 = vld [vmem:[%s233 + $0x164] sm:$0xf]
        %v332 = vld [vmem:[%s233 + $0x168] sm:$0xff]
        %v333 = vld [vmem:[%s233 + $0x170] sm:$0xff]
        %v334 = vld [vmem:[%s233 + $0x178] sm:$0xff]
        %v335 = vld [vmem:[%s233 + $0x180] sm:$0xff]
        %v336 = vld [vmem:[%s233 + $0x188] sm:$0xf]
        %v337 = vld [vmem:[%s233 + $0x18c] sm:$0xff]
        %v338 = vld [vmem:[%s233 + $0x194] sm:$0xff]
        %v339 = vld [vmem:[%s233 + $0x19c] sm:$0xff]
        %v340 = vld [vmem:[%s233 + $0x1a4] sm:$0xff]
        %v341 = vld [vmem:[%s233 + $0x1ac] sm:$0xf]
        %v342 = vld [vmem:[%s233 + $0x1b0] sm:$0xff]
        %v343 = vld [vmem:[%s233 + $0x1b8] sm:$0xff]
        %v344 = vld [vmem:[%s233 + $0x1c0] sm:$0xff]
        %v345 = vld [vmem:[%s233 + $0x1c8] sm:$0xff]
        %v346 = vld [vmem:[%s233 + $0x1d0] sm:$0xf]
        %v347 = vld [vmem:[%s233 + $0x1d4] sm:$0xff]
        %v348 = vld [vmem:[%s233 + $0x1dc] sm:$0xff]
        %v349 = vld [vmem:[%s233 + $0x1e4] sm:$0xff]
        %v350 = vld [vmem:[%s233 + $0x1ec] sm:$0xff]
        %v351 = vld [vmem:[%s233 + $0x1f4] sm:$0xf]
        %v352 = vld [vmem:[%s233 + $0x1f8] sm:$0xff]
        %v353 = vld [vmem:[%s233 + $0x200] sm:$0xff]
        %v354 = vld [vmem:[%s233 + $0x208] sm:$0xff]
        %v355 = vld [vmem:[%s233 + $0x210] sm:$0xff]
        %v356 = vld [vmem:[%s233 + $0x218] sm:$0xf]
        %v357 = vld [vmem:[%s233 + $0x21c] sm:$0xff]
        %v358 = vld [vmem:[%s233 + $0x224] sm:$0xff]
        %v359 = vld [vmem:[%s233 + $0x22c] sm:$0xff]
        %v360 = vld [vmem:[%s233 + $0x234] sm:$0xff]
        %v361 = vld [vmem:[%s233 + $0x23c] sm:$0xf]
        %v362 = vld [vmem:[%s233 + $0x240] sm:$0xff]
        %v363 = vld [vmem:[%s233 + $0x248] sm:$0xff]
        %v364 = vld [vmem:[%s233 + $0x250] sm:$0xff]
        %v365 = vld [vmem:[%s233 + $0x258] sm:$0xff]
        %v366 = vld [vmem:[%s233 + $0x260] sm:$0xf]
        %v367 = vld [vmem:[%s233 + $0x264] sm:$0xff]
        %v368 = vld [vmem:[%s233 + $0x26c] sm:$0xff]
        %v369 = vld [vmem:[%s233 + $0x274] sm:$0xff]
        %v370 = vld [vmem:[%s233 + $0x27c] sm:$0xff]
        %v371 = vld [vmem:[%s233 + $0x284] sm:$0xf]
        %v372 = vld [vmem:[%s233 + $0x288] sm:$0xff]
        %v373 = vld [vmem:[%s233 + $0x290] sm:$0xff]
        %v374 = vld [vmem:[%s233 + $0x298] sm:$0xff]
        %v375 = vld [vmem:[%s233 + $0x2a0] sm:$0xff]
        %v376 = vld [vmem:[%s233 + $0x2a8] sm:$0xf]
        %v377 = vld [vmem:[%s233 + $0x2ac] sm:$0xff]
        %v378 = vld [vmem:[%s233 + $0x2b4] sm:$0xff]
        %v379 = vld [vmem:[%s233 + $0x2bc] sm:$0xff]
        %v380 = vld [vmem:[%s233 + $0x2c4] sm:$0xff]
        %v381 = vld [vmem:[%s233 + $0x2cc] sm:$0xf]
        %v382 = vld [vmem:[%s233 + $0x2d0] sm:$0xff]
        %v383 = vld [vmem:[%s233 + $0x2d8] sm:$0xff]
        %v384 = vld [vmem:[%s233 + $0x2e0] sm:$0xff]
        %v385 = vld [vmem:[%s233 + $0x2e8] sm:$0xff]
        %v386 = vld [vmem:[%s233 + $0x2f0] sm:$0xf]
        %v387 = vld [vmem:[%s233 + $0x2f4] sm:$0xff]
        %v388 = vld [vmem:[%s233 + $0x2fc] sm:$0xff]
        %v389 = vld [vmem:[%s233 + $0x304] sm:$0xff]
        %v390 = vld [vmem:[%s233 + $0x30c] sm:$0xff]
        %v391 = vld [vmem:[%s233 + $0x314] sm:$0xf]
        %v392 = vld [vmem:[%s233 + $0x318] sm:$0xff]
        %v393 = vld [vmem:[%s233 + $0x320] sm:$0xff]
        %v394 = vld [vmem:[%s233 + $0x328] sm:$0xff]
        %v395 = vld [vmem:[%s233 + $0x330] sm:$0xff]
        %v396 = vld [vmem:[%s233 + $0x338] sm:$0xf]
        %v397 = vld [vmem:[%s233 + $0x33c] sm:$0xff]
        %v398 = vld [vmem:[%s233 + $0x344] sm:$0xff]
        %v399 = vld [vmem:[%s233 + $0x34c] sm:$0xff]
        %v400 = vld [vmem:[%s233 + $0x354] sm:$0xff]
        %v401 = vld [vmem:[%s233 + $0x35c] sm:$0xf]
        %v402 = vld [vmem:[%s233 + $0x360] sm:$0xff]
        %v403 = vld [vmem:[%s233 + $0x368] sm:$0xff]
        %v404 = vld [vmem:[%s233 + $0x370] sm:$0xff]
        %v405 = vld [vmem:[%s233 + $0x378] sm:$0xff]
        %v406 = vld [vmem:[%s233 + $0x380] sm:$0xf]
        %v407 = vld [vmem:[%s233 + $0x384] sm:$0xff]
        %v408 = vld [vmem:[%s233 + $0x38c] sm:$0xff]
        %v409 = vld [vmem:[%s233 + $0x394] sm:$0xff]
        %v410 = vld [vmem:[%s233 + $0x39c] sm:$0xff]
        %v411 = vld [vmem:[%s233 + $0x3a4] sm:$0xf]
        %v412 = vld [vmem:[%s233 + $0x3a8] sm:$0xff]
        %v413 = vld [vmem:[%s233 + $0x3b0] sm:$0xff]
        %v414 = vld [vmem:[%s233 + $0x3b8] sm:$0xff]
        %v415 = vld [vmem:[%s233 + $0x3c0] sm:$0xff]
        %v416 = vld [vmem:[%s233 + $0x3c8] sm:$0xf]
        %v417 = vld [vmem:[%s233 + $0x3cc] sm:$0xff]
        %v418 = vld [vmem:[%s233 + $0x3d4] sm:$0xff]
        %v419 = vld [vmem:[%s233 + $0x3dc] sm:$0xff]
        %v420 = vld [vmem:[%s233 + $0x3e4] sm:$0xff]
        %v421 = vld [vmem:[%s233 + $0x3ec] sm:$0xf]
        %v422 = vld [vmem:[%s233 + $0x3f0] sm:$0xff]
        %v423 = vld [vmem:[%s233 + $0x3f8] sm:$0xff]
        %v424 = vld [vmem:[%s233 + $0x400] sm:$0xff]
        %v425 = vld [vmem:[%s233 + $0x408] sm:$0xff]
        %v426 = vld [vmem:[%s233 + $0x410] sm:$0xf]
        %v427 = vld [vmem:[%s233 + $0x414] sm:$0xff]
        %v428 = vld [vmem:[%s233 + $0x41c] sm:$0xff]
        %v429 = vld [vmem:[%s233 + $0x424] sm:$0xff]
        %v430 = vld [vmem:[%s233 + $0x42c] sm:$0xff]
        %v431 = vld [vmem:[%s233 + $0x434] sm:$0xf]
        %v432 = vld [vmem:[%s233 + $0x438] sm:$0xff]
        %v433 = vld [vmem:[%s233 + $0x440] sm:$0xff]
        %v434 = vld [vmem:[%s233 + $0x448] sm:$0xff]
        %v435 = vld [vmem:[%s233 + $0x450] sm:$0xff]
        %v436 = vld [vmem:[%s233 + $0x458] sm:$0xf]
        %v437 = vld [vmem:[%s233 + $0x45c] sm:$0xff]
        %v438 = vld [vmem:[%s233 + $0x464] sm:$0xff]
        %v439 = vld [vmem:[%s233 + $0x46c] sm:$0xff]
        %v440 = vld [vmem:[%s233 + $0x474] sm:$0xff]
        %v441 = vld [vmem:[%s233 + $0x47c] sm:$0xf]
        %v442 = vld [vmem:[%s233 + $0x480] sm:$0xff]
        %v443 = vld [vmem:[%s233 + $0x488] sm:$0xff]
        %v444 = vld [vmem:[%s233 + $0x490] sm:$0xff]
        %v445 = vld [vmem:[%s233 + $0x498] sm:$0xff]
        %v446 = vld [vmem:[%s233 + $0x4a0] sm:$0xf]
        %v447 = vld [vmem:[%s233 + $0x4a4] sm:$0xff]
        %v448 = vld [vmem:[%s233 + $0x4ac] sm:$0xff]
        %v449 = vld [vmem:[%s233 + $0x4b4] sm:$0xff]
        %v450 = vld [vmem:[%s233 + $0x4bc] sm:$0xff]
        %v451 = vld [vmem:[%s233 + $0x4c4] sm:$0xf]
        %v452 = vld [vmem:[%s233 + $0x4c8] sm:$0xff]
        %v453 = vld [vmem:[%s233 + $0x4d0] sm:$0xff]
        %v454 = vld [vmem:[%s233 + $0x4d8] sm:$0xff]
        %v455 = vld [vmem:[%s233 + $0x4e0] sm:$0xff]
        %v456 = vld [vmem:[%s233 + $0x4e8] sm:$0xf]
        %v457 = vld [vmem:[%s233 + $0x4ec] sm:$0xff]
        %v458 = vld [vmem:[%s233 + $0x4f4] sm:$0xff]
        %v459 = vld [vmem:[%s233 + $0x4fc] sm:$0xff]
        %v460 = vld [vmem:[%s233 + $0x504] sm:$0xff]
        %v461 = vld [vmem:[%s233 + $0x50c] sm:$0xf]
        %v462 = vld [vmem:[%s233 + $0x510] sm:$0xff]
        %v463 = vld [vmem:[%s233 + $0x518] sm:$0xff]
        %v464 = vld [vmem:[%s233 + $0x520] sm:$0xff]
        %v465 = vld [vmem:[%s233 + $0x528] sm:$0xff]
        %v466 = vld [vmem:[%s233 + $0x530] sm:$0xf]
        %v467 = vld [vmem:[%s233 + $0x534] sm:$0xff]
        %v468 = vld [vmem:[%s233 + $0x53c] sm:$0xff]
        %v469 = vld [vmem:[%s233 + $0x544] sm:$0xff]
        %v470 = vld [vmem:[%s233 + $0x54c] sm:$0xff]
        %v471 = vld [vmem:[%s233 + $0x554] sm:$0xf]
        %v472 = vld [vmem:[%s233 + $0x558] sm:$0xff]
        %v473 = vld [vmem:[%s233 + $0x560] sm:$0xff]
        %v474 = vld [vmem:[%s233 + $0x568] sm:$0xff]
        %v475 = vld [vmem:[%s233 + $0x570] sm:$0xff]
        %v476 = vld [vmem:[%s233 + $0x578] sm:$0xf]
        %v477 = vld [vmem:[%s233 + $0x57c] sm:$0xff]
        %v478 = vld [vmem:[%s233 + $0x584] sm:$0xff]
        %v479 = vld [vmem:[%s233 + $0x58c] sm:$0xff]
        %v480 = vld [vmem:[%s233 + $0x594] sm:$0xff]
        %v481 = vld [vmem:[%s233 + $0x59c] sm:$0xf]
        %v482 = vld [vmem:[%s233 + $0x5a0] sm:$0xff]
        %v483 = vld [vmem:[%s233 + $0x5a8] sm:$0xff]
        %v484 = vld [vmem:[%s233 + $0x5b0] sm:$0xff]
        %v485 = vld [vmem:[%s233 + $0x5b8] sm:$0xff]
        %v486 = vld [vmem:[%s233 + $0x5c0] sm:$0xf]
        %v487 = vld [vmem:[%s233 + $0x5c4] sm:$0xff]
        %v488 = vld [vmem:[%s233 + $0x5cc] sm:$0xff]
        %v489 = vld [vmem:[%s233 + $0x5d4] sm:$0xff]
        %v490 = vld [vmem:[%s233 + $0x5dc] sm:$0xff]
        %v491 = vld [vmem:[%s233 + $0x5e4] sm:$0xf]
        %v492 = vld [vmem:[%s233 + $0x5e8] sm:$0xff]
        %v493 = vld [vmem:[%s233 + $0x5f0] sm:$0xff]
        %v494 = vld [vmem:[%s233 + $0x5f8] sm:$0xff]
        %v495 = vld [vmem:[%s233 + $0x600] sm:$0xff]
        %v496 = vld [vmem:[%s233 + $0x608] sm:$0xf]
        %v497 = vld [vmem:[%s233 + $0x60c] sm:$0xff]
        %v498 = vld [vmem:[%s233 + $0x614] sm:$0xff]
        %v499 = vld [vmem:[%s233 + $0x61c] sm:$0xff]
        %v500 = vld [vmem:[%s233 + $0x624] sm:$0xff]
        %v501 = vld [vmem:[%s233 + $0x62c] sm:$0xf]
        %v502 = vld [vmem:[%s233 + $0x630] sm:$0xff]
        %v503 = vld [vmem:[%s233 + $0x638] sm:$0xff]
        %v504 = vld [vmem:[%s233 + $0x640] sm:$0xff]
        %v505 = vld [vmem:[%s233 + $0x648] sm:$0xff]
        %v506 = vld [vmem:[%s233 + $0x650] sm:$0xf]
        %v507 = vld [vmem:[%s233 + $0x654] sm:$0xff]
        %v508 = vld [vmem:[%s233 + $0x65c] sm:$0xff]
        %v509 = vld [vmem:[%s233 + $0x664] sm:$0xff]
        %v510 = vld [vmem:[%s233 + $0x66c] sm:$0xff]
        %v511 = vld [vmem:[%s233 + $0x674] sm:$0xf]
        %v512 = vld [vmem:[%s233 + $0x678] sm:$0xff]
        %v513 = vld [vmem:[%s233 + $0x680] sm:$0xff]
        %v514 = vld [vmem:[%s233 + $0x688] sm:$0xff]
        %v515 = vld [vmem:[%s233 + $0x690] sm:$0xff]
        %v516 = vld [vmem:[%s233 + $0x698] sm:$0xf]
        %v517 = vld [vmem:[%s233 + $0x69c] sm:$0xff]
        %v518 = vld [vmem:[%s233 + $0x6a4] sm:$0xff]
        %v519 = vld [vmem:[%s233 + $0x6ac] sm:$0xff]
        %v520 = vld [vmem:[%s233 + $0x6b4] sm:$0xff]
        %v521 = vld [vmem:[%s233 + $0x6bc] sm:$0xf]
        %v522 = vld [vmem:[%s233 + $0x6c0] sm:$0xff]
        %v523 = vld [vmem:[%s233 + $0x6c8] sm:$0xff]
        %v524 = vld [vmem:[%s233 + $0x6d0] sm:$0xff]
        %v525 = vld [vmem:[%s233 + $0x6d8] sm:$0xff]
        %v526 = vld [vmem:[%s233 + $0x6e0] sm:$0xf]
        %v527 = vld [vmem:[%s233 + $0x6e4] sm:$0xff]
        %v528 = vld [vmem:[%s233 + $0x6ec] sm:$0xff]
        %v529 = vld [vmem:[%s233 + $0x6f4] sm:$0xff]
        %v530 = vld [vmem:[%s233 + $0x6fc] sm:$0xff]
        %v531 = vld [vmem:[%s233 + $0x704] sm:$0xf]
        %v532 = vld [vmem:[%s233 + $0x708] sm:$0xff]
        %v533 = vld [vmem:[%s233 + $0x710] sm:$0xff]
        %v534 = vld [vmem:[%s233 + $0x718] sm:$0xff]
        %v535 = vld [vmem:[%s233 + $0x720] sm:$0xff]
        %v536 = vld [vmem:[%s233 + $0x728] sm:$0xf]
        %v537 = vld [vmem:[%s233 + $0x72c] sm:$0xff]
        %v538 = vld [vmem:[%s233 + $0x734] sm:$0xff]
        %v539 = vld [vmem:[%s233 + $0x73c] sm:$0xff]
        %v540 = vld [vmem:[%s233 + $0x744] sm:$0xff]
        %v541 = vld [vmem:[%s233 + $0x74c] sm:$0xf]
        %v542 = vld [vmem:[%s233 + $0x750] sm:$0xff]
        %v543 = vld [vmem:[%s233 + $0x758] sm:$0xff]
        %v544 = vld [vmem:[%s233 + $0x760] sm:$0xff]
        %v545 = vld [vmem:[%s233 + $0x768] sm:$0xff]
        %v546 = vld [vmem:[%s233 + $0x770] sm:$0xf]
        %v547 = vld [vmem:[%s233 + $0x774] sm:$0xff]
        %v548 = vld [vmem:[%s233 + $0x77c] sm:$0xff]
        %v549 = vld [vmem:[%s233 + $0x784] sm:$0xff]
        %v550 = vld [vmem:[%s233 + $0x78c] sm:$0xff]
        %v551 = vld [vmem:[%s233 + $0x794] sm:$0xf]
        %v552 = vld [vmem:[%s233 + $0x798] sm:$0xff]
        %v553 = vld [vmem:[%s233 + $0x7a0] sm:$0xff]
        %v554 = vld [vmem:[%s233 + $0x7a8] sm:$0xff]
        %v555 = vld [vmem:[%s233 + $0x7b0] sm:$0xff]
        %v556 = vld [vmem:[%s233 + $0x7b8] sm:$0xf]
        %v557 = vld [vmem:[%s233 + $0x7bc] sm:$0xff]
        %v558 = vld [vmem:[%s233 + $0x7c4] sm:$0xff]
        %v559 = vld [vmem:[%s233 + $0x7cc] sm:$0xff]
        %v560 = vld [vmem:[%s233 + $0x7d4] sm:$0xff]
        %v561 = vld [vmem:[%s233 + $0x7dc] sm:$0xf]
        %v562 = vld [vmem:[%s233 + $0x7e0] sm:$0xff]
        %v563 = vld [vmem:[%s233 + $0x7e8] sm:$0xff]
        %v564 = vld [vmem:[%s233 + $0x7f0] sm:$0xff]
        %v565 = vld [vmem:[%s233 + $0x7f8] sm:$0xff]
        %v566 = vld [vmem:[%s233 + $0x800] sm:$0xf]
        %v567 = vld [vmem:[%s233 + $0x804] sm:$0xff]
        %v568 = vld [vmem:[%s233 + $0x80c] sm:$0xff]
        %v569 = vld [vmem:[%s233 + $0x814] sm:$0xff]
        %v570 = vld [vmem:[%s233 + $0x81c] sm:$0xff]
        %v571 = vld [vmem:[%s233 + $0x824] sm:$0xf]
        %v572 = vld [vmem:[%s233 + $0x828] sm:$0xff]
        %v573 = vld [vmem:[%s233 + $0x830] sm:$0xff]
        %v574 = vld [vmem:[%s233 + $0x838] sm:$0xff]
        %v575 = vld [vmem:[%s233 + $0x840] sm:$0xff]
        %v576 = vld [vmem:[%s233 + $0x848] sm:$0xf]
        %v577 = vld [vmem:[%s233 + $0x84c] sm:$0xff]
        %v578 = vld [vmem:[%s233 + $0x854] sm:$0xff]
        %v579 = vld [vmem:[%s233 + $0x85c] sm:$0xff]
        %v580 = vld [vmem:[%s233 + $0x864] sm:$0xff]
        %v581 = vld [vmem:[%s233 + $0x86c] sm:$0xf]
        %v582 = vld [vmem:[%s233 + $0x870] sm:$0xff]
        %v583 = vld [vmem:[%s233 + $0x878] sm:$0xff]
        %v584 = vld [vmem:[%s233 + $0x880] sm:$0xff]
        %v585 = vld [vmem:[%s233 + $0x888] sm:$0xff]
        %v586 = vld [vmem:[%s233 + $0x890] sm:$0xf]
        %v587 = vld [vmem:[%s233 + $0x894] sm:$0xff]
        %v588 = vld [vmem:[%s233 + $0x89c] sm:$0xff]
        %v589 = vld [vmem:[%s233 + $0x8a4] sm:$0xff]
        %v590 = vld [vmem:[%s233 + $0x8ac] sm:$0xff]
        %v591 = vld [vmem:[%s233 + $0x8b4] sm:$0xf]
        %v592 = vld [vmem:[%s233 + $0x8b8] sm:$0xff]
        %v593 = vld [vmem:[%s233 + $0x8c0] sm:$0xff]
        %v594 = vld [vmem:[%s233 + $0x8c8] sm:$0xff]
        %v595 = vld [vmem:[%s233 + $0x8d0] sm:$0xff]
        %v596 = vld [vmem:[%s233 + $0x8d8] sm:$0xf]
        %v597 = vld [vmem:[%s233 + $0x8dc] sm:$0xff]
        %v598 = vld [vmem:[%s233 + $0x8e4] sm:$0xff]
        %v599 = vld [vmem:[%s233 + $0x8ec] sm:$0xff]
        %v600 = vld [vmem:[%s233 + $0x8f4] sm:$0xff]
        %v601 = vld [vmem:[%s233 + $0x8fc] sm:$0xf]
        %v602 = vld [vmem:[%s233 + $0x900] sm:$0xff]
        %v603 = vld [vmem:[%s233 + $0x908] sm:$0xff]
        %v604 = vld [vmem:[%s233 + $0x910] sm:$0xff]
        %v605 = vld [vmem:[%s233 + $0x918] sm:$0xff]
        %v606 = vld [vmem:[%s233 + $0x920] sm:$0xf]
        %v607 = vld [vmem:[%s233 + $0x924] sm:$0xff]
        %v608 = vld [vmem:[%s233 + $0x92c] sm:$0xff]
        %v609 = vld [vmem:[%s233 + $0x934] sm:$0xff]
        %v610 = vld [vmem:[%s233 + $0x93c] sm:$0xff]
        %v611 = vld [vmem:[%s233 + $0x944] sm:$0xf]
        %v612 = vld [vmem:[%s233 + $0x948] sm:$0xff]
        %v613 = vld [vmem:[%s233 + $0x950] sm:$0xff]
        %v614 = vld [vmem:[%s233 + $0x958] sm:$0xff]
        %v615 = vld [vmem:[%s233 + $0x960] sm:$0xff]
        %v616 = vld [vmem:[%s233 + $0x968] sm:$0xf]
        %v617 = vld [vmem:[%s233 + $0x96c] sm:$0xff]
        %v618 = vld [vmem:[%s233 + $0x974] sm:$0xff]
        %v619 = vld [vmem:[%s233 + $0x97c] sm:$0xff]
        %v620 = vld [vmem:[%s233 + $0x984] sm:$0xff]
        %v621 = vld [vmem:[%s233 + $0x98c] sm:$0xf]
        %v622 = vld [vmem:[%s233 + $0x990] sm:$0xff]
        %v623 = vld [vmem:[%s233 + $0x998] sm:$0xff]
        %v624 = vld [vmem:[%s233 + $0x9a0] sm:$0xff]
        %v625 = vld [vmem:[%s233 + $0x9a8] sm:$0xff]
        %v626 = vld [vmem:[%s233 + $0x9b0] sm:$0xf]
        %v627 = vld [vmem:[%s233 + $0x9b4] sm:$0xff]
        %v628 = vld [vmem:[%s233 + $0x9bc] sm:$0xff]
        %v629 = vld [vmem:[%s233 + $0x9c4] sm:$0xff]
        %v630 = vld [vmem:[%s233 + $0x9cc] sm:$0xff]
        %v631 = vld [vmem:[%s233 + $0x9d4] sm:$0xf]
        %v632 = vld [vmem:[%s233 + $0x9d8] sm:$0xff]
        %v633 = vld [vmem:[%s233 + $0x9e0] sm:$0xff]
        %v634 = vld [vmem:[%s233 + $0x9e8] sm:$0xff]
        %v635 = vld [vmem:[%s233 + $0x9f0] sm:$0xff]
        %v636 = vld [vmem:[%s233 + $0x9f8] sm:$0xf]
        %v637 = vld [vmem:[%s233 + $0x9fc] sm:$0xff]
        %v638 = vld [vmem:[%s233 + $0xa04] sm:$0xff]
        %v639 = vld [vmem:[%s233 + $0xa0c] sm:$0xff]
        %v640 = vld [vmem:[%s233 + $0xa14] sm:$0xff]
        %v641 = vld [vmem:[%s233 + $0xa1c] sm:$0xf]
        %v642 = vld [vmem:[%s233 + $0xa20] sm:$0xff]
        %v643 = vld [vmem:[%s233 + $0xa28] sm:$0xff]
        %v644 = vld [vmem:[%s233 + $0xa30] sm:$0xff]
        %v645 = vld [vmem:[%s233 + $0xa38] sm:$0xff]
        %v646 = vld [vmem:[%s233 + $0xa40] sm:$0xf]
        %v647 = vld [vmem:[%s233 + $0xa44] sm:$0xff]
        %v648 = vld [vmem:[%s233 + $0xa4c] sm:$0xff]
        %v649 = vld [vmem:[%s233 + $0xa54] sm:$0xff]
        %v650 = vld [vmem:[%s233 + $0xa5c] sm:$0xff]
        %v651 = vld [vmem:[%s233 + $0xa64] sm:$0xf]
        %v652 = vld [vmem:[%s233 + $0xa68] sm:$0xff]
        %v653 = vld [vmem:[%s233 + $0xa70] sm:$0xff]
        %v654 = vld [vmem:[%s233 + $0xa78] sm:$0xff]
        %v655 = vld [vmem:[%s233 + $0xa80] sm:$0xff]
        %v656 = vld [vmem:[%s233 + $0xa88] sm:$0xf]
        %v657 = vld [vmem:[%s233 + $0xa8c] sm:$0xff]
        %v658 = vld [vmem:[%s233 + $0xa94] sm:$0xff]
        %v659 = vld [vmem:[%s233 + $0xa9c] sm:$0xff]
        %v660 = vld [vmem:[%s233 + $0xaa4] sm:$0xff]
        %v661 = vld [vmem:[%s233 + $0xaac] sm:$0xf]
        %v662 = vld [vmem:[%s233 + $0xab0] sm:$0xff]
        %v663 = vld [vmem:[%s233 + $0xab8] sm:$0xff]
        %v664 = vld [vmem:[%s233 + $0xac0] sm:$0xff]
        %v665 = vld [vmem:[%s233 + $0xac8] sm:$0xff]
        %v666 = vld [vmem:[%s233 + $0xad0] sm:$0xf]
        %v667 = vld [vmem:[%s233 + $0xad4] sm:$0xff]
        %v668 = vld [vmem:[%s233 + $0xadc] sm:$0xff]
        %v669 = vld [vmem:[%s233 + $0xae4] sm:$0xff]
        %v670 = vld [vmem:[%s233 + $0xaec] sm:$0xff]
        %v671 = vld [vmem:[%s233 + $0xaf4] sm:$0xf]
        %v672 = vld [vmem:[%s233 + $0xaf8] sm:$0xff]
        %v673 = vld [vmem:[%s233 + $0xb00] sm:$0xff]
        %v674 = vld [vmem:[%s233 + $0xb08] sm:$0xff]
        %v675 = vld [vmem:[%s233 + $0xb10] sm:$0xff]
        %v676 = vld [vmem:[%s233 + $0xb18] sm:$0xf]
        %v677 = vld [vmem:[%s233 + $0xb1c] sm:$0xff]
        %v678 = vld [vmem:[%s233 + $0xb24] sm:$0xff]
        %v679 = vld [vmem:[%s233 + $0xb2c] sm:$0xff]
        %v680 = vld [vmem:[%s233 + $0xb34] sm:$0xff]
        %v681 = vld [vmem:[%s233 + $0xb3c] sm:$0xf]
        %v682 = vld [vmem:[%s233 + $0xb40] sm:$0xff]
        %v683 = vld [vmem:[%s233 + $0xb48] sm:$0xff]
        %v684 = vld [vmem:[%s233 + $0xb50] sm:$0xff]
        %v685 = vld [vmem:[%s233 + $0xb58] sm:$0xff]
        %v686 = vld [vmem:[%s233 + $0xb60] sm:$0xf]
        %v687 = vld [vmem:[%s233 + $0xb64] sm:$0xff]
        %v688 = vld [vmem:[%s233 + $0xb6c] sm:$0xff]
        %v689 = vld [vmem:[%s233 + $0xb74] sm:$0xff]
        %v690 = vld [vmem:[%s233 + $0xb7c] sm:$0xff]
        %v691 = vld [vmem:[%s233 + $0xb84] sm:$0xf]
        %v692 = vld [vmem:[%s233 + $0xb88] sm:$0xff]
        %v693 = vld [vmem:[%s233 + $0xb90] sm:$0xff]
        %v694 = vld [vmem:[%s233 + $0xb98] sm:$0xff]
        %v695 = vld [vmem:[%s233 + $0xba0] sm:$0xff]
        %v696 = vld [vmem:[%s233 + $0xba8] sm:$0xf]
        %v697 = vld [vmem:[%s233 + $0xbac] sm:$0xff]
        %v698 = vld [vmem:[%s233 + $0xbb4] sm:$0xff]
        %v699 = vld [vmem:[%s233 + $0xbbc] sm:$0xff]
        %v700 = vld [vmem:[%s233 + $0xbc4] sm:$0xff]
        %v701 = vld [vmem:[%s233 + $0xbcc] sm:$0xf]
        %v702 = vld [vmem:[%s233 + $0xbd0] sm:$0xff]
        %v703 = vld [vmem:[%s233 + $0xbd8] sm:$0xff]
        %v704 = vld [vmem:[%s233 + $0xbe0] sm:$0xff]
        %v705 = vld [vmem:[%s233 + $0xbe8] sm:$0xff]
        %v706 = vld [vmem:[%s233 + $0xbf0] sm:$0xf]
        %v707 = vld [vmem:[%s233 + $0xbf4] sm:$0xff]
        %v708 = vld [vmem:[%s233 + $0xbfc] sm:$0xff]
        %v709 = vld [vmem:[%s233 + $0xc04] sm:$0xff]
        %v710 = vld [vmem:[%s233 + $0xc0c] sm:$0xff]
        %v711 = vld [vmem:[%s233 + $0xc14] sm:$0xf]
        %v712 = vld [vmem:[%s233 + $0xc18] sm:$0xff]
        %v713 = vld [vmem:[%s233 + $0xc20] sm:$0xff]
        %v714 = vld [vmem:[%s233 + $0xc28] sm:$0xff]
        %v715 = vld [vmem:[%s233 + $0xc30] sm:$0xff]
        %v716 = vld [vmem:[%s233 + $0xc38] sm:$0xf]
        %v717 = vld [vmem:[%s233 + $0xc3c] sm:$0xff]
        %v718 = vld [vmem:[%s233 + $0xc44] sm:$0xff]
        %v719 = vld [vmem:[%s233 + $0xc4c] sm:$0xff]
        %v720 = vld [vmem:[%s233 + $0xc54] sm:$0xff]
        %v721 = vld [vmem:[%s233 + $0xc5c] sm:$0xf]
        %v722 = vld [vmem:[%s233 + $0xc60] sm:$0xff]
        %v723 = vld [vmem:[%s233 + $0xc68] sm:$0xff]
        %v724 = vld [vmem:[%s233 + $0xc70] sm:$0xff]
        %v725 = vld [vmem:[%s233 + $0xc78] sm:$0xff]
        %v726 = vld [vmem:[%s233 + $0xc80] sm:$0xf]
        %v727 = vld [vmem:[%s233 + $0xc84] sm:$0xff]
        %v728 = vld [vmem:[%s233 + $0xc8c] sm:$0xff]
        %v729 = vld [vmem:[%s233 + $0xc94] sm:$0xff]
        %v730 = vld [vmem:[%s233 + $0xc9c] sm:$0xff]
        %v731 = vld [vmem:[%s233 + $0xca4] sm:$0xf]
        %v732 = vld [vmem:[%s233 + $0xca8] sm:$0xff]
        %v733 = vld [vmem:[%s233 + $0xcb0] sm:$0xff]
        %v734 = vld [vmem:[%s233 + $0xcb8] sm:$0xff]
        %v735 = vld [vmem:[%s233 + $0xcc0] sm:$0xff]
        %v736 = vld [vmem:[%s233 + $0xcc8] sm:$0xf]
        %v737 = vld [vmem:[%s233 + $0xccc] sm:$0xff]
        %v738 = vld [vmem:[%s233 + $0xcd4] sm:$0xff]
        %v739 = vld [vmem:[%s233 + $0xcdc] sm:$0xff]
        %v740 = vld [vmem:[%s233 + $0xce4] sm:$0xff]
        %v741 = vld [vmem:[%s233 + $0xcec] sm:$0xf]
        %v742 = vld [vmem:[%s233 + $0xcf0] sm:$0xff]
        %v743 = vld [vmem:[%s233 + $0xcf8] sm:$0xff]
        %v744 = vld [vmem:[%s233 + $0xd00] sm:$0xff]
        %v745 = vld [vmem:[%s233 + $0xd08] sm:$0xff]
        %v746 = vld [vmem:[%s233 + $0xd10] sm:$0xf]
        %v747 = vld [vmem:[%s233 + $0xd14] sm:$0xff]
        %v748 = vld [vmem:[%s233 + $0xd1c] sm:$0xff]
        %v749 = vld [vmem:[%s233 + $0xd24] sm:$0xff]
        %v750 = vld [vmem:[%s233 + $0xd2c] sm:$0xff]
        %v751 = vld [vmem:[%s233 + $0xd34] sm:$0xf]
        %v752 = vld [vmem:[%s233 + $0xd38] sm:$0xff]
        %v753 = vld [vmem:[%s233 + $0xd40] sm:$0xff]
        %v754 = vld [vmem:[%s233 + $0xd48] sm:$0xff]
        %v755 = vld [vmem:[%s233 + $0xd50] sm:$0xff]
        %v756 = vld [vmem:[%s233 + $0xd58] sm:$0xf]
        %v757 = vld [vmem:[%s233 + $0xd5c] sm:$0xff]
        %v758 = vld [vmem:[%s233 + $0xd64] sm:$0xff]
        %v759 = vld [vmem:[%s233 + $0xd6c] sm:$0xff]
        %v760 = vld [vmem:[%s233 + $0xd74] sm:$0xff]
        %v761 = vld [vmem:[%s233 + $0xd7c] sm:$0xf]
        %v762 = vld [vmem:[%s233 + $0xd80] sm:$0xff]
        %v763 = vld [vmem:[%s233 + $0xd88] sm:$0xff]
        %v764 = vld [vmem:[%s233 + $0xd90] sm:$0xff]
        %v765 = vld [vmem:[%s233 + $0xd98] sm:$0xff]
        %v766 = vld [vmem:[%s233 + $0xda0] sm:$0xf]
        %v767 = vld [vmem:[%s233 + $0xda4] sm:$0xff]
        %v768 = vld [vmem:[%s233 + $0xdac] sm:$0xff]
        %v769 = vld [vmem:[%s233 + $0xdb4] sm:$0xff]
        %v770 = vld [vmem:[%s233 + $0xdbc] sm:$0xff]
        %v771 = vld [vmem:[%s233 + $0xdc4] sm:$0xf]
        %v772 = vld [vmem:[%s233 + $0xdc8] sm:$0xff]
        %v773 = vld [vmem:[%s233 + $0xdd0] sm:$0xff]
        %v774 = vld [vmem:[%s233 + $0xdd8] sm:$0xff]
        %v775 = vld [vmem:[%s233 + $0xde0] sm:$0xff]
        %v776 = vld [vmem:[%s233 + $0xde8] sm:$0xf]
        %v777 = vld [vmem:[%s233 + $0xdec] sm:$0xff]
        %v778 = vld [vmem:[%s233 + $0xdf4] sm:$0xff]
        %v779 = vld [vmem:[%s233 + $0xdfc] sm:$0xff]
        %v780 = vld [vmem:[%s233 + $0xe04] sm:$0xff]
        %v781 = vld [vmem:[%s233 + $0xe0c] sm:$0xf]
        %v782 = vld [vmem:[%s233 + $0xe10] sm:$0xff]
        %v783 = vld [vmem:[%s233 + $0xe18] sm:$0xff]
        %v784 = vld [vmem:[%s233 + $0xe20] sm:$0xff]
        %v785 = vld [vmem:[%s233 + $0xe28] sm:$0xff]
        %v786 = vld [vmem:[%s233 + $0xe30] sm:$0xf]
        %v787 = vld [vmem:[%s233 + $0xe34] sm:$0xff]
        %v788 = vld [vmem:[%s233 + $0xe3c] sm:$0xff]
        %v789 = vld [vmem:[%s233 + $0xe44] sm:$0xff]
        %v790 = vld [vmem:[%s233 + $0xe4c] sm:$0xff]
        %v791 = vld [vmem:[%s233 + $0xe54] sm:$0xf]
        %v792 = vld [vmem:[%s233 + $0xe58] sm:$0xff]
        %v793 = vld [vmem:[%s233 + $0xe60] sm:$0xff]
        %v794 = vld [vmem:[%s233 + $0xe68] sm:$0xff]
        %v795 = vld [vmem:[%s233 + $0xe70] sm:$0xff]
        %v796 = vld [vmem:[%s233 + $0xe78] sm:$0xf]
        %v797 = vld [vmem:[%s233 + $0xe7c] sm:$0xff]
        %v798 = vld [vmem:[%s233 + $0xe84] sm:$0xff]
        %v799 = vld [vmem:[%s233 + $0xe8c] sm:$0xff]
        %v800 = vld [vmem:[%s233 + $0xe94] sm:$0xff]
        %v801 = vld [vmem:[%s233 + $0xe9c] sm:$0xf]
        %v802 = vld [vmem:[%s233 + $0xea0] sm:$0xff]
        %v803 = vld [vmem:[%s233 + $0xea8] sm:$0xff]
        %v804 = vld [vmem:[%s233 + $0xeb0] sm:$0xff]
        %v805 = vld [vmem:[%s233 + $0xeb8] sm:$0xff]
        %v806 = vld [vmem:[%s233 + $0xec0] sm:$0xf]
        %v807 = vld [vmem:[%s233 + $0xec4] sm:$0xff]
        %v808 = vld [vmem:[%s233 + $0xecc] sm:$0xff]
        %v809 = vld [vmem:[%s233 + $0xed4] sm:$0xff]
        %v810 = vld [vmem:[%s233 + $0xedc] sm:$0xff]
        %v811 = vld [vmem:[%s233 + $0xee4] sm:$0xf]
        %v812 = vld [vmem:[%s233 + $0xee8] sm:$0xff]
        %v813 = vld [vmem:[%s233 + $0xef0] sm:$0xff]
        %v814 = vld [vmem:[%s233 + $0xef8] sm:$0xff]
        %v815 = vld [vmem:[%s233 + $0xf00] sm:$0xff]
        %v816 = vld [vmem:[%s233 + $0xf08] sm:$0xf]
        %v817 = vld [vmem:[%s233 + $0xf0c] sm:$0xff]
        %v818 = vld [vmem:[%s233 + $0xf14] sm:$0xff]
        %v819 = vld [vmem:[%s233 + $0xf1c] sm:$0xff]
        %v820 = vld [vmem:[%s233 + $0xf24] sm:$0xff]
        %v821 = vld [vmem:[%s233 + $0xf2c] sm:$0xf]
        %v822 = vld [vmem:[%s233 + $0xf30] sm:$0xff]
        %v823 = vld [vmem:[%s233 + $0xf38] sm:$0xff]
        %v824 = vld [vmem:[%s233 + $0xf40] sm:$0xff]
        %v825 = vld [vmem:[%s233 + $0xf48] sm:$0xff]
        %v826 = vld [vmem:[%s233 + $0xf50] sm:$0xf]
        %v827 = vld [vmem:[%s233 + $0xf54] sm:$0xff]
        %v828 = vld [vmem:[%s233 + $0xf5c] sm:$0xff]
        %v829 = vld [vmem:[%s233 + $0xf64] sm:$0xff]
        %v830 = vld [vmem:[%s233 + $0xf6c] sm:$0xff]
        %v831 = vld [vmem:[%s233 + $0xf74] sm:$0xf]
        %v832 = vld [vmem:[%s233 + $0xf78] sm:$0xff]
        %v833 = vld [vmem:[%s233 + $0xf80] sm:$0xff]
        %v834 = vld [vmem:[%s233 + $0xf88] sm:$0xff]
        %v835 = vld [vmem:[%s233 + $0xf90] sm:$0xff]
        %v836 = vld [vmem:[%s233 + $0xf98] sm:$0xf]
        %v837 = vld [vmem:[%s233 + $0xf9c] sm:$0xff]
        %v838 = vld [vmem:[%s233 + $0xfa4] sm:$0xff]
        %v839 = vld [vmem:[%s233 + $0xfac] sm:$0xff]
        %v840 = vld [vmem:[%s233 + $0xfb4] sm:$0xff]
        %v841 = vld [vmem:[%s233 + $0xfbc] sm:$0xf]
        %843 = vst [vmem:[#allocation1] ss:$9 sm:$0xff] %v281
        %v844 = vld [vmem:[#allocation1] sm:$0xff]
        %v845 = vld [vmem:[#allocation1 + $0x9] sm:$0xff]
        %v846 = vld [vmem:[#allocation1 + $0x12] sm:$0xff]
        %v847 = vld [vmem:[#allocation1 + $0x1b] sm:$0xff]
        %v848 = vld [vmem:[#allocation1 + $0x24] sm:$0xff]
        %v849 = vld [vmem:[#allocation1 + $0x2d] sm:$0xff]
        %v850 = vld [vmem:[#allocation1 + $0x36] sm:$0xff]
        %v1418 = vunpack.c.l.b16 %v282
        %v1419 = vunpack.c.h.b16 %v282
        %v1420 = vunpack.c.l.b16 %v283
        %v1421 = vunpack.c.h.b16 %v283
        %v1422 = vunpack.c.l.b16 %v284
        %v1423 = vunpack.c.h.b16 %v284
        %v1424 = vunpack.c.l.b16 %v285
        %v1425 = vunpack.c.h.b16 %v285
        %v1426 = vunpack.c.l.b16 %v286
        %v1427 = vunpack.c.l.b16 %v287
        %v1428 = vunpack.c.h.b16 %v287
        %v1429 = vunpack.c.l.b16 %v288
        %v1430 = vunpack.c.h.b16 %v288
        %v1431 = vunpack.c.l.b16 %v289
        %v1432 = vunpack.c.h.b16 %v289
        %v1433 = vunpack.c.l.b16 %v290
        %v1434 = vunpack.c.h.b16 %v290
        %v1435 = vunpack.c.l.b16 %v291
        %v1436 = vunpack.c.l.b16 %v292
        %v1437 = vunpack.c.h.b16 %v292
        %v1438 = vunpack.c.l.b16 %v293
        %v1439 = vunpack.c.h.b16 %v293
        %v1440 = vunpack.c.l.b16 %v294
        %v1441 = vunpack.c.h.b16 %v294
        %v1442 = vunpack.c.l.b16 %v295
        %v1443 = vunpack.c.h.b16 %v295
        %v1444 = vunpack.c.l.b16 %v296
        %v1445 = vunpack.c.l.b16 %v297
        %v1446 = vunpack.c.h.b16 %v297
        %v1447 = vunpack.c.l.b16 %v298
        %v1448 = vunpack.c.h.b16 %v298
        %v1449 = vunpack.c.l.b16 %v299
        %v1450 = vunpack.c.h.b16 %v299
        %v1451 = vunpack.c.l.b16 %v300
        %v1452 = vunpack.c.h.b16 %v300
        %v1453 = vunpack.c.l.b16 %v301
        %v1454 = vunpack.c.l.b16 %v302
        %v1455 = vunpack.c.h.b16 %v302
        %v1456 = vunpack.c.l.b16 %v303
        %v1457 = vunpack.c.h.b16 %v303
        %v1458 = vunpack.c.l.b16 %v304
        %v1459 = vunpack.c.h.b16 %v304
        %v1460 = vunpack.c.l.b16 %v305
        %v1461 = vunpack.c.h.b16 %v305
        %v1462 = vunpack.c.l.b16 %v306
        %v1463 = vunpack.c.l.b16 %v307
        %v1464 = vunpack.c.h.b16 %v307
        %v1465 = vunpack.c.l.b16 %v308
        %v1466 = vunpack.c.h.b16 %v308
        %v1467 = vunpack.c.l.b16 %v309
        %v1468 = vunpack.c.h.b16 %v309
        %v1469 = vunpack.c.l.b16 %v310
        %v1470 = vunpack.c.h.b16 %v310
        %v1471 = vunpack.c.l.b16 %v311
        %v1472 = vunpack.c.l.b16 %v312
        %v1473 = vunpack.c.h.b16 %v312
        %v1474 = vunpack.c.l.b16 %v313
        %v1475 = vunpack.c.h.b16 %v313
        %v1476 = vunpack.c.l.b16 %v314
        %v1477 = vunpack.c.h.b16 %v314
        %v1478 = vunpack.c.l.b16 %v315
        %v1479 = vunpack.c.h.b16 %v315
        %v1480 = vunpack.c.l.b16 %v316
        %v1481 = vunpack.c.l.b16 %v317
        %v1482 = vunpack.c.h.b16 %v317
        %v1483 = vunpack.c.l.b16 %v318
        %v1484 = vunpack.c.h.b16 %v318
        %v1485 = vunpack.c.l.b16 %v319
        %v1486 = vunpack.c.h.b16 %v319
        %v1487 = vunpack.c.l.b16 %v320
        %v1488 = vunpack.c.h.b16 %v320
        %v1489 = vunpack.c.l.b16 %v321
        %v1490 = vunpack.c.l.b16 %v322
        %v1491 = vunpack.c.h.b16 %v322
        %v1492 = vunpack.c.l.b16 %v323
        %v1493 = vunpack.c.h.b16 %v323
        %v1494 = vunpack.c.l.b16 %v324
        %v1495 = vunpack.c.h.b16 %v324
        %v1496 = vunpack.c.l.b16 %v325
        %v1497 = vunpack.c.h.b16 %v325
        %v1498 = vunpack.c.l.b16 %v326
        %v1499 = vunpack.c.l.b16 %v327
        %v1500 = vunpack.c.h.b16 %v327
        %v1501 = vunpack.c.l.b16 %v328
        %v1502 = vunpack.c.h.b16 %v328
        %v1503 = vunpack.c.l.b16 %v329
        %v1504 = vunpack.c.h.b16 %v329
        %v1505 = vunpack.c.l.b16 %v330
        %v1506 = vunpack.c.h.b16 %v330
        %v1507 = vunpack.c.l.b16 %v331
        %v1508 = vunpack.c.l.b16 %v332
        %v1509 = vunpack.c.h.b16 %v332
        %v1510 = vunpack.c.l.b16 %v333
        %v1511 = vunpack.c.h.b16 %v333
        %v1512 = vunpack.c.l.b16 %v334
        %v1513 = vunpack.c.h.b16 %v334
        %v1514 = vunpack.c.l.b16 %v335
        %v1515 = vunpack.c.h.b16 %v335
        %v1516 = vunpack.c.l.b16 %v336
        %v1517 = vunpack.c.l.b16 %v337
        %v1518 = vunpack.c.h.b16 %v337
        %v1519 = vunpack.c.l.b16 %v338
        %v1520 = vunpack.c.h.b16 %v338
        %v1521 = vunpack.c.l.b16 %v339
        %v1522 = vunpack.c.h.b16 %v339
        %v1523 = vunpack.c.l.b16 %v340
        %v1524 = vunpack.c.h.b16 %v340
        %v1525 = vunpack.c.l.b16 %v341
        %v1526 = vunpack.c.l.b16 %v342
        %v1527 = vunpack.c.h.b16 %v342
        %v1528 = vunpack.c.l.b16 %v343
        %v1529 = vunpack.c.h.b16 %v343
        %v1530 = vunpack.c.l.b16 %v344
        %v1531 = vunpack.c.h.b16 %v344
        %v1532 = vunpack.c.l.b16 %v345
        %v1533 = vunpack.c.h.b16 %v345
        %v1534 = vunpack.c.l.b16 %v346
        %v1535 = vunpack.c.l.b16 %v347
        %v1536 = vunpack.c.h.b16 %v347
        %v1537 = vunpack.c.l.b16 %v348
        %v1538 = vunpack.c.h.b16 %v348
        %v1539 = vunpack.c.l.b16 %v349
        %v1540 = vunpack.c.h.b16 %v349
        %v1541 = vunpack.c.l.b16 %v350
        %v1542 = vunpack.c.h.b16 %v350
        %v1543 = vunpack.c.l.b16 %v351
        %v1544 = vunpack.c.l.b16 %v352
        %v1545 = vunpack.c.h.b16 %v352
        %v1546 = vunpack.c.l.b16 %v353
        %v1547 = vunpack.c.h.b16 %v353
        %v1548 = vunpack.c.l.b16 %v354
        %v1549 = vunpack.c.h.b16 %v354
        %v1550 = vunpack.c.l.b16 %v355
        %v1551 = vunpack.c.h.b16 %v355
        %v1552 = vunpack.c.l.b16 %v356
        %v1553 = vunpack.c.l.b16 %v357
        %v1554 = vunpack.c.h.b16 %v357
        %v1555 = vunpack.c.l.b16 %v358
        %v1556 = vunpack.c.h.b16 %v358
        %v1557 = vunpack.c.l.b16 %v359
        %v1558 = vunpack.c.h.b16 %v359
        %v1559 = vunpack.c.l.b16 %v360
        %v1560 = vunpack.c.h.b16 %v360
        %v1561 = vunpack.c.l.b16 %v361
        %v1562 = vunpack.c.l.b16 %v362
        %v1563 = vunpack.c.h.b16 %v362
        %v1564 = vunpack.c.l.b16 %v363
        %v1565 = vunpack.c.h.b16 %v363
        %v1566 = vunpack.c.l.b16 %v364
        %v1567 = vunpack.c.h.b16 %v364
        %v1568 = vunpack.c.l.b16 %v365
        %v1569 = vunpack.c.h.b16 %v365
        %v1570 = vunpack.c.l.b16 %v366
        %v1571 = vunpack.c.l.b16 %v367
        %v1572 = vunpack.c.h.b16 %v367
        %v1573 = vunpack.c.l.b16 %v368
        %v1574 = vunpack.c.h.b16 %v368
        %v1575 = vunpack.c.l.b16 %v369
        %v1576 = vunpack.c.h.b16 %v369
        %v1577 = vunpack.c.l.b16 %v370
        %v1578 = vunpack.c.h.b16 %v370
        %v1579 = vunpack.c.l.b16 %v371
        %v1580 = vunpack.c.l.b16 %v372
        %v1581 = vunpack.c.h.b16 %v372
        %v1582 = vunpack.c.l.b16 %v373
        %v1583 = vunpack.c.h.b16 %v373
        %v1584 = vunpack.c.l.b16 %v374
        %v1585 = vunpack.c.h.b16 %v374
        %v1586 = vunpack.c.l.b16 %v375
        %v1587 = vunpack.c.h.b16 %v375
        %v1588 = vunpack.c.l.b16 %v376
        %v1589 = vunpack.c.l.b16 %v377
        %v1590 = vunpack.c.h.b16 %v377
        %v1591 = vunpack.c.l.b16 %v378
        %v1592 = vunpack.c.h.b16 %v378
        %v1593 = vunpack.c.l.b16 %v379
        %v1594 = vunpack.c.h.b16 %v379
        %v1595 = vunpack.c.l.b16 %v380
        %v1596 = vunpack.c.h.b16 %v380
        %v1597 = vunpack.c.l.b16 %v381
        %v1598 = vunpack.c.l.b16 %v382
        %v1599 = vunpack.c.h.b16 %v382
        %v1600 = vunpack.c.l.b16 %v383
        %v1601 = vunpack.c.h.b16 %v383
        %v1602 = vunpack.c.l.b16 %v384
        %v1603 = vunpack.c.h.b16 %v384
        %v1604 = vunpack.c.l.b16 %v385
        %v1605 = vunpack.c.h.b16 %v385
        %v1606 = vunpack.c.l.b16 %v386
        %v1607 = vunpack.c.l.b16 %v387
        %v1608 = vunpack.c.h.b16 %v387
        %v1609 = vunpack.c.l.b16 %v388
        %v1610 = vunpack.c.h.b16 %v388
        %v1611 = vunpack.c.l.b16 %v389
        %v1612 = vunpack.c.h.b16 %v389
        %v1613 = vunpack.c.l.b16 %v390
        %v1614 = vunpack.c.h.b16 %v390
        %v1615 = vunpack.c.l.b16 %v391
        %v1616 = vunpack.c.l.b16 %v392
        %v1617 = vunpack.c.h.b16 %v392
        %v1618 = vunpack.c.l.b16 %v393
        %v1619 = vunpack.c.h.b16 %v393
        %v1620 = vunpack.c.l.b16 %v394
        %v1621 = vunpack.c.h.b16 %v394
        %v1622 = vunpack.c.l.b16 %v395
        %v1623 = vunpack.c.h.b16 %v395
        %v1624 = vunpack.c.l.b16 %v396
        %v1625 = vunpack.c.l.b16 %v397
        %v1626 = vunpack.c.h.b16 %v397
        %v1627 = vunpack.c.l.b16 %v398
        %v1628 = vunpack.c.h.b16 %v398
        %v1629 = vunpack.c.l.b16 %v399
        %v1630 = vunpack.c.h.b16 %v399
        %v1631 = vunpack.c.l.b16 %v400
        %v1632 = vunpack.c.h.b16 %v400
        %v1633 = vunpack.c.l.b16 %v401
        %v1634 = vunpack.c.l.b16 %v402
        %v1635 = vunpack.c.h.b16 %v402
        %v1636 = vunpack.c.l.b16 %v403
        %v1637 = vunpack.c.h.b16 %v403
        %v1638 = vunpack.c.l.b16 %v404
        %v1639 = vunpack.c.h.b16 %v404
        %v1640 = vunpack.c.l.b16 %v405
        %v1641 = vunpack.c.h.b16 %v405
        %v1642 = vunpack.c.l.b16 %v406
        %v1643 = vunpack.c.l.b16 %v407
        %v1644 = vunpack.c.h.b16 %v407
        %v1645 = vunpack.c.l.b16 %v408
        %v1646 = vunpack.c.h.b16 %v408
        %v1647 = vunpack.c.l.b16 %v409
        %v1648 = vunpack.c.h.b16 %v409
        %v1649 = vunpack.c.l.b16 %v410
        %v1650 = vunpack.c.h.b16 %v410
        %v1651 = vunpack.c.l.b16 %v411
        %v1652 = vunpack.c.l.b16 %v412
        %v1653 = vunpack.c.h.b16 %v412
        %v1654 = vunpack.c.l.b16 %v413
        %v1655 = vunpack.c.h.b16 %v413
        %v1656 = vunpack.c.l.b16 %v414
        %v1657 = vunpack.c.h.b16 %v414
        %v1658 = vunpack.c.l.b16 %v415
        %v1659 = vunpack.c.h.b16 %v415
        %v1660 = vunpack.c.l.b16 %v416
        %v1661 = vunpack.c.l.b16 %v417
        %v1662 = vunpack.c.h.b16 %v417
        %v1663 = vunpack.c.l.b16 %v418
        %v1664 = vunpack.c.h.b16 %v418
        %v1665 = vunpack.c.l.b16 %v419
        %v1666 = vunpack.c.h.b16 %v419
        %v1667 = vunpack.c.l.b16 %v420
        %v1668 = vunpack.c.h.b16 %v420
        %v1669 = vunpack.c.l.b16 %v421
        %v1670 = vunpack.c.l.b16 %v422
        %v1671 = vunpack.c.h.b16 %v422
        %v1672 = vunpack.c.l.b16 %v423
        %v1673 = vunpack.c.h.b16 %v423
        %v1674 = vunpack.c.l.b16 %v424
        %v1675 = vunpack.c.h.b16 %v424
        %v1676 = vunpack.c.l.b16 %v425
        %v1677 = vunpack.c.h.b16 %v425
        %v1678 = vunpack.c.l.b16 %v426
        %v1679 = vunpack.c.l.b16 %v427
        %v1680 = vunpack.c.h.b16 %v427
        %v1681 = vunpack.c.l.b16 %v428
        %v1682 = vunpack.c.h.b16 %v428
        %v1683 = vunpack.c.l.b16 %v429
        %v1684 = vunpack.c.h.b16 %v429
        %v1685 = vunpack.c.l.b16 %v430
        %v1686 = vunpack.c.h.b16 %v430
        %v1687 = vunpack.c.l.b16 %v431
        %v1688 = vunpack.c.l.b16 %v432
        %v1689 = vunpack.c.h.b16 %v432
        %v1690 = vunpack.c.l.b16 %v433
        %v1691 = vunpack.c.h.b16 %v433
        %v1692 = vunpack.c.l.b16 %v434
        %v1693 = vunpack.c.h.b16 %v434
        %v1694 = vunpack.c.l.b16 %v435
        %v1695 = vunpack.c.h.b16 %v435
        %v1696 = vunpack.c.l.b16 %v436
        %v1697 = vunpack.c.l.b16 %v437
        %v1698 = vunpack.c.h.b16 %v437
        %v1699 = vunpack.c.l.b16 %v438
        %v1700 = vunpack.c.h.b16 %v438
        %v1701 = vunpack.c.l.b16 %v439
        %v1702 = vunpack.c.h.b16 %v439
        %v1703 = vunpack.c.l.b16 %v440
        %v1704 = vunpack.c.h.b16 %v440
        %v1705 = vunpack.c.l.b16 %v441
        %v1706 = vunpack.c.l.b16 %v442
        %v1707 = vunpack.c.h.b16 %v442
        %v1708 = vunpack.c.l.b16 %v443
        %v1709 = vunpack.c.h.b16 %v443
        %v1710 = vunpack.c.l.b16 %v444
        %v1711 = vunpack.c.h.b16 %v444
        %v1712 = vunpack.c.l.b16 %v445
        %v1713 = vunpack.c.h.b16 %v445
        %v1714 = vunpack.c.l.b16 %v446
        %v1715 = vunpack.c.l.b16 %v447
        %v1716 = vunpack.c.h.b16 %v447
        %v1717 = vunpack.c.l.b16 %v448
        %v1718 = vunpack.c.h.b16 %v448
        %v1719 = vunpack.c.l.b16 %v449
        %v1720 = vunpack.c.h.b16 %v449
        %v1721 = vunpack.c.l.b16 %v450
        %v1722 = vunpack.c.h.b16 %v450
        %v1723 = vunpack.c.l.b16 %v451
        %v1724 = vunpack.c.l.b16 %v452
        %v1725 = vunpack.c.h.b16 %v452
        %v1726 = vunpack.c.l.b16 %v453
        %v1727 = vunpack.c.h.b16 %v453
        %v1728 = vunpack.c.l.b16 %v454
        %v1729 = vunpack.c.h.b16 %v454
        %v1730 = vunpack.c.l.b16 %v455
        %v1731 = vunpack.c.h.b16 %v455
        %v1732 = vunpack.c.l.b16 %v456
        %v1733 = vunpack.c.l.b16 %v457
        %v1734 = vunpack.c.h.b16 %v457
        %v1735 = vunpack.c.l.b16 %v458
        %v1736 = vunpack.c.h.b16 %v458
        %v1737 = vunpack.c.l.b16 %v459
        %v1738 = vunpack.c.h.b16 %v459
        %v1739 = vunpack.c.l.b16 %v460
        %v1740 = vunpack.c.h.b16 %v460
        %v1741 = vunpack.c.l.b16 %v461
        %v1742 = vunpack.c.l.b16 %v462
        %v1743 = vunpack.c.h.b16 %v462
        %v1744 = vunpack.c.l.b16 %v463
        %v1745 = vunpack.c.h.b16 %v463
        %v1746 = vunpack.c.l.b16 %v464
        %v1747 = vunpack.c.h.b16 %v464
        %v1748 = vunpack.c.l.b16 %v465
        %v1749 = vunpack.c.h.b16 %v465
        %v1750 = vunpack.c.l.b16 %v466
        %v1751 = vunpack.c.l.b16 %v467
        %v1752 = vunpack.c.h.b16 %v467
        %v1753 = vunpack.c.l.b16 %v468
        %v1754 = vunpack.c.h.b16 %v468
        %v1755 = vunpack.c.l.b16 %v469
        %v1756 = vunpack.c.h.b16 %v469
        %v1757 = vunpack.c.l.b16 %v470
        %v1758 = vunpack.c.h.b16 %v470
        %v1759 = vunpack.c.l.b16 %v471
        %v1760 = vunpack.c.l.b16 %v472
        %v1761 = vunpack.c.h.b16 %v472
        %v1762 = vunpack.c.l.b16 %v473
        %v1763 = vunpack.c.h.b16 %v473
        %v1764 = vunpack.c.l.b16 %v474
        %v1765 = vunpack.c.h.b16 %v474
        %v1766 = vunpack.c.l.b16 %v475
        %v1767 = vunpack.c.h.b16 %v475
        %v1768 = vunpack.c.l.b16 %v476
        %v1769 = vunpack.c.l.b16 %v477
        %v1770 = vunpack.c.h.b16 %v477
        %v1771 = vunpack.c.l.b16 %v478
        %v1772 = vunpack.c.h.b16 %v478
        %v1773 = vunpack.c.l.b16 %v479
        %v1774 = vunpack.c.h.b16 %v479
        %v1775 = vunpack.c.l.b16 %v480
        %v1776 = vunpack.c.h.b16 %v480
        %v1777 = vunpack.c.l.b16 %v481
        %v1778 = vunpack.c.l.b16 %v482
        %v1779 = vunpack.c.h.b16 %v482
        %v1780 = vunpack.c.l.b16 %v483
        %v1781 = vunpack.c.h.b16 %v483
        %v1782 = vunpack.c.l.b16 %v484
        %v1783 = vunpack.c.h.b16 %v484
        %v1784 = vunpack.c.l.b16 %v485
        %v1785 = vunpack.c.h.b16 %v485
        %v1786 = vunpack.c.l.b16 %v486
        %v1787 = vunpack.c.l.b16 %v487
        %v1788 = vunpack.c.h.b16 %v487
        %v1789 = vunpack.c.l.b16 %v488
        %v1790 = vunpack.c.h.b16 %v488
        %v1791 = vunpack.c.l.b16 %v489
        %v1792 = vunpack.c.h.b16 %v489
        %v1793 = vunpack.c.l.b16 %v490
        %v1794 = vunpack.c.h.b16 %v490
        %v1795 = vunpack.c.l.b16 %v491
        %v1796 = vunpack.c.l.b16 %v492
        %v1797 = vunpack.c.h.b16 %v492
        %v1798 = vunpack.c.l.b16 %v493
        %v1799 = vunpack.c.h.b16 %v493
        %v1800 = vunpack.c.l.b16 %v494
        %v1801 = vunpack.c.h.b16 %v494
        %v1802 = vunpack.c.l.b16 %v495
        %v1803 = vunpack.c.h.b16 %v495
        %v1804 = vunpack.c.l.b16 %v496
        %v1805 = vunpack.c.l.b16 %v497
        %v1806 = vunpack.c.h.b16 %v497
        %v1807 = vunpack.c.l.b16 %v498
        %v1808 = vunpack.c.h.b16 %v498
        %v1809 = vunpack.c.l.b16 %v499
        %v1810 = vunpack.c.h.b16 %v499
        %v1811 = vunpack.c.l.b16 %v500
        %v1812 = vunpack.c.h.b16 %v500
        %v1813 = vunpack.c.l.b16 %v501
        %v1814 = vunpack.c.l.b16 %v502
        %v1815 = vunpack.c.h.b16 %v502
        %v1816 = vunpack.c.l.b16 %v503
        %v1817 = vunpack.c.h.b16 %v503
        %v1818 = vunpack.c.l.b16 %v504
        %v1819 = vunpack.c.h.b16 %v504
        %v1820 = vunpack.c.l.b16 %v505
        %v1821 = vunpack.c.h.b16 %v505
        %v1822 = vunpack.c.l.b16 %v506
        %v1823 = vunpack.c.l.b16 %v507
        %v1824 = vunpack.c.h.b16 %v507
        %v1825 = vunpack.c.l.b16 %v508
        %v1826 = vunpack.c.h.b16 %v508
        %v1827 = vunpack.c.l.b16 %v509
        %v1828 = vunpack.c.h.b16 %v509
        %v1829 = vunpack.c.l.b16 %v510
        %v1830 = vunpack.c.h.b16 %v510
        %v1831 = vunpack.c.l.b16 %v511
        %v1832 = vunpack.c.l.b16 %v512
        %v1833 = vunpack.c.h.b16 %v512
        %v1834 = vunpack.c.l.b16 %v513
        %v1835 = vunpack.c.h.b16 %v513
        %v1836 = vunpack.c.l.b16 %v514
        %v1837 = vunpack.c.h.b16 %v514
        %v1838 = vunpack.c.l.b16 %v515
        %v1839 = vunpack.c.h.b16 %v515
        %v1840 = vunpack.c.l.b16 %v516
        %v1841 = vunpack.c.l.b16 %v517
        %v1842 = vunpack.c.h.b16 %v517
        %v1843 = vunpack.c.l.b16 %v518
        %v1844 = vunpack.c.h.b16 %v518
        %v1845 = vunpack.c.l.b16 %v519
        %v1846 = vunpack.c.h.b16 %v519
        %v1847 = vunpack.c.l.b16 %v520
        %v1848 = vunpack.c.h.b16 %v520
        %v1849 = vunpack.c.l.b16 %v521
        %v1850 = vunpack.c.l.b16 %v522
        %v1851 = vunpack.c.h.b16 %v522
        %v1852 = vunpack.c.l.b16 %v523
        %v1853 = vunpack.c.h.b16 %v523
        %v1854 = vunpack.c.l.b16 %v524
        %v1855 = vunpack.c.h.b16 %v524
        %v1856 = vunpack.c.l.b16 %v525
        %v1857 = vunpack.c.h.b16 %v525
        %v1858 = vunpack.c.l.b16 %v526
        %v1859 = vunpack.c.l.b16 %v527
        %v1860 = vunpack.c.h.b16 %v527
        %v1861 = vunpack.c.l.b16 %v528
        %v1862 = vunpack.c.h.b16 %v528
        %v1863 = vunpack.c.l.b16 %v529
        %v1864 = vunpack.c.h.b16 %v529
        %v1865 = vunpack.c.l.b16 %v530
        %v1866 = vunpack.c.h.b16 %v530
        %v1867 = vunpack.c.l.b16 %v531
        %v1868 = vunpack.c.l.b16 %v532
        %v1869 = vunpack.c.h.b16 %v532
        %v1870 = vunpack.c.l.b16 %v533
        %v1871 = vunpack.c.h.b16 %v533
        %v1872 = vunpack.c.l.b16 %v534
        %v1873 = vunpack.c.h.b16 %v534
        %v1874 = vunpack.c.l.b16 %v535
        %v1875 = vunpack.c.h.b16 %v535
        %v1876 = vunpack.c.l.b16 %v536
        %v1877 = vunpack.c.l.b16 %v537
        %v1878 = vunpack.c.h.b16 %v537
        %v1879 = vunpack.c.l.b16 %v538
        %v1880 = vunpack.c.h.b16 %v538
        %v1881 = vunpack.c.l.b16 %v539
        %v1882 = vunpack.c.h.b16 %v539
        %v1883 = vunpack.c.l.b16 %v540
        %v1884 = vunpack.c.h.b16 %v540
        %v1885 = vunpack.c.l.b16 %v541
        %v1886 = vunpack.c.l.b16 %v542
        %v1887 = vunpack.c.h.b16 %v542
        %v1888 = vunpack.c.l.b16 %v543
        %v1889 = vunpack.c.h.b16 %v543
        %v1890 = vunpack.c.l.b16 %v544
        %v1891 = vunpack.c.h.b16 %v544
        %v1892 = vunpack.c.l.b16 %v545
        %v1893 = vunpack.c.h.b16 %v545
        %v1894 = vunpack.c.l.b16 %v546
        %v1895 = vunpack.c.l.b16 %v547
        %v1896 = vunpack.c.h.b16 %v547
        %v1897 = vunpack.c.l.b16 %v548
        %v1898 = vunpack.c.h.b16 %v548
        %v1899 = vunpack.c.l.b16 %v549
        %v1900 = vunpack.c.h.b16 %v549
        %v1901 = vunpack.c.l.b16 %v550
        %v1902 = vunpack.c.h.b16 %v550
        %v1903 = vunpack.c.l.b16 %v551
        %v1904 = vunpack.c.l.b16 %v552
        %v1905 = vunpack.c.h.b16 %v552
        %v1906 = vunpack.c.l.b16 %v553
        %v1907 = vunpack.c.h.b16 %v553
        %v1908 = vunpack.c.l.b16 %v554
        %v1909 = vunpack.c.h.b16 %v554
        %v1910 = vunpack.c.l.b16 %v555
        %v1911 = vunpack.c.h.b16 %v555
        %v1912 = vunpack.c.l.b16 %v556
        %v1913 = vunpack.c.l.b16 %v557
        %v1914 = vunpack.c.h.b16 %v557
        %v1915 = vunpack.c.l.b16 %v558
        %v1916 = vunpack.c.h.b16 %v558
        %v1917 = vunpack.c.l.b16 %v559
        %v1918 = vunpack.c.h.b16 %v559
        %v1919 = vunpack.c.l.b16 %v560
        %v1920 = vunpack.c.h.b16 %v560
        %v1921 = vunpack.c.l.b16 %v561
        %v1922 = vunpack.c.l.b16 %v562
        %v1923 = vunpack.c.h.b16 %v562
        %v1924 = vunpack.c.l.b16 %v563
        %v1925 = vunpack.c.h.b16 %v563
        %v1926 = vunpack.c.l.b16 %v564
        %v1927 = vunpack.c.h.b16 %v564
        %v1928 = vunpack.c.l.b16 %v565
        %v1929 = vunpack.c.h.b16 %v565
        %v1930 = vunpack.c.l.b16 %v566
        %v1931 = vunpack.c.l.b16 %v567
        %v1932 = vunpack.c.h.b16 %v567
        %v1933 = vunpack.c.l.b16 %v568
        %v1934 = vunpack.c.h.b16 %v568
        %v1935 = vunpack.c.l.b16 %v569
        %v1936 = vunpack.c.h.b16 %v569
        %v1937 = vunpack.c.l.b16 %v570
        %v1938 = vunpack.c.h.b16 %v570
        %v1939 = vunpack.c.l.b16 %v571
        %v1940 = vunpack.c.l.b16 %v572
        %v1941 = vunpack.c.h.b16 %v572
        %v1942 = vunpack.c.l.b16 %v573
        %v1943 = vunpack.c.h.b16 %v573
        %v1944 = vunpack.c.l.b16 %v574
        %v1945 = vunpack.c.h.b16 %v574
        %v1946 = vunpack.c.l.b16 %v575
        %v1947 = vunpack.c.h.b16 %v575
        %v1948 = vunpack.c.l.b16 %v576
        %v1949 = vunpack.c.l.b16 %v577
        %v1950 = vunpack.c.h.b16 %v577
        %v1951 = vunpack.c.l.b16 %v578
        %v1952 = vunpack.c.h.b16 %v578
        %v1953 = vunpack.c.l.b16 %v579
        %v1954 = vunpack.c.h.b16 %v579
        %v1955 = vunpack.c.l.b16 %v580
        %v1956 = vunpack.c.h.b16 %v580
        %v1957 = vunpack.c.l.b16 %v581
        %v1958 = vunpack.c.l.b16 %v582
        %v1959 = vunpack.c.h.b16 %v582
        %v1960 = vunpack.c.l.b16 %v583
        %v1961 = vunpack.c.h.b16 %v583
        %v1962 = vunpack.c.l.b16 %v584
        %v1963 = vunpack.c.h.b16 %v584
        %v1964 = vunpack.c.l.b16 %v585
        %v1965 = vunpack.c.h.b16 %v585
        %v1966 = vunpack.c.l.b16 %v586
        %v1967 = vunpack.c.l.b16 %v587
        %v1968 = vunpack.c.h.b16 %v587
        %v1969 = vunpack.c.l.b16 %v588
        %v1970 = vunpack.c.h.b16 %v588
        %v1971 = vunpack.c.l.b16 %v589
        %v1972 = vunpack.c.h.b16 %v589
        %v1973 = vunpack.c.l.b16 %v590
        %v1974 = vunpack.c.h.b16 %v590
        %v1975 = vunpack.c.l.b16 %v591
        %v1976 = vunpack.c.l.b16 %v592
        %v1977 = vunpack.c.h.b16 %v592
        %v1978 = vunpack.c.l.b16 %v593
        %v1979 = vunpack.c.h.b16 %v593
        %v1980 = vunpack.c.l.b16 %v594
        %v1981 = vunpack.c.h.b16 %v594
        %v1982 = vunpack.c.l.b16 %v595
        %v1983 = vunpack.c.h.b16 %v595
        %v1984 = vunpack.c.l.b16 %v596
        %v1985 = vunpack.c.l.b16 %v597
        %v1986 = vunpack.c.h.b16 %v597
        %v1987 = vunpack.c.l.b16 %v598
        %v1988 = vunpack.c.h.b16 %v598
        %v1989 = vunpack.c.l.b16 %v599
        %v1990 = vunpack.c.h.b16 %v599
        %v1991 = vunpack.c.l.b16 %v600
        %v1992 = vunpack.c.h.b16 %v600
        %v1993 = vunpack.c.l.b16 %v601
        %v1994 = vunpack.c.l.b16 %v602
        %v1995 = vunpack.c.h.b16 %v602
        %v1996 = vunpack.c.l.b16 %v603
        %v1997 = vunpack.c.h.b16 %v603
        %v1998 = vunpack.c.l.b16 %v604
        %v1999 = vunpack.c.h.b16 %v604
        %v2000 = vunpack.c.l.b16 %v605
        %v2001 = vunpack.c.h.b16 %v605
        %v2002 = vunpack.c.l.b16 %v606
        %v2003 = vunpack.c.l.b16 %v607
        %v2004 = vunpack.c.h.b16 %v607
        %v2005 = vunpack.c.l.b16 %v608
        %v2006 = vunpack.c.h.b16 %v608
        %v2007 = vunpack.c.l.b16 %v609
        %v2008 = vunpack.c.h.b16 %v609
        %v2009 = vunpack.c.l.b16 %v610
        %v2010 = vunpack.c.h.b16 %v610
        %v2011 = vunpack.c.l.b16 %v611
        %v2012 = vunpack.c.l.b16 %v612
        %v2013 = vunpack.c.h.b16 %v612
        %v2014 = vunpack.c.l.b16 %v613
        %v2015 = vunpack.c.h.b16 %v613
        %v2016 = vunpack.c.l.b16 %v614
        %v2017 = vunpack.c.h.b16 %v614
        %v2018 = vunpack.c.l.b16 %v615
        %v2019 = vunpack.c.h.b16 %v615
        %v2020 = vunpack.c.l.b16 %v616
        %v2021 = vunpack.c.l.b16 %v617
        %v2022 = vunpack.c.h.b16 %v617
        %v2023 = vunpack.c.l.b16 %v618
        %v2024 = vunpack.c.h.b16 %v618
        %v2025 = vunpack.c.l.b16 %v619
        %v2026 = vunpack.c.h.b16 %v619
        %v2027 = vunpack.c.l.b16 %v620
        %v2028 = vunpack.c.h.b16 %v620
        %v2029 = vunpack.c.l.b16 %v621
        %v2030 = vunpack.c.l.b16 %v622
        %v2031 = vunpack.c.h.b16 %v622
        %v2032 = vunpack.c.l.b16 %v623
        %v2033 = vunpack.c.h.b16 %v623
        %v2034 = vunpack.c.l.b16 %v624
        %v2035 = vunpack.c.h.b16 %v624
        %v2036 = vunpack.c.l.b16 %v625
        %v2037 = vunpack.c.h.b16 %v625
        %v2038 = vunpack.c.l.b16 %v626
        %v2039 = vunpack.c.l.b16 %v627
        %v2040 = vunpack.c.h.b16 %v627
        %v2041 = vunpack.c.l.b16 %v628
        %v2042 = vunpack.c.h.b16 %v628
        %v2043 = vunpack.c.l.b16 %v629
        %v2044 = vunpack.c.h.b16 %v629
        %v2045 = vunpack.c.l.b16 %v630
        %v2046 = vunpack.c.h.b16 %v630
        %v2047 = vunpack.c.l.b16 %v631
        %v2048 = vunpack.c.l.b16 %v632
        %v2049 = vunpack.c.h.b16 %v632
        %v2050 = vunpack.c.l.b16 %v633
        %v2051 = vunpack.c.h.b16 %v633
        %v2052 = vunpack.c.l.b16 %v634
        %v2053 = vunpack.c.h.b16 %v634
        %v2054 = vunpack.c.l.b16 %v635
        %v2055 = vunpack.c.h.b16 %v635
        %v2056 = vunpack.c.l.b16 %v636
        %v2057 = vunpack.c.l.b16 %v637
        %v2058 = vunpack.c.h.b16 %v637
        %v2059 = vunpack.c.l.b16 %v638
        %v2060 = vunpack.c.h.b16 %v638
        %v2061 = vunpack.c.l.b16 %v639
        %v2062 = vunpack.c.h.b16 %v639
        %v2063 = vunpack.c.l.b16 %v640
        %v2064 = vunpack.c.h.b16 %v640
        %v2065 = vunpack.c.l.b16 %v641
        %v2066 = vunpack.c.l.b16 %v642
        %v2067 = vunpack.c.h.b16 %v642
        %v2068 = vunpack.c.l.b16 %v643
        %v2069 = vunpack.c.h.b16 %v643
        %v2070 = vunpack.c.l.b16 %v644
        %v2071 = vunpack.c.h.b16 %v644
        %v2072 = vunpack.c.l.b16 %v645
        %v2073 = vunpack.c.h.b16 %v645
        %v2074 = vunpack.c.l.b16 %v646
        %v2075 = vunpack.c.l.b16 %v647
        %v2076 = vunpack.c.h.b16 %v647
        %v2077 = vunpack.c.l.b16 %v648
        %v2078 = vunpack.c.h.b16 %v648
        %v2079 = vunpack.c.l.b16 %v649
        %v2080 = vunpack.c.h.b16 %v649
        %v2081 = vunpack.c.l.b16 %v650
        %v2082 = vunpack.c.h.b16 %v650
        %v2083 = vunpack.c.l.b16 %v651
        %v2084 = vunpack.c.l.b16 %v652
        %v2085 = vunpack.c.h.b16 %v652
        %v2086 = vunpack.c.l.b16 %v653
        %v2087 = vunpack.c.h.b16 %v653
        %v2088 = vunpack.c.l.b16 %v654
        %v2089 = vunpack.c.h.b16 %v654
        %v2090 = vunpack.c.l.b16 %v655
        %v2091 = vunpack.c.h.b16 %v655
        %v2092 = vunpack.c.l.b16 %v656
        %v2093 = vunpack.c.l.b16 %v657
        %v2094 = vunpack.c.h.b16 %v657
        %v2095 = vunpack.c.l.b16 %v658
        %v2096 = vunpack.c.h.b16 %v658
        %v2097 = vunpack.c.l.b16 %v659
        %v2098 = vunpack.c.h.b16 %v659
        %v2099 = vunpack.c.l.b16 %v660
        %v2100 = vunpack.c.h.b16 %v660
        %v2101 = vunpack.c.l.b16 %v661
        %v2102 = vunpack.c.l.b16 %v662
        %v2103 = vunpack.c.h.b16 %v662
        %v2104 = vunpack.c.l.b16 %v663
        %v2105 = vunpack.c.h.b16 %v663
        %v2106 = vunpack.c.l.b16 %v664
        %v2107 = vunpack.c.h.b16 %v664
        %v2108 = vunpack.c.l.b16 %v665
        %v2109 = vunpack.c.h.b16 %v665
        %v2110 = vunpack.c.l.b16 %v666
        %v2111 = vunpack.c.l.b16 %v667
        %v2112 = vunpack.c.h.b16 %v667
        %v2113 = vunpack.c.l.b16 %v668
        %v2114 = vunpack.c.h.b16 %v668
        %v2115 = vunpack.c.l.b16 %v669
        %v2116 = vunpack.c.h.b16 %v669
        %v2117 = vunpack.c.l.b16 %v670
        %v2118 = vunpack.c.h.b16 %v670
        %v2119 = vunpack.c.l.b16 %v671
        %v2120 = vunpack.c.l.b16 %v672
        %v2121 = vunpack.c.h.b16 %v672
        %v2122 = vunpack.c.l.b16 %v673
        %v2123 = vunpack.c.h.b16 %v673
        %v2124 = vunpack.c.l.b16 %v674
        %v2125 = vunpack.c.h.b16 %v674
        %v2126 = vunpack.c.l.b16 %v675
        %v2127 = vunpack.c.h.b16 %v675
        %v2128 = vunpack.c.l.b16 %v676
        %v2129 = vunpack.c.l.b16 %v677
        %v2130 = vunpack.c.h.b16 %v677
        %v2131 = vunpack.c.l.b16 %v678
        %v2132 = vunpack.c.h.b16 %v678
        %v2133 = vunpack.c.l.b16 %v679
        %v2134 = vunpack.c.h.b16 %v679
        %v2135 = vunpack.c.l.b16 %v680
        %v2136 = vunpack.c.h.b16 %v680
        %v2137 = vunpack.c.l.b16 %v681
        %v2138 = vunpack.c.l.b16 %v682
        %v2139 = vunpack.c.h.b16 %v682
        %v2140 = vunpack.c.l.b16 %v683
        %v2141 = vunpack.c.h.b16 %v683
        %v2142 = vunpack.c.l.b16 %v684
        %v2143 = vunpack.c.h.b16 %v684
        %v2144 = vunpack.c.l.b16 %v685
        %v2145 = vunpack.c.h.b16 %v685
        %v2146 = vunpack.c.l.b16 %v686
        %v2147 = vunpack.c.l.b16 %v687
        %v2148 = vunpack.c.h.b16 %v687
        %v2149 = vunpack.c.l.b16 %v688
        %v2150 = vunpack.c.h.b16 %v688
        %v2151 = vunpack.c.l.b16 %v689
        %v2152 = vunpack.c.h.b16 %v689
        %v2153 = vunpack.c.l.b16 %v690
        %v2154 = vunpack.c.h.b16 %v690
        %v2155 = vunpack.c.l.b16 %v691
        %v2156 = vunpack.c.l.b16 %v692
        %v2157 = vunpack.c.h.b16 %v692
        %v2158 = vunpack.c.l.b16 %v693
        %v2159 = vunpack.c.h.b16 %v693
        %v2160 = vunpack.c.l.b16 %v694
        %v2161 = vunpack.c.h.b16 %v694
        %v2162 = vunpack.c.l.b16 %v695
        %v2163 = vunpack.c.h.b16 %v695
        %v2164 = vunpack.c.l.b16 %v696
        %v2165 = vunpack.c.l.b16 %v697
        %v2166 = vunpack.c.h.b16 %v697
        %v2167 = vunpack.c.l.b16 %v698
        %v2168 = vunpack.c.h.b16 %v698
        %v2169 = vunpack.c.l.b16 %v699
        %v2170 = vunpack.c.h.b16 %v699
        %v2171 = vunpack.c.l.b16 %v700
        %v2172 = vunpack.c.h.b16 %v700
        %v2173 = vunpack.c.l.b16 %v701
        %v2174 = vunpack.c.l.b16 %v702
        %v2175 = vunpack.c.h.b16 %v702
        %v2176 = vunpack.c.l.b16 %v703
        %v2177 = vunpack.c.h.b16 %v703
        %v2178 = vunpack.c.l.b16 %v704
        %v2179 = vunpack.c.h.b16 %v704
        %v2180 = vunpack.c.l.b16 %v705
        %v2181 = vunpack.c.h.b16 %v705
        %v2182 = vunpack.c.l.b16 %v706
        %v2183 = vunpack.c.l.b16 %v707
        %v2184 = vunpack.c.h.b16 %v707
        %v2185 = vunpack.c.l.b16 %v708
        %v2186 = vunpack.c.h.b16 %v708
        %v2187 = vunpack.c.l.b16 %v709
        %v2188 = vunpack.c.h.b16 %v709
        %v2189 = vunpack.c.l.b16 %v710
        %v2190 = vunpack.c.h.b16 %v710
        %v2191 = vunpack.c.l.b16 %v711
        %v2192 = vunpack.c.l.b16 %v712
        %v2193 = vunpack.c.h.b16 %v712
        %v2194 = vunpack.c.l.b16 %v713
        %v2195 = vunpack.c.h.b16 %v713
        %v2196 = vunpack.c.l.b16 %v714
        %v2197 = vunpack.c.h.b16 %v714
        %v2198 = vunpack.c.l.b16 %v715
        %v2199 = vunpack.c.h.b16 %v715
        %v2200 = vunpack.c.l.b16 %v716
        %v2201 = vunpack.c.l.b16 %v717
        %v2202 = vunpack.c.h.b16 %v717
        %v2203 = vunpack.c.l.b16 %v718
        %v2204 = vunpack.c.h.b16 %v718
        %v2205 = vunpack.c.l.b16 %v719
        %v2206 = vunpack.c.h.b16 %v719
        %v2207 = vunpack.c.l.b16 %v720
        %v2208 = vunpack.c.h.b16 %v720
        %v2209 = vunpack.c.l.b16 %v721
        %v2210 = vunpack.c.l.b16 %v722
        %v2211 = vunpack.c.h.b16 %v722
        %v2212 = vunpack.c.l.b16 %v723
        %v2213 = vunpack.c.h.b16 %v723
        %v2214 = vunpack.c.l.b16 %v724
        %v2215 = vunpack.c.h.b16 %v724
        %v2216 = vunpack.c.l.b16 %v725
        %v2217 = vunpack.c.h.b16 %v725
        %v2218 = vunpack.c.l.b16 %v726
        %v2219 = vunpack.c.l.b16 %v727
        %v2220 = vunpack.c.h.b16 %v727
        %v2221 = vunpack.c.l.b16 %v728
        %v2222 = vunpack.c.h.b16 %v728
        %v2223 = vunpack.c.l.b16 %v729
        %v2224 = vunpack.c.h.b16 %v729
        %v2225 = vunpack.c.l.b16 %v730
        %v2226 = vunpack.c.h.b16 %v730
        %v2227 = vunpack.c.l.b16 %v731
        %v2228 = vunpack.c.l.b16 %v732
        %v2229 = vunpack.c.h.b16 %v732
        %v2230 = vunpack.c.l.b16 %v733
        %v2231 = vunpack.c.h.b16 %v733
        %v2232 = vunpack.c.l.b16 %v734
        %v2233 = vunpack.c.h.b16 %v734
        %v2234 = vunpack.c.l.b16 %v735
        %v2235 = vunpack.c.h.b16 %v735
        %v2236 = vunpack.c.l.b16 %v736
        %v2237 = vunpack.c.l.b16 %v737
        %v2238 = vunpack.c.h.b16 %v737
        %v2239 = vunpack.c.l.b16 %v738
        %v2240 = vunpack.c.h.b16 %v738
        %v2241 = vunpack.c.l.b16 %v739
        %v2242 = vunpack.c.h.b16 %v739
        %v2243 = vunpack.c.l.b16 %v740
        %v2244 = vunpack.c.h.b16 %v740
        %v2245 = vunpack.c.l.b16 %v741
        %v2246 = vunpack.c.l.b16 %v742
        %v2247 = vunpack.c.h.b16 %v742
        %v2248 = vunpack.c.l.b16 %v743
        %v2249 = vunpack.c.h.b16 %v743
        %v2250 = vunpack.c.l.b16 %v744
        %v2251 = vunpack.c.h.b16 %v744
        %v2252 = vunpack.c.l.b16 %v745
        %v2253 = vunpack.c.h.b16 %v745
        %v2254 = vunpack.c.l.b16 %v746
        %v2255 = vunpack.c.l.b16 %v747
        %v2256 = vunpack.c.h.b16 %v747
        %v2257 = vunpack.c.l.b16 %v748
        %v2258 = vunpack.c.h.b16 %v748
        %v2259 = vunpack.c.l.b16 %v749
        %v2260 = vunpack.c.h.b16 %v749
        %v2261 = vunpack.c.l.b16 %v750
        %v2262 = vunpack.c.h.b16 %v750
        %v2263 = vunpack.c.l.b16 %v751
        %v2264 = vunpack.c.l.b16 %v752
        %v2265 = vunpack.c.h.b16 %v752
        %v2266 = vunpack.c.l.b16 %v753
        %v2267 = vunpack.c.h.b16 %v753
        %v2268 = vunpack.c.l.b16 %v754
        %v2269 = vunpack.c.h.b16 %v754
        %v2270 = vunpack.c.l.b16 %v755
        %v2271 = vunpack.c.h.b16 %v755
        %v2272 = vunpack.c.l.b16 %v756
        %v2273 = vunpack.c.l.b16 %v757
        %v2274 = vunpack.c.h.b16 %v757
        %v2275 = vunpack.c.l.b16 %v758
        %v2276 = vunpack.c.h.b16 %v758
        %v2277 = vunpack.c.l.b16 %v759
        %v2278 = vunpack.c.h.b16 %v759
        %v2279 = vunpack.c.l.b16 %v760
        %v2280 = vunpack.c.h.b16 %v760
        %v2281 = vunpack.c.l.b16 %v761
        %v2282 = vunpack.c.l.b16 %v762
        %v2283 = vunpack.c.h.b16 %v762
        %v2284 = vunpack.c.l.b16 %v763
        %v2285 = vunpack.c.h.b16 %v763
        %v2286 = vunpack.c.l.b16 %v764
        %v2287 = vunpack.c.h.b16 %v764
        %v2288 = vunpack.c.l.b16 %v765
        %v2289 = vunpack.c.h.b16 %v765
        %v2290 = vunpack.c.l.b16 %v766
        %v2291 = vunpack.c.l.b16 %v767
        %v2292 = vunpack.c.h.b16 %v767
        %v2293 = vunpack.c.l.b16 %v768
        %v2294 = vunpack.c.h.b16 %v768
        %v2295 = vunpack.c.l.b16 %v769
        %v2296 = vunpack.c.h.b16 %v769
        %v2297 = vunpack.c.l.b16 %v770
        %v2298 = vunpack.c.h.b16 %v770
        %v2299 = vunpack.c.l.b16 %v771
        %v2300 = vunpack.c.l.b16 %v772
        %v2301 = vunpack.c.h.b16 %v772
        %v2302 = vunpack.c.l.b16 %v773
        %v2303 = vunpack.c.h.b16 %v773
        %v2304 = vunpack.c.l.b16 %v774
        %v2305 = vunpack.c.h.b16 %v774
        %v2306 = vunpack.c.l.b16 %v775
        %v2307 = vunpack.c.h.b16 %v775
        %v2308 = vunpack.c.l.b16 %v776
        %v2309 = vunpack.c.l.b16 %v777
        %v2310 = vunpack.c.h.b16 %v777
        %v2311 = vunpack.c.l.b16 %v778
        %v2312 = vunpack.c.h.b16 %v778
        %v2313 = vunpack.c.l.b16 %v779
        %v2314 = vunpack.c.h.b16 %v779
        %v2315 = vunpack.c.l.b16 %v780
        %v2316 = vunpack.c.h.b16 %v780
        %v2317 = vunpack.c.l.b16 %v781
        %v2318 = vunpack.c.l.b16 %v782
        %v2319 = vunpack.c.h.b16 %v782
        %v2320 = vunpack.c.l.b16 %v783
        %v2321 = vunpack.c.h.b16 %v783
        %v2322 = vunpack.c.l.b16 %v784
        %v2323 = vunpack.c.h.b16 %v784
        %v2324 = vunpack.c.l.b16 %v785
        %v2325 = vunpack.c.h.b16 %v785
        %v2326 = vunpack.c.l.b16 %v786
        %v2327 = vunpack.c.l.b16 %v787
        %v2328 = vunpack.c.h.b16 %v787
        %v2329 = vunpack.c.l.b16 %v788
        %v2330 = vunpack.c.h.b16 %v788
        %v2331 = vunpack.c.l.b16 %v789
        %v2332 = vunpack.c.h.b16 %v789
        %v2333 = vunpack.c.l.b16 %v790
        %v2334 = vunpack.c.h.b16 %v790
        %v2335 = vunpack.c.l.b16 %v791
        %v2336 = vunpack.c.l.b16 %v792
        %v2337 = vunpack.c.h.b16 %v792
        %v2338 = vunpack.c.l.b16 %v793
        %v2339 = vunpack.c.h.b16 %v793
        %v2340 = vunpack.c.l.b16 %v794
        %v2341 = vunpack.c.h.b16 %v794
        %v2342 = vunpack.c.l.b16 %v795
        %v2343 = vunpack.c.h.b16 %v795
        %v2344 = vunpack.c.l.b16 %v796
        %v2345 = vunpack.c.l.b16 %v797
        %v2346 = vunpack.c.h.b16 %v797
        %v2347 = vunpack.c.l.b16 %v798
        %v2348 = vunpack.c.h.b16 %v798
        %v2349 = vunpack.c.l.b16 %v799
        %v2350 = vunpack.c.h.b16 %v799
        %v2351 = vunpack.c.l.b16 %v800
        %v2352 = vunpack.c.h.b16 %v800
        %v2353 = vunpack.c.l.b16 %v801
        %v2354 = vunpack.c.l.b16 %v802
        %v2355 = vunpack.c.h.b16 %v802
        %v2356 = vunpack.c.l.b16 %v803
        %v2357 = vunpack.c.h.b16 %v803
        %v2358 = vunpack.c.l.b16 %v804
        %v2359 = vunpack.c.h.b16 %v804
        %v2360 = vunpack.c.l.b16 %v805
        %v2361 = vunpack.c.h.b16 %v805
        %v2362 = vunpack.c.l.b16 %v806
        %v2363 = vunpack.c.l.b16 %v807
        %v2364 = vunpack.c.h.b16 %v807
        %v2365 = vunpack.c.l.b16 %v808
        %v2366 = vunpack.c.h.b16 %v808
        %v2367 = vunpack.c.l.b16 %v809
        %v2368 = vunpack.c.h.b16 %v809
        %v2369 = vunpack.c.l.b16 %v810
        %v2370 = vunpack.c.h.b16 %v810
        %v2371 = vunpack.c.l.b16 %v811
        %v2372 = vunpack.c.l.b16 %v812
        %v2373 = vunpack.c.h.b16 %v812
        %v2374 = vunpack.c.l.b16 %v813
        %v2375 = vunpack.c.h.b16 %v813
        %v2376 = vunpack.c.l.b16 %v814
        %v2377 = vunpack.c.h.b16 %v814
        %v2378 = vunpack.c.l.b16 %v815
        %v2379 = vunpack.c.h.b16 %v815
        %v2380 = vunpack.c.l.b16 %v816
        %v2381 = vunpack.c.l.b16 %v817
        %v2382 = vunpack.c.h.b16 %v817
        %v2383 = vunpack.c.l.b16 %v818
        %v2384 = vunpack.c.h.b16 %v818
        %v2385 = vunpack.c.l.b16 %v819
        %v2386 = vunpack.c.h.b16 %v819
        %v2387 = vunpack.c.l.b16 %v820
        %v2388 = vunpack.c.h.b16 %v820
        %v2389 = vunpack.c.l.b16 %v821
        %v2390 = vunpack.c.l.b16 %v822
        %v2391 = vunpack.c.h.b16 %v822
        %v2392 = vunpack.c.l.b16 %v823
        %v2393 = vunpack.c.h.b16 %v823
        %v2394 = vunpack.c.l.b16 %v824
        %v2395 = vunpack.c.h.b16 %v824
        %v2396 = vunpack.c.l.b16 %v825
        %v2397 = vunpack.c.h.b16 %v825
        %v2398 = vunpack.c.l.b16 %v826
        %v2399 = vunpack.c.l.b16 %v827
        %v2400 = vunpack.c.h.b16 %v827
        %v2401 = vunpack.c.l.b16 %v828
        %v2402 = vunpack.c.h.b16 %v828
        %v2403 = vunpack.c.l.b16 %v829
        %v2404 = vunpack.c.h.b16 %v829
        %v2405 = vunpack.c.l.b16 %v830
        %v2406 = vunpack.c.h.b16 %v830
        %v2407 = vunpack.c.l.b16 %v831
        %v2408 = vunpack.c.l.b16 %v832
        %v2409 = vunpack.c.h.b16 %v832
        %v2410 = vunpack.c.l.b16 %v833
        %v2411 = vunpack.c.h.b16 %v833
        %v2412 = vunpack.c.l.b16 %v834
        %v2413 = vunpack.c.h.b16 %v834
        %v2414 = vunpack.c.l.b16 %v835
        %v2415 = vunpack.c.h.b16 %v835
        %v2416 = vunpack.c.l.b16 %v836
        %v2417 = vunpack.c.l.b16 %v837
        %v2418 = vunpack.c.h.b16 %v837
        %v2419 = vunpack.c.l.b16 %v838
        %v2420 = vunpack.c.h.b16 %v838
        %v2421 = vunpack.c.l.b16 %v839
        %v2422 = vunpack.c.h.b16 %v839
        %v2423 = vunpack.c.l.b16 %v840
        %v2424 = vunpack.c.h.b16 %v840
        %v2425 = vunpack.c.l.b16 %v841
        %v2426 = vpack.c.b16 %v1427, %v1418
        %v2427 = vpack.c.b16 %v1428, %v1419
        %v2428 = vpack.c.b16 %v1429, %v1420
        %v2429 = vpack.c.b16 %v1430, %v1421
        %v2430 = vpack.c.b16 %v1431, %v1422
        %v2431 = vpack.c.b16 %v1432, %v1423
        %v2432 = vpack.c.b16 %v1433, %v1424
        %v2433 = vpack.c.b16 %v1434, %v1425
        %v2434 = vpack.c.b16 %v1435, %v1426
        %v2435 = vpack.c.b16 %v1445, %v1436
        %v2436 = vpack.c.b16 %v1446, %v1437
        %v2437 = vpack.c.b16 %v1447, %v1438
        %v2438 = vpack.c.b16 %v1448, %v1439
        %v2439 = vpack.c.b16 %v1449, %v1440
        %v2440 = vpack.c.b16 %v1450, %v1441
        %v2441 = vpack.c.b16 %v1451, %v1442
        %v2442 = vpack.c.b16 %v1452, %v1443
        %v2443 = vpack.c.b16 %v1453, %v1444
        %v2444 = vpack.c.b16 %v1463, %v1454
        %v2445 = vpack.c.b16 %v1464, %v1455
        %v2446 = vpack.c.b16 %v1465, %v1456
        %v2447 = vpack.c.b16 %v1466, %v1457
        %v2448 = vpack.c.b16 %v1467, %v1458
        %v2449 = vpack.c.b16 %v1468, %v1459
        %v2450 = vpack.c.b16 %v1469, %v1460
        %v2451 = vpack.c.b16 %v1470, %v1461
        %v2452 = vpack.c.b16 %v1471, %v1462
        %v2453 = vpack.c.b16 %v1481, %v1472
        %v2454 = vpack.c.b16 %v1482, %v1473
        %v2455 = vpack.c.b16 %v1483, %v1474
        %v2456 = vpack.c.b16 %v1484, %v1475
        %v2457 = vpack.c.b16 %v1485, %v1476
        %v2458 = vpack.c.b16 %v1486, %v1477
        %v2459 = vpack.c.b16 %v1487, %v1478
        %v2460 = vpack.c.b16 %v1488, %v1479
        %v2461 = vpack.c.b16 %v1489, %v1480
        %v2462 = vpack.c.b16 %v1499, %v1490
        %v2463 = vpack.c.b16 %v1500, %v1491
        %v2464 = vpack.c.b16 %v1501, %v1492
        %v2465 = vpack.c.b16 %v1502, %v1493
        %v2466 = vpack.c.b16 %v1503, %v1494
        %v2467 = vpack.c.b16 %v1504, %v1495
        %v2468 = vpack.c.b16 %v1505, %v1496
        %v2469 = vpack.c.b16 %v1506, %v1497
        %v2470 = vpack.c.b16 %v1507, %v1498
        %v2471 = vpack.c.b16 %v1517, %v1508
        %v2472 = vpack.c.b16 %v1518, %v1509
        %v2473 = vpack.c.b16 %v1519, %v1510
        %v2474 = vpack.c.b16 %v1520, %v1511
        %v2475 = vpack.c.b16 %v1521, %v1512
        %v2476 = vpack.c.b16 %v1522, %v1513
        %v2477 = vpack.c.b16 %v1523, %v1514
        %v2478 = vpack.c.b16 %v1524, %v1515
        %v2479 = vpack.c.b16 %v1525, %v1516
        %v2480 = vpack.c.b16 %v1535, %v1526
        %v2481 = vpack.c.b16 %v1536, %v1527
        %v2482 = vpack.c.b16 %v1537, %v1528
        %v2483 = vpack.c.b16 %v1538, %v1529
        %v2484 = vpack.c.b16 %v1539, %v1530
        %v2485 = vpack.c.b16 %v1540, %v1531
        %v2486 = vpack.c.b16 %v1541, %v1532
        %v2487 = vpack.c.b16 %v1542, %v1533
        %v2488 = vpack.c.b16 %v1543, %v1534
        %v2489 = vpack.c.b16 %v1553, %v1544
        %v2490 = vpack.c.b16 %v1554, %v1545
        %v2491 = vpack.c.b16 %v1555, %v1546
        %v2492 = vpack.c.b16 %v1556, %v1547
        %v2493 = vpack.c.b16 %v1557, %v1548
        %v2494 = vpack.c.b16 %v1558, %v1549
        %v2495 = vpack.c.b16 %v1559, %v1550
        %v2496 = vpack.c.b16 %v1560, %v1551
        %v2497 = vpack.c.b16 %v1561, %v1552
        %v2498 = vpack.c.b16 %v1571, %v1562
        %v2499 = vpack.c.b16 %v1572, %v1563
        %v2500 = vpack.c.b16 %v1573, %v1564
        %v2501 = vpack.c.b16 %v1574, %v1565
        %v2502 = vpack.c.b16 %v1575, %v1566
        %v2503 = vpack.c.b16 %v1576, %v1567
        %v2504 = vpack.c.b16 %v1577, %v1568
        %v2505 = vpack.c.b16 %v1578, %v1569
        %v2506 = vpack.c.b16 %v1579, %v1570
        %v2507 = vpack.c.b16 %v1589, %v1580
        %v2508 = vpack.c.b16 %v1590, %v1581
        %v2509 = vpack.c.b16 %v1591, %v1582
        %v2510 = vpack.c.b16 %v1592, %v1583
        %v2511 = vpack.c.b16 %v1593, %v1584
        %v2512 = vpack.c.b16 %v1594, %v1585
        %v2513 = vpack.c.b16 %v1595, %v1586
        %v2514 = vpack.c.b16 %v1596, %v1587
        %v2515 = vpack.c.b16 %v1597, %v1588
        %v2516 = vpack.c.b16 %v1607, %v1598
        %v2517 = vpack.c.b16 %v1608, %v1599
        %v2518 = vpack.c.b16 %v1609, %v1600
        %v2519 = vpack.c.b16 %v1610, %v1601
        %v2520 = vpack.c.b16 %v1611, %v1602
        %v2521 = vpack.c.b16 %v1612, %v1603
        %v2522 = vpack.c.b16 %v1613, %v1604
        %v2523 = vpack.c.b16 %v1614, %v1605
        %v2524 = vpack.c.b16 %v1615, %v1606
        %v2525 = vpack.c.b16 %v1625, %v1616
        %v2526 = vpack.c.b16 %v1626, %v1617
        %v2527 = vpack.c.b16 %v1627, %v1618
        %v2528 = vpack.c.b16 %v1628, %v1619
        %v2529 = vpack.c.b16 %v1629, %v1620
        %v2530 = vpack.c.b16 %v1630, %v1621
        %v2531 = vpack.c.b16 %v1631, %v1622
        %v2532 = vpack.c.b16 %v1632, %v1623
        %v2533 = vpack.c.b16 %v1633, %v1624
        %v2534 = vpack.c.b16 %v1643, %v1634
        %v2535 = vpack.c.b16 %v1644, %v1635
        %v2536 = vpack.c.b16 %v1645, %v1636
        %v2537 = vpack.c.b16 %v1646, %v1637
        %v2538 = vpack.c.b16 %v1647, %v1638
        %v2539 = vpack.c.b16 %v1648, %v1639
        %v2540 = vpack.c.b16 %v1649, %v1640
        %v2541 = vpack.c.b16 %v1650, %v1641
        %v2542 = vpack.c.b16 %v1651, %v1642
        %v2543 = vpack.c.b16 %v1661, %v1652
        %v2544 = vpack.c.b16 %v1662, %v1653
        %v2545 = vpack.c.b16 %v1663, %v1654
        %v2546 = vpack.c.b16 %v1664, %v1655
        %v2547 = vpack.c.b16 %v1665, %v1656
        %v2548 = vpack.c.b16 %v1666, %v1657
        %v2549 = vpack.c.b16 %v1667, %v1658
        %v2550 = vpack.c.b16 %v1668, %v1659
        %v2551 = vpack.c.b16 %v1669, %v1660
        %v2552 = vpack.c.b16 %v1679, %v1670
        %v2553 = vpack.c.b16 %v1680, %v1671
        %v2554 = vpack.c.b16 %v1681, %v1672
        %v2555 = vpack.c.b16 %v1682, %v1673
        %v2556 = vpack.c.b16 %v1683, %v1674
        %v2557 = vpack.c.b16 %v1684, %v1675
        %v2558 = vpack.c.b16 %v1685, %v1676
        %v2559 = vpack.c.b16 %v1686, %v1677
        %v2560 = vpack.c.b16 %v1687, %v1678
        %v2561 = vpack.c.b16 %v1697, %v1688
        %v2562 = vpack.c.b16 %v1698, %v1689
        %v2563 = vpack.c.b16 %v1699, %v1690
        %v2564 = vpack.c.b16 %v1700, %v1691
        %v2565 = vpack.c.b16 %v1701, %v1692
        %v2566 = vpack.c.b16 %v1702, %v1693
        %v2567 = vpack.c.b16 %v1703, %v1694
        %v2568 = vpack.c.b16 %v1704, %v1695
        %v2569 = vpack.c.b16 %v1705, %v1696
        %v2570 = vpack.c.b16 %v1715, %v1706
        %v2571 = vpack.c.b16 %v1716, %v1707
        %v2572 = vpack.c.b16 %v1717, %v1708
        %v2573 = vpack.c.b16 %v1718, %v1709
        %v2574 = vpack.c.b16 %v1719, %v1710
        %v2575 = vpack.c.b16 %v1720, %v1711
        %v2576 = vpack.c.b16 %v1721, %v1712
        %v2577 = vpack.c.b16 %v1722, %v1713
        %v2578 = vpack.c.b16 %v1723, %v1714
        %v2579 = vpack.c.b16 %v1733, %v1724
        %v2580 = vpack.c.b16 %v1734, %v1725
        %v2581 = vpack.c.b16 %v1735, %v1726
        %v2582 = vpack.c.b16 %v1736, %v1727
        %v2583 = vpack.c.b16 %v1737, %v1728
        %v2584 = vpack.c.b16 %v1738, %v1729
        %v2585 = vpack.c.b16 %v1739, %v1730
        %v2586 = vpack.c.b16 %v1740, %v1731
        %v2587 = vpack.c.b16 %v1741, %v1732
        %v2588 = vpack.c.b16 %v1751, %v1742
        %v2589 = vpack.c.b16 %v1752, %v1743
        %v2590 = vpack.c.b16 %v1753, %v1744
        %v2591 = vpack.c.b16 %v1754, %v1745
        %v2592 = vpack.c.b16 %v1755, %v1746
        %v2593 = vpack.c.b16 %v1756, %v1747
        %v2594 = vpack.c.b16 %v1757, %v1748
        %v2595 = vpack.c.b16 %v1758, %v1749
        %v2596 = vpack.c.b16 %v1759, %v1750
        %v2597 = vpack.c.b16 %v1769, %v1760
        %v2598 = vpack.c.b16 %v1770, %v1761
        %v2599 = vpack.c.b16 %v1771, %v1762
        %v2600 = vpack.c.b16 %v1772, %v1763
        %v2601 = vpack.c.b16 %v1773, %v1764
        %v2602 = vpack.c.b16 %v1774, %v1765
        %v2603 = vpack.c.b16 %v1775, %v1766
        %v2604 = vpack.c.b16 %v1776, %v1767
        %v2605 = vpack.c.b16 %v1777, %v1768
        %v2606 = vpack.c.b16 %v1787, %v1778
        %v2607 = vpack.c.b16 %v1788, %v1779
        %v2608 = vpack.c.b16 %v1789, %v1780
        %v2609 = vpack.c.b16 %v1790, %v1781
        %v2610 = vpack.c.b16 %v1791, %v1782
        %v2611 = vpack.c.b16 %v1792, %v1783
        %v2612 = vpack.c.b16 %v1793, %v1784
        %v2613 = vpack.c.b16 %v1794, %v1785
        %v2614 = vpack.c.b16 %v1795, %v1786
        %v2615 = vpack.c.b16 %v1805, %v1796
        %v2616 = vpack.c.b16 %v1806, %v1797
        %v2617 = vpack.c.b16 %v1807, %v1798
        %v2618 = vpack.c.b16 %v1808, %v1799
        %v2619 = vpack.c.b16 %v1809, %v1800
        %v2620 = vpack.c.b16 %v1810, %v1801
        %v2621 = vpack.c.b16 %v1811, %v1802
        %v2622 = vpack.c.b16 %v1812, %v1803
        %v2623 = vpack.c.b16 %v1813, %v1804
        %v2624 = vpack.c.b16 %v1823, %v1814
        %v2625 = vpack.c.b16 %v1824, %v1815
        %v2626 = vpack.c.b16 %v1825, %v1816
        %v2627 = vpack.c.b16 %v1826, %v1817
        %v2628 = vpack.c.b16 %v1827, %v1818
        %v2629 = vpack.c.b16 %v1828, %v1819
        %v2630 = vpack.c.b16 %v1829, %v1820
        %v2631 = vpack.c.b16 %v1830, %v1821
        %v2632 = vpack.c.b16 %v1831, %v1822
        %v2633 = vpack.c.b16 %v1841, %v1832
        %v2634 = vpack.c.b16 %v1842, %v1833
        %v2635 = vpack.c.b16 %v1843, %v1834
        %v2636 = vpack.c.b16 %v1844, %v1835
        %v2637 = vpack.c.b16 %v1845, %v1836
        %v2638 = vpack.c.b16 %v1846, %v1837
        %v2639 = vpack.c.b16 %v1847, %v1838
        %v2640 = vpack.c.b16 %v1848, %v1839
        %v2641 = vpack.c.b16 %v1849, %v1840
        %v2642 = vpack.c.b16 %v1859, %v1850
        %v2643 = vpack.c.b16 %v1860, %v1851
        %v2644 = vpack.c.b16 %v1861, %v1852
        %v2645 = vpack.c.b16 %v1862, %v1853
        %v2646 = vpack.c.b16 %v1863, %v1854
        %v2647 = vpack.c.b16 %v1864, %v1855
        %v2648 = vpack.c.b16 %v1865, %v1856
        %v2649 = vpack.c.b16 %v1866, %v1857
        %v2650 = vpack.c.b16 %v1867, %v1858
        %v2651 = vpack.c.b16 %v1877, %v1868
        %v2652 = vpack.c.b16 %v1878, %v1869
        %v2653 = vpack.c.b16 %v1879, %v1870
        %v2654 = vpack.c.b16 %v1880, %v1871
        %v2655 = vpack.c.b16 %v1881, %v1872
        %v2656 = vpack.c.b16 %v1882, %v1873
        %v2657 = vpack.c.b16 %v1883, %v1874
        %v2658 = vpack.c.b16 %v1884, %v1875
        %v2659 = vpack.c.b16 %v1885, %v1876
        %v2660 = vpack.c.b16 %v1895, %v1886
        %v2661 = vpack.c.b16 %v1896, %v1887
        %v2662 = vpack.c.b16 %v1897, %v1888
        %v2663 = vpack.c.b16 %v1898, %v1889
        %v2664 = vpack.c.b16 %v1899, %v1890
        %v2665 = vpack.c.b16 %v1900, %v1891
        %v2666 = vpack.c.b16 %v1901, %v1892
        %v2667 = vpack.c.b16 %v1902, %v1893
        %v2668 = vpack.c.b16 %v1903, %v1894
        %v2669 = vpack.c.b16 %v1913, %v1904
        %v2670 = vpack.c.b16 %v1914, %v1905
        %v2671 = vpack.c.b16 %v1915, %v1906
        %v2672 = vpack.c.b16 %v1916, %v1907
        %v2673 = vpack.c.b16 %v1917, %v1908
        %v2674 = vpack.c.b16 %v1918, %v1909
        %v2675 = vpack.c.b16 %v1919, %v1910
        %v2676 = vpack.c.b16 %v1920, %v1911
        %v2677 = vpack.c.b16 %v1921, %v1912
        %v2678 = vpack.c.b16 %v1931, %v1922
        %v2679 = vpack.c.b16 %v1932, %v1923
        %v2680 = vpack.c.b16 %v1933, %v1924
        %v2681 = vpack.c.b16 %v1934, %v1925
        %v2682 = vpack.c.b16 %v1935, %v1926
        %v2683 = vpack.c.b16 %v1936, %v1927
        %v2684 = vpack.c.b16 %v1937, %v1928
        %v2685 = vpack.c.b16 %v1938, %v1929
        %v2686 = vpack.c.b16 %v1939, %v1930
        %v2687 = vpack.c.b16 %v1949, %v1940
        %v2688 = vpack.c.b16 %v1950, %v1941
        %v2689 = vpack.c.b16 %v1951, %v1942
        %v2690 = vpack.c.b16 %v1952, %v1943
        %v2691 = vpack.c.b16 %v1953, %v1944
        %v2692 = vpack.c.b16 %v1954, %v1945
        %v2693 = vpack.c.b16 %v1955, %v1946
        %v2694 = vpack.c.b16 %v1956, %v1947
        %v2695 = vpack.c.b16 %v1957, %v1948
        %v2696 = vpack.c.b16 %v1967, %v1958
        %v2697 = vpack.c.b16 %v1968, %v1959
        %v2698 = vpack.c.b16 %v1969, %v1960
        %v2699 = vpack.c.b16 %v1970, %v1961
        %v2700 = vpack.c.b16 %v1971, %v1962
        %v2701 = vpack.c.b16 %v1972, %v1963
        %v2702 = vpack.c.b16 %v1973, %v1964
        %v2703 = vpack.c.b16 %v1974, %v1965
        %v2704 = vpack.c.b16 %v1975, %v1966
        %v2705 = vpack.c.b16 %v1985, %v1976
        %v2706 = vpack.c.b16 %v1986, %v1977
        %v2707 = vpack.c.b16 %v1987, %v1978
        %v2708 = vpack.c.b16 %v1988, %v1979
        %v2709 = vpack.c.b16 %v1989, %v1980
        %v2710 = vpack.c.b16 %v1990, %v1981
        %v2711 = vpack.c.b16 %v1991, %v1982
        %v2712 = vpack.c.b16 %v1992, %v1983
        %v2713 = vpack.c.b16 %v1993, %v1984
        %v2714 = vpack.c.b16 %v2003, %v1994
        %v2715 = vpack.c.b16 %v2004, %v1995
        %v2716 = vpack.c.b16 %v2005, %v1996
        %v2717 = vpack.c.b16 %v2006, %v1997
        %v2718 = vpack.c.b16 %v2007, %v1998
        %v2719 = vpack.c.b16 %v2008, %v1999
        %v2720 = vpack.c.b16 %v2009, %v2000
        %v2721 = vpack.c.b16 %v2010, %v2001
        %v2722 = vpack.c.b16 %v2011, %v2002
        %v2723 = vpack.c.b16 %v2021, %v2012
        %v2724 = vpack.c.b16 %v2022, %v2013
        %v2725 = vpack.c.b16 %v2023, %v2014
        %v2726 = vpack.c.b16 %v2024, %v2015
        %v2727 = vpack.c.b16 %v2025, %v2016
        %v2728 = vpack.c.b16 %v2026, %v2017
        %v2729 = vpack.c.b16 %v2027, %v2018
        %v2730 = vpack.c.b16 %v2028, %v2019
        %v2731 = vpack.c.b16 %v2029, %v2020
        %v2732 = vpack.c.b16 %v2039, %v2030
        %v2733 = vpack.c.b16 %v2040, %v2031
        %v2734 = vpack.c.b16 %v2041, %v2032
        %v2735 = vpack.c.b16 %v2042, %v2033
        %v2736 = vpack.c.b16 %v2043, %v2034
        %v2737 = vpack.c.b16 %v2044, %v2035
        %v2738 = vpack.c.b16 %v2045, %v2036
        %v2739 = vpack.c.b16 %v2046, %v2037
        %v2740 = vpack.c.b16 %v2047, %v2038
        %v2741 = vpack.c.b16 %v2057, %v2048
        %v2742 = vpack.c.b16 %v2058, %v2049
        %v2743 = vpack.c.b16 %v2059, %v2050
        %v2744 = vpack.c.b16 %v2060, %v2051
        %v2745 = vpack.c.b16 %v2061, %v2052
        %v2746 = vpack.c.b16 %v2062, %v2053
        %v2747 = vpack.c.b16 %v2063, %v2054
        %v2748 = vpack.c.b16 %v2064, %v2055
        %v2749 = vpack.c.b16 %v2065, %v2056
        %v2750 = vpack.c.b16 %v2075, %v2066
        %v2751 = vpack.c.b16 %v2076, %v2067
        %v2752 = vpack.c.b16 %v2077, %v2068
        %v2753 = vpack.c.b16 %v2078, %v2069
        %v2754 = vpack.c.b16 %v2079, %v2070
        %v2755 = vpack.c.b16 %v2080, %v2071
        %v2756 = vpack.c.b16 %v2081, %v2072
        %v2757 = vpack.c.b16 %v2082, %v2073
        %v2758 = vpack.c.b16 %v2083, %v2074
        %v2759 = vpack.c.b16 %v2093, %v2084
        %v2760 = vpack.c.b16 %v2094, %v2085
        %v2761 = vpack.c.b16 %v2095, %v2086
        %v2762 = vpack.c.b16 %v2096, %v2087
        %v2763 = vpack.c.b16 %v2097, %v2088
        %v2764 = vpack.c.b16 %v2098, %v2089
        %v2765 = vpack.c.b16 %v2099, %v2090
        %v2766 = vpack.c.b16 %v2100, %v2091
        %v2767 = vpack.c.b16 %v2101, %v2092
        %v2768 = vpack.c.b16 %v2111, %v2102
        %v2769 = vpack.c.b16 %v2112, %v2103
        %v2770 = vpack.c.b16 %v2113, %v2104
        %v2771 = vpack.c.b16 %v2114, %v2105
        %v2772 = vpack.c.b16 %v2115, %v2106
        %v2773 = vpack.c.b16 %v2116, %v2107
        %v2774 = vpack.c.b16 %v2117, %v2108
        %v2775 = vpack.c.b16 %v2118, %v2109
        %v2776 = vpack.c.b16 %v2119, %v2110
        %v2777 = vpack.c.b16 %v2129, %v2120
        %v2778 = vpack.c.b16 %v2130, %v2121
        %v2779 = vpack.c.b16 %v2131, %v2122
        %v2780 = vpack.c.b16 %v2132, %v2123
        %v2781 = vpack.c.b16 %v2133, %v2124
        %v2782 = vpack.c.b16 %v2134, %v2125
        %v2783 = vpack.c.b16 %v2135, %v2126
        %v2784 = vpack.c.b16 %v2136, %v2127
        %v2785 = vpack.c.b16 %v2137, %v2128
        %v2786 = vpack.c.b16 %v2147, %v2138
        %v2787 = vpack.c.b16 %v2148, %v2139
        %v2788 = vpack.c.b16 %v2149, %v2140
        %v2789 = vpack.c.b16 %v2150, %v2141
        %v2790 = vpack.c.b16 %v2151, %v2142
        %v2791 = vpack.c.b16 %v2152, %v2143
        %v2792 = vpack.c.b16 %v2153, %v2144
        %v2793 = vpack.c.b16 %v2154, %v2145
        %v2794 = vpack.c.b16 %v2155, %v2146
        %v2795 = vpack.c.b16 %v2165, %v2156
        %v2796 = vpack.c.b16 %v2166, %v2157
        %v2797 = vpack.c.b16 %v2167, %v2158
        %v2798 = vpack.c.b16 %v2168, %v2159
        %v2799 = vpack.c.b16 %v2169, %v2160
        %v2800 = vpack.c.b16 %v2170, %v2161
        %v2801 = vpack.c.b16 %v2171, %v2162
        %v2802 = vpack.c.b16 %v2172, %v2163
        %v2803 = vpack.c.b16 %v2173, %v2164
        %v2804 = vpack.c.b16 %v2183, %v2174
        %v2805 = vpack.c.b16 %v2184, %v2175
        %v2806 = vpack.c.b16 %v2185, %v2176
        %v2807 = vpack.c.b16 %v2186, %v2177
        %v2808 = vpack.c.b16 %v2187, %v2178
        %v2809 = vpack.c.b16 %v2188, %v2179
        %v2810 = vpack.c.b16 %v2189, %v2180
        %v2811 = vpack.c.b16 %v2190, %v2181
        %v2812 = vpack.c.b16 %v2191, %v2182
        %v2813 = vpack.c.b16 %v2201, %v2192
        %v2814 = vpack.c.b16 %v2202, %v2193
        %v2815 = vpack.c.b16 %v2203, %v2194
        %v2816 = vpack.c.b16 %v2204, %v2195
        %v2817 = vpack.c.b16 %v2205, %v2196
        %v2818 = vpack.c.b16 %v2206, %v2197
        %v2819 = vpack.c.b16 %v2207, %v2198
        %v2820 = vpack.c.b16 %v2208, %v2199
        %v2821 = vpack.c.b16 %v2209, %v2200
        %v2822 = vpack.c.b16 %v2219, %v2210
        %v2823 = vpack.c.b16 %v2220, %v2211
        %v2824 = vpack.c.b16 %v2221, %v2212
        %v2825 = vpack.c.b16 %v2222, %v2213
        %v2826 = vpack.c.b16 %v2223, %v2214
        %v2827 = vpack.c.b16 %v2224, %v2215
        %v2828 = vpack.c.b16 %v2225, %v2216
        %v2829 = vpack.c.b16 %v2226, %v2217
        %v2830 = vpack.c.b16 %v2227, %v2218
        %v2831 = vpack.c.b16 %v2237, %v2228
        %v2832 = vpack.c.b16 %v2238, %v2229
        %v2833 = vpack.c.b16 %v2239, %v2230
        %v2834 = vpack.c.b16 %v2240, %v2231
        %v2835 = vpack.c.b16 %v2241, %v2232
        %v2836 = vpack.c.b16 %v2242, %v2233
        %v2837 = vpack.c.b16 %v2243, %v2234
        %v2838 = vpack.c.b16 %v2244, %v2235
        %v2839 = vpack.c.b16 %v2245, %v2236
        %v2840 = vpack.c.b16 %v2255, %v2246
        %v2841 = vpack.c.b16 %v2256, %v2247
        %v2842 = vpack.c.b16 %v2257, %v2248
        %v2843 = vpack.c.b16 %v2258, %v2249
        %v2844 = vpack.c.b16 %v2259, %v2250
        %v2845 = vpack.c.b16 %v2260, %v2251
        %v2846 = vpack.c.b16 %v2261, %v2252
        %v2847 = vpack.c.b16 %v2262, %v2253
        %v2848 = vpack.c.b16 %v2263, %v2254
        %v2849 = vpack.c.b16 %v2273, %v2264
        %v2850 = vpack.c.b16 %v2274, %v2265
        %v2851 = vpack.c.b16 %v2275, %v2266
        %v2852 = vpack.c.b16 %v2276, %v2267
        %v2853 = vpack.c.b16 %v2277, %v2268
        %v2854 = vpack.c.b16 %v2278, %v2269
        %v2855 = vpack.c.b16 %v2279, %v2270
        %v2856 = vpack.c.b16 %v2280, %v2271
        %v2857 = vpack.c.b16 %v2281, %v2272
        %v2858 = vpack.c.b16 %v2291, %v2282
        %v2859 = vpack.c.b16 %v2292, %v2283
        %v2860 = vpack.c.b16 %v2293, %v2284
        %v2861 = vpack.c.b16 %v2294, %v2285
        %v2862 = vpack.c.b16 %v2295, %v2286
        %v2863 = vpack.c.b16 %v2296, %v2287
        %v2864 = vpack.c.b16 %v2297, %v2288
        %v2865 = vpack.c.b16 %v2298, %v2289
        %v2866 = vpack.c.b16 %v2299, %v2290
        %v2867 = vpack.c.b16 %v2309, %v2300
        %v2868 = vpack.c.b16 %v2310, %v2301
        %v2869 = vpack.c.b16 %v2311, %v2302
        %v2870 = vpack.c.b16 %v2312, %v2303
        %v2871 = vpack.c.b16 %v2313, %v2304
        %v2872 = vpack.c.b16 %v2314, %v2305
        %v2873 = vpack.c.b16 %v2315, %v2306
        %v2874 = vpack.c.b16 %v2316, %v2307
        %v2875 = vpack.c.b16 %v2317, %v2308
        %v2876 = vpack.c.b16 %v2327, %v2318
        %v2877 = vpack.c.b16 %v2328, %v2319
        %v2878 = vpack.c.b16 %v2329, %v2320
        %v2879 = vpack.c.b16 %v2330, %v2321
        %v2880 = vpack.c.b16 %v2331, %v2322
        %v2881 = vpack.c.b16 %v2332, %v2323
        %v2882 = vpack.c.b16 %v2333, %v2324
        %v2883 = vpack.c.b16 %v2334, %v2325
        %v2884 = vpack.c.b16 %v2335, %v2326
        %v2885 = vpack.c.b16 %v2345, %v2336
        %v2886 = vpack.c.b16 %v2346, %v2337
        %v2887 = vpack.c.b16 %v2347, %v2338
        %v2888 = vpack.c.b16 %v2348, %v2339
        %v2889 = vpack.c.b16 %v2349, %v2340
        %v2890 = vpack.c.b16 %v2350, %v2341
        %v2891 = vpack.c.b16 %v2351, %v2342
        %v2892 = vpack.c.b16 %v2352, %v2343
        %v2893 = vpack.c.b16 %v2353, %v2344
        %v2894 = vpack.c.b16 %v2363, %v2354
        %v2895 = vpack.c.b16 %v2364, %v2355
        %v2896 = vpack.c.b16 %v2365, %v2356
        %v2897 = vpack.c.b16 %v2366, %v2357
        %v2898 = vpack.c.b16 %v2367, %v2358
        %v2899 = vpack.c.b16 %v2368, %v2359
        %v2900 = vpack.c.b16 %v2369, %v2360
        %v2901 = vpack.c.b16 %v2370, %v2361
        %v2902 = vpack.c.b16 %v2371, %v2362
        %v2903 = vpack.c.b16 %v2381, %v2372
        %v2904 = vpack.c.b16 %v2382, %v2373
        %v2905 = vpack.c.b16 %v2383, %v2374
        %v2906 = vpack.c.b16 %v2384, %v2375
        %v2907 = vpack.c.b16 %v2385, %v2376
        %v2908 = vpack.c.b16 %v2386, %v2377
        %v2909 = vpack.c.b16 %v2387, %v2378
        %v2910 = vpack.c.b16 %v2388, %v2379
        %v2911 = vpack.c.b16 %v2389, %v2380
        %v2912 = vpack.c.b16 %v2399, %v2390
        %v2913 = vpack.c.b16 %v2400, %v2391
        %v2914 = vpack.c.b16 %v2401, %v2392
        %v2915 = vpack.c.b16 %v2402, %v2393
        %v2916 = vpack.c.b16 %v2403, %v2394
        %v2917 = vpack.c.b16 %v2404, %v2395
        %v2918 = vpack.c.b16 %v2405, %v2396
        %v2919 = vpack.c.b16 %v2406, %v2397
        %v2920 = vpack.c.b16 %v2407, %v2398
        %v2921 = vpack.c.b16 %v2417, %v2408
        %v2922 = vpack.c.b16 %v2418, %v2409
        %v2923 = vpack.c.b16 %v2419, %v2410
        %v2924 = vpack.c.b16 %v2420, %v2411
        %v2925 = vpack.c.b16 %v2421, %v2412
        %v2926 = vpack.c.b16 %v2422, %v2413
        %v2927 = vpack.c.b16 %v2423, %v2414
        %v2928 = vpack.c.b16 %v2424, %v2415
        %v2929 = vpack.c.b16 %v2425, %v2416
        %3434 = vmatpush.bf16.msra.mxu0 %v2489
        %3435 = vmatpush.bf16.msra.mxu0 %v2480
        %3436 = vmatpush.bf16.msra.mxu0 %v2471
        %3437 = vmatpush.bf16.msra.mxu0 %v2462
        %3438 = vmatpush.bf16.msra.mxu0 %v2453
        %3439 = vmatpush.bf16.msra.mxu0 %v2444
        %3440 = vmatpush.bf16.msra.mxu0 %v2435
        %3441 = vmatpush.bf16.msra.mxu0 %v2426
        %3442 = vmatmul.bf16.gmra.mxu0 %v844
        %v3443 = vpop.f32.mrf.mxu0
        %v3444 = vadd.f32 0.0, %v3443
        %v3445 = vpop.f32.mrf.mxu0
        %3446 = vdwg.mxu0
        %3447 = vmatpush.bf16.msra.mxu0 %v2561
        %3448 = vmatpush.bf16.msra.mxu0 %v2552
        %3449 = vmatpush.bf16.msra.mxu0 %v2543
        %3450 = vmatpush.bf16.msra.mxu0 %v2534
        %3451 = vmatpush.bf16.msra.mxu0 %v2525
        %3452 = vmatpush.bf16.msra.mxu0 %v2516
        %3453 = vmatpush.bf16.msra.mxu0 %v2507
        %3454 = vmatpush.bf16.msra.mxu0 %v2498
        %3455 = vmatmul.bf16.gmra.mxu0 %v845
        %v3456 = vpop.f32.mrf.mxu0
        %v3457 = vadd.f32 %v3444, %v3456
        %v3458 = vpop.f32.mrf.mxu0
        %3459 = vdwg.mxu0
        %3460 = vmatpush.bf16.msra.mxu0 %v2633
        %3461 = vmatpush.bf16.msra.mxu0 %v2624
        %3462 = vmatpush.bf16.msra.mxu0 %v2615
        %3463 = vmatpush.bf16.msra.mxu0 %v2606
        %3464 = vmatpush.bf16.msra.mxu0 %v2597
        %3465 = vmatpush.bf16.msra.mxu0 %v2588
        %3466 = vmatpush.bf16.msra.mxu0 %v2579
        %3467 = vmatpush.bf16.msra.mxu0 %v2570
        %3468 = vmatmul.bf16.gmra.mxu0 %v846
        %v3469 = vpop.f32.mrf.mxu0
        %v3470 = vadd.f32 %v3457, %v3469
        %v3471 = vpop.f32.mrf.mxu0
        %3472 = vdwg.mxu0
        %3473 = vmatpush.bf16.msra.mxu0 %v2705
        %3474 = vmatpush.bf16.msra.mxu0 %v2696
        %3475 = vmatpush.bf16.msra.mxu0 %v2687
        %3476 = vmatpush.bf16.msra.mxu0 %v2678
        %3477 = vmatpush.bf16.msra.mxu0 %v2669
        %3478 = vmatpush.bf16.msra.mxu0 %v2660
        %3479 = vmatpush.bf16.msra.mxu0 %v2651
        %3480 = vmatpush.bf16.msra.mxu0 %v2642
        %3481 = vmatmul.bf16.gmra.mxu0 %v847
        %v3482 = vpop.f32.mrf.mxu0
        %v3483 = vadd.f32 %v3470, %v3482
        %v3484 = vpop.f32.mrf.mxu0
        %3485 = vdwg.mxu0
        %3486 = vmatpush.bf16.msra.mxu0 %v2777
        %3487 = vmatpush.bf16.msra.mxu0 %v2768
        %3488 = vmatpush.bf16.msra.mxu0 %v2759
        %3489 = vmatpush.bf16.msra.mxu0 %v2750
        %3490 = vmatpush.bf16.msra.mxu0 %v2741
        %3491 = vmatpush.bf16.msra.mxu0 %v2732
        %3492 = vmatpush.bf16.msra.mxu0 %v2723
        %3493 = vmatpush.bf16.msra.mxu0 %v2714
        %3494 = vmatmul.bf16.gmra.mxu0 %v848
        %v3495 = vpop.f32.mrf.mxu0
        %v3496 = vadd.f32 %v3483, %v3495
        %v3497 = vpop.f32.mrf.mxu0
        %3498 = vdwg.mxu0
        %3499 = vmatpush.bf16.msra.mxu0 %v2849
        %3500 = vmatpush.bf16.msra.mxu0 %v2840
        %3501 = vmatpush.bf16.msra.mxu0 %v2831
        %3502 = vmatpush.bf16.msra.mxu0 %v2822
        %3503 = vmatpush.bf16.msra.mxu0 %v2813
        %3504 = vmatpush.bf16.msra.mxu0 %v2804
        %3505 = vmatpush.bf16.msra.mxu0 %v2795
        %3506 = vmatpush.bf16.msra.mxu0 %v2786
        %3507 = vmatmul.bf16.gmra.mxu0 %v849
        %v3508 = vpop.f32.mrf.mxu0
        %v3509 = vadd.f32 %v3496, %v3508
        %v3510 = vpop.f32.mrf.mxu0
        %3511 = vdwg.mxu0
        %3512 = vmatpush.bf16.msra.mxu0 %v2921
        %3513 = vmatpush.bf16.msra.mxu0 %v2912
        %3514 = vmatpush.bf16.msra.mxu0 %v2903
        %3515 = vmatpush.bf16.msra.mxu0 %v2894
        %3516 = vmatpush.bf16.msra.mxu0 %v2885
        %3517 = vmatpush.bf16.msra.mxu0 %v2876
        %3518 = vmatpush.bf16.msra.mxu0 %v2867
        %3519 = vmatpush.bf16.msra.mxu0 %v2858
        %3520 = vmatmul.bf16.gmra.mxu0 %v850
        %v3521 = vpop.f32.mrf.mxu0
        %v3522 = vadd.f32 %v3509, %v3521
        %v3523 = vpop.f32.mrf.mxu0
        %3524 = vdwg.mxu0
        %3525 = vmatpush.bf16.msra.mxu0 %v2490
        %3526 = vmatpush.bf16.msra.mxu0 %v2481
        %3527 = vmatpush.bf16.msra.mxu0 %v2472
        %3528 = vmatpush.bf16.msra.mxu0 %v2463
        %3529 = vmatpush.bf16.msra.mxu0 %v2454
        %3530 = vmatpush.bf16.msra.mxu0 %v2445
        %3531 = vmatpush.bf16.msra.mxu0 %v2436
        %3532 = vmatpush.bf16.msra.mxu0 %v2427
        %3533 = vmatmul.bf16.gmra.mxu0 %v844
        %v3534 = vpop.f32.mrf.mxu0
        %v3535 = vadd.f32 0.0, %v3534
        %v3536 = vpop.f32.mrf.mxu0
        %3537 = vdwg.mxu0
        %3538 = vmatpush.bf16.msra.mxu0 %v2562
        %3539 = vmatpush.bf16.msra.mxu0 %v2553
        %3540 = vmatpush.bf16.msra.mxu0 %v2544
        %3541 = vmatpush.bf16.msra.mxu0 %v2535
        %3542 = vmatpush.bf16.msra.mxu0 %v2526
        %3543 = vmatpush.bf16.msra.mxu0 %v2517
        %3544 = vmatpush.bf16.msra.mxu0 %v2508
        %3545 = vmatpush.bf16.msra.mxu0 %v2499
        %3546 = vmatmul.bf16.gmra.mxu0 %v845
        %v3547 = vpop.f32.mrf.mxu0
        %v3548 = vadd.f32 %v3535, %v3547
        %v3549 = vpop.f32.mrf.mxu0
        %3550 = vdwg.mxu0
        %3551 = vmatpush.bf16.msra.mxu0 %v2634
        %3552 = vmatpush.bf16.msra.mxu0 %v2625
        %3553 = vmatpush.bf16.msra.mxu0 %v2616
        %3554 = vmatpush.bf16.msra.mxu0 %v2607
        %3555 = vmatpush.bf16.msra.mxu0 %v2598
        %3556 = vmatpush.bf16.msra.mxu0 %v2589
        %3557 = vmatpush.bf16.msra.mxu0 %v2580
        %3558 = vmatpush.bf16.msra.mxu0 %v2571
        %3559 = vmatmul.bf16.gmra.mxu0 %v846
        %v3560 = vpop.f32.mrf.mxu0
        %v3561 = vadd.f32 %v3548, %v3560
        %v3562 = vpop.f32.mrf.mxu0
        %3563 = vdwg.mxu0
        %3564 = vmatpush.bf16.msra.mxu0 %v2706
        %3565 = vmatpush.bf16.msra.mxu0 %v2697
        %3566 = vmatpush.bf16.msra.mxu0 %v2688
        %3567 = vmatpush.bf16.msra.mxu0 %v2679
        %3568 = vmatpush.bf16.msra.mxu0 %v2670
        %3569 = vmatpush.bf16.msra.mxu0 %v2661
        %3570 = vmatpush.bf16.msra.mxu0 %v2652
        %3571 = vmatpush.bf16.msra.mxu0 %v2643
        %3572 = vmatmul.bf16.gmra.mxu0 %v847
        %v3573 = vpop.f32.mrf.mxu0
        %v3574 = vadd.f32 %v3561, %v3573
        %v3575 = vpop.f32.mrf.mxu0
        %3576 = vdwg.mxu0
        %3577 = vmatpush.bf16.msra.mxu0 %v2778
        %3578 = vmatpush.bf16.msra.mxu0 %v2769
        %3579 = vmatpush.bf16.msra.mxu0 %v2760
        %3580 = vmatpush.bf16.msra.mxu0 %v2751
        %3581 = vmatpush.bf16.msra.mxu0 %v2742
        %3582 = vmatpush.bf16.msra.mxu0 %v2733
        %3583 = vmatpush.bf16.msra.mxu0 %v2724
        %3584 = vmatpush.bf16.msra.mxu0 %v2715
        %3585 = vmatmul.bf16.gmra.mxu0 %v848
        %v3586 = vpop.f32.mrf.mxu0
        %v3587 = vadd.f32 %v3574, %v3586
        %v3588 = vpop.f32.mrf.mxu0
        %3589 = vdwg.mxu0
        %3590 = vmatpush.bf16.msra.mxu0 %v2850
        %3591 = vmatpush.bf16.msra.mxu0 %v2841
        %3592 = vmatpush.bf16.msra.mxu0 %v2832
        %3593 = vmatpush.bf16.msra.mxu0 %v2823
        %3594 = vmatpush.bf16.msra.mxu0 %v2814
        %3595 = vmatpush.bf16.msra.mxu0 %v2805
        %3596 = vmatpush.bf16.msra.mxu0 %v2796
        %3597 = vmatpush.bf16.msra.mxu0 %v2787
        %3598 = vmatmul.bf16.gmra.mxu0 %v849
        %v3599 = vpop.f32.mrf.mxu0
        %v3600 = vadd.f32 %v3587, %v3599
        %v3601 = vpop.f32.mrf.mxu0
        %3602 = vdwg.mxu0
        %3603 = vmatpush.bf16.msra.mxu0 %v2922
        %3604 = vmatpush.bf16.msra.mxu0 %v2913
        %3605 = vmatpush.bf16.msra.mxu0 %v2904
        %3606 = vmatpush.bf16.msra.mxu0 %v2895
        %3607 = vmatpush.bf16.msra.mxu0 %v2886
        %3608 = vmatpush.bf16.msra.mxu0 %v2877
        %3609 = vmatpush.bf16.msra.mxu0 %v2868
        %3610 = vmatpush.bf16.msra.mxu0 %v2859
        %3611 = vmatmul.bf16.gmra.mxu0 %v850
        %v3612 = vpop.f32.mrf.mxu0
        %v3613 = vadd.f32 %v3600, %v3612
        %v3614 = vpop.f32.mrf.mxu0
        %3615 = vdwg.mxu0
        %3616 = vmatpush.bf16.msra.mxu0 %v2491
        %3617 = vmatpush.bf16.msra.mxu0 %v2482
        %3618 = vmatpush.bf16.msra.mxu0 %v2473
        %3619 = vmatpush.bf16.msra.mxu0 %v2464
        %3620 = vmatpush.bf16.msra.mxu0 %v2455
        %3621 = vmatpush.bf16.msra.mxu0 %v2446
        %3622 = vmatpush.bf16.msra.mxu0 %v2437
        %3623 = vmatpush.bf16.msra.mxu0 %v2428
        %3624 = vmatmul.bf16.gmra.mxu0 %v844
        %v3625 = vpop.f32.mrf.mxu0
        %v3626 = vadd.f32 0.0, %v3625
        %v3627 = vpop.f32.mrf.mxu0
        %3628 = vdwg.mxu0
        %3629 = vmatpush.bf16.msra.mxu0 %v2563
        %3630 = vmatpush.bf16.msra.mxu0 %v2554
        %3631 = vmatpush.bf16.msra.mxu0 %v2545
        %3632 = vmatpush.bf16.msra.mxu0 %v2536
        %3633 = vmatpush.bf16.msra.mxu0 %v2527
        %3634 = vmatpush.bf16.msra.mxu0 %v2518
        %3635 = vmatpush.bf16.msra.mxu0 %v2509
        %3636 = vmatpush.bf16.msra.mxu0 %v2500
        %3637 = vmatmul.bf16.gmra.mxu0 %v845
        %v3638 = vpop.f32.mrf.mxu0
        %v3639 = vadd.f32 %v3626, %v3638
        %v3640 = vpop.f32.mrf.mxu0
        %3641 = vdwg.mxu0
        %3642 = vmatpush.bf16.msra.mxu0 %v2635
        %3643 = vmatpush.bf16.msra.mxu0 %v2626
        %3644 = vmatpush.bf16.msra.mxu0 %v2617
        %3645 = vmatpush.bf16.msra.mxu0 %v2608
        %3646 = vmatpush.bf16.msra.mxu0 %v2599
        %3647 = vmatpush.bf16.msra.mxu0 %v2590
        %3648 = vmatpush.bf16.msra.mxu0 %v2581
        %3649 = vmatpush.bf16.msra.mxu0 %v2572
        %3650 = vmatmul.bf16.gmra.mxu0 %v846
        %v3651 = vpop.f32.mrf.mxu0
        %v3652 = vadd.f32 %v3639, %v3651
        %v3653 = vpop.f32.mrf.mxu0
        %3654 = vdwg.mxu0
        %3655 = vmatpush.bf16.msra.mxu0 %v2707
        %3656 = vmatpush.bf16.msra.mxu0 %v2698
        %3657 = vmatpush.bf16.msra.mxu0 %v2689
        %3658 = vmatpush.bf16.msra.mxu0 %v2680
        %3659 = vmatpush.bf16.msra.mxu0 %v2671
        %3660 = vmatpush.bf16.msra.mxu0 %v2662
        %3661 = vmatpush.bf16.msra.mxu0 %v2653
        %3662 = vmatpush.bf16.msra.mxu0 %v2644
        %3663 = vmatmul.bf16.gmra.mxu0 %v847
        %v3664 = vpop.f32.mrf.mxu0
        %v3665 = vadd.f32 %v3652, %v3664
        %v3666 = vpop.f32.mrf.mxu0
        %3667 = vdwg.mxu0
        %3668 = vmatpush.bf16.msra.mxu0 %v2779
        %3669 = vmatpush.bf16.msra.mxu0 %v2770
        %3670 = vmatpush.bf16.msra.mxu0 %v2761
        %3671 = vmatpush.bf16.msra.mxu0 %v2752
        %3672 = vmatpush.bf16.msra.mxu0 %v2743
        %3673 = vmatpush.bf16.msra.mxu0 %v2734
        %3674 = vmatpush.bf16.msra.mxu0 %v2725
        %3675 = vmatpush.bf16.msra.mxu0 %v2716
        %3676 = vmatmul.bf16.gmra.mxu0 %v848
        %v3677 = vpop.f32.mrf.mxu0
        %v3678 = vadd.f32 %v3665, %v3677
        %v3679 = vpop.f32.mrf.mxu0
        %3680 = vdwg.mxu0
        %3681 = vmatpush.bf16.msra.mxu0 %v2851
        %3682 = vmatpush.bf16.msra.mxu0 %v2842
        %3683 = vmatpush.bf16.msra.mxu0 %v2833
        %3684 = vmatpush.bf16.msra.mxu0 %v2824
        %3685 = vmatpush.bf16.msra.mxu0 %v2815
        %3686 = vmatpush.bf16.msra.mxu0 %v2806
        %3687 = vmatpush.bf16.msra.mxu0 %v2797
        %3688 = vmatpush.bf16.msra.mxu0 %v2788
        %3689 = vmatmul.bf16.gmra.mxu0 %v849
        %v3690 = vpop.f32.mrf.mxu0
        %v3691 = vadd.f32 %v3678, %v3690
        %v3692 = vpop.f32.mrf.mxu0
        %3693 = vdwg.mxu0
        %3694 = vmatpush.bf16.msra.mxu0 %v2923
        %3695 = vmatpush.bf16.msra.mxu0 %v2914
        %3696 = vmatpush.bf16.msra.mxu0 %v2905
        %3697 = vmatpush.bf16.msra.mxu0 %v2896
        %3698 = vmatpush.bf16.msra.mxu0 %v2887
        %3699 = vmatpush.bf16.msra.mxu0 %v2878
        %3700 = vmatpush.bf16.msra.mxu0 %v2869
        %3701 = vmatpush.bf16.msra.mxu0 %v2860
        %3702 = vmatmul.bf16.gmra.mxu0 %v850
        %v3703 = vpop.f32.mrf.mxu0
        %v3704 = vadd.f32 %v3691, %v3703
        %v3705 = vpop.f32.mrf.mxu0
        %3706 = vdwg.mxu0
        %3707 = vmatpush.bf16.msra.mxu0 %v2492
        %3708 = vmatpush.bf16.msra.mxu0 %v2483
        %3709 = vmatpush.bf16.msra.mxu0 %v2474
        %3710 = vmatpush.bf16.msra.mxu0 %v2465
        %3711 = vmatpush.bf16.msra.mxu0 %v2456
        %3712 = vmatpush.bf16.msra.mxu0 %v2447
        %3713 = vmatpush.bf16.msra.mxu0 %v2438
        %3714 = vmatpush.bf16.msra.mxu0 %v2429
        %3715 = vmatmul.bf16.gmra.mxu0 %v844
        %v3716 = vpop.f32.mrf.mxu0
        %v3717 = vadd.f32 0.0, %v3716
        %v3718 = vpop.f32.mrf.mxu0
        %3719 = vdwg.mxu0
        %3720 = vmatpush.bf16.msra.mxu0 %v2564
        %3721 = vmatpush.bf16.msra.mxu0 %v2555
        %3722 = vmatpush.bf16.msra.mxu0 %v2546
        %3723 = vmatpush.bf16.msra.mxu0 %v2537
        %3724 = vmatpush.bf16.msra.mxu0 %v2528
        %3725 = vmatpush.bf16.msra.mxu0 %v2519
        %3726 = vmatpush.bf16.msra.mxu0 %v2510
        %3727 = vmatpush.bf16.msra.mxu0 %v2501
        %3728 = vmatmul.bf16.gmra.mxu0 %v845
        %v3729 = vpop.f32.mrf.mxu0
        %v3730 = vadd.f32 %v3717, %v3729
        %v3731 = vpop.f32.mrf.mxu0
        %3732 = vdwg.mxu0
        %3733 = vmatpush.bf16.msra.mxu0 %v2636
        %3734 = vmatpush.bf16.msra.mxu0 %v2627
        %3735 = vmatpush.bf16.msra.mxu0 %v2618
        %3736 = vmatpush.bf16.msra.mxu0 %v2609
        %3737 = vmatpush.bf16.msra.mxu0 %v2600
        %3738 = vmatpush.bf16.msra.mxu0 %v2591
        %3739 = vmatpush.bf16.msra.mxu0 %v2582
        %3740 = vmatpush.bf16.msra.mxu0 %v2573
        %3741 = vmatmul.bf16.gmra.mxu0 %v846
        %v3742 = vpop.f32.mrf.mxu0
        %v3743 = vadd.f32 %v3730, %v3742
        %v3744 = vpop.f32.mrf.mxu0
        %3745 = vdwg.mxu0
        %3746 = vmatpush.bf16.msra.mxu0 %v2708
        %3747 = vmatpush.bf16.msra.mxu0 %v2699
        %3748 = vmatpush.bf16.msra.mxu0 %v2690
        %3749 = vmatpush.bf16.msra.mxu0 %v2681
        %3750 = vmatpush.bf16.msra.mxu0 %v2672
        %3751 = vmatpush.bf16.msra.mxu0 %v2663
        %3752 = vmatpush.bf16.msra.mxu0 %v2654
        %3753 = vmatpush.bf16.msra.mxu0 %v2645
        %3754 = vmatmul.bf16.gmra.mxu0 %v847
        %v3755 = vpop.f32.mrf.mxu0
        %v3756 = vadd.f32 %v3743, %v3755
        %v3757 = vpop.f32.mrf.mxu0
        %3758 = vdwg.mxu0
        %3759 = vmatpush.bf16.msra.mxu0 %v2780
        %3760 = vmatpush.bf16.msra.mxu0 %v2771
        %3761 = vmatpush.bf16.msra.mxu0 %v2762
        %3762 = vmatpush.bf16.msra.mxu0 %v2753
        %3763 = vmatpush.bf16.msra.mxu0 %v2744
        %3764 = vmatpush.bf16.msra.mxu0 %v2735
        %3765 = vmatpush.bf16.msra.mxu0 %v2726
        %3766 = vmatpush.bf16.msra.mxu0 %v2717
        %3767 = vmatmul.bf16.gmra.mxu0 %v848
        %v3768 = vpop.f32.mrf.mxu0
        %v3769 = vadd.f32 %v3756, %v3768
        %v3770 = vpop.f32.mrf.mxu0
        %3771 = vdwg.mxu0
        %3772 = vmatpush.bf16.msra.mxu0 %v2852
        %3773 = vmatpush.bf16.msra.mxu0 %v2843
        %3774 = vmatpush.bf16.msra.mxu0 %v2834
        %3775 = vmatpush.bf16.msra.mxu0 %v2825
        %3776 = vmatpush.bf16.msra.mxu0 %v2816
        %3777 = vmatpush.bf16.msra.mxu0 %v2807
        %3778 = vmatpush.bf16.msra.mxu0 %v2798
        %3779 = vmatpush.bf16.msra.mxu0 %v2789
        %3780 = vmatmul.bf16.gmra.mxu0 %v849
        %v3781 = vpop.f32.mrf.mxu0
        %v3782 = vadd.f32 %v3769, %v3781
        %v3783 = vpop.f32.mrf.mxu0
        %3784 = vdwg.mxu0
        %3785 = vmatpush.bf16.msra.mxu0 %v2924
        %3786 = vmatpush.bf16.msra.mxu0 %v2915
        %3787 = vmatpush.bf16.msra.mxu0 %v2906
        %3788 = vmatpush.bf16.msra.mxu0 %v2897
        %3789 = vmatpush.bf16.msra.mxu0 %v2888
        %3790 = vmatpush.bf16.msra.mxu0 %v2879
        %3791 = vmatpush.bf16.msra.mxu0 %v2870
        %3792 = vmatpush.bf16.msra.mxu0 %v2861
        %3793 = vmatmul.bf16.gmra.mxu0 %v850
        %v3794 = vpop.f32.mrf.mxu0
        %v3795 = vadd.f32 %v3782, %v3794
        %v3796 = vpop.f32.mrf.mxu0
        %3797 = vdwg.mxu0
        %3798 = vmatpush.bf16.msra.mxu0 %v2493
        %3799 = vmatpush.bf16.msra.mxu0 %v2484
        %3800 = vmatpush.bf16.msra.mxu0 %v2475
        %3801 = vmatpush.bf16.msra.mxu0 %v2466
        %3802 = vmatpush.bf16.msra.mxu0 %v2457
        %3803 = vmatpush.bf16.msra.mxu0 %v2448
        %3804 = vmatpush.bf16.msra.mxu0 %v2439
        %3805 = vmatpush.bf16.msra.mxu0 %v2430
        %3806 = vmatmul.bf16.gmra.mxu0 %v844
        %v3807 = vpop.f32.mrf.mxu0
        %v3808 = vadd.f32 0.0, %v3807
        %v3809 = vpop.f32.mrf.mxu0
        %3810 = vdwg.mxu0
        %3811 = vmatpush.bf16.msra.mxu0 %v2565
        %3812 = vmatpush.bf16.msra.mxu0 %v2556
        %3813 = vmatpush.bf16.msra.mxu0 %v2547
        %3814 = vmatpush.bf16.msra.mxu0 %v2538
        %3815 = vmatpush.bf16.msra.mxu0 %v2529
        %3816 = vmatpush.bf16.msra.mxu0 %v2520
        %3817 = vmatpush.bf16.msra.mxu0 %v2511
        %3818 = vmatpush.bf16.msra.mxu0 %v2502
        %3819 = vmatmul.bf16.gmra.mxu0 %v845
        %v3820 = vpop.f32.mrf.mxu0
        %v3821 = vadd.f32 %v3808, %v3820
        %v3822 = vpop.f32.mrf.mxu0
        %3823 = vdwg.mxu0
        %3824 = vmatpush.bf16.msra.mxu0 %v2637
        %3825 = vmatpush.bf16.msra.mxu0 %v2628
        %3826 = vmatpush.bf16.msra.mxu0 %v2619
        %3827 = vmatpush.bf16.msra.mxu0 %v2610
        %3828 = vmatpush.bf16.msra.mxu0 %v2601
        %3829 = vmatpush.bf16.msra.mxu0 %v2592
        %3830 = vmatpush.bf16.msra.mxu0 %v2583
        %3831 = vmatpush.bf16.msra.mxu0 %v2574
        %3832 = vmatmul.bf16.gmra.mxu0 %v846
        %v3833 = vpop.f32.mrf.mxu0
        %v3834 = vadd.f32 %v3821, %v3833
        %v3835 = vpop.f32.mrf.mxu0
        %3836 = vdwg.mxu0
        %3837 = vmatpush.bf16.msra.mxu0 %v2709
        %3838 = vmatpush.bf16.msra.mxu0 %v2700
        %3839 = vmatpush.bf16.msra.mxu0 %v2691
        %3840 = vmatpush.bf16.msra.mxu0 %v2682
        %3841 = vmatpush.bf16.msra.mxu0 %v2673
        %3842 = vmatpush.bf16.msra.mxu0 %v2664
        %3843 = vmatpush.bf16.msra.mxu0 %v2655
        %3844 = vmatpush.bf16.msra.mxu0 %v2646
        %3845 = vmatmul.bf16.gmra.mxu0 %v847
        %v3846 = vpop.f32.mrf.mxu0
        %v3847 = vadd.f32 %v3834, %v3846
        %v3848 = vpop.f32.mrf.mxu0
        %3849 = vdwg.mxu0
        %3850 = vmatpush.bf16.msra.mxu0 %v2781
        %3851 = vmatpush.bf16.msra.mxu0 %v2772
        %3852 = vmatpush.bf16.msra.mxu0 %v2763
        %3853 = vmatpush.bf16.msra.mxu0 %v2754
        %3854 = vmatpush.bf16.msra.mxu0 %v2745
        %3855 = vmatpush.bf16.msra.mxu0 %v2736
        %3856 = vmatpush.bf16.msra.mxu0 %v2727
        %3857 = vmatpush.bf16.msra.mxu0 %v2718
        %3858 = vmatmul.bf16.gmra.mxu0 %v848
        %v3859 = vpop.f32.mrf.mxu0
        %v3860 = vadd.f32 %v3847, %v3859
        %v3861 = vpop.f32.mrf.mxu0
        %3862 = vdwg.mxu0
        %3863 = vmatpush.bf16.msra.mxu0 %v2853
        %3864 = vmatpush.bf16.msra.mxu0 %v2844
        %3865 = vmatpush.bf16.msra.mxu0 %v2835
        %3866 = vmatpush.bf16.msra.mxu0 %v2826
        %3867 = vmatpush.bf16.msra.mxu0 %v2817
        %3868 = vmatpush.bf16.msra.mxu0 %v2808
        %3869 = vmatpush.bf16.msra.mxu0 %v2799
        %3870 = vmatpush.bf16.msra.mxu0 %v2790
        %3871 = vmatmul.bf16.gmra.mxu0 %v849
        %v3872 = vpop.f32.mrf.mxu0
        %v3873 = vadd.f32 %v3860, %v3872
        %v3874 = vpop.f32.mrf.mxu0
        %3875 = vdwg.mxu0
        %3876 = vmatpush.bf16.msra.mxu0 %v2925
        %3877 = vmatpush.bf16.msra.mxu0 %v2916
        %3878 = vmatpush.bf16.msra.mxu0 %v2907
        %3879 = vmatpush.bf16.msra.mxu0 %v2898
        %3880 = vmatpush.bf16.msra.mxu0 %v2889
        %3881 = vmatpush.bf16.msra.mxu0 %v2880
        %3882 = vmatpush.bf16.msra.mxu0 %v2871
        %3883 = vmatpush.bf16.msra.mxu0 %v2862
        %3884 = vmatmul.bf16.gmra.mxu0 %v850
        %v3885 = vpop.f32.mrf.mxu0
        %v3886 = vadd.f32 %v3873, %v3885
        %v3887 = vpop.f32.mrf.mxu0
        %3888 = vdwg.mxu0
        %3889 = vmatpush.bf16.msra.mxu0 %v2494
        %3890 = vmatpush.bf16.msra.mxu0 %v2485
        %3891 = vmatpush.bf16.msra.mxu0 %v2476
        %3892 = vmatpush.bf16.msra.mxu0 %v2467
        %3893 = vmatpush.bf16.msra.mxu0 %v2458
        %3894 = vmatpush.bf16.msra.mxu0 %v2449
        %3895 = vmatpush.bf16.msra.mxu0 %v2440
        %3896 = vmatpush.bf16.msra.mxu0 %v2431
        %3897 = vmatmul.bf16.gmra.mxu0 %v844
        %v3898 = vpop.f32.mrf.mxu0
        %v3899 = vadd.f32 0.0, %v3898
        %v3900 = vpop.f32.mrf.mxu0
        %3901 = vdwg.mxu0
        %3902 = vmatpush.bf16.msra.mxu0 %v2566
        %3903 = vmatpush.bf16.msra.mxu0 %v2557
        %3904 = vmatpush.bf16.msra.mxu0 %v2548
        %3905 = vmatpush.bf16.msra.mxu0 %v2539
        %3906 = vmatpush.bf16.msra.mxu0 %v2530
        %3907 = vmatpush.bf16.msra.mxu0 %v2521
        %3908 = vmatpush.bf16.msra.mxu0 %v2512
        %3909 = vmatpush.bf16.msra.mxu0 %v2503
        %3910 = vmatmul.bf16.gmra.mxu0 %v845
        %v3911 = vpop.f32.mrf.mxu0
        %v3912 = vadd.f32 %v3899, %v3911
        %v3913 = vpop.f32.mrf.mxu0
        %3914 = vdwg.mxu0
        %3915 = vmatpush.bf16.msra.mxu0 %v2638
        %3916 = vmatpush.bf16.msra.mxu0 %v2629
        %3917 = vmatpush.bf16.msra.mxu0 %v2620
        %3918 = vmatpush.bf16.msra.mxu0 %v2611
        %3919 = vmatpush.bf16.msra.mxu0 %v2602
        %3920 = vmatpush.bf16.msra.mxu0 %v2593
        %3921 = vmatpush.bf16.msra.mxu0 %v2584
        %3922 = vmatpush.bf16.msra.mxu0 %v2575
        %3923 = vmatmul.bf16.gmra.mxu0 %v846
        %v3924 = vpop.f32.mrf.mxu0
        %v3925 = vadd.f32 %v3912, %v3924
        %v3926 = vpop.f32.mrf.mxu0
        %3927 = vdwg.mxu0
        %3928 = vmatpush.bf16.msra.mxu0 %v2710
        %3929 = vmatpush.bf16.msra.mxu0 %v2701
        %3930 = vmatpush.bf16.msra.mxu0 %v2692
        %3931 = vmatpush.bf16.msra.mxu0 %v2683
        %3932 = vmatpush.bf16.msra.mxu0 %v2674
        %3933 = vmatpush.bf16.msra.mxu0 %v2665
        %3934 = vmatpush.bf16.msra.mxu0 %v2656
        %3935 = vmatpush.bf16.msra.mxu0 %v2647
        %3936 = vmatmul.bf16.gmra.mxu0 %v847
        %v3937 = vpop.f32.mrf.mxu0
        %v3938 = vadd.f32 %v3925, %v3937
        %v3939 = vpop.f32.mrf.mxu0
        %3940 = vdwg.mxu0
        %3941 = vmatpush.bf16.msra.mxu0 %v2782
        %3942 = vmatpush.bf16.msra.mxu0 %v2773
        %3943 = vmatpush.bf16.msra.mxu0 %v2764
        %3944 = vmatpush.bf16.msra.mxu0 %v2755
        %3945 = vmatpush.bf16.msra.mxu0 %v2746
        %3946 = vmatpush.bf16.msra.mxu0 %v2737
        %3947 = vmatpush.bf16.msra.mxu0 %v2728
        %3948 = vmatpush.bf16.msra.mxu0 %v2719
        %3949 = vmatmul.bf16.gmra.mxu0 %v848
        %v3950 = vpop.f32.mrf.mxu0
        %v3951 = vadd.f32 %v3938, %v3950
        %v3952 = vpop.f32.mrf.mxu0
        %3953 = vdwg.mxu0
        %3954 = vmatpush.bf16.msra.mxu0 %v2854
        %3955 = vmatpush.bf16.msra.mxu0 %v2845
        %3956 = vmatpush.bf16.msra.mxu0 %v2836
        %3957 = vmatpush.bf16.msra.mxu0 %v2827
        %3958 = vmatpush.bf16.msra.mxu0 %v2818
        %3959 = vmatpush.bf16.msra.mxu0 %v2809
        %3960 = vmatpush.bf16.msra.mxu0 %v2800
        %3961 = vmatpush.bf16.msra.mxu0 %v2791
        %3962 = vmatmul.bf16.gmra.mxu0 %v849
        %v3963 = vpop.f32.mrf.mxu0
        %v3964 = vadd.f32 %v3951, %v3963
        %v3965 = vpop.f32.mrf.mxu0
        %3966 = vdwg.mxu0
        %3967 = vmatpush.bf16.msra.mxu0 %v2926
        %3968 = vmatpush.bf16.msra.mxu0 %v2917
        %3969 = vmatpush.bf16.msra.mxu0 %v2908
        %3970 = vmatpush.bf16.msra.mxu0 %v2899
        %3971 = vmatpush.bf16.msra.mxu0 %v2890
        %3972 = vmatpush.bf16.msra.mxu0 %v2881
        %3973 = vmatpush.bf16.msra.mxu0 %v2872
        %3974 = vmatpush.bf16.msra.mxu0 %v2863
        %3975 = vmatmul.bf16.gmra.mxu0 %v850
        %v3976 = vpop.f32.mrf.mxu0
        %v3977 = vadd.f32 %v3964, %v3976
        %v3978 = vpop.f32.mrf.mxu0
        %3979 = vdwg.mxu0
        %3980 = vmatpush.bf16.msra.mxu0 %v2495
        %3981 = vmatpush.bf16.msra.mxu0 %v2486
        %3982 = vmatpush.bf16.msra.mxu0 %v2477
        %3983 = vmatpush.bf16.msra.mxu0 %v2468
        %3984 = vmatpush.bf16.msra.mxu0 %v2459
        %3985 = vmatpush.bf16.msra.mxu0 %v2450
        %3986 = vmatpush.bf16.msra.mxu0 %v2441
        %3987 = vmatpush.bf16.msra.mxu0 %v2432
        %3988 = vmatmul.bf16.gmra.mxu0 %v844
        %v3989 = vpop.f32.mrf.mxu0
        %v3990 = vadd.f32 0.0, %v3989
        %v3991 = vpop.f32.mrf.mxu0
        %3992 = vdwg.mxu0
        %3993 = vmatpush.bf16.msra.mxu0 %v2567
        %3994 = vmatpush.bf16.msra.mxu0 %v2558
        %3995 = vmatpush.bf16.msra.mxu0 %v2549
        %3996 = vmatpush.bf16.msra.mxu0 %v2540
        %3997 = vmatpush.bf16.msra.mxu0 %v2531
        %3998 = vmatpush.bf16.msra.mxu0 %v2522
        %3999 = vmatpush.bf16.msra.mxu0 %v2513
        %4000 = vmatpush.bf16.msra.mxu0 %v2504
        %4001 = vmatmul.bf16.gmra.mxu0 %v845
        %v4002 = vpop.f32.mrf.mxu0
        %v4003 = vadd.f32 %v3990, %v4002
        %v4004 = vpop.f32.mrf.mxu0
        %4005 = vdwg.mxu0
        %4006 = vmatpush.bf16.msra.mxu0 %v2639
        %4007 = vmatpush.bf16.msra.mxu0 %v2630
        %4008 = vmatpush.bf16.msra.mxu0 %v2621
        %4009 = vmatpush.bf16.msra.mxu0 %v2612
        %4010 = vmatpush.bf16.msra.mxu0 %v2603
        %4011 = vmatpush.bf16.msra.mxu0 %v2594
        %4012 = vmatpush.bf16.msra.mxu0 %v2585
        %4013 = vmatpush.bf16.msra.mxu0 %v2576
        %4014 = vmatmul.bf16.gmra.mxu0 %v846
        %v4015 = vpop.f32.mrf.mxu0
        %v4016 = vadd.f32 %v4003, %v4015
        %v4017 = vpop.f32.mrf.mxu0
        %4018 = vdwg.mxu0
        %4019 = vmatpush.bf16.msra.mxu0 %v2711
        %4020 = vmatpush.bf16.msra.mxu0 %v2702
        %4021 = vmatpush.bf16.msra.mxu0 %v2693
        %4022 = vmatpush.bf16.msra.mxu0 %v2684
        %4023 = vmatpush.bf16.msra.mxu0 %v2675
        %4024 = vmatpush.bf16.msra.mxu0 %v2666
        %4025 = vmatpush.bf16.msra.mxu0 %v2657
        %4026 = vmatpush.bf16.msra.mxu0 %v2648
        %4027 = vmatmul.bf16.gmra.mxu0 %v847
        %v4028 = vpop.f32.mrf.mxu0
        %v4029 = vadd.f32 %v4016, %v4028
        %v4030 = vpop.f32.mrf.mxu0
        %4031 = vdwg.mxu0
        %4032 = vmatpush.bf16.msra.mxu0 %v2783
        %4033 = vmatpush.bf16.msra.mxu0 %v2774
        %4034 = vmatpush.bf16.msra.mxu0 %v2765
        %4035 = vmatpush.bf16.msra.mxu0 %v2756
        %4036 = vmatpush.bf16.msra.mxu0 %v2747
        %4037 = vmatpush.bf16.msra.mxu0 %v2738
        %4038 = vmatpush.bf16.msra.mxu0 %v2729
        %4039 = vmatpush.bf16.msra.mxu0 %v2720
        %4040 = vmatmul.bf16.gmra.mxu0 %v848
        %v4041 = vpop.f32.mrf.mxu0
        %v4042 = vadd.f32 %v4029, %v4041
        %v4043 = vpop.f32.mrf.mxu0
        %4044 = vdwg.mxu0
        %4045 = vmatpush.bf16.msra.mxu0 %v2855
        %4046 = vmatpush.bf16.msra.mxu0 %v2846
        %4047 = vmatpush.bf16.msra.mxu0 %v2837
        %4048 = vmatpush.bf16.msra.mxu0 %v2828
        %4049 = vmatpush.bf16.msra.mxu0 %v2819
        %4050 = vmatpush.bf16.msra.mxu0 %v2810
        %4051 = vmatpush.bf16.msra.mxu0 %v2801
        %4052 = vmatpush.bf16.msra.mxu0 %v2792
        %4053 = vmatmul.bf16.gmra.mxu0 %v849
        %v4054 = vpop.f32.mrf.mxu0
        %v4055 = vadd.f32 %v4042, %v4054
        %v4056 = vpop.f32.mrf.mxu0
        %4057 = vdwg.mxu0
        %4058 = vmatpush.bf16.msra.mxu0 %v2927
        %4059 = vmatpush.bf16.msra.mxu0 %v2918
        %4060 = vmatpush.bf16.msra.mxu0 %v2909
        %4061 = vmatpush.bf16.msra.mxu0 %v2900
        %4062 = vmatpush.bf16.msra.mxu0 %v2891
        %4063 = vmatpush.bf16.msra.mxu0 %v2882
        %4064 = vmatpush.bf16.msra.mxu0 %v2873
        %4065 = vmatpush.bf16.msra.mxu0 %v2864
        %4066 = vmatmul.bf16.gmra.mxu0 %v850
        %v4067 = vpop.f32.mrf.mxu0
        %v4068 = vadd.f32 %v4055, %v4067
        %v4069 = vpop.f32.mrf.mxu0
        %4070 = vdwg.mxu0
        %4071 = vmatpush.bf16.msra.mxu0 %v2496
        %4072 = vmatpush.bf16.msra.mxu0 %v2487
        %4073 = vmatpush.bf16.msra.mxu0 %v2478
        %4074 = vmatpush.bf16.msra.mxu0 %v2469
        %4075 = vmatpush.bf16.msra.mxu0 %v2460
        %4076 = vmatpush.bf16.msra.mxu0 %v2451
        %4077 = vmatpush.bf16.msra.mxu0 %v2442
        %4078 = vmatpush.bf16.msra.mxu0 %v2433
        %4079 = vmatmul.bf16.gmra.mxu0 %v844
        %v4080 = vpop.f32.mrf.mxu0
        %v4081 = vadd.f32 0.0, %v4080
        %v4082 = vpop.f32.mrf.mxu0
        %4083 = vdwg.mxu0
        %4084 = vmatpush.bf16.msra.mxu0 %v2568
        %4085 = vmatpush.bf16.msra.mxu0 %v2559
        %4086 = vmatpush.bf16.msra.mxu0 %v2550
        %4087 = vmatpush.bf16.msra.mxu0 %v2541
        %4088 = vmatpush.bf16.msra.mxu0 %v2532
        %4089 = vmatpush.bf16.msra.mxu0 %v2523
        %4090 = vmatpush.bf16.msra.mxu0 %v2514
        %4091 = vmatpush.bf16.msra.mxu0 %v2505
        %4092 = vmatmul.bf16.gmra.mxu0 %v845
        %v4093 = vpop.f32.mrf.mxu0
        %v4094 = vadd.f32 %v4081, %v4093
        %v4095 = vpop.f32.mrf.mxu0
        %4096 = vdwg.mxu0
        %4097 = vmatpush.bf16.msra.mxu0 %v2640
        %4098 = vmatpush.bf16.msra.mxu0 %v2631
        %4099 = vmatpush.bf16.msra.mxu0 %v2622
        %4100 = vmatpush.bf16.msra.mxu0 %v2613
        %4101 = vmatpush.bf16.msra.mxu0 %v2604
        %4102 = vmatpush.bf16.msra.mxu0 %v2595
        %4103 = vmatpush.bf16.msra.mxu0 %v2586
        %4104 = vmatpush.bf16.msra.mxu0 %v2577
        %4105 = vmatmul.bf16.gmra.mxu0 %v846
        %v4106 = vpop.f32.mrf.mxu0
        %v4107 = vadd.f32 %v4094, %v4106
        %v4108 = vpop.f32.mrf.mxu0
        %4109 = vdwg.mxu0
        %4110 = vmatpush.bf16.msra.mxu0 %v2712
        %4111 = vmatpush.bf16.msra.mxu0 %v2703
        %4112 = vmatpush.bf16.msra.mxu0 %v2694
        %4113 = vmatpush.bf16.msra.mxu0 %v2685
        %4114 = vmatpush.bf16.msra.mxu0 %v2676
        %4115 = vmatpush.bf16.msra.mxu0 %v2667
        %4116 = vmatpush.bf16.msra.mxu0 %v2658
        %4117 = vmatpush.bf16.msra.mxu0 %v2649
        %4118 = vmatmul.bf16.gmra.mxu0 %v847
        %v4119 = vpop.f32.mrf.mxu0
        %v4120 = vadd.f32 %v4107, %v4119
        %v4121 = vpop.f32.mrf.mxu0
        %4122 = vdwg.mxu0
        %4123 = vmatpush.bf16.msra.mxu0 %v2784
        %4124 = vmatpush.bf16.msra.mxu0 %v2775
        %4125 = vmatpush.bf16.msra.mxu0 %v2766
        %4126 = vmatpush.bf16.msra.mxu0 %v2757
        %4127 = vmatpush.bf16.msra.mxu0 %v2748
        %4128 = vmatpush.bf16.msra.mxu0 %v2739
        %4129 = vmatpush.bf16.msra.mxu0 %v2730
        %4130 = vmatpush.bf16.msra.mxu0 %v2721
        %4131 = vmatmul.bf16.gmra.mxu0 %v848
        %v4132 = vpop.f32.mrf.mxu0
        %v4133 = vadd.f32 %v4120, %v4132
        %v4134 = vpop.f32.mrf.mxu0
        %4135 = vdwg.mxu0
        %4136 = vmatpush.bf16.msra.mxu0 %v2856
        %4137 = vmatpush.bf16.msra.mxu0 %v2847
        %4138 = vmatpush.bf16.msra.mxu0 %v2838
        %4139 = vmatpush.bf16.msra.mxu0 %v2829
        %4140 = vmatpush.bf16.msra.mxu0 %v2820
        %4141 = vmatpush.bf16.msra.mxu0 %v2811
        %4142 = vmatpush.bf16.msra.mxu0 %v2802
        %4143 = vmatpush.bf16.msra.mxu0 %v2793
        %4144 = vmatmul.bf16.gmra.mxu0 %v849
        %v4145 = vpop.f32.mrf.mxu0
        %v4146 = vadd.f32 %v4133, %v4145
        %v4147 = vpop.f32.mrf.mxu0
        %4148 = vdwg.mxu0
        %4149 = vmatpush.bf16.msra.mxu0 %v2928
        %4150 = vmatpush.bf16.msra.mxu0 %v2919
        %4151 = vmatpush.bf16.msra.mxu0 %v2910
        %4152 = vmatpush.bf16.msra.mxu0 %v2901
        %4153 = vmatpush.bf16.msra.mxu0 %v2892
        %4154 = vmatpush.bf16.msra.mxu0 %v2883
        %4155 = vmatpush.bf16.msra.mxu0 %v2874
        %4156 = vmatpush.bf16.msra.mxu0 %v2865
        %4157 = vmatmul.bf16.gmra.mxu0 %v850
        %v4158 = vpop.f32.mrf.mxu0
        %v4159 = vadd.f32 %v4146, %v4158
        %v4160 = vpop.f32.mrf.mxu0
        %4161 = vdwg.mxu0
        %4162 = vmatpush.bf16.msra.mxu0 %v2497
        %4163 = vmatpush.bf16.msra.mxu0 %v2488
        %4164 = vmatpush.bf16.msra.mxu0 %v2479
        %4165 = vmatpush.bf16.msra.mxu0 %v2470
        %4166 = vmatpush.bf16.msra.mxu0 %v2461
        %4167 = vmatpush.bf16.msra.mxu0 %v2452
        %4168 = vmatpush.bf16.msra.mxu0 %v2443
        %4169 = vmatpush.bf16.msra.mxu0 %v2434
        %4170 = vmatmul.bf16.gmra.mxu0 %v844
        %v4171 = vpop.f32.mrf.mxu0
        %v4172 = vadd.f32 0.0, %v4171
        %v4173 = vpop.f32.mrf.mxu0
        %4174 = vdwg.mxu0
        %4175 = vmatpush.bf16.msra.mxu0 %v2569
        %4176 = vmatpush.bf16.msra.mxu0 %v2560
        %4177 = vmatpush.bf16.msra.mxu0 %v2551
        %4178 = vmatpush.bf16.msra.mxu0 %v2542
        %4179 = vmatpush.bf16.msra.mxu0 %v2533
        %4180 = vmatpush.bf16.msra.mxu0 %v2524
        %4181 = vmatpush.bf16.msra.mxu0 %v2515
        %4182 = vmatpush.bf16.msra.mxu0 %v2506
        %4183 = vmatmul.bf16.gmra.mxu0 %v845
        %v4184 = vpop.f32.mrf.mxu0
        %v4185 = vadd.f32 %v4172, %v4184
        %v4186 = vpop.f32.mrf.mxu0
        %4187 = vdwg.mxu0
        %4188 = vmatpush.bf16.msra.mxu0 %v2641
        %4189 = vmatpush.bf16.msra.mxu0 %v2632
        %4190 = vmatpush.bf16.msra.mxu0 %v2623
        %4191 = vmatpush.bf16.msra.mxu0 %v2614
        %4192 = vmatpush.bf16.msra.mxu0 %v2605
        %4193 = vmatpush.bf16.msra.mxu0 %v2596
        %4194 = vmatpush.bf16.msra.mxu0 %v2587
        %4195 = vmatpush.bf16.msra.mxu0 %v2578
        %4196 = vmatmul.bf16.gmra.mxu0 %v846
        %v4197 = vpop.f32.mrf.mxu0
        %v4198 = vadd.f32 %v4185, %v4197
        %v4199 = vpop.f32.mrf.mxu0
        %4200 = vdwg.mxu0
        %4201 = vmatpush.bf16.msra.mxu0 %v2713
        %4202 = vmatpush.bf16.msra.mxu0 %v2704
        %4203 = vmatpush.bf16.msra.mxu0 %v2695
        %4204 = vmatpush.bf16.msra.mxu0 %v2686
        %4205 = vmatpush.bf16.msra.mxu0 %v2677
        %4206 = vmatpush.bf16.msra.mxu0 %v2668
        %4207 = vmatpush.bf16.msra.mxu0 %v2659
        %4208 = vmatpush.bf16.msra.mxu0 %v2650
        %4209 = vmatmul.bf16.gmra.mxu0 %v847
        %v4210 = vpop.f32.mrf.mxu0
        %v4211 = vadd.f32 %v4198, %v4210
        %v4212 = vpop.f32.mrf.mxu0
        %4213 = vdwg.mxu0
        %4214 = vmatpush.bf16.msra.mxu0 %v2785
        %4215 = vmatpush.bf16.msra.mxu0 %v2776
        %4216 = vmatpush.bf16.msra.mxu0 %v2767
        %4217 = vmatpush.bf16.msra.mxu0 %v2758
        %4218 = vmatpush.bf16.msra.mxu0 %v2749
        %4219 = vmatpush.bf16.msra.mxu0 %v2740
        %4220 = vmatpush.bf16.msra.mxu0 %v2731
        %4221 = vmatpush.bf16.msra.mxu0 %v2722
        %4222 = vmatmul.bf16.gmra.mxu0 %v848
        %v4223 = vpop.f32.mrf.mxu0
        %v4224 = vadd.f32 %v4211, %v4223
        %v4225 = vpop.f32.mrf.mxu0
        %4226 = vdwg.mxu0
        %4227 = vmatpush.bf16.msra.mxu0 %v2857
        %4228 = vmatpush.bf16.msra.mxu0 %v2848
        %4229 = vmatpush.bf16.msra.mxu0 %v2839
        %4230 = vmatpush.bf16.msra.mxu0 %v2830
        %4231 = vmatpush.bf16.msra.mxu0 %v2821
        %4232 = vmatpush.bf16.msra.mxu0 %v2812
        %4233 = vmatpush.bf16.msra.mxu0 %v2803
        %4234 = vmatpush.bf16.msra.mxu0 %v2794
        %4235 = vmatmul.bf16.gmra.mxu0 %v849
        %v4236 = vpop.f32.mrf.mxu0
        %v4237 = vadd.f32 %v4224, %v4236
        %v4238 = vpop.f32.mrf.mxu0
        %4239 = vdwg.mxu0
        %4240 = vmatpush.bf16.msra.mxu0 %v2929
        %4241 = vmatpush.bf16.msra.mxu0 %v2920
        %4242 = vmatpush.bf16.msra.mxu0 %v2911
        %4243 = vmatpush.bf16.msra.mxu0 %v2902
        %4244 = vmatpush.bf16.msra.mxu0 %v2893
        %4245 = vmatpush.bf16.msra.mxu0 %v2884
        %4246 = vmatpush.bf16.msra.mxu0 %v2875
        %4247 = vmatpush.bf16.msra.mxu0 %v2866
        %4248 = vmatmul.bf16.gmra.mxu0 %v850
        %v4249 = vpop.f32.mrf.mxu0
        %v4250 = vadd.f32 %v4237, %v4249
        %v4251 = vpop.f32.mrf.mxu0
        %4252 = vdwg.mxu0
        %v4261 = vrot.slane %v3613, 6
        %v4262 = vrot.slane %v3704, 4
        %v4263 = vrot.slane %v3795, 2
        %v4264 = vrot.slane %v3977, 6
        %v4265 = vrot.slane %v4068, 4
        %v4266 = vrot.slane %v4159, 2
        %vm4267 = vcmask 1041408
        %v4268 = vsel %vm4267, %v3522, %v4261
        %vm4269 = vcmask 1045508
        %v4270 = vsel %vm4269, %v4262, %v4263
        %vm4271 = vcmask 1043456
        %v4272 = vsel %vm4271, %v4268, %v4270
        %v4273 = vsel %vm4267, %v3886, %v4264
        %v4274 = vsel %vm4269, %v4265, %v4266
        %v4275 = vsel %vm4271, %v4273, %v4274
        %v4278 = vadd.f32 %v278, %v4272
        %v4279 = vadd.f32 %v279, %v4275
        %v4280 = vadd.f32 %v280, %v4250
        %4281 = vst [vmem:[#allocation2] sm:$0xff] %v4278
        %4282 = vst [vmem:[#allocation2 + $0x8] sm:$0xff] %v4279
        %4283 = vst [vmem:[#allocation2 + $0x10] sm:$0x3] %v4280
        %p4284 = scmp.eq.s32.totalorder %s21, 6
        // Predicated region
        $region53: #{ann_net_forward_streaming.5} parent=39 // pred_check
          %p4285 = pneg %p4284
        $region54: #{ann_net_forward_streaming.5} parent=39 // pred_check_branch
          %4287 = sbr.rel (%p4285) target = $region56
        $region55: #{ann_net_forward_streaming.5} parent=39 // pred_region
          %v4288 = vld [vmem:[#allocation2] sm:$0xff]
          %v4289 = vld [vmem:[#allocation2 + $0x8] sm:$0xff]
          %v4290 = vld [vmem:[#allocation2 + $0x10] sm:$0x3]
          %v4291 = vmax.f32 %v4288, 0.0
          %v4292 = vmax.f32 %v4289, 0.0
          %v4293 = vmax.f32 %v4290, 0.0
          %4297 = vst [vmem:[#allocation1] ss:$4 sm:$0xff] %v4291
          %s4298 = scalar_lea.vmem [#allocation1], 32
          %4299 = vst [vmem:[%s4298] ss:$4 sm:$0xff] %v4292
          %v4300 = vld.sshfl [vmem:[#allocation1] sm:$0xff pattern:$0x73625140]
          %v4301 = vld.sshfl [vmem:[#allocation1 + $0x8] sm:$0xff pattern:$0x73625140]
          %v4302 = vld.sshfl [vmem:[#allocation1 + $0x10] sm:$0xff pattern:$0x73625140]
          %v4303 = vld.sshfl [vmem:[#allocation1 + $0x18] sm:$0xff pattern:$0x73625140]
          %v4304 = vld.sshfl [vmem:[#allocation1 + $0x20] sm:$0xff pattern:$0x73625140]
          %v4305 = vld.sshfl [vmem:[#allocation1 + $0x28] sm:$0xff pattern:$0x73625140]
          %v4306 = vld.sshfl [vmem:[#allocation1 + $0x30] sm:$0xff pattern:$0x73625140]
          %v4307 = vld.sshfl [vmem:[#allocation1 + $0x38] sm:$0xff pattern:$0x73625140]
          %4308 = vst [vmem:[#allocation1] ss:$4 sm:$0xff] %v4293
          %v4309 = vld.sshfl [vmem:[#allocation1] sm:$0xff pattern:$0x73625140]
          %v4319 = vpack.c.bf16 %v4300, %v4300
          %v4320 = vpack.c.bf16 %v4301, %v4301
          %v4321 = vpack.c.bf16 %v4302, %v4302
          %v4322 = vpack.c.bf16 %v4303, %v4303
          %v4323 = vpack.c.bf16 %v4304, %v4304
          %v4324 = vpack.c.bf16 %v4305, %v4305
          %v4325 = vpack.c.bf16 %v4306, %v4306
          %v4326 = vpack.c.bf16 %v4307, %v4307
          %v4327 = vpack.c.bf16 %v4309, %v4309
          %v4328 = vld [vmem:[#allocation6] sm:$0xf]
          %v4329 = vld [vmem:[#allocation6 + $0x4] sm:$0xf]
          %v4330 = vld [vmem:[#allocation6 + $0x8] sm:$0xf]
          %v4331 = vld [vmem:[#allocation6 + $0xc] sm:$0xf]
          %v4332 = vld [vmem:[#allocation6 + $0x10] sm:$0xf]
          %v4333 = vld [vmem:[#allocation6 + $0x14] sm:$0xf]
          %v4334 = vld [vmem:[#allocation6 + $0x18] sm:$0xf]
          %v4335 = vld [vmem:[#allocation6 + $0x1c] sm:$0xf]
          %v4336 = vld [vmem:[#allocation6 + $0x20] sm:$0xf]
          %v4337 = vld [vmem:[#allocation6 + $0x24] sm:$0xf]
          %v4338 = vld [vmem:[#allocation6 + $0x28] sm:$0xf]
          %v4339 = vld [vmem:[#allocation6 + $0x2c] sm:$0xf]
          %v4340 = vld [vmem:[#allocation6 + $0x30] sm:$0xf]
          %v4341 = vld [vmem:[#allocation6 + $0x34] sm:$0xf]
          %v4342 = vld [vmem:[#allocation6 + $0x38] sm:$0xf]
          %v4343 = vld [vmem:[#allocation6 + $0x3c] sm:$0xf]
          %v4344 = vld [vmem:[#allocation6 + $0x40] sm:$0xf]
          %v4345 = vld [vmem:[#allocation6 + $0x44] sm:$0xf]
          %v4346 = vld [vmem:[#allocation6 + $0x48] sm:$0xf]
          %v4347 = vld [vmem:[#allocation6 + $0x4c] sm:$0xf]
          %v4348 = vld [vmem:[#allocation6 + $0x50] sm:$0xf]
          %v4349 = vld [vmem:[#allocation6 + $0x54] sm:$0xf]
          %v4350 = vld [vmem:[#allocation6 + $0x58] sm:$0xf]
          %v4351 = vld [vmem:[#allocation6 + $0x5c] sm:$0xf]
          %v4352 = vld [vmem:[#allocation6 + $0x60] sm:$0xf]
          %v4353 = vld [vmem:[#allocation6 + $0x64] sm:$0xf]
          %v4354 = vld [vmem:[#allocation6 + $0x68] sm:$0xf]
          %v4355 = vld [vmem:[#allocation6 + $0x6c] sm:$0xf]
          %v4356 = vld [vmem:[#allocation6 + $0x70] sm:$0xf]
          %v4357 = vld [vmem:[#allocation6 + $0x74] sm:$0xf]
          %v4358 = vld [vmem:[#allocation6 + $0x78] sm:$0xf]
          %v4359 = vld [vmem:[#allocation6 + $0x7c] sm:$0xf]
          %v4360 = vld [vmem:[#allocation6 + $0x80] sm:$0xf]
          %v4361 = vld [vmem:[#allocation6 + $0x84] sm:$0xf]
          %v4362 = vld [vmem:[#allocation6 + $0x88] sm:$0xf]
          %v4363 = vld [vmem:[#allocation6 + $0x8c] sm:$0xf]
          %v4364 = vld [vmem:[#allocation6 + $0x90] sm:$0xf]
          %v4365 = vld [vmem:[#allocation6 + $0x94] sm:$0xf]
          %v4366 = vld [vmem:[#allocation6 + $0x98] sm:$0xf]
          %v4367 = vld [vmem:[#allocation6 + $0x9c] sm:$0xf]
          %v4368 = vld [vmem:[#allocation6 + $0xa0] sm:$0xf]
          %v4369 = vld [vmem:[#allocation6 + $0xa4] sm:$0xf]
          %v4370 = vld [vmem:[#allocation6 + $0xa8] sm:$0xf]
          %v4371 = vld [vmem:[#allocation6 + $0xac] sm:$0xf]
          %v4372 = vld [vmem:[#allocation6 + $0xb0] sm:$0xf]
          %v4373 = vld [vmem:[#allocation6 + $0xb4] sm:$0xf]
          %v4374 = vld [vmem:[#allocation6 + $0xb8] sm:$0xf]
          %v4375 = vld [vmem:[#allocation6 + $0xbc] sm:$0xf]
          %v4376 = vld [vmem:[#allocation6 + $0xc0] sm:$0xf]
          %v4377 = vld [vmem:[#allocation6 + $0xc4] sm:$0xf]
          %v4378 = vld [vmem:[#allocation6 + $0xc8] sm:$0xf]
          %v4379 = vld [vmem:[#allocation6 + $0xcc] sm:$0xf]
          %v4380 = vld [vmem:[#allocation6 + $0xd0] sm:$0xf]
          %v4381 = vld [vmem:[#allocation6 + $0xd4] sm:$0xf]
          %v4382 = vld [vmem:[#allocation6 + $0xd8] sm:$0xf]
          %v4383 = vld [vmem:[#allocation6 + $0xdc] sm:$0xf]
          %v4384 = vld [vmem:[#allocation6 + $0xe0] sm:$0xf]
          %v4385 = vld [vmem:[#allocation6 + $0xe4] sm:$0xf]
          %v4386 = vld [vmem:[#allocation6 + $0xe8] sm:$0xf]
          %v4387 = vld [vmem:[#allocation6 + $0xec] sm:$0xf]
          %v4388 = vld [vmem:[#allocation6 + $0xf0] sm:$0xf]
          %v4389 = vld [vmem:[#allocation6 + $0xf4] sm:$0xf]
          %v4390 = vld [vmem:[#allocation6 + $0xf8] sm:$0xf]
          %v4391 = vld [vmem:[#allocation6 + $0xfc] sm:$0xf]
          %v4392 = vld [vmem:[#allocation6 + $0x100] sm:$0xf]
          %v4393 = vld [vmem:[#allocation6 + $0x104] sm:$0xf]
          %v4394 = vld [vmem:[#allocation6 + $0x108] sm:$0xf]
          %v4395 = vld [vmem:[#allocation6 + $0x10c] sm:$0xf]
          %v4396 = vld [vmem:[#allocation6 + $0x110] sm:$0xf]
          %v4397 = vld [vmem:[#allocation6 + $0x114] sm:$0xf]
          %v4398 = vld [vmem:[#allocation6 + $0x118] sm:$0xf]
          %v4399 = vld [vmem:[#allocation6 + $0x11c] sm:$0xf]
          %v4400 = vld [vmem:[#allocation6 + $0x120] sm:$0xf]
          %v4401 = vld [vmem:[#allocation6 + $0x124] sm:$0xf]
          %v4402 = vld [vmem:[#allocation6 + $0x128] sm:$0xf]
          %v4403 = vld [vmem:[#allocation6 + $0x12c] sm:$0xf]
          %v4404 = vld [vmem:[#allocation6 + $0x130] sm:$0xf]
          %v4405 = vld [vmem:[#allocation6 + $0x134] sm:$0xf]
          %v4406 = vld [vmem:[#allocation6 + $0x138] sm:$0xf]
          %v4407 = vld [vmem:[#allocation6 + $0x13c] sm:$0xf]
          %v4408 = vld [vmem:[#allocation6 + $0x140] sm:$0xf]
          %v4409 = vld [vmem:[#allocation6 + $0x144] sm:$0xf]
          %v4410 = vld [vmem:[#allocation6 + $0x148] sm:$0xf]
          %v4411 = vld [vmem:[#allocation6 + $0x14c] sm:$0xf]
          %v4412 = vld [vmem:[#allocation6 + $0x150] sm:$0xf]
          %v4413 = vld [vmem:[#allocation6 + $0x154] sm:$0xf]
          %v4414 = vld [vmem:[#allocation6 + $0x158] sm:$0xf]
          %v4415 = vld [vmem:[#allocation6 + $0x15c] sm:$0xf]
          %v4416 = vld [vmem:[#allocation6 + $0x160] sm:$0xf]
          %v4417 = vld [vmem:[#allocation6 + $0x164] sm:$0xf]
          %v4418 = vld [vmem:[#allocation6 + $0x168] sm:$0xf]
          %v4419 = vld [vmem:[#allocation6 + $0x16c] sm:$0xf]
          %v4420 = vld [vmem:[#allocation6 + $0x170] sm:$0xf]
          %v4421 = vld [vmem:[#allocation6 + $0x174] sm:$0xf]
          %v4422 = vld [vmem:[#allocation6 + $0x178] sm:$0xf]
          %v4423 = vld [vmem:[#allocation6 + $0x17c] sm:$0xf]
          %v4424 = vld [vmem:[#allocation6 + $0x180] sm:$0xf]
          %v4425 = vld [vmem:[#allocation6 + $0x184] sm:$0xf]
          %v4426 = vld [vmem:[#allocation6 + $0x188] sm:$0xf]
          %v4427 = vld [vmem:[#allocation6 + $0x18c] sm:$0xf]
          %v4428 = vld [vmem:[#allocation6 + $0x190] sm:$0xf]
          %v4429 = vld [vmem:[#allocation6 + $0x194] sm:$0xf]
          %v4430 = vld [vmem:[#allocation6 + $0x198] sm:$0xf]
          %v4431 = vld [vmem:[#allocation6 + $0x19c] sm:$0xf]
          %v4432 = vld [vmem:[#allocation6 + $0x1a0] sm:$0xf]
          %v4433 = vld [vmem:[#allocation6 + $0x1a4] sm:$0xf]
          %v4434 = vld [vmem:[#allocation6 + $0x1a8] sm:$0xf]
          %v4435 = vld [vmem:[#allocation6 + $0x1ac] sm:$0xf]
          %v4436 = vld [vmem:[#allocation6 + $0x1b0] sm:$0xf]
          %v4437 = vld [vmem:[#allocation6 + $0x1b4] sm:$0xf]
          %v4438 = vld [vmem:[#allocation6 + $0x1b8] sm:$0xf]
          %v4439 = vld [vmem:[#allocation6 + $0x1bc] sm:$0xf]
          %v4440 = vld [vmem:[#allocation6 + $0x1c0] sm:$0xf]
          %v4441 = vld [vmem:[#allocation6 + $0x1c4] sm:$0xf]
          %v4442 = vld [vmem:[#allocation6 + $0x1c8] sm:$0xf]
          %v4443 = vld [vmem:[#allocation6 + $0x1cc] sm:$0xf]
          %v4444 = vld [vmem:[#allocation6 + $0x1d0] sm:$0xf]
          %v4445 = vld [vmem:[#allocation6 + $0x1d4] sm:$0xf]
          %v4446 = vld [vmem:[#allocation6 + $0x1d8] sm:$0xf]
          %v4447 = vld [vmem:[#allocation6 + $0x1dc] sm:$0xf]
          %v4448 = vld [vmem:[#allocation6 + $0x1e0] sm:$0xf]
          %v4449 = vld [vmem:[#allocation6 + $0x1e4] sm:$0xf]
          %v4450 = vld [vmem:[#allocation6 + $0x1e8] sm:$0xf]
          %v4451 = vld [vmem:[#allocation6 + $0x1ec] sm:$0xf]
          %v4452 = vld [vmem:[#allocation6 + $0x1f0] sm:$0xf]
          %v4453 = vld [vmem:[#allocation6 + $0x1f4] sm:$0xf]
          %v4454 = vld [vmem:[#allocation6 + $0x1f8] sm:$0xf]
          %v4455 = vld [vmem:[#allocation6 + $0x1fc] sm:$0xf]
          %v4456 = vld [vmem:[#allocation6 + $0x200] sm:$0xf]
          %v4457 = vld [vmem:[#allocation6 + $0x204] sm:$0xf]
          %v4458 = vld [vmem:[#allocation6 + $0x208] sm:$0xf]
          %v4459 = vld [vmem:[#allocation6 + $0x20c] sm:$0xf]
          %v4460 = vld [vmem:[#allocation6 + $0x210] sm:$0xf]
          %v4461 = vld [vmem:[#allocation6 + $0x214] sm:$0xf]
          %v4462 = vld [vmem:[#allocation6 + $0x218] sm:$0xf]
          %v4463 = vld [vmem:[#allocation6 + $0x21c] sm:$0xf]
          %v4464 = vld [vmem:[#allocation6 + $0x220] sm:$0xf]
          %v4465 = vld [vmem:[#allocation6 + $0x224] sm:$0xf]
          %v4466 = vld [vmem:[#allocation6 + $0x228] sm:$0xf]
          %v4467 = vld [vmem:[#allocation6 + $0x22c] sm:$0xf]
          %v4468 = vld [vmem:[#allocation6 + $0x230] sm:$0xf]
          %v4469 = vld [vmem:[#allocation6 + $0x234] sm:$0xf]
          %v4470 = vld [vmem:[#allocation6 + $0x238] sm:$0xf]
          %v4471 = vld [vmem:[#allocation6 + $0x23c] sm:$0xf]
          %v4616 = vunpack.c.l.b16 %v4328
          %v4617 = vunpack.c.l.b16 %v4329
          %v4618 = vunpack.c.l.b16 %v4330
          %v4619 = vunpack.c.l.b16 %v4331
          %v4620 = vunpack.c.l.b16 %v4332
          %v4621 = vunpack.c.l.b16 %v4333
          %v4622 = vunpack.c.l.b16 %v4334
          %v4623 = vunpack.c.l.b16 %v4335
          %v4624 = vunpack.c.l.b16 %v4336
          %v4625 = vunpack.c.l.b16 %v4337
          %v4626 = vunpack.c.l.b16 %v4338
          %v4627 = vunpack.c.l.b16 %v4339
          %v4628 = vunpack.c.l.b16 %v4340
          %v4629 = vunpack.c.l.b16 %v4341
          %v4630 = vunpack.c.l.b16 %v4342
          %v4631 = vunpack.c.l.b16 %v4343
          %v4632 = vunpack.c.l.b16 %v4344
          %v4633 = vunpack.c.l.b16 %v4345
          %v4634 = vunpack.c.l.b16 %v4346
          %v4635 = vunpack.c.l.b16 %v4347
          %v4636 = vunpack.c.l.b16 %v4348
          %v4637 = vunpack.c.l.b16 %v4349
          %v4638 = vunpack.c.l.b16 %v4350
          %v4639 = vunpack.c.l.b16 %v4351
          %v4640 = vunpack.c.l.b16 %v4352
          %v4641 = vunpack.c.l.b16 %v4353
          %v4642 = vunpack.c.l.b16 %v4354
          %v4643 = vunpack.c.l.b16 %v4355
          %v4644 = vunpack.c.l.b16 %v4356
          %v4645 = vunpack.c.l.b16 %v4357
          %v4646 = vunpack.c.l.b16 %v4358
          %v4647 = vunpack.c.l.b16 %v4359
          %v4648 = vunpack.c.l.b16 %v4360
          %v4649 = vunpack.c.l.b16 %v4361
          %v4650 = vunpack.c.l.b16 %v4362
          %v4651 = vunpack.c.l.b16 %v4363
          %v4652 = vunpack.c.l.b16 %v4364
          %v4653 = vunpack.c.l.b16 %v4365
          %v4654 = vunpack.c.l.b16 %v4366
          %v4655 = vunpack.c.l.b16 %v4367
          %v4656 = vunpack.c.l.b16 %v4368
          %v4657 = vunpack.c.l.b16 %v4369
          %v4658 = vunpack.c.l.b16 %v4370
          %v4659 = vunpack.c.l.b16 %v4371
          %v4660 = vunpack.c.l.b16 %v4372
          %v4661 = vunpack.c.l.b16 %v4373
          %v4662 = vunpack.c.l.b16 %v4374
          %v4663 = vunpack.c.l.b16 %v4375
          %v4664 = vunpack.c.l.b16 %v4376
          %v4665 = vunpack.c.l.b16 %v4377
          %v4666 = vunpack.c.l.b16 %v4378
          %v4667 = vunpack.c.l.b16 %v4379
          %v4668 = vunpack.c.l.b16 %v4380
          %v4669 = vunpack.c.l.b16 %v4381
          %v4670 = vunpack.c.l.b16 %v4382
          %v4671 = vunpack.c.l.b16 %v4383
          %v4672 = vunpack.c.l.b16 %v4384
          %v4673 = vunpack.c.l.b16 %v4385
          %v4674 = vunpack.c.l.b16 %v4386
          %v4675 = vunpack.c.l.b16 %v4387
          %v4676 = vunpack.c.l.b16 %v4388
          %v4677 = vunpack.c.l.b16 %v4389
          %v4678 = vunpack.c.l.b16 %v4390
          %v4679 = vunpack.c.l.b16 %v4391
          %v4680 = vunpack.c.l.b16 %v4392
          %v4681 = vunpack.c.l.b16 %v4393
          %v4682 = vunpack.c.l.b16 %v4394
          %v4683 = vunpack.c.l.b16 %v4395
          %v4684 = vunpack.c.l.b16 %v4396
          %v4685 = vunpack.c.l.b16 %v4397
          %v4686 = vunpack.c.l.b16 %v4398
          %v4687 = vunpack.c.l.b16 %v4399
          %v4688 = vunpack.c.l.b16 %v4400
          %v4689 = vunpack.c.l.b16 %v4401
          %v4690 = vunpack.c.l.b16 %v4402
          %v4691 = vunpack.c.l.b16 %v4403
          %v4692 = vunpack.c.l.b16 %v4404
          %v4693 = vunpack.c.l.b16 %v4405
          %v4694 = vunpack.c.l.b16 %v4406
          %v4695 = vunpack.c.l.b16 %v4407
          %v4696 = vunpack.c.l.b16 %v4408
          %v4697 = vunpack.c.l.b16 %v4409
          %v4698 = vunpack.c.l.b16 %v4410
          %v4699 = vunpack.c.l.b16 %v4411
          %v4700 = vunpack.c.l.b16 %v4412
          %v4701 = vunpack.c.l.b16 %v4413
          %v4702 = vunpack.c.l.b16 %v4414
          %v4703 = vunpack.c.l.b16 %v4415
          %v4704 = vunpack.c.l.b16 %v4416
          %v4705 = vunpack.c.l.b16 %v4417
          %v4706 = vunpack.c.l.b16 %v4418
          %v4707 = vunpack.c.l.b16 %v4419
          %v4708 = vunpack.c.l.b16 %v4420
          %v4709 = vunpack.c.l.b16 %v4421
          %v4710 = vunpack.c.l.b16 %v4422
          %v4711 = vunpack.c.l.b16 %v4423
          %v4712 = vunpack.c.l.b16 %v4424
          %v4713 = vunpack.c.l.b16 %v4425
          %v4714 = vunpack.c.l.b16 %v4426
          %v4715 = vunpack.c.l.b16 %v4427
          %v4716 = vunpack.c.l.b16 %v4428
          %v4717 = vunpack.c.l.b16 %v4429
          %v4718 = vunpack.c.l.b16 %v4430
          %v4719 = vunpack.c.l.b16 %v4431
          %v4720 = vunpack.c.l.b16 %v4432
          %v4721 = vunpack.c.l.b16 %v4433
          %v4722 = vunpack.c.l.b16 %v4434
          %v4723 = vunpack.c.l.b16 %v4435
          %v4724 = vunpack.c.l.b16 %v4436
          %v4725 = vunpack.c.l.b16 %v4437
          %v4726 = vunpack.c.l.b16 %v4438
          %v4727 = vunpack.c.l.b16 %v4439
          %v4728 = vunpack.c.l.b16 %v4440
          %v4729 = vunpack.c.l.b16 %v4441
          %v4730 = vunpack.c.l.b16 %v4442
          %v4731 = vunpack.c.l.b16 %v4443
          %v4732 = vunpack.c.l.b16 %v4444
          %v4733 = vunpack.c.l.b16 %v4445
          %v4734 = vunpack.c.l.b16 %v4446
          %v4735 = vunpack.c.l.b16 %v4447
          %v4736 = vunpack.c.l.b16 %v4448
          %v4737 = vunpack.c.l.b16 %v4449
          %v4738 = vunpack.c.l.b16 %v4450
          %v4739 = vunpack.c.l.b16 %v4451
          %v4740 = vunpack.c.l.b16 %v4452
          %v4741 = vunpack.c.l.b16 %v4453
          %v4742 = vunpack.c.l.b16 %v4454
          %v4743 = vunpack.c.l.b16 %v4455
          %v4744 = vunpack.c.l.b16 %v4456
          %v4745 = vunpack.c.l.b16 %v4457
          %v4746 = vunpack.c.l.b16 %v4458
          %v4747 = vunpack.c.l.b16 %v4459
          %v4748 = vunpack.c.l.b16 %v4460
          %v4749 = vunpack.c.l.b16 %v4461
          %v4750 = vunpack.c.l.b16 %v4462
          %v4751 = vunpack.c.l.b16 %v4463
          %v4752 = vunpack.c.l.b16 %v4464
          %v4753 = vunpack.c.l.b16 %v4465
          %v4754 = vunpack.c.l.b16 %v4466
          %v4755 = vunpack.c.l.b16 %v4467
          %v4756 = vunpack.c.l.b16 %v4468
          %v4757 = vunpack.c.l.b16 %v4469
          %v4758 = vunpack.c.l.b16 %v4470
          %v4759 = vunpack.c.l.b16 %v4471
          %v4760 = vpack.c.b16 %v4617, %v4616
          %v4761 = vpack.c.b16 %v4619, %v4618
          %v4762 = vpack.c.b16 %v4621, %v4620
          %v4763 = vpack.c.b16 %v4623, %v4622
          %v4764 = vpack.c.b16 %v4625, %v4624
          %v4765 = vpack.c.b16 %v4627, %v4626
          %v4766 = vpack.c.b16 %v4629, %v4628
          %v4767 = vpack.c.b16 %v4631, %v4630
          %v4768 = vpack.c.b16 %v4633, %v4632
          %v4769 = vpack.c.b16 %v4635, %v4634
          %v4770 = vpack.c.b16 %v4637, %v4636
          %v4771 = vpack.c.b16 %v4639, %v4638
          %v4772 = vpack.c.b16 %v4641, %v4640
          %v4773 = vpack.c.b16 %v4643, %v4642
          %v4774 = vpack.c.b16 %v4645, %v4644
          %v4775 = vpack.c.b16 %v4647, %v4646
          %v4776 = vpack.c.b16 %v4649, %v4648
          %v4777 = vpack.c.b16 %v4651, %v4650
          %v4778 = vpack.c.b16 %v4653, %v4652
          %v4779 = vpack.c.b16 %v4655, %v4654
          %v4780 = vpack.c.b16 %v4657, %v4656
          %v4781 = vpack.c.b16 %v4659, %v4658
          %v4782 = vpack.c.b16 %v4661, %v4660
          %v4783 = vpack.c.b16 %v4663, %v4662
          %v4784 = vpack.c.b16 %v4665, %v4664
          %v4785 = vpack.c.b16 %v4667, %v4666
          %v4786 = vpack.c.b16 %v4669, %v4668
          %v4787 = vpack.c.b16 %v4671, %v4670
          %v4788 = vpack.c.b16 %v4673, %v4672
          %v4789 = vpack.c.b16 %v4675, %v4674
          %v4790 = vpack.c.b16 %v4677, %v4676
          %v4791 = vpack.c.b16 %v4679, %v4678
          %v4792 = vpack.c.b16 %v4681, %v4680
          %v4793 = vpack.c.b16 %v4683, %v4682
          %v4794 = vpack.c.b16 %v4685, %v4684
          %v4795 = vpack.c.b16 %v4687, %v4686
          %v4796 = vpack.c.b16 %v4689, %v4688
          %v4797 = vpack.c.b16 %v4691, %v4690
          %v4798 = vpack.c.b16 %v4693, %v4692
          %v4799 = vpack.c.b16 %v4695, %v4694
          %v4800 = vpack.c.b16 %v4697, %v4696
          %v4801 = vpack.c.b16 %v4699, %v4698
          %v4802 = vpack.c.b16 %v4701, %v4700
          %v4803 = vpack.c.b16 %v4703, %v4702
          %v4804 = vpack.c.b16 %v4705, %v4704
          %v4805 = vpack.c.b16 %v4707, %v4706
          %v4806 = vpack.c.b16 %v4709, %v4708
          %v4807 = vpack.c.b16 %v4711, %v4710
          %v4808 = vpack.c.b16 %v4713, %v4712
          %v4809 = vpack.c.b16 %v4715, %v4714
          %v4810 = vpack.c.b16 %v4717, %v4716
          %v4811 = vpack.c.b16 %v4719, %v4718
          %v4812 = vpack.c.b16 %v4721, %v4720
          %v4813 = vpack.c.b16 %v4723, %v4722
          %v4814 = vpack.c.b16 %v4725, %v4724
          %v4815 = vpack.c.b16 %v4727, %v4726
          %v4816 = vpack.c.b16 %v4729, %v4728
          %v4817 = vpack.c.b16 %v4731, %v4730
          %v4818 = vpack.c.b16 %v4733, %v4732
          %v4819 = vpack.c.b16 %v4735, %v4734
          %v4820 = vpack.c.b16 %v4737, %v4736
          %v4821 = vpack.c.b16 %v4739, %v4738
          %v4822 = vpack.c.b16 %v4741, %v4740
          %v4823 = vpack.c.b16 %v4743, %v4742
          %v4824 = vpack.c.b16 %v4745, %v4744
          %v4825 = vpack.c.b16 %v4747, %v4746
          %v4826 = vpack.c.b16 %v4749, %v4748
          %v4827 = vpack.c.b16 %v4751, %v4750
          %v4828 = vpack.c.b16 %v4753, %v4752
          %v4829 = vpack.c.b16 %v4755, %v4754
          %v4830 = vpack.c.b16 %v4757, %v4756
          %v4831 = vpack.c.b16 %v4759, %v4758
          %4904 = vmatpush.bf16.msra.mxu0 %v4767
          %4905 = vmatpush.bf16.msra.mxu0 %v4766
          %4906 = vmatpush.bf16.msra.mxu0 %v4765
          %4907 = vmatpush.bf16.msra.mxu0 %v4764
          %4908 = vmatpush.bf16.msra.mxu0 %v4763
          %4909 = vmatpush.bf16.msra.mxu0 %v4762
          %4910 = vmatpush.bf16.msra.mxu0 %v4761
          %4911 = vmatpush.bf16.msra.mxu0 %v4760
          %4912 = vmatmul.bf16.gmra.mxu0 %v4319
          %v4913 = vpop.f32.mrf.mxu0
          %v4914 = vadd.f32 0.0, %v4913
          %v4915 = vpop.f32.mrf.mxu0
          %4916 = vdwg.mxu0
          %4917 = vmatpush.bf16.msra.mxu0 %v4775
          %4918 = vmatpush.bf16.msra.mxu0 %v4774
          %4919 = vmatpush.bf16.msra.mxu0 %v4773
          %4920 = vmatpush.bf16.msra.mxu0 %v4772
          %4921 = vmatpush.bf16.msra.mxu0 %v4771
          %4922 = vmatpush.bf16.msra.mxu0 %v4770
          %4923 = vmatpush.bf16.msra.mxu0 %v4769
          %4924 = vmatpush.bf16.msra.mxu0 %v4768
          %4925 = vmatmul.bf16.gmra.mxu0 %v4320
          %v4926 = vpop.f32.mrf.mxu0
          %v4927 = vadd.f32 %v4914, %v4926
          %v4928 = vpop.f32.mrf.mxu0
          %4929 = vdwg.mxu0
          %4930 = vmatpush.bf16.msra.mxu0 %v4783
          %4931 = vmatpush.bf16.msra.mxu0 %v4782
          %4932 = vmatpush.bf16.msra.mxu0 %v4781
          %4933 = vmatpush.bf16.msra.mxu0 %v4780
          %4934 = vmatpush.bf16.msra.mxu0 %v4779
          %4935 = vmatpush.bf16.msra.mxu0 %v4778
          %4936 = vmatpush.bf16.msra.mxu0 %v4777
          %4937 = vmatpush.bf16.msra.mxu0 %v4776
          %4938 = vmatmul.bf16.gmra.mxu0 %v4321
          %v4939 = vpop.f32.mrf.mxu0
          %v4940 = vadd.f32 %v4927, %v4939
          %v4941 = vpop.f32.mrf.mxu0
          %4942 = vdwg.mxu0
          %4943 = vmatpush.bf16.msra.mxu0 %v4791
          %4944 = vmatpush.bf16.msra.mxu0 %v4790
          %4945 = vmatpush.bf16.msra.mxu0 %v4789
          %4946 = vmatpush.bf16.msra.mxu0 %v4788
          %4947 = vmatpush.bf16.msra.mxu0 %v4787
          %4948 = vmatpush.bf16.msra.mxu0 %v4786
          %4949 = vmatpush.bf16.msra.mxu0 %v4785
          %4950 = vmatpush.bf16.msra.mxu0 %v4784
          %4951 = vmatmul.bf16.gmra.mxu0 %v4322
          %v4952 = vpop.f32.mrf.mxu0
          %v4953 = vadd.f32 %v4940, %v4952
          %v4954 = vpop.f32.mrf.mxu0
          %4955 = vdwg.mxu0
          %4956 = vmatpush.bf16.msra.mxu0 %v4799
          %4957 = vmatpush.bf16.msra.mxu0 %v4798
          %4958 = vmatpush.bf16.msra.mxu0 %v4797
          %4959 = vmatpush.bf16.msra.mxu0 %v4796
          %4960 = vmatpush.bf16.msra.mxu0 %v4795
          %4961 = vmatpush.bf16.msra.mxu0 %v4794
          %4962 = vmatpush.bf16.msra.mxu0 %v4793
          %4963 = vmatpush.bf16.msra.mxu0 %v4792
          %4964 = vmatmul.bf16.gmra.mxu0 %v4323
          %v4965 = vpop.f32.mrf.mxu0
          %v4966 = vadd.f32 %v4953, %v4965
          %v4967 = vpop.f32.mrf.mxu0
          %4968 = vdwg.mxu0
          %4969 = vmatpush.bf16.msra.mxu0 %v4807
          %4970 = vmatpush.bf16.msra.mxu0 %v4806
          %4971 = vmatpush.bf16.msra.mxu0 %v4805
          %4972 = vmatpush.bf16.msra.mxu0 %v4804
          %4973 = vmatpush.bf16.msra.mxu0 %v4803
          %4974 = vmatpush.bf16.msra.mxu0 %v4802
          %4975 = vmatpush.bf16.msra.mxu0 %v4801
          %4976 = vmatpush.bf16.msra.mxu0 %v4800
          %4977 = vmatmul.bf16.gmra.mxu0 %v4324
          %v4978 = vpop.f32.mrf.mxu0
          %v4979 = vadd.f32 %v4966, %v4978
          %v4980 = vpop.f32.mrf.mxu0
          %4981 = vdwg.mxu0
          %4982 = vmatpush.bf16.msra.mxu0 %v4815
          %4983 = vmatpush.bf16.msra.mxu0 %v4814
          %4984 = vmatpush.bf16.msra.mxu0 %v4813
          %4985 = vmatpush.bf16.msra.mxu0 %v4812
          %4986 = vmatpush.bf16.msra.mxu0 %v4811
          %4987 = vmatpush.bf16.msra.mxu0 %v4810
          %4988 = vmatpush.bf16.msra.mxu0 %v4809
          %4989 = vmatpush.bf16.msra.mxu0 %v4808
          %4990 = vmatmul.bf16.gmra.mxu0 %v4325
          %v4991 = vpop.f32.mrf.mxu0
          %v4992 = vadd.f32 %v4979, %v4991
          %v4993 = vpop.f32.mrf.mxu0
          %4994 = vdwg.mxu0
          %4995 = vmatpush.bf16.msra.mxu0 %v4823
          %4996 = vmatpush.bf16.msra.mxu0 %v4822
          %4997 = vmatpush.bf16.msra.mxu0 %v4821
          %4998 = vmatpush.bf16.msra.mxu0 %v4820
          %4999 = vmatpush.bf16.msra.mxu0 %v4819
          %5000 = vmatpush.bf16.msra.mxu0 %v4818
          %5001 = vmatpush.bf16.msra.mxu0 %v4817
          %5002 = vmatpush.bf16.msra.mxu0 %v4816
          %5003 = vmatmul.bf16.gmra.mxu0 %v4326
          %v5004 = vpop.f32.mrf.mxu0
          %v5005 = vadd.f32 %v4992, %v5004
          %v5006 = vpop.f32.mrf.mxu0
          %5007 = vdwg.mxu0
          %5008 = vmatpush.bf16.msra.mxu0 %v4831
          %5009 = vmatpush.bf16.msra.mxu0 %v4830
          %5010 = vmatpush.bf16.msra.mxu0 %v4829
          %5011 = vmatpush.bf16.msra.mxu0 %v4828
          %5012 = vmatpush.bf16.msra.mxu0 %v4827
          %5013 = vmatpush.bf16.msra.mxu0 %v4826
          %5014 = vmatpush.bf16.msra.mxu0 %v4825
          %5015 = vmatpush.bf16.msra.mxu0 %v4824
          %5016 = vmatmul.bf16.gmra.mxu0 %v4327
          %v5017 = vpop.f32.mrf.mxu0
          %v5018 = vadd.f32 %v5005, %v5017
          %v5019 = vpop.f32.mrf.mxu0
          %5020 = vdwg.mxu0
          %v5021 = vmax.f32 %v5018, 0.0
          %v5022 = vpack.c.bf16 %v5021, %v5021
          %v5023 = vld [vmem:[%s3] sm:$0xf]
          %v5024 = vld [vmem:[%s3 + $0x4] sm:$0xf]
          %v5025 = vld [vmem:[%s3 + $0x8] sm:$0xf]
          %v5026 = vld [vmem:[%s3 + $0xc] sm:$0xf]
          %v5027 = vld [vmem:[%s3 + $0x10] sm:$0xf]
          %v5028 = vld [vmem:[%s3 + $0x14] sm:$0xf]
          %v5029 = vld [vmem:[%s3 + $0x18] sm:$0xf]
          %v5030 = vld [vmem:[%s3 + $0x1c] sm:$0xf]
          %v5031 = vld [vmem:[%s3 + $0x20] sm:$0xf]
          %v5032 = vld [vmem:[%s3 + $0x24] sm:$0xf]
          %v5033 = vld [vmem:[%s3 + $0x28] sm:$0xf]
          %v5034 = vld [vmem:[%s3 + $0x2c] sm:$0xf]
          %v5035 = vld [vmem:[%s3 + $0x30] sm:$0xf]
          %v5036 = vld [vmem:[%s3 + $0x34] sm:$0xf]
          %v5037 = vld [vmem:[%s3 + $0x38] sm:$0xf]
          %v5038 = vld [vmem:[%s3 + $0x3c] sm:$0xf]
          %v5055 = vunpack.c.l.b16 %v5023
          %v5056 = vunpack.c.l.b16 %v5024
          %v5057 = vunpack.c.l.b16 %v5025
          %v5058 = vunpack.c.l.b16 %v5026
          %v5059 = vunpack.c.l.b16 %v5027
          %v5060 = vunpack.c.l.b16 %v5028
          %v5061 = vunpack.c.l.b16 %v5029
          %v5062 = vunpack.c.l.b16 %v5030
          %v5063 = vunpack.c.l.b16 %v5031
          %v5064 = vunpack.c.l.b16 %v5032
          %v5065 = vunpack.c.l.b16 %v5033
          %v5066 = vunpack.c.l.b16 %v5034
          %v5067 = vunpack.c.l.b16 %v5035
          %v5068 = vunpack.c.l.b16 %v5036
          %v5069 = vunpack.c.l.b16 %v5037
          %v5070 = vunpack.c.l.b16 %v5038
          %v5071 = vpack.c.b16 %v5056, %v5055
          %v5072 = vpack.c.b16 %v5058, %v5057
          %v5073 = vpack.c.b16 %v5060, %v5059
          %v5074 = vpack.c.b16 %v5062, %v5061
          %v5075 = vpack.c.b16 %v5064, %v5063
          %v5076 = vpack.c.b16 %v5066, %v5065
          %v5077 = vpack.c.b16 %v5068, %v5067
          %v5078 = vpack.c.b16 %v5070, %v5069
          %5087 = vmatpush.bf16.msra.mxu0 %v5078
          %5088 = vmatpush.bf16.msra.mxu0 %v5077
          %5089 = vmatpush.bf16.msra.mxu0 %v5076
          %5090 = vmatpush.bf16.msra.mxu0 %v5075
          %5091 = vmatpush.bf16.msra.mxu0 %v5074
          %5092 = vmatpush.bf16.msra.mxu0 %v5073
          %5093 = vmatpush.bf16.msra.mxu0 %v5072
          %5094 = vmatpush.bf16.msra.mxu0 %v5071
          %5095 = vmatmul.bf16.gmra.mxu0 %v5022
          %v5096 = vpop.f32.mrf.mxu0
          %v5097 = vadd.f32 0.0, %v5096
          %v5098 = vpop.f32.mrf.mxu0
          %5099 = vdwg.mxu0
          %v5100 = vmax.f32 %v5097, 0.0
          %v5101 = vld [vmem:[%s4] sm:$0xff]
          %v5102 = vld [vmem:[%s4 + $0x8] sm:$0xff]
          %v5103 = vld [vmem:[%s4 + $0x10] sm:$0xff]
          %v5104 = vld [vmem:[%s4 + $0x18] sm:$0xff]
          %v5105 = vld [vmem:[%s4 + $0x20] sm:$0xff]
          %v5106 = vld [vmem:[%s4 + $0x28] sm:$0xff]
          %v5107 = vld [vmem:[%s4 + $0x30] sm:$0xff]
          %v5108 = vld [vmem:[%s4 + $0x38] sm:$0xff]
          %v5109 = vld [vmem:[%s4 + $0x40] sm:$0xff]
          %v5110 = vld [vmem:[%s4 + $0x48] sm:$0xff]
          %v5111 = vld [vmem:[%s4 + $0x50] sm:$0xff]
          %v5112 = vld [vmem:[%s4 + $0x58] sm:$0xff]
          %v5113 = vld [vmem:[%s4 + $0x60] sm:$0xf]
          %vm5114 = vcmask 818176
          %v5116 = vsel %vm5114, %v5100, 0
          %v5119 = vsel %vm4271, %v5113, 0
          %5121 = vmatpush.msra.mxu0 0.0
          %5122 = vmatpush.msra.mxu0 0.0
          %5123 = vmatpush.msra.mxu0 0.0
          %5124 = vmatpush.msra.mxu0 %v5119
          %5125 = vmatpush.msra.mxu0 %v5112
          %5126 = vmatpush.msra.mxu0 %v5111
          %5127 = vmatpush.msra.mxu0 %v5110
          %5128 = vmatpush.msra.mxu0 %v5109
          %5129 = vmatpush.msra.mxu0 %v5108
          %5130 = vmatpush.msra.mxu0 %v5107
          %5131 = vmatpush.msra.mxu0 %v5106
          %5132 = vmatpush.msra.mxu0 %v5105
          %5133 = vmatpush.msra.mxu0 %v5104
          %5134 = vmatpush.msra.mxu0 %v5103
          %5135 = vmatpush.msra.mxu0 %v5102
          %5136 = vmatpush.msra.mxu0 %v5101
          %5137 = vmatmul.f32.gmra.mxu0 %v5116
          %v5138 = vpop.f32.mrf.mxu0
          %v5139 = vadd.f32 0.0, %v5138
          %5140 = vdwg.mxu0
          %vm5141 = vcmask 74752
          %5142 = vst.msk [vmem:[#allocation8] sm:$0x3] %vm5141, %v5139
        $region56: #{ann_net_forward_streaming.5} parent=39 // pred_fallthru
          _
        // Predicated region
        $region57: #{ann_net_forward_streaming.5} parent=39 // pred_check
          %p5143 = pneg %p149
        $region58: #{ann_net_forward_streaming.5} parent=39 // pred_check_branch
          %5145 = sbr.rel (%p5143) target = $region60
        $region59: #{ann_net_forward_streaming.5} parent=39 // pred_region
          %5147 = vsyncadd [#allocation5], 0
          %s5149 = sshll.u32 [#allocation8], 4
          %s5150 = int_to_ptr.vmem [resolvable:$true] %s5149
          %s5151 = sshll.u32 %s5, 4
          %s5152 = int_to_ptr.hbm [resolvable:$true] %s5151
          %5154 = dma.vmem_to_hbm [thread:$0]  %s5150, 32, %s5152, [#allocation5]
        $region60: #{ann_net_forward_streaming.5} parent=39 // pred_fallthru
          _
        // Predicated region
        $region61: #{ann_net_forward_streaming.5} parent=39 // pred_check
          %p5155 = pneg %p149
        $region62: #{ann_net_forward_streaming.5} parent=39 // pred_check_branch
          %5157 = sbr.rel (%p5155) target = $region64
        $region63: #{ann_net_forward_streaming.5} parent=39 // pred_region
          %5159 = dma.done [#allocation5], 32
        $region64: #{ann_net_forward_streaming.5} parent=39 // pred_fallthru
          _
      $region40: #{ann_net_forward_streaming.5} parent=5 // pred_fallthru
        _
      %p5160 = scmp.le.s32.totalorder 2, %s16
      // Predicated region
      $region65: #{ann_net_forward_streaming.5} parent=5 // pred_check
        %p5161 = pneg %p5160
      $region66: #{ann_net_forward_streaming.5} parent=5 // pred_check_branch
        %5163 = sbr.rel (%p5161) target = $region68
      $region67: #{ann_net_forward_streaming.5} parent=5 // pred_region
        %s5164 = ssub.s32 %s16, 2
      $region68: #{ann_net_forward_streaming.5} parent=5 // pred_fallthru
        _
    $region6: #{ann_net_forward_streaming.5} parent=1 // loop_footer
      %s20 = sadd.s32 1, %s16
    $region7: #{ann_net_forward_streaming.5} parent=1 // loop_footer_branch
      %15 = sbr.rel target = $region3
    $region8: #{ann_net_forward_streaming.5} parent=1 // loop_exit
      _
    %5165 = vsyncpa [#allocation4], 1
    %s5166 = scalar_lea.sflag [#allocation4], 1
    %5167 = vsyncpa %s5166, 1
    %5168 = vsyncpa [#allocation7], 1
    %5169 = vsyncpa [#allocation5], 1
    %s5170 = scalar_lea.sflag [#allocation5], 1
    %5171 = vsyncpa %s5170, 1

</llo_original>
